<compile_context>
chip_gen: v5e
topology: v5e:2x2
jax: 0.10.0
libtpu: 0.0.40
codegen_flags: <defaults>
</compile_context>

<pallas_src>
import functools

import jax
import jax.numpy as jnp
from jax import lax
from jax.experimental import pallas as pl
from jax.experimental.pallas import tpu as pltpu

EPS = 1e-5
_LANE = 128
_VMEM_LIMIT = 48 * 1024 * 1024


def _round_up(a, b):
    return (a + b - 1) // b * b


def _cparams(*sem):
    return pltpu.CompilerParams(dimension_semantics=sem,
                                vmem_limit_bytes=_VMEM_LIMIT)


# ---------------------------------------------------------------------------
# Kernel 1: conv1 (1x1 == matmul) + per-(sample, channel) sum / sum-of-squares
# ---------------------------------------------------------------------------
def _conv1_stats_kernel(x_ref, w_ref, t_ref, ssum_ref, ssq_ref):
    j = pl.program_id(1)
    t = jnp.dot(x_ref[0].astype(jnp.bfloat16), w_ref[...],
                preferred_element_type=jnp.float32)           # (TR, PP) f32
    t_ref[0] = t.astype(t_ref.dtype)

    @pl.when(j == 0)
    def _init():
        ssum_ref[...] = jnp.zeros_like(ssum_ref)
        ssq_ref[...] = jnp.zeros_like(ssq_ref)

    # Zero-padded rows (spatial ring / row padding) contribute exactly 0, so no
    # mask is needed here; the wrapper divides by the true H*W count.
    ssum_ref[0] += jnp.sum(t, axis=0, keepdims=True)
    ssq_ref[0] += jnp.sum(t * t, axis=0, keepdims=True)


# ---------------------------------------------------------------------------
# Kernel 2: norm1 + ReLU + 3x3 conv as 9 shifted matmuls + BN2 partial stats
# ---------------------------------------------------------------------------
def _conv2_3x3_stats_kernel(t1_ref, sc_ref, sh_ref, w2_ref, m_ref,
                            t2_ref, ssum_ref, ssq_ref,
                            hbuf_ref, acc_ref, *, padr, wp):
    rpp = t1_ref.shape[1]
    m = m_ref[...]                                            # (Rpp, 1) interior mask
    h = jnp.maximum(t1_ref[0].astype(jnp.float32) * sc_ref[0] + sh_ref[0], 0.0)
    h = h * m                                                 # zero the conv padding ring

    # Stage the padded plane into VMEM scratch with aligned zero guard strips so
    # all 9 shifted windows are simple in-bounds row slices.
    zeros_strip = jnp.zeros((padr, hbuf_ref.shape[1]), hbuf_ref.dtype)
    hbuf_ref[pl.ds(0, padr), :] = zeros_strip
    hbuf_ref[pl.ds(padr + rpp, padr), :] = zeros_strip
    hbuf_ref[pl.ds(padr, rpp), :] = h.astype(hbuf_ref.dtype)

    acc_ref[...] = jnp.zeros_like(acc_ref)
    for tap in range(9):                                      # static unroll
        ky, kx = tap // 3, tap % 3
        off = padr + (ky - 1) * wp + (kx - 1)
        acc_ref[...] += jnp.dot(hbuf_ref[pl.ds(off, rpp), :], w2_ref[tap],
                                preferred_element_type=jnp.float32)

    acc = acc_ref[...]
    t2_ref[0] = acc.astype(t2_ref.dtype)
    am = acc * m                                              # only real positions count
    ssum_ref[0] = jnp.sum(am, axis=0, keepdims=True)
    ssq_ref[0] = jnp.sum(acc * am, axis=0, keepdims=True)


# ---------------------------------------------------------------------------
# Kernel 3: norm2 + ReLU + conv3 (1x1 == matmul) + BN3 partial stats
# ---------------------------------------------------------------------------
def _conv3_stats_kernel(t2_ref, sc_ref, sh_ref, w_ref, m_ref,
                        t3_ref, ssum_ref, ssq_ref):
    j = pl.program_id(1)
    h = jnp.maximum(t2_ref[0].astype(jnp.float32) * sc_ref[0] + sh_ref[0], 0.0)
    t = jnp.dot(h.astype(jnp.bfloat16), w_ref[...],
                preferred_element_type=jnp.float32)           # (TR, CP)
    t3_ref[0] = t.astype(t3_ref.dtype)

    @pl.when(j == 0)
    def _init():
        ssum_ref[...] = jnp.zeros_like(ssum_ref)
        ssq_ref[...] = jnp.zeros_like(ssq_ref)

    tm = t * m_ref[...]
    ssum_ref[0] += jnp.sum(tm, axis=0, keepdims=True)
    ssq_ref[0] += jnp.sum(t * tm, axis=0, keepdims=True)


# ---------------------------------------------------------------------------
# Kernel 4: norm3 + residual add + ReLU (output aliases the residual buffer)
# ---------------------------------------------------------------------------
def _bn3_residual_relu_kernel(t3_ref, r_ref, sc_ref, sh_ref, o_ref):
    y = t3_ref[0].astype(jnp.float32) * sc_ref[0] + sh_ref[0] + r_ref[0]
    o_ref[0] = jnp.maximum(y, 0.0)


# ---------------------------------------------------------------------------
# Wrapper
# ---------------------------------------------------------------------------
def _forward_impl(x_nchw, params, half):
    n, cin, hgt, wid = x_nchw.shape
    p = params["w1"].shape[1]
    c4 = params["w3"].shape[1]
    assert cin == c4, "downsample is None => inplanes must equal planes*4"

    hp, wp = hgt + 2, wid + 2                 # +1 zero ring for the 3x3 conv
    rp = hp * wp                              # padded plane rows
    tr = _round_up(rp, 8) if rp <= 512 else 512
    rpp = _round_up(rp, tr)                   # row-padded so tiles divide evenly
    nj = rpp // tr
    padr = _round_up(wp + 1, 8)               # aligned guard strip for K2 scratch
    cp = _round_up(cin, _LANE)                # lane-dense inplanes (== planes*4)
    pp = _round_up(p, _LANE)                  # lane-dense planes

    f32, bf16 = jnp.float32, jnp.bfloat16
    cnt = float(hgt * wid)

    # ---- layout prep: pad spatially (+ring), pad rows / channels, pad weights ---
    x_nhwc = jnp.transpose(x_nchw, (0, 2, 3, 1)).astype(f32)
    xp = jnp.pad(x_nhwc, ((0, 0), (1, 1), (1, 1), (0, cp - cin)))
    xp = jnp.pad(xp.reshape(n, rp, cp), ((0, 0), (0, rpp - rp), (0, 0)))  # (N,Rpp,CP) f32

    w1p = jnp.pad(params["w1"], ((0, cp - cin), (0, pp - p))).astype(bf16)
    w2p = jnp.pad(params["w2"].reshape(9, p, p),
                  ((0, 0), (0, pp - p), (0, pp - p))).astype(bf16)        # (9,PP,PP)
    w3p = jnp.pad(params["w3"], ((0, pp - p), (0, cp - c4))).astype(bf16)

    padv = lambda v, k: jnp.pad(v.astype(f32), (0, k - v.shape[0]))
    g1 = padv(jnp.concatenate([params["in_g"], params["bn1_g"]]), pp)
    b1 = padv(jnp.concatenate([params["in_b"], params["bn1_b"]]), pp)
    g2, b2 = padv(params["bn2_g"], pp), padv(params["bn2_b"], pp)
    g3, b3 = padv(params["bn3_g"], cp), padv(params["bn3_b"], cp)

    rr = jnp.arange(rpp)
    mh, mw = rr // wp, rr % wp
    mask = (((mh >= 1) & (mh <= hgt) & (mw >= 1) & (mw <= wid))
            .astype(f32).reshape(rpp, 1))      # 1.0 on real (h, w) positions

    # ---- stage 1: conv1 + per-(sample, channel) sum / sumsq ------------------
    t1, s1_sum, s1_sq = pl.pallas_call(
        _conv1_stats_kernel,
        grid=(n, nj),
        in_specs=[pl.BlockSpec((1, tr, cp), lambda i, j: (i, j, 0)),
                  pl.BlockSpec((cp, pp), lambda i, j: (0, 0))],
        out_specs=[pl.BlockSpec((1, tr, pp), lambda i, j: (i, j, 0)),
                   pl.BlockSpec((1, 1, pp), lambda i, j: (i, 0, 0)),
                   pl.BlockSpec((1, 1, pp), lambda i, j: (i, 0, 0))],
        out_shape=[jax.ShapeDtypeStruct((n, rpp, pp), bf16),
                   jax.ShapeDtypeStruct((n, 1, pp), f32),
                   jax.ShapeDtypeStruct((n, 1, pp), f32)],
        compiler_params=_cparams("parallel", "arbitrary"),
    )(xp, w1p)

    # IBN-a: instance-norm stats for channels < half, batch-norm for the rest.
    mean_in = s1_sum[:, 0] / cnt                                    # (N, PP)
    var_in = jnp.maximum(s1_sq[:, 0] / cnt - mean_in ** 2, 0.0)
    mean_bn = jnp.sum(s1_sum[:, 0], axis=0) / (n * cnt)             # (PP,)
    var_bn = jnp.maximum(jnp.sum(s1_sq[:, 0], axis=0) / (n * cnt) - mean_bn ** 2, 0.0)
    is_in = jnp.arange(pp) < half
    mean1 = jnp.where(is_in, mean_in, mean_bn)
    var1 = jnp.where(is_in, var_in, var_bn)
    scale1 = g1 * lax.rsqrt(var1 + EPS)
    shift1 = b1 - mean1 * scale1
    scale1, shift1 = scale1.reshape(n, 1, pp), shift1.reshape(n, 1, pp)

    # ---- stage 2: norm1 + ReLU + 3x3 conv (fused, no im2col) + BN2 stats -----
    t2, s2_sum, s2_sq = pl.pallas_call(
        functools.partial(_conv2_3x3_stats_kernel, padr=padr, wp=wp),
        grid=(n,),
        in_specs=[pl.BlockSpec((1, rpp, pp), lambda i: (i, 0, 0)),
                  pl.BlockSpec((1, 1, pp), lambda i: (i, 0, 0)),
                  pl.BlockSpec((1, 1, pp), lambda i: (i, 0, 0)),
                  pl.BlockSpec((9, pp, pp), lambda i: (0, 0, 0)),
                  pl.BlockSpec((rpp, 1), lambda i: (0, 0))],
        out_specs=[pl.BlockSpec((1, rpp, pp), lambda i: (i, 0, 0)),
                   pl.BlockSpec((1, 1, pp), lambda i: (i, 0, 0)),
                   pl.BlockSpec((1, 1, pp), lambda i: (i, 0, 0))],
        out_shape=[jax.ShapeDtypeStruct((n, rpp, pp), bf16),
                   jax.ShapeDtypeStruct((n, 1, pp), f32),
                   jax.ShapeDtypeStruct((n, 1, pp), f32)],
        scratch_shapes=[pltpu.VMEM((rpp + 2 * padr, pp), bf16),
                        pltpu.VMEM((rpp, pp), f32)],
        compiler_params=_cparams("parallel"),
    )(t1, scale1, shift1, w2p, mask)

    m2 = jnp.sum(s2_sum[:, 0], axis=0) / (n * cnt)
    v2 = jnp.maximum(jnp.sum(s2_sq[:, 0], axis=0) / (n * cnt) - m2 ** 2, 0.0)
    sc2 = g2 * lax.rsqrt(v2 + EPS)
    scale2, shift2 = sc2.reshape(1, 1, pp), (b2 - m2 * sc2).reshape(1, 1, pp)

    # ---- stage 3: norm2 + ReLU + conv3 + BN3 stats ---------------------------
    t3, s3_sum, s3_sq = pl.pallas_call(
        _conv3_stats_kernel,
        grid=(n, nj),
        in_specs=[pl.BlockSpec((1, tr, pp), lambda i, j: (i, j, 0)),
                  pl.BlockSpec((1, 1, pp), lambda i, j: (0, 0, 0)),
                  pl.BlockSpec((1, 1, pp), lambda i, j: (0, 0, 0)),
                  pl.BlockSpec((pp, cp), lambda i, j: (0, 0)),
                  pl.BlockSpec((tr, 1), lambda i, j: (j, 0))],
        out_specs=[pl.BlockSpec((1, tr, cp), lambda i, j: (i, j, 0)),
                   pl.BlockSpec((1, 1, cp), lambda i, j: (i, 0, 0)),
                   pl.BlockSpec((1, 1, cp), lambda i, j: (i, 0, 0))],
        out_shape=[jax.ShapeDtypeStruct((n, rpp, cp), bf16),
                   jax.ShapeDtypeStruct((n, 1, cp), f32),
                   jax.ShapeDtypeStruct((n, 1, cp), f32)],
        compiler_params=_cparams("parallel", "arbitrary"),
    )(t2, scale2, shift2, w3p, mask)

    m3 = jnp.sum(s3_sum[:, 0], axis=0) / (n * cnt)
    v3 = jnp.maximum(jnp.sum(s3_sq[:, 0], axis=0) / (n * cnt) - m3 ** 2, 0.0)
    sc3 = g3 * lax.rsqrt(v3 + EPS)
    scale3, shift3 = sc3.reshape(1, 1, cp), (b3 - m3 * sc3).reshape(1, 1, cp)

    # ---- stage 4: norm3 + residual + ReLU (output aliases residual buffer) ---
    out_p = pl.pallas_call(
        _bn3_residual_relu_kernel,
        grid=(n, nj),
        in_specs=[pl.BlockSpec((1, tr, cp), lambda i, j: (i, j, 0)),
                  pl.BlockSpec((1, tr, cp), lambda i, j: (i, j, 0)),
                  pl.BlockSpec((1, 1, cp), lambda i, j: (0, 0, 0)),
                  pl.BlockSpec((1, 1, cp), lambda i, j: (0, 0, 0))],
        out_specs=pl.BlockSpec((1, tr, cp), lambda i, j: (i, j, 0)),
        out_shape=jax.ShapeDtypeStruct((n, rpp, cp), f32),
        input_output_aliases={1: 0},
        compiler_params=_cparams("parallel", "parallel"),
    )(t3, xp, scale3, shift3)

    # Drop row/channel padding, extract the spatial interior, back to NCHW.
    out = out_p[:, :rp, :c4].reshape(n, hp, wp, c4)[:, 1:hgt + 1, 1:wid + 1, :]
    return jnp.transpose(out, (0, 3, 1, 2))


bottleneck_ibn_forward = jax.jit(_forward_impl, static_argnames=("half",))


# ---------------------------------------------------------------------------
# Pure-JAX reference (PyTorch training-mode semantics). Matmul/conv operands
# and the stored inter-stage activations are quantized to bf16 at the same
# points as the Pallas pipeline; normalization math stays in f32.
# ---------------------------------------------------------------------------
def reference_forward(x_nchw, params, half):
    f32 = jnp.float32
    hi = lax.Precision.HIGHEST
    q = lambda a: a.astype(jnp.bfloat16).astype(f32)

    x = jnp.transpose(x_nchw, (0, 2, 3, 1)).astype(f32)          # NHWC
    t1 = jnp.einsum("nhwc,cd->nhwd", q(x), q(params["w1"]), precision=hi)
    g1 = jnp.concatenate([params["in_g"], params["bn1_g"]])
    b1 = jnp.concatenate([params["in_b"], params["bn1_b"]])
    m_in = jnp.mean(t1, axis=(1, 2), keepdims=True)
    v_in = jnp.mean(t1 * t1, axis=(1, 2), keepdims=True) - m_in ** 2
    m_bn = jnp.mean(t1, axis=(0, 1, 2), keepdims=True)
    v_bn = jnp.mean(t1 * t1, axis=(0, 1, 2), keepdims=True) - m_bn ** 2
    is_in = jnp.arange(t1.shape[-1]) < half
    mean1 = jnp.where(is_in, m_in, m_bn)
    var1 = jnp.where(is_in, v_in, v_bn)
    h1 = jnp.maximum((q(t1) - mean1) * lax.rsqrt(var1 + EPS) * g1 + b1, 0.0)

    t2 = lax.conv_general_dilated(q(h1), q(params["w2"]), (1, 1), ((1, 1), (1, 1)),
                                  dimension_numbers=("NHWC", "HWIO", "NHWC"),
                                  precision=hi)
    m2 = jnp.mean(t2, axis=(0, 1, 2), keepdims=True)
    v2 = jnp.mean(t2 * t2, axis=(0, 1, 2), keepdims=True) - m2 ** 2
    h2 = jnp.maximum((q(t2) - m2) * lax.rsqrt(v2 + EPS) * params["bn2_g"]
                     + params["bn2_b"], 0.0)

    t3 = jnp.einsum("nhwc,cd->nhwd", q(h2), q(params["w3"]), precision=hi)
    m3 = jnp.mean(t3, axis=(0, 1, 2), keepdims=True)
    v3 = jnp.mean(t3 * t3, axis=(0, 1, 2), keepdims=True) - m3 ** 2
    y = (q(t3) - m3) * lax.rsqrt(v3 + EPS) * params["bn3_g"] + params["bn3_b"] + x
    return jnp.transpose(jnp.maximum(y, 0.0), (0, 3, 1, 2))


# ---------------------------------------------------------------------------
if __name__ == "__main__":
    N, planes, H, W = 2, 4, 16, 16
    expansion = 4
    inplanes = planes * expansion          # 16, so the residual add works w/o downsample
    half = int(planes * 0.5)               # IBN ratio 0.5 -> 2 instance-norm channels

    key = jax.random.PRNGKey(0)
    ks = jax.random.split(key, 12)
    params = {
        "w1": 0.3 * jax.random.normal(ks[0], (inplanes, planes), jnp.float32),
        "w2": 0.2 * jax.random.normal(ks[1], (3, 3, planes, planes), jnp.float32),
        "w3": 0.3 * jax.random.normal(ks[2], (planes, planes * expansion), jnp.float32),
        "in_g": 1.0 + 0.1 * jax.random.normal(ks[3], (half,), jnp.float32),
        "in_b": 0.1 * jax.random.normal(ks[4], (half,), jnp.float32),
        "bn1_g": 1.0 + 0.1 * jax.random.normal(ks[5], (planes - half,), jnp.float32),
        "bn1_b": 0.1 * jax.random.normal(ks[6], (planes - half,), jnp.float32),
        "bn2_g": 1.0 + 0.1 * jax.random.normal(ks[7], (planes,), jnp.float32),
        "bn2_b": 0.1 * jax.random.normal(ks[8], (planes,), jnp.float32),
        "bn3_g": 1.0 + 0.1 * jax.random.normal(ks[9], (planes * expansion,), jnp.float32),
        "bn3_b": 0.1 * jax.random.normal(ks[10], (planes * expansion,), jnp.float32),
    }
    x = jax.random.normal(ks[11], (N, inplanes, H, W), jnp.float32)

    out = jax.block_until_ready(bottleneck_ibn_forward(x, params, half=half))
    assert out.shape == (N, planes * expansion, H, W)

    ref = reference_forward(x, params, half)
    max_err = float(jnp.max(jnp.abs(out - ref)))
    if max_err > 3e-2:
        raise SystemExit(f"mismatch vs reference: max abs err = {max_err}")

    print("KERNEL_OK")
</pallas_src>

<mosaic_0001>
module attributes {stable_mosaic.version = 11 : i64} {
  func.func @_conv1_stats_kernel(%arg0: i32, %arg1: i32, %arg2: memref<1x328x128xf32, #tpu.memory_space<vmem>>, %arg3: memref<128x128xbf16, #tpu.memory_space<vmem>>, %arg4: memref<1x328x128xbf16, #tpu.memory_space<vmem>>, %arg5: memref<1x1x128xf32, #tpu.memory_space<vmem>>, %arg6: memref<1x1x128xf32, #tpu.memory_space<vmem>>) attributes {dimension_semantics = [#tpu.dimension_semantics<parallel>, #tpu.dimension_semantics<arbitrary>], iteration_bounds = array<i64: 2, 1>, scalar_prefetch = 0 : i64, scratch_operands = 0 : i64, tpu.core_type = #tpu.core_type<tc>, window_params = [{transform_indices = @transform_0, window_bounds = array<i64: 1, 328, 128>}, {pipeline_mode = #tpu.pipeline_mode<synchronous>, transform_indices = @transform_1, window_bounds = array<i64: 128, 128>}, {transform_indices = @transform_2, window_bounds = array<i64: 1, 328, 128>}, {transform_indices = @transform_3, window_bounds = array<i64: 1, 1, 128>}, {transform_indices = @transform_4, window_bounds = array<i64: 1, 1, 128>}]} {
    %c0 = arith.constant 0 : index
    %c0_0 = arith.constant 0 : index
    %c0_1 = arith.constant 0 : index
    %0 = vector.load %arg2[%c0, %c0_0, %c0_1] : memref<1x328x128xf32, #tpu.memory_space<vmem>>, vector<1x328x128xf32>
    %1 = vector.shape_cast %0 : vector<1x328x128xf32> to vector<328x128xf32>
    %2 = arith.truncf %1 : vector<328x128xf32> to vector<328x128xbf16>
    %c0_2 = arith.constant 0 : index
    %c0_3 = arith.constant 0 : index
    %3 = vector.load %arg3[%c0_2, %c0_3] : memref<128x128xbf16, #tpu.memory_space<vmem>>, vector<128x128xbf16>
    %cst = arith.constant dense<0.000000e+00> : vector<328x128xf32>
    %4 = tpu.matmul %2, %3, %cst {dimension_numbers = #tpu.dot_dimension_numbers<[1], [0], [0], [1], [0, 0, 1, 1], [], []>} : vector<328x128xbf16>, vector<128x128xbf16>, vector<328x128xf32> -> vector<328x128xf32>
    %5 = arith.truncf %4 : vector<328x128xf32> to vector<328x128xbf16>
    %c0_4 = arith.constant 0 : index
    %c0_5 = arith.constant 0 : index
    %c0_6 = arith.constant 0 : index
    %6 = vector.load %arg4[%c0_4, %c0_5, %c0_6] : memref<1x328x128xbf16, #tpu.memory_space<vmem>>, vector<1x328x128xbf16>
    %7 = vector.shape_cast %6 : vector<1x328x128xbf16> to vector<328x128xbf16>
    %8 = vector.shape_cast %5 : vector<328x128xbf16> to vector<1x328x128xbf16>
    tpu.vector_store %arg4[%c0_4, %c0_5, %c0_6], %8 {strides = array<i32>} : memref<1x328x128xbf16, #tpu.memory_space<vmem>>, vector<1x328x128xbf16>,
    %c0_i32 = arith.constant 0 : i32
    %9 = arith.cmpi eq, %arg1, %c0_i32 : i32
    %10 = arith.extui %9 : i1 to i32
    %c0_i32_7 = arith.constant 0 : i32
    %11 = arith.cmpi ne, %10, %c0_i32_7 : i32
    scf.if %11 {
      %cst_22 = arith.constant 0.000000e+00 : f32
      %29 = vector.broadcast %cst_22 : f32 to vector<1x1x128xf32>
      %c0_23 = arith.constant 0 : index
      %c0_24 = arith.constant 0 : index
      %c0_25 = arith.constant 0 : index
      %30 = vector.load %arg5[%c0_23, %c0_24, %c0_25] : memref<1x1x128xf32, #tpu.memory_space<vmem>>, vector<1x1x128xf32>
      tpu.vector_store %arg5[%c0_23, %c0_24, %c0_25], %29 {strides = array<i32>} : memref<1x1x128xf32, #tpu.memory_space<vmem>>, vector<1x1x128xf32>,
      %cst_26 = arith.constant 0.000000e+00 : f32
      %31 = vector.broadcast %cst_26 : f32 to vector<1x1x128xf32>
      %c0_27 = arith.constant 0 : index
      %c0_28 = arith.constant 0 : index
      %c0_29 = arith.constant 0 : index
      %32 = vector.load %arg6[%c0_27, %c0_28, %c0_29] : memref<1x1x128xf32, #tpu.memory_space<vmem>>, vector<1x1x128xf32>
      tpu.vector_store %arg6[%c0_27, %c0_28, %c0_29], %31 {strides = array<i32>} : memref<1x1x128xf32, #tpu.memory_space<vmem>>, vector<1x1x128xf32>,
    } else {
    }
    %c0_8 = arith.constant 0 : index
    %c0_9 = arith.constant 0 : index
    %c0_10 = arith.constant 0 : index
    %12 = vector.load %arg5[%c0_8, %c0_9, %c0_10] : memref<1x1x128xf32, #tpu.memory_space<vmem>>, vector<1x1x128xf32>
    %13 = vector.shape_cast %12 : vector<1x1x128xf32> to vector<1x128xf32>
    %cst_11 = arith.constant dense<0.000000e+00> : vector<128xf32>
    %14 = vector.multi_reduction <add>, %4, %cst_11 [0] : vector<328x128xf32> to vector<128xf32>
    %15 = vector.shape_cast %14 : vector<128xf32> to vector<1x128xf32>
    %16 = arith.addf %13, %15 : vector<1x128xf32>
    %c0_12 = arith.constant 0 : index
    %c0_13 = arith.constant 0 : index
    %c0_14 = arith.constant 0 : index
    %17 = vector.load %arg5[%c0_12, %c0_13, %c0_14] : memref<1x1x128xf32, #tpu.memory_space<vmem>>, vector<1x1x128xf32>
    %18 = vector.shape_cast %17 : vector<1x1x128xf32> to vector<1x128xf32>
    %19 = vector.shape_cast %16 : vector<1x128xf32> to vector<1x1x128xf32>
    tpu.vector_store %arg5[%c0_12, %c0_13, %c0_14], %19 {strides = array<i32>} : memref<1x1x128xf32, #tpu.memory_space<vmem>>, vector<1x1x128xf32>,
    %c0_15 = arith.constant 0 : index
    %c0_16 = arith.constant 0 : index
    %c0_17 = arith.constant 0 : index
    %20 = vector.load %arg6[%c0_15, %c0_16, %c0_17] : memref<1x1x128xf32, #tpu.memory_space<vmem>>, vector<1x1x128xf32>
    %21 = vector.shape_cast %20 : vector<1x1x128xf32> to vector<1x128xf32>
    %22 = arith.mulf %4, %4 : vector<328x128xf32>
    %cst_18 = arith.constant dense<0.000000e+00> : vector<128xf32>
    %23 = vector.multi_reduction <add>, %22, %cst_18 [0] : vector<328x128xf32> to vector<128xf32>
    %24 = vector.shape_cast %23 : vector<128xf32> to vector<1x128xf32>
    %25 = arith.addf %21, %24 : vector<1x128xf32>
    %c0_19 = arith.constant 0 : index
    %c0_20 = arith.constant 0 : index
    %c0_21 = arith.constant 0 : index
    %26 = vector.load %arg6[%c0_19, %c0_20, %c0_21] : memref<1x1x128xf32, #tpu.memory_space<vmem>>, vector<1x1x128xf32>
    %27 = vector.shape_cast %26 : vector<1x1x128xf32> to vector<1x128xf32>
    %28 = vector.shape_cast %25 : vector<1x128xf32> to vector<1x1x128xf32>
    tpu.vector_store %arg6[%c0_19, %c0_20, %c0_21], %28 {strides = array<i32>} : memref<1x1x128xf32, #tpu.memory_space<vmem>>, vector<1x1x128xf32>,
    return
  }
  func.func @transform_0(%arg0: i32, %arg1: i32) -> (i32, i32, i32) {
    %c0_i32 = arith.constant 0 : i32
    %c0_i32_0 = arith.constant 0 : i32
    return %arg0, %arg1, %c0_i32 : i32, i32, i32
  }
  func.func @transform_1(%arg0: i32, %arg1: i32) -> (i32, i32) {
    %c0_i32 = arith.constant 0 : i32
    %c0_i32_0 = arith.constant 0 : i32
    %c0_i32_1 = arith.constant 0 : i32
    return %c0_i32, %c0_i32_0 : i32, i32
  }
  func.func @transform_2(%arg0: i32, %arg1: i32) -> (i32, i32, i32) {
    %c0_i32 = arith.constant 0 : i32
    %c0_i32_0 = arith.constant 0 : i32
    return %arg0, %arg1, %c0_i32 : i32, i32, i32
  }
  func.func @transform_3(%arg0: i32, %arg1: i32) -> (i32, i32, i32) {
    %c0_i32 = arith.constant 0 : i32
    %c0_i32_0 = arith.constant 0 : i32
    %c0_i32_1 = arith.constant 0 : i32
    return %arg0, %c0_i32, %c0_i32_0 : i32, i32, i32
  }
  func.func @transform_4(%arg0: i32, %arg1: i32) -> (i32, i32, i32) {
    %c0_i32 = arith.constant 0 : i32
    %c0_i32_0 = arith.constant 0 : i32
    %c0_i32_1 = arith.constant 0 : i32
    return %arg0, %c0_i32, %c0_i32_0 : i32, i32, i32
  }
}

module attributes {stable_mosaic.version = 11 : i64} {
  func.func @_conv2_3x3_stats_kernel(%arg0: i32, %arg1: memref<1x328x128xbf16, #tpu.memory_space<vmem>>, %arg2: memref<1x1x128xf32, #tpu.memory_space<vmem>>, %arg3: memref<1x1x128xf32, #tpu.memory_space<vmem>>, %arg4: memref<9x128x128xbf16, #tpu.memory_space<vmem>>, %arg5: memref<328x1xf32, #tpu.memory_space<vmem>>, %arg6: memref<1x328x128xbf16, #tpu.memory_space<vmem>>, %arg7: memref<1x1x128xf32, #tpu.memory_space<vmem>>, %arg8: memref<1x1x128xf32, #tpu.memory_space<vmem>>, %arg9: memref<376x128xbf16, #tpu.memory_space<vmem>>, %arg10: memref<328x128xf32, #tpu.memory_space<vmem>>) attributes {dimension_semantics = [#tpu.dimension_semantics<parallel>], iteration_bounds = array<i64: 2>, scalar_prefetch = 0 : i64, scratch_operands = 2 : i64, tpu.core_type = #tpu.core_type<tc>, window_params = [{transform_indices = @transform_0, window_bounds = array<i64: 1, 328, 128>}, {transform_indices = @transform_1, window_bounds = array<i64: 1, 1, 128>}, {transform_indices = @transform_2, window_bounds = array<i64: 1, 1, 128>}, {pipeline_mode = #tpu.pipeline_mode<synchronous>, transform_indices = @transform_3, window_bounds = array<i64: 9, 128, 128>}, {pipeline_mode = #tpu.pipeline_mode<synchronous>, transform_indices = @transform_4, window_bounds = array<i64: 328, 1>}, {transform_indices = @transform_5, window_bounds = array<i64: 1, 328, 128>}, {transform_indices = @transform_6, window_bounds = array<i64: 1, 1, 128>}, {transform_indices = @transform_7, window_bounds = array<i64: 1, 1, 128>}]} {
    %c0 = arith.constant 0 : index
    %c0_0 = arith.constant 0 : index
    %0 = vector.load %arg5[%c0, %c0_0] : memref<328x1xf32, #tpu.memory_space<vmem>>, vector<328x1xf32>
    %c0_1 = arith.constant 0 : index
    %c0_2 = arith.constant 0 : index
    %c0_3 = arith.constant 0 : index
    %1 = vector.load %arg1[%c0_1, %c0_2, %c0_3] : memref<1x328x128xbf16, #tpu.memory_space<vmem>>, vector<1x328x128xbf16>
    %2 = vector.shape_cast %1 : vector<1x328x128xbf16> to vector<328x128xbf16>
    %3 = arith.extf %2 : vector<328x128xbf16> to vector<328x128xf32>
    %c0_4 = arith.constant 0 : index
    %c0_5 = arith.constant 0 : index
    %c0_6 = arith.constant 0 : index
    %4 = vector.load %arg2[%c0_4, %c0_5, %c0_6] : memref<1x1x128xf32, #tpu.memory_space<vmem>>, vector<1x1x128xf32>
    %5 = vector.shape_cast %4 : vector<1x1x128xf32> to vector<1x128xf32>
    %6 = vector.broadcast %5 : vector<1x128xf32> to vector<328x128xf32>
    %7 = arith.mulf %3, %6 : vector<328x128xf32>
    %c0_7 = arith.constant 0 : index
    %c0_8 = arith.constant 0 : index
    %c0_9 = arith.constant 0 : index
    %8 = vector.load %arg3[%c0_7, %c0_8, %c0_9] : memref<1x1x128xf32, #tpu.memory_space<vmem>>, vector<1x1x128xf32>
    %9 = vector.shape_cast %8 : vector<1x1x128xf32> to vector<1x128xf32>
    %10 = vector.broadcast %9 : vector<1x128xf32> to vector<328x128xf32>
    %11 = arith.addf %7, %10 : vector<328x128xf32>
    %cst = arith.constant 0.000000e+00 : f32
    %12 = vector.broadcast %cst : f32 to vector<328x128xf32>
    %13 = arith.maximumf %11, %12 : vector<328x128xf32>
    %14 = vector.broadcast %0 : vector<328x1xf32> to vector<328x128xf32>
    %15 = arith.mulf %13, %14 : vector<328x128xf32>
    %cst_10 = arith.constant 0.000000e+00 : bf16
    %16 = vector.broadcast %cst_10 : bf16 to vector<24x128xbf16>
    %c0_11 = arith.constant 0 : index
    %c0_12 = arith.constant 0 : index
    %17 = vector.load %arg9[%c0_11, %c0_12] : memref<376x128xbf16, #tpu.memory_space<vmem>>, vector<24x128xbf16>
    tpu.vector_store %arg9[%c0_11, %c0_12], %16 {strides = array<i32>} : memref<376x128xbf16, #tpu.memory_space<vmem>>, vector<24x128xbf16>,
    %c352 = arith.constant 352 : index
    %c0_13 = arith.constant 0 : index
    %18 = vector.load %arg9[%c352, %c0_13] : memref<376x128xbf16, #tpu.memory_space<vmem>>, vector<24x128xbf16>
    tpu.vector_store %arg9[%c352, %c0_13], %16 {strides = array<i32>} : memref<376x128xbf16, #tpu.memory_space<vmem>>, vector<24x128xbf16>,
    %19 = arith.truncf %15 : vector<328x128xf32> to vector<328x128xbf16>
    %c24 = arith.constant 24 : index
    %c0_14 = arith.constant 0 : index
    %20 = vector.load %arg9[%c24, %c0_14] : memref<376x128xbf16, #tpu.memory_space<vmem>>, vector<328x128xbf16>
    tpu.vector_store %arg9[%c24, %c0_14], %19 {strides = array<i32>} : memref<376x128xbf16, #tpu.memory_space<vmem>>, vector<328x128xbf16>,
    %cst_15 = arith.constant 0.000000e+00 : f32
    %21 = vector.broadcast %cst_15 : f32 to vector<328x128xf32>
    %c0_16 = arith.constant 0 : index
    %c0_17 = arith.constant 0 : index
    %22 = vector.load %arg10[%c0_16, %c0_17] : memref<328x128xf32, #tpu.memory_space<vmem>>, vector<328x128xf32>
    tpu.vector_store %arg10[%c0_16, %c0_17], %21 {strides = array<i32>} : memref<328x128xf32, #tpu.memory_space<vmem>>, vector<328x128xf32>,
    %c0_18 = arith.constant 0 : index
    %c0_19 = arith.constant 0 : index
    %23 = vector.load %arg10[%c0_18, %c0_19] : memref<328x128xf32, #tpu.memory_space<vmem>>, vector<328x128xf32>
    %c5 = arith.constant 5 : index
    %c0_20 = arith.constant 0 : index
    %24 = vector.load %arg9[%c5, %c0_20] : memref<376x128xbf16, #tpu.memory_space<vmem>>, vector<328x128xbf16>
    %c0_21 = arith.constant 0 : index
    %c0_22 = arith.constant 0 : index
    %c0_23 = arith.constant 0 : index
    %25 = vector.load %arg4[%c0_21, %c0_22, %c0_23] : memref<9x128x128xbf16, #tpu.memory_space<vmem>>, vector<1x128x128xbf16>
    %26 = vector.shape_cast %25 : vector<1x128x128xbf16> to vector<128x128xbf16>
    %cst_24 = arith.constant dense<0.000000e+00> : vector<328x128xf32>
    %27 = tpu.matmul %24, %26, %cst_24 {dimension_numbers = #tpu.dot_dimension_numbers<[1], [0], [0], [1], [0, 0, 1, 1], [], []>} : vector<328x128xbf16>, vector<128x128xbf16>, vector<328x128xf32> -> vector<328x128xf32>
    %28 = arith.addf %23, %27 : vector<328x128xf32>
    %c0_25 = arith.constant 0 : index
    %c0_26 = arith.constant 0 : index
    %29 = vector.load %arg10[%c0_25, %c0_26] : memref<328x128xf32, #tpu.memory_space<vmem>>, vector<328x128xf32>
    tpu.vector_store %arg10[%c0_25, %c0_26], %28 {strides = array<i32>} : memref<328x128xf32, #tpu.memory_space<vmem>>, vector<328x128xf32>,
    %c0_27 = arith.constant 0 : index
    %c0_28 = arith.constant 0 : index
    %30 = vector.load %arg10[%c0_27, %c0_28] : memref<328x128xf32, #tpu.memory_space<vmem>>, vector<328x128xf32>
    %c6 = arith.constant 6 : index
    %c0_29 = arith.constant 0 : index
    %31 = vector.load %arg9[%c6, %c0_29] : memref<376x128xbf16, #tpu.memory_space<vmem>>, vector<328x128xbf16>
    %c1 = arith.constant 1 : index
    %c0_30 = arith.constant 0 : index
    %c0_31 = arith.constant 0 : index
    %32 = vector.load %arg4[%c1, %c0_30, %c0_31] : memref<9x128x128xbf16, #tpu.memory_space<vmem>>, vector<1x128x128xbf16>
    %33 = vector.shape_cast %32 : vector<1x128x128xbf16> to vector<128x128xbf16>
    %cst_32 = arith.constant dense<0.000000e+00> : vector<328x128xf32>
    %34 = tpu.matmul %31, %33, %cst_32 {dimension_numbers = #tpu.dot_dimension_numbers<[1], [0], [0], [1], [0, 0, 1, 1], [], []>} : vector<328x128xbf16>, vector<128x128xbf16>, vector<328x128xf32> -> vector<328x128xf32>
    %35 = arith.addf %30, %34 : vector<328x128xf32>
    %c0_33 = arith.constant 0 : index
    %c0_34 = arith.constant 0 : index
    %36 = vector.load %arg10[%c0_33, %c0_34] : memref<328x128xf32, #tpu.memory_space<vmem>>, vector<328x128xf32>
    tpu.vector_store %arg10[%c0_33, %c0_34], %35 {strides = array<i32>} : memref<328x128xf32, #tpu.memory_space<vmem>>, vector<328x128xf32>,
    %c0_35 = arith.constant 0 : index
    %c0_36 = arith.constant 0 : index
    %37 = vector.load %arg10[%c0_35, %c0_36] : memref<328x128xf32, #tpu.memory_space<vmem>>, vector<328x128xf32>
    %c7 = arith.constant 7 : index
    %c0_37 = arith.constant 0 : index
    %38 = vector.load %arg9[%c7, %c0_37] : memref<376x128xbf16, #tpu.memory_space<vmem>>, vector<328x128xbf16>
    %c2 = arith.constant 2 : index
    %c0_38 = arith.constant 0 : index
    %c0_39 = arith.constant 0 : index
    %39 = vector.load %arg4[%c2, %c0_38, %c0_39] : memref<9x128x128xbf16, #tpu.memory_space<vmem>>, vector<1x128x128xbf16>
    %40 = vector.shape_cast %39 : vector<1x128x128xbf16> to vector<128x128xbf16>
    %cst_40 = arith.constant dense<0.000000e+00> : vector<328x128xf32>
    %41 = tpu.matmul %38, %40, %cst_40 {dimension_numbers = #tpu.dot_dimension_numbers<[1], [0], [0], [1], [0, 0, 1, 1], [], []>} : vector<328x128xbf16>, vector<128x128xbf16>, vector<328x128xf32> -> vector<328x128xf32>
    %42 = arith.addf %37, %41 : vector<328x128xf32>
    %c0_41 = arith.constant 0 : index
    %c0_42 = arith.constant 0 : index
    %43 = vector.load %arg10[%c0_41, %c0_42] : memref<328x128xf32, #tpu.memory_space<vmem>>, vector<328x128xf32>
    tpu.vector_store %arg10[%c0_41, %c0_42], %42 {strides = array<i32>} : memref<328x128xf32, #tpu.memory_space<vmem>>, vector<328x128xf32>,
    %c0_43 = arith.constant 0 : index
    %c0_44 = arith.constant 0 : index
    %44 = vector.load %arg10[%c0_43, %c0_44] : memref<328x128xf32, #tpu.memory_space<vmem>>, vector<328x128xf32>
    %c23 = arith.constant 23 : index
    %c0_45 = arith.constant 0 : index
    %45 = vector.load %arg9[%c23, %c0_45] : memref<376x128xbf16, #tpu.memory_space<vmem>>, vector<328x128xbf16>
    %c3 = arith.constant 3 : index
    %c0_46 = arith.constant 0 : index
    %c0_47 = arith.constant 0 : index
    %46 = vector.load %arg4[%c3, %c0_46, %c0_47] : memref<9x128x128xbf16, #tpu.memory_space<vmem>>, vector<1x128x128xbf16>
    %47 = vector.shape_cast %46 : vector<1x128x128xbf16> to vector<128x128xbf16>
    %cst_48 = arith.constant dense<0.000000e+00> : vector<328x128xf32>
    %48 = tpu.matmul %45, %47, %cst_48 {dimension_numbers = #tpu.dot_dimension_numbers<[1], [0], [0], [1], [0, 0, 1, 1], [], []>} : vector<328x128xbf16>, vector<128x128xbf16>, vector<328x128xf32> -> vector<328x128xf32>
    %49 = arith.addf %44, %48 : vector<328x128xf32>
    %c0_49 = arith.constant 0 : index
    %c0_50 = arith.constant 0 : index
    %50 = vector.load %arg10[%c0_49, %c0_50] : memref<328x128xf32, #tpu.memory_space<vmem>>, vector<328x128xf32>
    tpu.vector_store %arg10[%c0_49, %c0_50], %49 {strides = array<i32>} : memref<328x128xf32, #tpu.memory_space<vmem>>, vector<328x128xf32>,
    %c0_51 = arith.constant 0 : index
    %c0_52 = arith.constant 0 : index
    %51 = vector.load %arg10[%c0_51, %c0_52] : memref<328x128xf32, #tpu.memory_space<vmem>>, vector<328x128xf32>
    %c24_53 = arith.constant 24 : index
    %c0_54 = arith.constant 0 : index
    %52 = vector.load %arg9[%c24_53, %c0_54] : memref<376x128xbf16, #tpu.memory_space<vmem>>, vector<328x128xbf16>
    %c4 = arith.constant 4 : index
    %c0_55 = arith.constant 0 : index
    %c0_56 = arith.constant 0 : index
    %53 = vector.load %arg4[%c4, %c0_55, %c0_56] : memref<9x128x128xbf16, #tpu.memory_space<vmem>>, vector<1x128x128xbf16>
    %54 = vector.shape_cast %53 : vector<1x128x128xbf16> to vector<128x128xbf16>
    %cst_57 = arith.constant dense<0.000000e+00> : vector<328x128xf32>
    %55 = tpu.matmul %52, %54, %cst_57 {dimension_numbers = #tpu.dot_dimension_numbers<[1], [0], [0], [1], [0, 0, 1, 1], [], []>} : vector<328x128xbf16>, vector<128x128xbf16>, vector<328x128xf32> -> vector<328x128xf32>
    %56 = arith.addf %51, %55 : vector<328x128xf32>
    %c0_58 = arith.constant 0 : index
    %c0_59 = arith.constant 0 : index
    %57 = vector.load %arg10[%c0_58, %c0_59] : memref<328x128xf32, #tpu.memory_space<vmem>>, vector<328x128xf32>
    tpu.vector_store %arg10[%c0_58, %c0_59], %56 {strides = array<i32>} : memref<328x128xf32, #tpu.memory_space<vmem>>, vector<328x128xf32>,
    %c0_60 = arith.constant 0 : index
    %c0_61 = arith.constant 0 : index
    %58 = vector.load %arg10[%c0_60, %c0_61] : memref<328x128xf32, #tpu.memory_space<vmem>>, vector<328x128xf32>
    %c25 = arith.constant 25 : index
    %c0_62 = arith.constant 0 : index
    %59 = vector.load %arg9[%c25, %c0_62] : memref<376x128xbf16, #tpu.memory_space<vmem>>, vector<328x128xbf16>
    %c5_63 = arith.constant 5 : index
    %c0_64 = arith.constant 0 : index
    %c0_65 = arith.constant 0 : index
    %60 = vector.load %arg4[%c5_63, %c0_64, %c0_65] : memref<9x128x128xbf16, #tpu.memory_space<vmem>>, vector<1x128x128xbf16>
    %61 = vector.shape_cast %60 : vector<1x128x128xbf16> to vector<128x128xbf16>
    %cst_66 = arith.constant dense<0.000000e+00> : vector<328x128xf32>
    %62 = tpu.matmul %59, %61, %cst_66 {dimension_numbers = #tpu.dot_dimension_numbers<[1], [0], [0], [1], [0, 0, 1, 1], [], []>} : vector<328x128xbf16>, vector<128x128xbf16>, vector<328x128xf32> -> vector<328x128xf32>
    %63 = arith.addf %58, %62 : vector<328x128xf32>
    %c0_67 = arith.constant 0 : index
    %c0_68 = arith.constant 0 : index
    %64 = vector.load %arg10[%c0_67, %c0_68] : memref<328x128xf32, #tpu.memory_space<vmem>>, vector<328x128xf32>
    tpu.vector_store %arg10[%c0_67, %c0_68], %63 {strides = array<i32>} : memref<328x128xf32, #tpu.memory_space<vmem>>, vector<328x128xf32>,
    %c0_69 = arith.constant 0 : index
    %c0_70 = arith.constant 0 : index
    %65 = vector.load %arg10[%c0_69, %c0_70] : memref<328x128xf32, #tpu.memory_space<vmem>>, vector<328x128xf32>
    %c41 = arith.constant 41 : index
    %c0_71 = arith.constant 0 : index
    %66 = vector.load %arg9[%c41, %c0_71] : memref<376x128xbf16, #tpu.memory_space<vmem>>, vector<328x128xbf16>
    %c6_72 = arith.constant 6 : index
    %c0_73 = arith.constant 0 : index
    %c0_74 = arith.constant 0 : index
    %67 = vector.load %arg4[%c6_72, %c0_73, %c0_74] : memref<9x128x128xbf16, #tpu.memory_space<vmem>>, vector<1x128x128xbf16>
    %68 = vector.shape_cast %67 : vector<1x128x128xbf16> to vector<128x128xbf16>
    %cst_75 = arith.constant dense<0.000000e+00> : vector<328x128xf32>
    %69 = tpu.matmul %66, %68, %cst_75 {dimension_numbers = #tpu.dot_dimension_numbers<[1], [0], [0], [1], [0, 0, 1, 1], [], []>} : vector<328x128xbf16>, vector<128x128xbf16>, vector<328x128xf32> -> vector<328x128xf32>
    %70 = arith.addf %65, %69 : vector<328x128xf32>
    %c0_76 = arith.constant 0 : index
    %c0_77 = arith.constant 0 : index
    %71 = vector.load %arg10[%c0_76, %c0_77] : memref<328x128xf32, #tpu.memory_space<vmem>>, vector<328x128xf32>
    tpu.vector_store %arg10[%c0_76, %c0_77], %70 {strides = array<i32>} : memref<328x128xf32, #tpu.memory_space<vmem>>, vector<328x128xf32>,
    %c0_78 = arith.constant 0 : index
    %c0_79 = arith.constant 0 : index
    %72 = vector.load %arg10[%c0_78, %c0_79] : memref<328x128xf32, #tpu.memory_space<vmem>>, vector<328x128xf32>
    %c42 = arith.constant 42 : index
    %c0_80 = arith.constant 0 : index
    %73 = vector.load %arg9[%c42, %c0_80] : memref<376x128xbf16, #tpu.memory_space<vmem>>, vector<328x128xbf16>
    %c7_81 = arith.constant 7 : index
    %c0_82 = arith.constant 0 : index
    %c0_83 = arith.constant 0 : index
    %74 = vector.load %arg4[%c7_81, %c0_82, %c0_83] : memref<9x128x128xbf16, #tpu.memory_space<vmem>>, vector<1x128x128xbf16>
    %75 = vector.shape_cast %74 : vector<1x128x128xbf16> to vector<128x128xbf16>
    %cst_84 = arith.constant dense<0.000000e+00> : vector<328x128xf32>
    %76 = tpu.matmul %73, %75, %cst_84 {dimension_numbers = #tpu.dot_dimension_numbers<[1], [0], [0], [1], [0, 0, 1, 1], [], []>} : vector<328x128xbf16>, vector<128x128xbf16>, vector<328x128xf32> -> vector<328x128xf32>
    %77 = arith.addf %72, %76 : vector<328x128xf32>
    %c0_85 = arith.constant 0 : index
    %c0_86 = arith.constant 0 : index
    %78 = vector.load %arg10[%c0_85, %c0_86] : memref<328x128xf32, #tpu.memory_space<vmem>>, vector<328x128xf32>
    tpu.vector_store %arg10[%c0_85, %c0_86], %77 {strides = array<i32>} : memref<328x128xf32, #tpu.memory_space<vmem>>, vector<328x128xf32>,
    %c0_87 = arith.constant 0 : index
    %c0_88 = arith.constant 0 : index
    %79 = vector.load %arg10[%c0_87, %c0_88] : memref<328x128xf32, #tpu.memory_space<vmem>>, vector<328x128xf32>
    %c43 = arith.constant 43 : index
    %c0_89 = arith.constant 0 : index
    %80 = vector.load %arg9[%c43, %c0_89] : memref<376x128xbf16, #tpu.memory_space<vmem>>, vector<328x128xbf16>
    %c8 = arith.constant 8 : index
    %c0_90 = arith.constant 0 : index
    %c0_91 = arith.constant 0 : index
    %81 = vector.load %arg4[%c8, %c0_90, %c0_91] : memref<9x128x128xbf16, #tpu.memory_space<vmem>>, vector<1x128x128xbf16>
    %82 = vector.shape_cast %81 : vector<1x128x128xbf16> to vector<128x128xbf16>
    %cst_92 = arith.constant dense<0.000000e+00> : vector<328x128xf32>
    %83 = tpu.matmul %80, %82, %cst_92 {dimension_numbers = #tpu.dot_dimension_numbers<[1], [0], [0], [1], [0, 0, 1, 1], [], []>} : vector<328x128xbf16>, vector<128x128xbf16>, vector<328x128xf32> -> vector<328x128xf32>
    %84 = arith.addf %79, %83 : vector<328x128xf32>
    %c0_93 = arith.constant 0 : index
    %c0_94 = arith.constant 0 : index
    %85 = vector.load %arg10[%c0_93, %c0_94] : memref<328x128xf32, #tpu.memory_space<vmem>>, vector<328x128xf32>
    tpu.vector_store %arg10[%c0_93, %c0_94], %84 {strides = array<i32>} : memref<328x128xf32, #tpu.memory_space<vmem>>, vector<328x128xf32>,
    %c0_95 = arith.constant 0 : index
    %c0_96 = arith.constant 0 : index
    %86 = vector.load %arg10[%c0_95, %c0_96] : memref<328x128xf32, #tpu.memory_space<vmem>>, vector<328x128xf32>
    %87 = arith.truncf %86 : vector<328x128xf32> to vector<328x128xbf16>
    %c0_97 = arith.constant 0 : index
    %c0_98 = arith.constant 0 : index
    %c0_99 = arith.constant 0 : index
    %88 = vector.load %arg6[%c0_97, %c0_98, %c0_99] : memref<1x328x128xbf16, #tpu.memory_space<vmem>>, vector<1x328x128xbf16>
    %89 = vector.shape_cast %88 : vector<1x328x128xbf16> to vector<328x128xbf16>
    %90 = vector.shape_cast %87 : vector<328x128xbf16> to vector<1x328x128xbf16>
    tpu.vector_store %arg6[%c0_97, %c0_98, %c0_99], %90 {strides = array<i32>} : memref<1x328x128xbf16, #tpu.memory_space<vmem>>, vector<1x328x128xbf16>,
    %91 = vector.broadcast %0 : vector<328x1xf32> to vector<328x128xf32>
    %92 = arith.mulf %86, %91 : vector<328x128xf32>
    %cst_100 = arith.constant dense<0.000000e+00> : vector<128xf32>
    %93 = vector.multi_reduction <add>, %92, %cst_100 [0] : vector<328x128xf32> to vector<128xf32>
    %94 = vector.shape_cast %93 : vector<128xf32> to vector<1x128xf32>
    %c0_101 = arith.constant 0 : index
    %c0_102 = arith.constant 0 : index
    %c0_103 = arith.constant 0 : index
    %95 = vector.load %arg7[%c0_101, %c0_102, %c0_103] : memref<1x1x128xf32, #tpu.memory_space<vmem>>, vector<1x1x128xf32>
    %96 = vector.shape_cast %95 : vector<1x1x128xf32> to vector<1x128xf32>
    %97 = vector.shape_cast %94 : vector<1x128xf32> to vector<1x1x128xf32>
    tpu.vector_store %arg7[%c0_101, %c0_102, %c0_103], %97 {strides = array<i32>} : memref<1x1x128xf32, #tpu.memory_space<vmem>>, vector<1x1x128xf32>,
    %98 = arith.mulf %86, %92 : vector<328x128xf32>
    %cst_104 = arith.constant dense<0.000000e+00> : vector<128xf32>
    %99 = vector.multi_reduction <add>, %98, %cst_104 [0] : vector<328x128xf32> to vector<128xf32>
    %100 = vector.shape_cast %99 : vector<128xf32> to vector<1x128xf32>
    %c0_105 = arith.constant 0 : index
    %c0_106 = arith.constant 0 : index
    %c0_107 = arith.constant 0 : index
    %101 = vector.load %arg8[%c0_105, %c0_106, %c0_107] : memref<1x1x128xf32, #tpu.memory_space<vmem>>, vector<1x1x128xf32>
    %102 = vector.shape_cast %101 : vector<1x1x128xf32> to vector<1x128xf32>
    %103 = vector.shape_cast %100 : vector<1x128xf32> to vector<1x1x128xf32>
    tpu.vector_store %arg8[%c0_105, %c0_106, %c0_107], %103 {strides = array<i32>} : memref<1x1x128xf32, #tpu.memory_space<vmem>>, vector<1x1x128xf32>,
    return
  }
  func.func @transform_0(%arg0: i32) -> (i32, i32, i32) {
    %c0_i32 = arith.constant 0 : i32
    %c0_i32_0 = arith.constant 0 : i32
    %c0_i32_1 = arith.constant 0 : i32
    return %arg0, %c0_i32, %c0_i32_0 : i32, i32, i32
  }
  func.func @transform_1(%arg0: i32) -> (i32, i32, i32) {
    %c0_i32 = arith.constant 0 : i32
    %c0_i32_0 = arith.constant 0 : i32
    %c0_i32_1 = arith.constant 0 : i32
    return %arg0, %c0_i32, %c0_i32_0 : i32, i32, i32
  }
  func.func @transform_2(%arg0: i32) -> (i32, i32, i32) {
    %c0_i32 = arith.constant 0 : i32
    %c0_i32_0 = arith.constant 0 : i32
    %c0_i32_1 = arith.constant 0 : i32
    return %arg0, %c0_i32, %c0_i32_0 : i32, i32, i32
  }
  func.func @transform_3(%arg0: i32) -> (i32, i32, i32) {
    %c0_i32 = arith.constant 0 : i32
    %c0_i32_0 = arith.constant 0 : i32
    %c0_i32_1 = arith.constant 0 : i32
    %c0_i32_2 = arith.constant 0 : i32
    return %c0_i32, %c0_i32_0, %c0_i32_1 : i32, i32, i32
  }
  func.func @transform_4(%arg0: i32) -> (i32, i32) {
    %c0_i32 = arith.constant 0 : i32
    %c0_i32_0 = arith.constant 0 : i32
    %c0_i32_1 = arith.constant 0 : i32
    return %c0_i32, %c0_i32_0 : i32, i32
  }
  func.func @transform_5(%arg0: i32) -> (i32, i32, i32) {
    %c0_i32 = arith.constant 0 : i32
    %c0_i32_0 = arith.constant 0 : i32
    %c0_i32_1 = arith.constant 0 : i32
    return %arg0, %c0_i32, %c0_i32_0 : i32, i32, i32
  }
  func.func @transform_6(%arg0: i32) -> (i32, i32, i32) {
    %c0_i32 = arith.constant 0 : i32
    %c0_i32_0 = arith.constant 0 : i32
    %c0_i32_1 = arith.constant 0 : i32
    return %arg0, %c0_i32, %c0_i32_0 : i32, i32, i32
  }
  func.func @transform_7(%arg0: i32) -> (i32, i32, i32) {
    %c0_i32 = arith.constant 0 : i32
    %c0_i32_0 = arith.constant 0 : i32
    %c0_i32_1 = arith.constant 0 : i32
    return %arg0, %c0_i32, %c0_i32_0 : i32, i32, i32
  }
}

module attributes {stable_mosaic.version = 11 : i64} {
  func.func @_conv3_stats_kernel(%arg0: i32, %arg1: i32, %arg2: memref<1x328x128xbf16, #tpu.memory_space<vmem>>, %arg3: memref<1x1x128xf32, #tpu.memory_space<vmem>>, %arg4: memref<1x1x128xf32, #tpu.memory_space<vmem>>, %arg5: memref<128x128xbf16, #tpu.memory_space<vmem>>, %arg6: memref<328x1xf32, #tpu.memory_space<vmem>>, %arg7: memref<1x328x128xbf16, #tpu.memory_space<vmem>>, %arg8: memref<1x1x128xf32, #tpu.memory_space<vmem>>, %arg9: memref<1x1x128xf32, #tpu.memory_space<vmem>>) attributes {dimension_semantics = [#tpu.dimension_semantics<parallel>, #tpu.dimension_semantics<arbitrary>], iteration_bounds = array<i64: 2, 1>, scalar_prefetch = 0 : i64, scratch_operands = 0 : i64, tpu.core_type = #tpu.core_type<tc>, window_params = [{transform_indices = @transform_0, window_bounds = array<i64: 1, 328, 128>}, {pipeline_mode = #tpu.pipeline_mode<synchronous>, transform_indices = @transform_1, window_bounds = array<i64: 1, 1, 128>}, {pipeline_mode = #tpu.pipeline_mode<synchronous>, transform_indices = @transform_2, window_bounds = array<i64: 1, 1, 128>}, {pipeline_mode = #tpu.pipeline_mode<synchronous>, transform_indices = @transform_3, window_bounds = array<i64: 128, 128>}, {transform_indices = @transform_4, window_bounds = array<i64: 328, 1>}, {transform_indices = @transform_5, window_bounds = array<i64: 1, 328, 128>}, {transform_indices = @transform_6, window_bounds = array<i64: 1, 1, 128>}, {transform_indices = @transform_7, window_bounds = array<i64: 1, 1, 128>}]} {
    %c0 = arith.constant 0 : index
    %c0_0 = arith.constant 0 : index
    %c0_1 = arith.constant 0 : index
    %0 = vector.load %arg2[%c0, %c0_0, %c0_1] : memref<1x328x128xbf16, #tpu.memory_space<vmem>>, vector<1x328x128xbf16>
    %1 = vector.shape_cast %0 : vector<1x328x128xbf16> to vector<328x128xbf16>
    %2 = arith.extf %1 : vector<328x128xbf16> to vector<328x128xf32>
    %c0_2 = arith.constant 0 : index
    %c0_3 = arith.constant 0 : index
    %c0_4 = arith.constant 0 : index
    %3 = vector.load %arg3[%c0_2, %c0_3, %c0_4] : memref<1x1x128xf32, #tpu.memory_space<vmem>>, vector<1x1x128xf32>
    %4 = vector.shape_cast %3 : vector<1x1x128xf32> to vector<1x128xf32>
    %5 = vector.broadcast %4 : vector<1x128xf32> to vector<328x128xf32>
    %6 = arith.mulf %2, %5 : vector<328x128xf32>
    %c0_5 = arith.constant 0 : index
    %c0_6 = arith.constant 0 : index
    %c0_7 = arith.constant 0 : index
    %7 = vector.load %arg4[%c0_5, %c0_6, %c0_7] : memref<1x1x128xf32, #tpu.memory_space<vmem>>, vector<1x1x128xf32>
    %8 = vector.shape_cast %7 : vector<1x1x128xf32> to vector<1x128xf32>
    %9 = vector.broadcast %8 : vector<1x128xf32> to vector<328x128xf32>
    %10 = arith.addf %6, %9 : vector<328x128xf32>
    %cst = arith.constant 0.000000e+00 : f32
    %11 = vector.broadcast %cst : f32 to vector<328x128xf32>
    %12 = arith.maximumf %10, %11 : vector<328x128xf32>
    %13 = arith.truncf %12 : vector<328x128xf32> to vector<328x128xbf16>
    %c0_8 = arith.constant 0 : index
    %c0_9 = arith.constant 0 : index
    %14 = vector.load %arg5[%c0_8, %c0_9] : memref<128x128xbf16, #tpu.memory_space<vmem>>, vector<128x128xbf16>
    %cst_10 = arith.constant dense<0.000000e+00> : vector<328x128xf32>
    %15 = tpu.matmul %13, %14, %cst_10 {dimension_numbers = #tpu.dot_dimension_numbers<[1], [0], [0], [1], [0, 0, 1, 1], [], []>} : vector<328x128xbf16>, vector<128x128xbf16>, vector<328x128xf32> -> vector<328x128xf32>
    %16 = arith.truncf %15 : vector<328x128xf32> to vector<328x128xbf16>
    %c0_11 = arith.constant 0 : index
    %c0_12 = arith.constant 0 : index
    %c0_13 = arith.constant 0 : index
    %17 = vector.load %arg7[%c0_11, %c0_12, %c0_13] : memref<1x328x128xbf16, #tpu.memory_space<vmem>>, vector<1x328x128xbf16>
    %18 = vector.shape_cast %17 : vector<1x328x128xbf16> to vector<328x128xbf16>
    %19 = vector.shape_cast %16 : vector<328x128xbf16> to vector<1x328x128xbf16>
    tpu.vector_store %arg7[%c0_11, %c0_12, %c0_13], %19 {strides = array<i32>} : memref<1x328x128xbf16, #tpu.memory_space<vmem>>, vector<1x328x128xbf16>,
    %c0_i32 = arith.constant 0 : i32
    %20 = arith.cmpi eq, %arg1, %c0_i32 : i32
    %21 = arith.extui %20 : i1 to i32
    %c0_i32_14 = arith.constant 0 : i32
    %22 = arith.cmpi ne, %21, %c0_i32_14 : i32
    scf.if %22 {
      %cst_31 = arith.constant 0.000000e+00 : f32
      %43 = vector.broadcast %cst_31 : f32 to vector<1x1x128xf32>
      %c0_32 = arith.constant 0 : index
      %c0_33 = arith.constant 0 : index
      %c0_34 = arith.constant 0 : index
      %44 = vector.load %arg8[%c0_32, %c0_33, %c0_34] : memref<1x1x128xf32, #tpu.memory_space<vmem>>, vector<1x1x128xf32>
      tpu.vector_store %arg8[%c0_32, %c0_33, %c0_34], %43 {strides = array<i32>} : memref<1x1x128xf32, #tpu.memory_space<vmem>>, vector<1x1x128xf32>,
      %cst_35 = arith.constant 0.000000e+00 : f32
      %45 = vector.broadcast %cst_35 : f32 to vector<1x1x128xf32>
      %c0_36 = arith.constant 0 : index
      %c0_37 = arith.constant 0 : index
      %c0_38 = arith.constant 0 : index
      %46 = vector.load %arg9[%c0_36, %c0_37, %c0_38] : memref<1x1x128xf32, #tpu.memory_space<vmem>>, vector<1x1x128xf32>
      tpu.vector_store %arg9[%c0_36, %c0_37, %c0_38], %45 {strides = array<i32>} : memref<1x1x128xf32, #tpu.memory_space<vmem>>, vector<1x1x128xf32>,
    } else {
    }
    %c0_15 = arith.constant 0 : index
    %c0_16 = arith.constant 0 : index
    %23 = vector.load %arg6[%c0_15, %c0_16] : memref<328x1xf32, #tpu.memory_space<vmem>>, vector<328x1xf32>
    %24 = vector.broadcast %23 : vector<328x1xf32> to vector<328x128xf32>
    %25 = arith.mulf %15, %24 : vector<328x128xf32>
    %c0_17 = arith.constant 0 : index
    %c0_18 = arith.constant 0 : index
    %c0_19 = arith.constant 0 : index
    %26 = vector.load %arg8[%c0_17, %c0_18, %c0_19] : memref<1x1x128xf32, #tpu.memory_space<vmem>>, vector<1x1x128xf32>
    %27 = vector.shape_cast %26 : vector<1x1x128xf32> to vector<1x128xf32>
    %cst_20 = arith.constant dense<0.000000e+00> : vector<128xf32>
    %28 = vector.multi_reduction <add>, %25, %cst_20 [0] : vector<328x128xf32> to vector<128xf32>
    %29 = vector.shape_cast %28 : vector<128xf32> to vector<1x128xf32>
    %30 = arith.addf %27, %29 : vector<1x128xf32>
    %c0_21 = arith.constant 0 : index
    %c0_22 = arith.constant 0 : index
    %c0_23 = arith.constant 0 : index
    %31 = vector.load %arg8[%c0_21, %c0_22, %c0_23] : memref<1x1x128xf32, #tpu.memory_space<vmem>>, vector<1x1x128xf32>
    %32 = vector.shape_cast %31 : vector<1x1x128xf32> to vector<1x128xf32>
    %33 = vector.shape_cast %30 : vector<1x128xf32> to vector<1x1x128xf32>
    tpu.vector_store %arg8[%c0_21, %c0_22, %c0_23], %33 {strides = array<i32>} : memref<1x1x128xf32, #tpu.memory_space<vmem>>, vector<1x1x128xf32>,
    %c0_24 = arith.constant 0 : index
    %c0_25 = arith.constant 0 : index
    %c0_26 = arith.constant 0 : index
    %34 = vector.load %arg9[%c0_24, %c0_25, %c0_26] : memref<1x1x128xf32, #tpu.memory_space<vmem>>, vector<1x1x128xf32>
    %35 = vector.shape_cast %34 : vector<1x1x128xf32> to vector<1x128xf32>
    %36 = arith.mulf %15, %25 : vector<328x128xf32>
    %cst_27 = arith.constant dense<0.000000e+00> : vector<128xf32>
    %37 = vector.multi_reduction <add>, %36, %cst_27 [0] : vector<328x128xf32> to vector<128xf32>
    %38 = vector.shape_cast %37 : vector<128xf32> to vector<1x128xf32>
    %39 = arith.addf %35, %38 : vector<1x128xf32>
    %c0_28 = arith.constant 0 : index
    %c0_29 = arith.constant 0 : index
    %c0_30 = arith.constant 0 : index
    %40 = vector.load %arg9[%c0_28, %c0_29, %c0_30] : memref<1x1x128xf32, #tpu.memory_space<vmem>>, vector<1x1x128xf32>
    %41 = vector.shape_cast %40 : vector<1x1x128xf32> to vector<1x128xf32>
    %42 = vector.shape_cast %39 : vector<1x128xf32> to vector<1x1x128xf32>
    tpu.vector_store %arg9[%c0_28, %c0_29, %c0_30], %42 {strides = array<i32>} : memref<1x1x128xf32, #tpu.memory_space<vmem>>, vector<1x1x128xf32>,
    return
  }
  func.func @transform_0(%arg0: i32, %arg1: i32) -> (i32, i32, i32) {
    %c0_i32 = arith.constant 0 : i32
    %c0_i32_0 = arith.constant 0 : i32
    return %arg0, %arg1, %c0_i32 : i32, i32, i32
  }
  func.func @transform_1(%arg0: i32, %arg1: i32) -> (i32, i32, i32) {
    %c0_i32 = arith.constant 0 : i32
    %c0_i32_0 = arith.constant 0 : i32
    %c0_i32_1 = arith.constant 0 : i32
    %c0_i32_2 = arith.constant 0 : i32
    return %c0_i32, %c0_i32_0, %c0_i32_1 : i32, i32, i32
  }
  func.func @transform_2(%arg0: i32, %arg1: i32) -> (i32, i32, i32) {
    %c0_i32 = arith.constant 0 : i32
    %c0_i32_0 = arith.constant 0 : i32
    %c0_i32_1 = arith.constant 0 : i32
    %c0_i32_2 = arith.constant 0 : i32
    return %c0_i32, %c0_i32_0, %c0_i32_1 : i32, i32, i32
  }
  func.func @transform_3(%arg0: i32, %arg1: i32) -> (i32, i32) {
    %c0_i32 = arith.constant 0 : i32
    %c0_i32_0 = arith.constant 0 : i32
    %c0_i32_1 = arith.constant 0 : i32
    return %c0_i32, %c0_i32_0 : i32, i32
  }
  func.func @transform_4(%arg0: i32, %arg1: i32) -> (i32, i32) {
    %c0_i32 = arith.constant 0 : i32
    %c0_i32_0 = arith.constant 0 : i32
    return %arg1, %c0_i32 : i32, i32
  }
  func.func @transform_5(%arg0: i32, %arg1: i32) -> (i32, i32, i32) {
    %c0_i32 = arith.constant 0 : i32
    %c0_i32_0 = arith.constant 0 : i32
    return %arg0, %arg1, %c0_i32 : i32, i32, i32
  }
  func.func @transform_6(%arg0: i32, %arg1: i32) -> (i32, i32, i32) {
    %c0_i32 = arith.constant 0 : i32
    %c0_i32_0 = arith.constant 0 : i32
    %c0_i32_1 = arith.constant 0 : i32
    return %arg0, %c0_i32, %c0_i32_0 : i32, i32, i32
  }
  func.func @transform_7(%arg0: i32, %arg1: i32) -> (i32, i32, i32) {
    %c0_i32 = arith.constant 0 : i32
    %c0_i32_0 = arith.constant 0 : i32
    %c0_i32_1 = arith.constant 0 : i32
    return %arg0, %c0_i32, %c0_i32_0 : i32, i32, i32
  }
}

module attributes {stable_mosaic.version = 11 : i64} {
  func.func @_bn3_residual_relu_kernel(%arg0: i32, %arg1: i32, %arg2: memref<1x328x128xbf16, #tpu.memory_space<vmem>>, %arg3: memref<1x328x128xf32, #tpu.memory_space<vmem>>, %arg4: memref<1x1x128xf32, #tpu.memory_space<vmem>>, %arg5: memref<1x1x128xf32, #tpu.memory_space<vmem>>, %arg6: memref<1x328x128xf32, #tpu.memory_space<vmem>>) attributes {dimension_semantics = [#tpu.dimension_semantics<parallel>, #tpu.dimension_semantics<parallel>], iteration_bounds = array<i64: 2, 1>, scalar_prefetch = 0 : i64, scratch_operands = 0 : i64, tpu.core_type = #tpu.core_type<tc>, window_params = [{transform_indices = @transform_0, window_bounds = array<i64: 1, 328, 128>}, {transform_indices = @transform_1, window_bounds = array<i64: 1, 328, 128>}, {pipeline_mode = #tpu.pipeline_mode<synchronous>, transform_indices = @transform_2, window_bounds = array<i64: 1, 1, 128>}, {pipeline_mode = #tpu.pipeline_mode<synchronous>, transform_indices = @transform_3, window_bounds = array<i64: 1, 1, 128>}, {transform_indices = @transform_4, window_bounds = array<i64: 1, 328, 128>}]} {
    %c0 = arith.constant 0 : index
    %c0_0 = arith.constant 0 : index
    %c0_1 = arith.constant 0 : index
    %0 = vector.load %arg2[%c0, %c0_0, %c0_1] : memref<1x328x128xbf16, #tpu.memory_space<vmem>>, vector<1x328x128xbf16>
    %1 = vector.shape_cast %0 : vector<1x328x128xbf16> to vector<328x128xbf16>
    %2 = arith.extf %1 : vector<328x128xbf16> to vector<328x128xf32>
    %c0_2 = arith.constant 0 : index
    %c0_3 = arith.constant 0 : index
    %c0_4 = arith.constant 0 : index
    %3 = vector.load %arg4[%c0_2, %c0_3, %c0_4] : memref<1x1x128xf32, #tpu.memory_space<vmem>>, vector<1x1x128xf32>
    %4 = vector.shape_cast %3 : vector<1x1x128xf32> to vector<1x128xf32>
    %5 = vector.broadcast %4 : vector<1x128xf32> to vector<328x128xf32>
    %6 = arith.mulf %2, %5 : vector<328x128xf32>
    %c0_5 = arith.constant 0 : index
    %c0_6 = arith.constant 0 : index
    %c0_7 = arith.constant 0 : index
    %7 = vector.load %arg5[%c0_5, %c0_6, %c0_7] : memref<1x1x128xf32, #tpu.memory_space<vmem>>, vector<1x1x128xf32>
    %8 = vector.shape_cast %7 : vector<1x1x128xf32> to vector<1x128xf32>
    %9 = vector.broadcast %8 : vector<1x128xf32> to vector<328x128xf32>
    %10 = arith.addf %6, %9 : vector<328x128xf32>
    %c0_8 = arith.constant 0 : index
    %c0_9 = arith.constant 0 : index
    %c0_10 = arith.constant 0 : index
    %11 = vector.load %arg3[%c0_8, %c0_9, %c0_10] : memref<1x328x128xf32, #tpu.memory_space<vmem>>, vector<1x328x128xf32>
    %12 = vector.shape_cast %11 : vector<1x328x128xf32> to vector<328x128xf32>
    %13 = arith.addf %10, %12 : vector<328x128xf32>
    %cst = arith.constant 0.000000e+00 : f32
    %14 = vector.broadcast %cst : f32 to vector<328x128xf32>
    %15 = arith.maximumf %13, %14 : vector<328x128xf32>
    %c0_11 = arith.constant 0 : index
    %c0_12 = arith.constant 0 : index
    %c0_13 = arith.constant 0 : index
    %16 = vector.load %arg6[%c0_11, %c0_12, %c0_13] : memref<1x328x128xf32, #tpu.memory_space<vmem>>, vector<1x328x128xf32>
    %17 = vector.shape_cast %16 : vector<1x328x128xf32> to vector<328x128xf32>
    %18 = vector.shape_cast %15 : vector<328x128xf32> to vector<1x328x128xf32>
    tpu.vector_store %arg6[%c0_11, %c0_12, %c0_13], %18 {strides = array<i32>} : memref<1x328x128xf32, #tpu.memory_space<vmem>>, vector<1x328x128xf32>,
    return
  }
  func.func @transform_0(%arg0: i32, %arg1: i32) -> (i32, i32, i32) {
    %c0_i32 = arith.constant 0 : i32
    %c0_i32_0 = arith.constant 0 : i32
    return %arg0, %arg1, %c0_i32 : i32, i32, i32
  }
  func.func @transform_1(%arg0: i32, %arg1: i32) -> (i32, i32, i32) {
    %c0_i32 = arith.constant 0 : i32
    %c0_i32_0 = arith.constant 0 : i32
    return %arg0, %arg1, %c0_i32 : i32, i32, i32
  }
  func.func @transform_2(%arg0: i32, %arg1: i32) -> (i32, i32, i32) {
    %c0_i32 = arith.constant 0 : i32
    %c0_i32_0 = arith.constant 0 : i32
    %c0_i32_1 = arith.constant 0 : i32
    %c0_i32_2 = arith.constant 0 : i32
    return %c0_i32, %c0_i32_0, %c0_i32_1 : i32, i32, i32
  }
  func.func @transform_3(%arg0: i32, %arg1: i32) -> (i32, i32, i32) {
    %c0_i32 = arith.constant 0 : i32
    %c0_i32_0 = arith.constant 0 : i32
    %c0_i32_1 = arith.constant 0 : i32
    %c0_i32_2 = arith.constant 0 : i32
    return %c0_i32, %c0_i32_0, %c0_i32_1 : i32, i32, i32
  }
  func.func @transform_4(%arg0: i32, %arg1: i32) -> (i32, i32, i32) {
    %c0_i32 = arith.constant 0 : i32
    %c0_i32_0 = arith.constant 0 : i32
    return %arg0, %arg1, %c0_i32 : i32, i32, i32
  }
}

</mosaic_0001>

<llo_original>
// kernel: _forward_impl.4
$region0: #{_forward_impl.4}
  #allocation0 [shape = 'u32[]', space=smem, size = 0x4, offset = 0x4, fixed_abs, tag = 'smem constant byte address 0x4 - core index']
  #allocation1 [shape = 'u32[72,128]{1,0:T(1,128)}', space=vmem, size = 0x9000, scoped, tag = 'internal scratch']
  %s0 = inlined_call_operand.vmem [shape: f32[2,328,128], index: 0, kind: input, shape index: {}]
  %s1 = inlined_call_operand.vmem [shape: bf16[128,128], index: 1, kind: input, shape index: {}]
  %s2 = inlined_call_operand.vmem [shape: bf16[2,328,128], index: 2, kind: output, shape index: {0}]
  %s3 = inlined_call_operand.vmem [shape: f32[2,1,128], index: 3, kind: output, shape index: {1}]
  %s4 = inlined_call_operand.vmem [shape: f32[2,1,128], index: 4, kind: output, shape index: {2}]
  %5 = xla_tuple %s2, %s3, %s4
  %s6 = sld [smem:[#allocation0]]
  $region61: #{_forward_impl.4} parent=0
    _
  %s8 = ssub.s32 1, %s6
  %s9 = scalar_select 0, %s8, %s6
  loop: start=0, step=1, limit=4
  $region2: #{_forward_impl.4} parent=0 // loop_pre_header
    _
  $region3: #{_forward_impl.4} parent=0 // loop_header
    %s11 = sphi 0, %s15
    %p12 = scmp.ge.s32.totalorder %s11, 4
    %s18 = sphi 0, %s30
    %s19 = sphi 0, %s26
    %s20 = sphi 0, %s18
    %s21 = sphi 0, %s19
    %s22 = sphi 0, %s20
    %s23 = sphi 0, %s21
    %s35 = sphi 0, %s37
    %s38 = sphi 0, %s35
    %s39 = sphi 0, %s38
    %s55 = sphi 0, %s39
    %s59 = sphi 0, %s59
    %s61 = sphi 0, %s59
    %s62 = sphi 0, %s61
    %s76 = sphi 0, %s62
    %s84 = sphi 0, %s86
    %s87 = sphi 0, %s84
    %s88 = sphi 0, %s87
    %s104 = sphi 0, %s88
    %s110 = sphi 0, %s112
    %s113 = sphi 0, %s110
    %s114 = sphi 0, %s113
    %s130 = sphi 0, %s114
    %s136 = sphi 0, %s138
    %s139 = sphi 0, %s136
    %s140 = sphi 0, %s139
    %s156 = sphi 0, %s140
  $region4: #{_forward_impl.4} parent=0 // loop_header_branch
    %14 = sbr.rel (%p12) target = $region8
  $region5: #{_forward_impl.4} parent=0 // loop_body
    %s16 = ssub.s32 %s11, 1
    %s17 = ssub.s32 %s11, 2
    %s24 = sadd.s32 1, %s19
    %p25 = scmp.ge.s32.totalorder %s24, 1
    %s26 = scalar_select %p25, 0, %s24
    %s27 = sadd.s32 1, %s18
    %s28 = scalar_select %p25, %s27, %s18
    %p29 = scmp.ge.s32.totalorder %s28, 2
    %s30 = scalar_select %p29, 0, %s28
    %s31 = ssub.s32 %s18, %s30
    %s32 = ssub.s32 %s19, %s26
    %s33 = sor.u32 %s31, %s32
    %p34 = scmp.eq.s32.totalorder %s33, 0
    %s36 = sadd.s32 %s35, 1
    %s37 = scalar_select %p34, %s35, %s36
    %p40 = pneg %p34
    %p41 = scmp.eq.s32.totalorder %s11, 1
    %p42 = por %p40, %p41
    %p43 = scmp.ne.s32.totalorder %s35, %s38
    %p44 = scmp.eq.s32.totalorder %s11, 0
    %p45 = por %p43, %p44
    %p46 = scmp.ne.s32.totalorder %s35, %s38
    %p47 = scmp.eq.s32.totalorder %s16, 1
    %p48 = por %p46, %p47
    %p49 = scmp.ne.s32.totalorder %s38, %s39
    %p50 = scmp.eq.s32.totalorder %s16, 0
    %p51 = por %p49, %p50
    %p52 = scmp.ne.s32.totalorder %s38, %s39
    %p53 = scmp.eq.s32.totalorder %s17, 1
    %p54 = por %p52, %p53
    %p56 = scmp.ne.s32.totalorder %s39, %s55
    %p57 = scmp.eq.s32.totalorder %s17, 0
    %p58 = por %p56, %p57
    %s60 = sadd.s32 %s59, 1
    %p63 = scmp.eq.s32.totalorder %s11, 1
    %p64 = scmp.ne.s32.totalorder %s59, %s61
    %p65 = scmp.eq.s32.totalorder %s11, 0
    %p66 = por %p64, %p65
    %p67 = scmp.ne.s32.totalorder %s59, %s61
    %p68 = scmp.eq.s32.totalorder %s16, 1
    %p69 = por %p67, %p68
    %p70 = scmp.ne.s32.totalorder %s61, %s62
    %p71 = scmp.eq.s32.totalorder %s16, 0
    %p72 = por %p70, %p71
    %p73 = scmp.ne.s32.totalorder %s61, %s62
    %p74 = scmp.eq.s32.totalorder %s17, 1
    %p75 = por %p73, %p74
    %p77 = scmp.ne.s32.totalorder %s62, %s76
    %p78 = scmp.eq.s32.totalorder %s17, 0
    %p79 = por %p77, %p78
    %s80 = ssub.s32 %s18, %s30
    %s81 = ssub.s32 %s19, %s26
    %s82 = sor.u32 %s80, %s81
    %p83 = scmp.eq.s32.totalorder %s82, 0
    %s85 = sadd.s32 %s84, 1
    %s86 = scalar_select %p83, %s84, %s85
    %p89 = pneg %p83
    %p90 = scmp.eq.s32.totalorder %s11, 1
    %p91 = por %p89, %p90
    %p92 = scmp.ne.s32.totalorder %s84, %s87
    %p93 = scmp.eq.s32.totalorder %s11, 0
    %p94 = por %p92, %p93
    %p95 = scmp.ne.s32.totalorder %s84, %s87
    %p96 = scmp.eq.s32.totalorder %s16, 1
    %p97 = por %p95, %p96
    %p98 = scmp.ne.s32.totalorder %s87, %s88
    %p99 = scmp.eq.s32.totalorder %s16, 0
    %p100 = por %p98, %p99
    %p101 = scmp.ne.s32.totalorder %s87, %s88
    %p102 = scmp.eq.s32.totalorder %s17, 1
    %p103 = por %p101, %p102
    %p105 = scmp.ne.s32.totalorder %s88, %s104
    %p106 = scmp.eq.s32.totalorder %s17, 0
    %p107 = por %p105, %p106
    %s108 = ssub.s32 %s18, %s30
    %p109 = scmp.eq.s32.totalorder %s108, 0
    %s111 = sadd.s32 %s110, 1
    %s112 = scalar_select %p109, %s110, %s111
    %p115 = pneg %p109
    %p116 = scmp.eq.s32.totalorder %s11, 1
    %p117 = por %p115, %p116
    %p118 = scmp.ne.s32.totalorder %s110, %s113
    %p119 = scmp.eq.s32.totalorder %s11, 0
    %p120 = por %p118, %p119
    %p121 = scmp.ne.s32.totalorder %s110, %s113
    %p122 = scmp.eq.s32.totalorder %s16, 1
    %p123 = por %p121, %p122
    %p124 = scmp.ne.s32.totalorder %s113, %s114
    %p125 = scmp.eq.s32.totalorder %s16, 0
    %p126 = por %p124, %p125
    %p127 = scmp.ne.s32.totalorder %s113, %s114
    %p128 = scmp.eq.s32.totalorder %s17, 1
    %p129 = por %p127, %p128
    %p131 = scmp.ne.s32.totalorder %s114, %s130
    %p132 = scmp.eq.s32.totalorder %s17, 0
    %p133 = por %p131, %p132
    %s134 = ssub.s32 %s18, %s30
    %p135 = scmp.eq.s32.totalorder %s134, 0
    %s137 = sadd.s32 %s136, 1
    %s138 = scalar_select %p135, %s136, %s137
    %p141 = pneg %p135
    %p142 = scmp.eq.s32.totalorder %s11, 1
    %p143 = por %p141, %p142
    %p144 = scmp.ne.s32.totalorder %s136, %s139
    %p145 = scmp.eq.s32.totalorder %s11, 0
    %p146 = por %p144, %p145
    %p147 = scmp.ne.s32.totalorder %s136, %s139
    %p148 = scmp.eq.s32.totalorder %s16, 1
    %p149 = por %p147, %p148
    %p150 = scmp.ne.s32.totalorder %s139, %s140
    %p151 = scmp.eq.s32.totalorder %s16, 0
    %p152 = por %p150, %p151
    %p153 = scmp.ne.s32.totalorder %s139, %s140
    %p154 = scmp.eq.s32.totalorder %s17, 1
    %p155 = por %p153, %p154
    %p157 = scmp.ne.s32.totalorder %s140, %s156
    %p158 = scmp.eq.s32.totalorder %s17, 0
    %p159 = por %p157, %p158
    %p160 = scmp.le.s32.totalorder 1, %s11
    %p161 = scmp.lt.s32.totalorder %s11, 3
    %p162 = pnand %p160, %p161
    %p163 = pneg %p162
    // Predicated region
    $region9: #{_forward_impl.4} parent=5 // pred_check
      _
    $region10: #{_forward_impl.4} parent=5 // pred_check_branch
      %165 = sbr.rel (%p162) target = $region12
    $region11: #{_forward_impl.4} parent=5 // pred_region
      %s166 = ssub.s32 %s11, 1
      // Predicated region
      $region13: #{_forward_impl.4} parent=11 // pred_check
        %p167 = pneg %p72
      $region14: #{_forward_impl.4} parent=11 // pred_check_branch
        %169 = sbr.rel (%p167) target = $region16
      $region15: #{_forward_impl.4} parent=11 // pred_region
        _
      $region16: #{_forward_impl.4} parent=11 // pred_fallthru
        _
    $region12: #{_forward_impl.4} parent=5 // pred_fallthru
      _
    %p170 = scmp.lt.s32.totalorder %s11, 2
    // Predicated region
    $region17: #{_forward_impl.4} parent=5 // pred_check
      %p171 = pneg %p170
    $region18: #{_forward_impl.4} parent=5 // pred_check_branch
      %173 = sbr.rel (%p171) target = $region20
    $region19: #{_forward_impl.4} parent=5 // pred_region
      // Predicated region
      $region21: #{_forward_impl.4} parent=19 // pred_check
        %p174 = pneg %p45
      $region22: #{_forward_impl.4} parent=19 // pred_check_branch
        %176 = sbr.rel (%p174) target = $region24
      $region23: #{_forward_impl.4} parent=19 // pred_region
        %s177 = smul.u32 41, %s19
        %p178 = scmp.lt.s32.totalorder %s18, 1
        %s179 = scalar_select %p178, %s18, 1
        %p180 = scmp.lt.s32.totalorder %s177, 40
        %s181 = scalar_select %p180, %s177, 40
        %s182 = smul.addr %s179, 41
        %s183 = sadd.s32 %s181, %s182
        %s184 = smul.addr %s183, 8
        %s185 = scalar_lea.vmem %s0, %s184
        %s186 = smul.u32 41, %s19
      $region24: #{_forward_impl.4} parent=19 // pred_fallthru
        _
    $region20: #{_forward_impl.4} parent=5 // pred_fallthru
      _
    %p187 = scmp.le.s32.totalorder 1, %s11
    %p188 = scmp.lt.s32.totalorder %s11, 3
    %p189 = pnand %p187, %p188
    %p190 = pneg %p189
    // Predicated region
    $region25: #{_forward_impl.4} parent=5 // pred_check
      _
    $region26: #{_forward_impl.4} parent=5 // pred_check_branch
      %192 = sbr.rel (%p189) target = $region28
    $region27: #{_forward_impl.4} parent=5 // pred_region
      %s193 = ssub.s32 %s11, 1
      %s194 = smul.u32 41, %s21
      %p195 = scmp.lt.s32.totalorder %s20, 1
      %s196 = scalar_select %p195, %s20, 1
      %p197 = scmp.lt.s32.totalorder %s194, 40
      %s198 = scalar_select %p197, %s194, 40
      %s199 = smul.addr %s196, 41
      %s200 = sadd.s32 %s198, %s199
      %s201 = smul.addr %s200, 8
      %s202 = scalar_lea.vmem %s0, %s201
      %p203 = pneg %p51
      %p204 = pneg %p48
      %p205 = pneg %p72
      %p206 = pneg %p69
      %p207 = pneg %p100
      %p208 = pneg %p97
      %s209 = smul.u32 41, %s21
      %p210 = scmp.lt.s32.totalorder %s20, 1
      %s211 = scalar_select %p210, %s20, 1
      %p212 = scmp.lt.s32.totalorder %s209, 40
      %s213 = scalar_select %p212, %s209, 40
      %s214 = smul.addr %s211, 41
      %s215 = sadd.s32 %s213, %s214
      %s216 = smul.addr %s215, 4
      %s217 = scalar_lea.vmem %s2, %s216
      %p218 = pneg %p126
      %p219 = pneg %p123
      %p220 = scmp.lt.s32.totalorder %s20, 1
      %s221 = scalar_select %p220, %s20, 1
      %s222 = scalar_lea.vmem %s3, %s221
      %p223 = pneg %p152
      %p224 = pneg %p149
      %p225 = scmp.lt.s32.totalorder %s20, 1
      %s226 = scalar_select %p225, %s20, 1
      %s227 = scalar_lea.vmem %s4, %s226
      %s228 = smul.u32 41, %s21
      %p229 = scmp.lt.s32.totalorder %s20, 1
      %s230 = scalar_select %p229, %s20, 1
      %p231 = scmp.lt.s32.totalorder %s228, 40
      %s232 = scalar_select %p231, %s228, 40
      %s233 = smul.addr %s230, 41
      %s234 = sadd.s32 %s232, %s233
      %s235 = smul.addr %s234, 8
      %s236 = scalar_lea.vmem %s0, %s235
      %s237 = smul.u32 41, %s21
      %s238 = smul.u32 41, %s21
      %p239 = scmp.lt.s32.totalorder %s20, 1
      %s240 = scalar_select %p239, %s20, 1
      %p241 = scmp.lt.s32.totalorder %s238, 40
      %s242 = scalar_select %p241, %s238, 40
      %s243 = smul.addr %s240, 41
      %s244 = sadd.s32 %s242, %s243
      %s245 = smul.addr %s244, 4
      %s246 = scalar_lea.vmem %s2, %s245
      %s247 = smul.u32 41, %s21
      %p248 = scmp.lt.s32.totalorder %s20, 1
      %s249 = scalar_select %p248, %s20, 1
      %s250 = scalar_lea.vmem %s3, %s249
      %p251 = scmp.lt.s32.totalorder %s20, 1
      %s252 = scalar_select %p251, %s20, 1
      %s253 = scalar_lea.vmem %s4, %s252
      %v254 = vld [vmem:[%s236] sm:$0xff]
      %v255 = vld [vmem:[%s236 + $0x8] sm:$0xff]
      %v256 = vld [vmem:[%s236 + $0x10] sm:$0xff]
      %v257 = vld [vmem:[%s236 + $0x18] sm:$0xff]
      %v258 = vld [vmem:[%s236 + $0x20] sm:$0xff]
      %v259 = vld [vmem:[%s236 + $0x28] sm:$0xff]
      %v260 = vld [vmem:[%s236 + $0x30] sm:$0xff]
      %v261 = vld [vmem:[%s236 + $0x38] sm:$0xff]
      %v262 = vld [vmem:[%s236 + $0x40] sm:$0xff]
      %v263 = vld [vmem:[%s236 + $0x48] sm:$0xff]
      %v264 = vld [vmem:[%s236 + $0x50] sm:$0xff]
      %v265 = vld [vmem:[%s236 + $0x58] sm:$0xff]
      %v266 = vld [vmem:[%s236 + $0x60] sm:$0xff]
      %v267 = vld [vmem:[%s236 + $0x68] sm:$0xff]
      %v268 = vld [vmem:[%s236 + $0x70] sm:$0xff]
      %v269 = vld [vmem:[%s236 + $0x78] sm:$0xff]
      %v270 = vld [vmem:[%s236 + $0x80] sm:$0xff]
      %v271 = vld [vmem:[%s236 + $0x88] sm:$0xff]
      %v272 = vld [vmem:[%s236 + $0x90] sm:$0xff]
      %v273 = vld [vmem:[%s236 + $0x98] sm:$0xff]
      %v274 = vld [vmem:[%s236 + $0xa0] sm:$0xff]
      %v275 = vld [vmem:[%s236 + $0xa8] sm:$0xff]
      %v276 = vld [vmem:[%s236 + $0xb0] sm:$0xff]
      %v277 = vld [vmem:[%s236 + $0xb8] sm:$0xff]
      %v278 = vld [vmem:[%s236 + $0xc0] sm:$0xff]
      %v279 = vld [vmem:[%s236 + $0xc8] sm:$0xff]
      %v280 = vld [vmem:[%s236 + $0xd0] sm:$0xff]
      %v281 = vld [vmem:[%s236 + $0xd8] sm:$0xff]
      %v282 = vld [vmem:[%s236 + $0xe0] sm:$0xff]
      %v283 = vld [vmem:[%s236 + $0xe8] sm:$0xff]
      %v284 = vld [vmem:[%s236 + $0xf0] sm:$0xff]
      %v285 = vld [vmem:[%s236 + $0xf8] sm:$0xff]
      %v286 = vld [vmem:[%s236 + $0x100] sm:$0xff]
      %v287 = vld [vmem:[%s236 + $0x108] sm:$0xff]
      %v288 = vld [vmem:[%s236 + $0x110] sm:$0xff]
      %v289 = vld [vmem:[%s236 + $0x118] sm:$0xff]
      %v290 = vld [vmem:[%s236 + $0x120] sm:$0xff]
      %v291 = vld [vmem:[%s236 + $0x128] sm:$0xff]
      %v292 = vld [vmem:[%s236 + $0x130] sm:$0xff]
      %v293 = vld [vmem:[%s236 + $0x138] sm:$0xff]
      %v294 = vld [vmem:[%s236 + $0x140] sm:$0xff]
      %v295 = vpack.c.bf16 %v255, %v254
      %v296 = vpack.c.bf16 %v257, %v256
      %v297 = vpack.c.bf16 %v259, %v258
      %v298 = vpack.c.bf16 %v261, %v260
      %v299 = vpack.c.bf16 %v263, %v262
      %v300 = vpack.c.bf16 %v265, %v264
      %v301 = vpack.c.bf16 %v267, %v266
      %v302 = vpack.c.bf16 %v269, %v268
      %v303 = vpack.c.bf16 %v271, %v270
      %v304 = vpack.c.bf16 %v273, %v272
      %v305 = vpack.c.bf16 %v275, %v274
      %v306 = vpack.c.bf16 %v277, %v276
      %v307 = vpack.c.bf16 %v279, %v278
      %v308 = vpack.c.bf16 %v281, %v280
      %v309 = vpack.c.bf16 %v283, %v282
      %v310 = vpack.c.bf16 %v285, %v284
      %v311 = vpack.c.bf16 %v287, %v286
      %v312 = vpack.c.bf16 %v289, %v288
      %v313 = vpack.c.bf16 %v291, %v290
      %v314 = vpack.c.bf16 %v293, %v292
      %v315 = vpack.c.bf16 %v294, %v294
      %v316 = vld [vmem:[%s1] sm:$0xf]
      %v317 = vld [vmem:[%s1 + $0x4] sm:$0xf]
      %v318 = vld [vmem:[%s1 + $0x8] sm:$0xf]
      %v319 = vld [vmem:[%s1 + $0xc] sm:$0xf]
      %v320 = vld [vmem:[%s1 + $0x10] sm:$0xf]
      %v321 = vld [vmem:[%s1 + $0x14] sm:$0xf]
      %v322 = vld [vmem:[%s1 + $0x18] sm:$0xf]
      %v323 = vld [vmem:[%s1 + $0x1c] sm:$0xf]
      %v324 = vld [vmem:[%s1 + $0x20] sm:$0xf]
      %v325 = vld [vmem:[%s1 + $0x24] sm:$0xf]
      %v326 = vld [vmem:[%s1 + $0x28] sm:$0xf]
      %v327 = vld [vmem:[%s1 + $0x2c] sm:$0xf]
      %v328 = vld [vmem:[%s1 + $0x30] sm:$0xf]
      %v329 = vld [vmem:[%s1 + $0x34] sm:$0xf]
      %v330 = vld [vmem:[%s1 + $0x38] sm:$0xf]
      %v331 = vld [vmem:[%s1 + $0x3c] sm:$0xf]
      %v348 = vunpack.c.l.b16 %v316
      %v349 = vunpack.c.l.b16 %v317
      %v350 = vunpack.c.l.b16 %v318
      %v351 = vunpack.c.l.b16 %v319
      %v352 = vunpack.c.l.b16 %v320
      %v353 = vunpack.c.l.b16 %v321
      %v354 = vunpack.c.l.b16 %v322
      %v355 = vunpack.c.l.b16 %v323
      %v356 = vunpack.c.l.b16 %v324
      %v357 = vunpack.c.l.b16 %v325
      %v358 = vunpack.c.l.b16 %v326
      %v359 = vunpack.c.l.b16 %v327
      %v360 = vunpack.c.l.b16 %v328
      %v361 = vunpack.c.l.b16 %v329
      %v362 = vunpack.c.l.b16 %v330
      %v363 = vunpack.c.l.b16 %v331
      %v364 = vpack.c.b16 %v349, %v348
      %v365 = vpack.c.b16 %v351, %v350
      %v366 = vpack.c.b16 %v353, %v352
      %v367 = vpack.c.b16 %v355, %v354
      %v368 = vpack.c.b16 %v357, %v356
      %v369 = vpack.c.b16 %v359, %v358
      %v370 = vpack.c.b16 %v361, %v360
      %v371 = vpack.c.b16 %v363, %v362
      %380 = vmatpush.bf16.msra.mxu0 %v371
      %381 = vmatpush.bf16.msra.mxu0 %v370
      %382 = vmatpush.bf16.msra.mxu0 %v369
      %383 = vmatpush.bf16.msra.mxu0 %v368
      %384 = vmatpush.bf16.msra.mxu0 %v367
      %385 = vmatpush.bf16.msra.mxu0 %v366
      %386 = vmatpush.bf16.msra.mxu0 %v365
      %387 = vmatpush.bf16.msra.mxu0 %v364
      %388 = vmatmul.bf16.gmra.mxu0 %v295
      %v389 = vpop.f32.mrf.mxu0
      %v390 = vadd.f32 0.0, %v389
      %v391 = vpop.f32.mrf.mxu0
      %v392 = vadd.f32 0.0, %v391
      %393 = vmatmul.bf16.gmra.mxu0 %v296
      %v394 = vpop.f32.mrf.mxu0
      %v395 = vadd.f32 0.0, %v394
      %v396 = vpop.f32.mrf.mxu0
      %v397 = vadd.f32 0.0, %v396
      %398 = vmatmul.bf16.gmra.mxu0 %v297
      %v399 = vpop.f32.mrf.mxu0
      %v400 = vadd.f32 0.0, %v399
      %v401 = vpop.f32.mrf.mxu0
      %v402 = vadd.f32 0.0, %v401
      %403 = vmatmul.bf16.gmra.mxu0 %v298
      %v404 = vpop.f32.mrf.mxu0
      %v405 = vadd.f32 0.0, %v404
      %v406 = vpop.f32.mrf.mxu0
      %v407 = vadd.f32 0.0, %v406
      %408 = vmatmul.bf16.gmra.mxu0 %v299
      %v409 = vpop.f32.mrf.mxu0
      %v410 = vadd.f32 0.0, %v409
      %v411 = vpop.f32.mrf.mxu0
      %v412 = vadd.f32 0.0, %v411
      %413 = vmatmul.bf16.gmra.mxu0 %v300
      %v414 = vpop.f32.mrf.mxu0
      %v415 = vadd.f32 0.0, %v414
      %v416 = vpop.f32.mrf.mxu0
      %v417 = vadd.f32 0.0, %v416
      %418 = vmatmul.bf16.gmra.mxu0 %v301
      %v419 = vpop.f32.mrf.mxu0
      %v420 = vadd.f32 0.0, %v419
      %v421 = vpop.f32.mrf.mxu0
      %v422 = vadd.f32 0.0, %v421
      %423 = vmatmul.bf16.gmra.mxu0 %v302
      %v424 = vpop.f32.mrf.mxu0
      %v425 = vadd.f32 0.0, %v424
      %v426 = vpop.f32.mrf.mxu0
      %v427 = vadd.f32 0.0, %v426
      %428 = vmatmul.bf16.gmra.mxu0 %v303
      %v429 = vpop.f32.mrf.mxu0
      %v430 = vadd.f32 0.0, %v429
      %v431 = vpop.f32.mrf.mxu0
      %v432 = vadd.f32 0.0, %v431
      %433 = vmatmul.bf16.gmra.mxu0 %v304
      %v434 = vpop.f32.mrf.mxu0
      %v435 = vadd.f32 0.0, %v434
      %v436 = vpop.f32.mrf.mxu0
      %v437 = vadd.f32 0.0, %v436
      %438 = vmatmul.bf16.gmra.mxu0 %v305
      %v439 = vpop.f32.mrf.mxu0
      %v440 = vadd.f32 0.0, %v439
      %v441 = vpop.f32.mrf.mxu0
      %v442 = vadd.f32 0.0, %v441
      %443 = vmatmul.bf16.gmra.mxu0 %v306
      %v444 = vpop.f32.mrf.mxu0
      %v445 = vadd.f32 0.0, %v444
      %v446 = vpop.f32.mrf.mxu0
      %v447 = vadd.f32 0.0, %v446
      %448 = vmatmul.bf16.gmra.mxu0 %v307
      %v449 = vpop.f32.mrf.mxu0
      %v450 = vadd.f32 0.0, %v449
      %v451 = vpop.f32.mrf.mxu0
      %v452 = vadd.f32 0.0, %v451
      %453 = vmatmul.bf16.gmra.mxu0 %v308
      %v454 = vpop.f32.mrf.mxu0
      %v455 = vadd.f32 0.0, %v454
      %v456 = vpop.f32.mrf.mxu0
      %v457 = vadd.f32 0.0, %v456
      %458 = vmatmul.bf16.gmra.mxu0 %v309
      %v459 = vpop.f32.mrf.mxu0
      %v460 = vadd.f32 0.0, %v459
      %v461 = vpop.f32.mrf.mxu0
      %v462 = vadd.f32 0.0, %v461
      %463 = vmatmul.bf16.gmra.mxu0 %v310
      %v464 = vpop.f32.mrf.mxu0
      %v465 = vadd.f32 0.0, %v464
      %v466 = vpop.f32.mrf.mxu0
      %v467 = vadd.f32 0.0, %v466
      %468 = vmatmul.bf16.gmra.mxu0 %v311
      %v469 = vpop.f32.mrf.mxu0
      %v470 = vadd.f32 0.0, %v469
      %v471 = vpop.f32.mrf.mxu0
      %v472 = vadd.f32 0.0, %v471
      %473 = vmatmul.bf16.gmra.mxu0 %v312
      %v474 = vpop.f32.mrf.mxu0
      %v475 = vadd.f32 0.0, %v474
      %v476 = vpop.f32.mrf.mxu0
      %v477 = vadd.f32 0.0, %v476
      %478 = vmatmul.bf16.gmra.mxu0 %v313
      %v479 = vpop.f32.mrf.mxu0
      %v480 = vadd.f32 0.0, %v479
      %v481 = vpop.f32.mrf.mxu0
      %v482 = vadd.f32 0.0, %v481
      %483 = vmatmul.bf16.gmra.mxu0 %v314
      %v484 = vpop.f32.mrf.mxu0
      %v485 = vadd.f32 0.0, %v484
      %v486 = vpop.f32.mrf.mxu0
      %v487 = vadd.f32 0.0, %v486
      %488 = vmatmul.bf16.gmra.mxu0 %v315
      %v489 = vpop.f32.mrf.mxu0
      %v490 = vadd.f32 0.0, %v489
      %v491 = vpop.f32.mrf.mxu0
      %492 = vdwg.mxu0
      %v493 = vpack.c.bf16 %v390, %v390
      %v494 = vpack.c.bf16 %v392, %v392
      %v495 = vpack.c.bf16 %v395, %v395
      %v496 = vpack.c.bf16 %v397, %v397
      %v497 = vpack.c.bf16 %v400, %v400
      %v498 = vpack.c.bf16 %v402, %v402
      %v499 = vpack.c.bf16 %v405, %v405
      %v500 = vpack.c.bf16 %v407, %v407
      %v501 = vpack.c.bf16 %v410, %v410
      %v502 = vpack.c.bf16 %v412, %v412
      %v503 = vpack.c.bf16 %v415, %v415
      %v504 = vpack.c.bf16 %v417, %v417
      %v505 = vpack.c.bf16 %v420, %v420
      %v506 = vpack.c.bf16 %v422, %v422
      %v507 = vpack.c.bf16 %v425, %v425
      %v508 = vpack.c.bf16 %v427, %v427
      %v509 = vpack.c.bf16 %v430, %v430
      %v510 = vpack.c.bf16 %v432, %v432
      %v511 = vpack.c.bf16 %v435, %v435
      %v512 = vpack.c.bf16 %v437, %v437
      %v513 = vpack.c.bf16 %v440, %v440
      %v514 = vpack.c.bf16 %v442, %v442
      %v515 = vpack.c.bf16 %v445, %v445
      %v516 = vpack.c.bf16 %v447, %v447
      %v517 = vpack.c.bf16 %v450, %v450
      %v518 = vpack.c.bf16 %v452, %v452
      %v519 = vpack.c.bf16 %v455, %v455
      %v520 = vpack.c.bf16 %v457, %v457
      %v521 = vpack.c.bf16 %v460, %v460
      %v522 = vpack.c.bf16 %v462, %v462
      %v523 = vpack.c.bf16 %v465, %v465
      %v524 = vpack.c.bf16 %v467, %v467
      %v525 = vpack.c.bf16 %v470, %v470
      %v526 = vpack.c.bf16 %v472, %v472
      %v527 = vpack.c.bf16 %v475, %v475
      %v528 = vpack.c.bf16 %v477, %v477
      %v529 = vpack.c.bf16 %v480, %v480
      %v530 = vpack.c.bf16 %v482, %v482
      %v531 = vpack.c.bf16 %v485, %v485
      %v532 = vpack.c.bf16 %v487, %v487
      %v533 = vpack.c.bf16 %v490, %v490
      %534 = vst [vmem:[%s246] sm:$0xf] %v493
      %535 = vst [vmem:[%s246 + $0x4] sm:$0xf] %v494
      %536 = vst [vmem:[%s246 + $0x8] sm:$0xf] %v495
      %537 = vst [vmem:[%s246 + $0xc] sm:$0xf] %v496
      %538 = vst [vmem:[%s246 + $0x10] sm:$0xf] %v497
      %539 = vst [vmem:[%s246 + $0x14] sm:$0xf] %v498
      %540 = vst [vmem:[%s246 + $0x18] sm:$0xf] %v499
      %541 = vst [vmem:[%s246 + $0x1c] sm:$0xf] %v500
      %542 = vst [vmem:[%s246 + $0x20] sm:$0xf] %v501
      %543 = vst [vmem:[%s246 + $0x24] sm:$0xf] %v502
      %544 = vst [vmem:[%s246 + $0x28] sm:$0xf] %v503
      %545 = vst [vmem:[%s246 + $0x2c] sm:$0xf] %v504
      %546 = vst [vmem:[%s246 + $0x30] sm:$0xf] %v505
      %547 = vst [vmem:[%s246 + $0x34] sm:$0xf] %v506
      %548 = vst [vmem:[%s246 + $0x38] sm:$0xf] %v507
      %549 = vst [vmem:[%s246 + $0x3c] sm:$0xf] %v508
      %550 = vst [vmem:[%s246 + $0x40] sm:$0xf] %v509
      %551 = vst [vmem:[%s246 + $0x44] sm:$0xf] %v510
      %552 = vst [vmem:[%s246 + $0x48] sm:$0xf] %v511
      %553 = vst [vmem:[%s246 + $0x4c] sm:$0xf] %v512
      %554 = vst [vmem:[%s246 + $0x50] sm:$0xf] %v513
      %555 = vst [vmem:[%s246 + $0x54] sm:$0xf] %v514
      %556 = vst [vmem:[%s246 + $0x58] sm:$0xf] %v515
      %557 = vst [vmem:[%s246 + $0x5c] sm:$0xf] %v516
      %558 = vst [vmem:[%s246 + $0x60] sm:$0xf] %v517
      %559 = vst [vmem:[%s246 + $0x64] sm:$0xf] %v518
      %560 = vst [vmem:[%s246 + $0x68] sm:$0xf] %v519
      %561 = vst [vmem:[%s246 + $0x6c] sm:$0xf] %v520
      %562 = vst [vmem:[%s246 + $0x70] sm:$0xf] %v521
      %563 = vst [vmem:[%s246 + $0x74] sm:$0xf] %v522
      %564 = vst [vmem:[%s246 + $0x78] sm:$0xf] %v523
      %565 = vst [vmem:[%s246 + $0x7c] sm:$0xf] %v524
      %566 = vst [vmem:[%s246 + $0x80] sm:$0xf] %v525
      %567 = vst [vmem:[%s246 + $0x84] sm:$0xf] %v526
      %568 = vst [vmem:[%s246 + $0x88] sm:$0xf] %v527
      %569 = vst [vmem:[%s246 + $0x8c] sm:$0xf] %v528
      %570 = vst [vmem:[%s246 + $0x90] sm:$0xf] %v529
      %571 = vst [vmem:[%s246 + $0x94] sm:$0xf] %v530
      %572 = vst [vmem:[%s246 + $0x98] sm:$0xf] %v531
      %573 = vst [vmem:[%s246 + $0x9c] sm:$0xf] %v532
      %574 = vst [vmem:[%s246 + $0xa0] sm:$0xf] %v533
      %p575 = scmp.eq.s32.totalorder %s21, 0
      // Predicated region
      $region29: #{_forward_impl.4} parent=27 // pred_check
        %p576 = pneg %p575
      $region30: #{_forward_impl.4} parent=27 // pred_check_branch
        %578 = sbr.rel (%p576) target = $region32
      $region31: #{_forward_impl.4} parent=27 // pred_region
        %579 = vst [vmem:[%s250] sm:$0x1] 0.0
        %580 = vst [vmem:[%s253] sm:$0x1] 0.0
      $region32: #{_forward_impl.4} parent=27 // pred_fallthru
        _
      %v581 = vld [vmem:[%s250] sm:$0x1]
      %v582 = vadd.f32 %v390, %v392
      %v583 = vadd.f32 %v582, %v395
      %v584 = vadd.f32 %v583, %v397
      %v585 = vadd.f32 %v584, %v400
      %v586 = vadd.f32 %v585, %v402
      %v587 = vadd.f32 %v586, %v405
      %v588 = vadd.f32 %v587, %v407
      %v589 = vadd.f32 %v588, %v410
      %v590 = vadd.f32 %v589, %v412
      %v591 = vadd.f32 %v590, %v415
      %v592 = vadd.f32 %v591, %v417
      %v593 = vadd.f32 %v592, %v420
      %v594 = vadd.f32 %v593, %v422
      %v595 = vadd.f32 %v594, %v425
      %v596 = vadd.f32 %v595, %v427
      %v597 = vadd.f32 %v596, %v430
      %v598 = vadd.f32 %v597, %v432
      %v599 = vadd.f32 %v598, %v435
      %v600 = vadd.f32 %v599, %v437
      %v601 = vadd.f32 %v600, %v440
      %v602 = vadd.f32 %v601, %v442
      %v603 = vadd.f32 %v602, %v445
      %v604 = vadd.f32 %v603, %v447
      %v605 = vadd.f32 %v604, %v450
      %v606 = vadd.f32 %v605, %v452
      %v607 = vadd.f32 %v606, %v455
      %v608 = vadd.f32 %v607, %v457
      %v609 = vadd.f32 %v608, %v460
      %v610 = vadd.f32 %v609, %v462
      %v611 = vadd.f32 %v610, %v465
      %v612 = vadd.f32 %v611, %v467
      %v613 = vadd.f32 %v612, %v470
      %v614 = vadd.f32 %v613, %v472
      %v615 = vadd.f32 %v614, %v475
      %v616 = vadd.f32 %v615, %v477
      %v617 = vadd.f32 %v616, %v480
      %v618 = vadd.f32 %v617, %v482
      %v619 = vadd.f32 %v618, %v485
      %v620 = vadd.f32 %v619, %v487
      %v621 = vadd.f32 %v620, %v490
      %v622 = vrot.slane %v621, 4
      %v623 = vadd.f32 %v621, %v622
      %v624 = vrot.slane %v623, 2
      %v625 = vadd.f32 %v623, %v624
      %v626 = vrot.slane %v625, 1
      %v627 = vadd.f32 %v625, %v626
      %v628 = vadd.f32 %v581, %v627
      %629 = vst [vmem:[%s250] sm:$0x1] %v628
      %v630 = vld [vmem:[%s253] sm:$0x1]
      %v631 = vmul.f32 %v390, %v390
      %v632 = vmul.f32 %v392, %v392
      %v633 = vmul.f32 %v395, %v395
      %v634 = vmul.f32 %v397, %v397
      %v635 = vmul.f32 %v400, %v400
      %v636 = vmul.f32 %v402, %v402
      %v637 = vmul.f32 %v405, %v405
      %v638 = vmul.f32 %v407, %v407
      %v639 = vmul.f32 %v410, %v410
      %v640 = vmul.f32 %v412, %v412
      %v641 = vmul.f32 %v415, %v415
      %v642 = vmul.f32 %v417, %v417
      %v643 = vmul.f32 %v420, %v420
      %v644 = vmul.f32 %v422, %v422
      %v645 = vmul.f32 %v425, %v425
      %v646 = vmul.f32 %v427, %v427
      %v647 = vmul.f32 %v430, %v430
      %v648 = vmul.f32 %v432, %v432
      %v649 = vmul.f32 %v435, %v435
      %v650 = vmul.f32 %v437, %v437
      %v651 = vmul.f32 %v440, %v440
      %v652 = vmul.f32 %v442, %v442
      %v653 = vmul.f32 %v445, %v445
      %v654 = vmul.f32 %v447, %v447
      %v655 = vmul.f32 %v450, %v450
      %v656 = vmul.f32 %v452, %v452
      %v657 = vmul.f32 %v455, %v455
      %v658 = vmul.f32 %v457, %v457
      %v659 = vmul.f32 %v460, %v460
      %v660 = vmul.f32 %v462, %v462
      %v661 = vmul.f32 %v465, %v465
      %v662 = vmul.f32 %v467, %v467
      %v663 = vmul.f32 %v470, %v470
      %v664 = vmul.f32 %v472, %v472
      %v665 = vmul.f32 %v475, %v475
      %v666 = vmul.f32 %v477, %v477
      %v667 = vmul.f32 %v480, %v480
      %v668 = vmul.f32 %v482, %v482
      %v669 = vmul.f32 %v485, %v485
      %v670 = vmul.f32 %v487, %v487
      %v671 = vmul.f32 %v490, %v490
      %v672 = vadd.f32 %v631, %v632
      %v673 = vadd.f32 %v672, %v633
      %v674 = vadd.f32 %v673, %v634
      %v675 = vadd.f32 %v674, %v635
      %v676 = vadd.f32 %v675, %v636
      %v677 = vadd.f32 %v676, %v637
      %v678 = vadd.f32 %v677, %v638
      %v679 = vadd.f32 %v678, %v639
      %v680 = vadd.f32 %v679, %v640
      %v681 = vadd.f32 %v680, %v641
      %v682 = vadd.f32 %v681, %v642
      %v683 = vadd.f32 %v682, %v643
      %v684 = vadd.f32 %v683, %v644
      %v685 = vadd.f32 %v684, %v645
      %v686 = vadd.f32 %v685, %v646
      %v687 = vadd.f32 %v686, %v647
      %v688 = vadd.f32 %v687, %v648
      %v689 = vadd.f32 %v688, %v649
      %v690 = vadd.f32 %v689, %v650
      %v691 = vadd.f32 %v690, %v651
      %v692 = vadd.f32 %v691, %v652
      %v693 = vadd.f32 %v692, %v653
      %v694 = vadd.f32 %v693, %v654
      %v695 = vadd.f32 %v694, %v655
      %v696 = vadd.f32 %v695, %v656
      %v697 = vadd.f32 %v696, %v657
      %v698 = vadd.f32 %v697, %v658
      %v699 = vadd.f32 %v698, %v659
      %v700 = vadd.f32 %v699, %v660
      %v701 = vadd.f32 %v700, %v661
      %v702 = vadd.f32 %v701, %v662
      %v703 = vadd.f32 %v702, %v663
      %v704 = vadd.f32 %v703, %v664
      %v705 = vadd.f32 %v704, %v665
      %v706 = vadd.f32 %v705, %v666
      %v707 = vadd.f32 %v706, %v667
      %v708 = vadd.f32 %v707, %v668
      %v709 = vadd.f32 %v708, %v669
      %v710 = vadd.f32 %v709, %v670
      %v711 = vadd.f32 %v710, %v671
      %v712 = vrot.slane %v711, 4
      %v713 = vadd.f32 %v711, %v712
      %v714 = vrot.slane %v713, 2
      %v715 = vadd.f32 %v713, %v714
      %v716 = vrot.slane %v715, 1
      %v717 = vadd.f32 %v715, %v716
      %v718 = vadd.f32 %v630, %v717
      %719 = vst [vmem:[%s253] sm:$0x1] %v718
      %s720 = smul.u32 41, %s21
      %p721 = scmp.lt.s32.totalorder %s20, 1
      %s722 = scalar_select %p721, %s20, 1
      %p723 = scmp.lt.s32.totalorder %s720, 40
      %s724 = scalar_select %p723, %s720, 40
      %s725 = smul.addr %s722, 41
      %s726 = sadd.s32 %s724, %s725
      %s727 = smul.addr %s726, 4
      %s728 = scalar_lea.vmem %s2, %s727
      %p729 = scmp.lt.s32.totalorder %s20, 1
      %s730 = scalar_select %p729, %s20, 1
      %s731 = scalar_lea.vmem %s3, %s730
      %p732 = scmp.lt.s32.totalorder %s20, 1
      %s733 = scalar_select %p732, %s20, 1
      %s734 = scalar_lea.vmem %s4, %s733
      // Predicated region
      $region33: #{_forward_impl.4} parent=27 // pred_check
        %p735 = pneg %p97
      $region34: #{_forward_impl.4} parent=27 // pred_check_branch
        %737 = sbr.rel (%p735) target = $region36
      $region35: #{_forward_impl.4} parent=27 // pred_region
        %s738 = smul.u32 41, %s21
      $region36: #{_forward_impl.4} parent=27 // pred_fallthru
        _
      // Predicated region
      $region37: #{_forward_impl.4} parent=27 // pred_check
        %p739 = pneg %p123
      $region38: #{_forward_impl.4} parent=27 // pred_check_branch
        %741 = sbr.rel (%p739) target = $region40
      $region39: #{_forward_impl.4} parent=27 // pred_region
        _
      $region40: #{_forward_impl.4} parent=27 // pred_fallthru
        _
      // Predicated region
      $region41: #{_forward_impl.4} parent=27 // pred_check
        %p742 = pneg %p149
      $region42: #{_forward_impl.4} parent=27 // pred_check_branch
        %744 = sbr.rel (%p742) target = $region44
      $region43: #{_forward_impl.4} parent=27 // pred_region
        _
      $region44: #{_forward_impl.4} parent=27 // pred_fallthru
        _
    $region28: #{_forward_impl.4} parent=5 // pred_fallthru
      _
    %p745 = scmp.le.s32.totalorder 2, %s11
    // Predicated region
    $region45: #{_forward_impl.4} parent=5 // pred_check
      %p746 = pneg %p745
    $region46: #{_forward_impl.4} parent=5 // pred_check_branch
      %748 = sbr.rel (%p746) target = $region48
    $region47: #{_forward_impl.4} parent=5 // pred_region
      %s749 = ssub.s32 %s11, 2
      // Predicated region
      $region49: #{_forward_impl.4} parent=47 // pred_check
        %p750 = pneg %p103
      $region50: #{_forward_impl.4} parent=47 // pred_check_branch
        %752 = sbr.rel (%p750) target = $region52
      $region51: #{_forward_impl.4} parent=47 // pred_region
        %s753 = smul.u32 41, %s23
        %p754 = scmp.lt.s32.totalorder %s22, 1
        %s755 = scalar_select %p754, %s22, 1
        %p756 = scmp.lt.s32.totalorder %s753, 40
        %s757 = scalar_select %p756, %s753, 40
        %s758 = smul.addr %s755, 41
        %s759 = sadd.s32 %s757, %s758
        %s760 = smul.addr %s759, 4
        %s761 = scalar_lea.vmem %s2, %s760
      $region52: #{_forward_impl.4} parent=47 // pred_fallthru
        _
      // Predicated region
      $region53: #{_forward_impl.4} parent=47 // pred_check
        %p762 = pneg %p129
      $region54: #{_forward_impl.4} parent=47 // pred_check_branch
        %764 = sbr.rel (%p762) target = $region56
      $region55: #{_forward_impl.4} parent=47 // pred_region
        %p765 = scmp.lt.s32.totalorder %s22, 1
        %s766 = scalar_select %p765, %s22, 1
        %s767 = scalar_lea.vmem %s3, %s766
      $region56: #{_forward_impl.4} parent=47 // pred_fallthru
        _
      // Predicated region
      $region57: #{_forward_impl.4} parent=47 // pred_check
        %p768 = pneg %p155
      $region58: #{_forward_impl.4} parent=47 // pred_check_branch
        %770 = sbr.rel (%p768) target = $region60
      $region59: #{_forward_impl.4} parent=47 // pred_region
        %p771 = scmp.lt.s32.totalorder %s22, 1
        %s772 = scalar_select %p771, %s22, 1
        %s773 = scalar_lea.vmem %s4, %s772
      $region60: #{_forward_impl.4} parent=47 // pred_fallthru
        _
    $region48: #{_forward_impl.4} parent=5 // pred_fallthru
      _
  $region6: #{_forward_impl.4} parent=0 // loop_footer
    %s15 = sadd.s32 1, %s11
  $region7: #{_forward_impl.4} parent=0 // loop_footer_branch
    %10 = sbr.rel target = $region3
  $region8: #{_forward_impl.4} parent=0 // loop_exit
    _

// kernel: _forward_impl.6
$region0: #{_forward_impl.6}
  #allocation0 [shape = 'u32[]', space=smem, size = 0x4, offset = 0x4, fixed_abs, tag = 'smem constant byte address 0x4 - core index']
  #allocation1 [shape = 'u32[72,128]{1,0:T(1,128)}', space=vmem, size = 0x9000, scoped, tag = 'internal scratch']
  %s0 = inlined_call_operand.vmem [shape: bf16[2,328,128], index: 0, kind: input, shape index: {}]
  %s1 = inlined_call_operand.vmem [shape: f32[1,1,128], index: 1, kind: input, shape index: {}]
  %s2 = inlined_call_operand.vmem [shape: f32[1,1,128], index: 2, kind: input, shape index: {}]
  %s3 = inlined_call_operand.vmem [shape: bf16[128,128], index: 3, kind: input, shape index: {}]
  %s4 = inlined_call_operand.vmem [shape: f32[328,1], index: 4, kind: input, shape index: {}]
  %s5 = inlined_call_operand.vmem [shape: bf16[2,328,128], index: 5, kind: output, shape index: {0}]
  %s6 = inlined_call_operand.vmem [shape: f32[2,1,128], index: 6, kind: output, shape index: {1}]
  %s7 = inlined_call_operand.vmem [shape: f32[2,1,128], index: 7, kind: output, shape index: {2}]
  %8 = xla_tuple %s5, %s6, %s7
  %s9 = sld [smem:[#allocation0]]
  $region73: #{_forward_impl.6} parent=0
    _
  %s11 = ssub.s32 1, %s9
  %s12 = scalar_select 0, %s11, %s9
  loop: start=0, step=1, limit=4
  $region2: #{_forward_impl.6} parent=0 // loop_pre_header
    _
  $region3: #{_forward_impl.6} parent=0 // loop_header
    %s14 = sphi 0, %s18
    %p15 = scmp.ge.s32.totalorder %s14, 4
    %s21 = sphi 0, %s33
    %s22 = sphi 0, %s29
    %s23 = sphi 0, %s21
    %s24 = sphi 0, %s22
    %s25 = sphi 0, %s23
    %s26 = sphi 0, %s24
    %s38 = sphi 0, %s40
    %s41 = sphi 0, %s38
    %s42 = sphi 0, %s41
    %s58 = sphi 0, %s42
    %s62 = sphi 0, %s62
    %s64 = sphi 0, %s62
    %s65 = sphi 0, %s64
    %s79 = sphi 0, %s65
    %s83 = sphi 0, %s83
    %s85 = sphi 0, %s83
    %s86 = sphi 0, %s85
    %s100 = sphi 0, %s86
    %s104 = sphi 0, %s104
    %s106 = sphi 0, %s104
    %s107 = sphi 0, %s106
    %s121 = sphi 0, %s107
    %s127 = sphi 0, %s129
    %s130 = sphi 0, %s127
    %s131 = sphi 0, %s130
    %s147 = sphi 0, %s131
    %s155 = sphi 0, %s157
    %s158 = sphi 0, %s155
    %s159 = sphi 0, %s158
    %s175 = sphi 0, %s159
    %s181 = sphi 0, %s183
    %s184 = sphi 0, %s181
    %s185 = sphi 0, %s184
    %s201 = sphi 0, %s185
    %s207 = sphi 0, %s209
    %s210 = sphi 0, %s207
    %s211 = sphi 0, %s210
    %s227 = sphi 0, %s211
  $region4: #{_forward_impl.6} parent=0 // loop_header_branch
    %17 = sbr.rel (%p15) target = $region8
  $region5: #{_forward_impl.6} parent=0 // loop_body
    %s19 = ssub.s32 %s14, 1
    %s20 = ssub.s32 %s14, 2
    %s27 = sadd.s32 1, %s22
    %p28 = scmp.ge.s32.totalorder %s27, 1
    %s29 = scalar_select %p28, 0, %s27
    %s30 = sadd.s32 1, %s21
    %s31 = scalar_select %p28, %s30, %s21
    %p32 = scmp.ge.s32.totalorder %s31, 2
    %s33 = scalar_select %p32, 0, %s31
    %s34 = ssub.s32 %s21, %s33
    %s35 = ssub.s32 %s22, %s29
    %s36 = sor.u32 %s34, %s35
    %p37 = scmp.eq.s32.totalorder %s36, 0
    %s39 = sadd.s32 %s38, 1
    %s40 = scalar_select %p37, %s38, %s39
    %p43 = pneg %p37
    %p44 = scmp.eq.s32.totalorder %s14, 1
    %p45 = por %p43, %p44
    %p46 = scmp.ne.s32.totalorder %s38, %s41
    %p47 = scmp.eq.s32.totalorder %s14, 0
    %p48 = por %p46, %p47
    %p49 = scmp.ne.s32.totalorder %s38, %s41
    %p50 = scmp.eq.s32.totalorder %s19, 1
    %p51 = por %p49, %p50
    %p52 = scmp.ne.s32.totalorder %s41, %s42
    %p53 = scmp.eq.s32.totalorder %s19, 0
    %p54 = por %p52, %p53
    %p55 = scmp.ne.s32.totalorder %s41, %s42
    %p56 = scmp.eq.s32.totalorder %s20, 1
    %p57 = por %p55, %p56
    %p59 = scmp.ne.s32.totalorder %s42, %s58
    %p60 = scmp.eq.s32.totalorder %s20, 0
    %p61 = por %p59, %p60
    %s63 = sadd.s32 %s62, 1
    %p66 = scmp.eq.s32.totalorder %s14, 1
    %p67 = scmp.ne.s32.totalorder %s62, %s64
    %p68 = scmp.eq.s32.totalorder %s14, 0
    %p69 = por %p67, %p68
    %p70 = scmp.ne.s32.totalorder %s62, %s64
    %p71 = scmp.eq.s32.totalorder %s19, 1
    %p72 = por %p70, %p71
    %p73 = scmp.ne.s32.totalorder %s64, %s65
    %p74 = scmp.eq.s32.totalorder %s19, 0
    %p75 = por %p73, %p74
    %p76 = scmp.ne.s32.totalorder %s64, %s65
    %p77 = scmp.eq.s32.totalorder %s20, 1
    %p78 = por %p76, %p77
    %p80 = scmp.ne.s32.totalorder %s65, %s79
    %p81 = scmp.eq.s32.totalorder %s20, 0
    %p82 = por %p80, %p81
    %s84 = sadd.s32 %s83, 1
    %p87 = scmp.eq.s32.totalorder %s14, 1
    %p88 = scmp.ne.s32.totalorder %s83, %s85
    %p89 = scmp.eq.s32.totalorder %s14, 0
    %p90 = por %p88, %p89
    %p91 = scmp.ne.s32.totalorder %s83, %s85
    %p92 = scmp.eq.s32.totalorder %s19, 1
    %p93 = por %p91, %p92
    %p94 = scmp.ne.s32.totalorder %s85, %s86
    %p95 = scmp.eq.s32.totalorder %s19, 0
    %p96 = por %p94, %p95
    %p97 = scmp.ne.s32.totalorder %s85, %s86
    %p98 = scmp.eq.s32.totalorder %s20, 1
    %p99 = por %p97, %p98
    %p101 = scmp.ne.s32.totalorder %s86, %s100
    %p102 = scmp.eq.s32.totalorder %s20, 0
    %p103 = por %p101, %p102
    %s105 = sadd.s32 %s104, 1
    %p108 = scmp.eq.s32.totalorder %s14, 1
    %p109 = scmp.ne.s32.totalorder %s104, %s106
    %p110 = scmp.eq.s32.totalorder %s14, 0
    %p111 = por %p109, %p110
    %p112 = scmp.ne.s32.totalorder %s104, %s106
    %p113 = scmp.eq.s32.totalorder %s19, 1
    %p114 = por %p112, %p113
    %p115 = scmp.ne.s32.totalorder %s106, %s107
    %p116 = scmp.eq.s32.totalorder %s19, 0
    %p117 = por %p115, %p116
    %p118 = scmp.ne.s32.totalorder %s106, %s107
    %p119 = scmp.eq.s32.totalorder %s20, 1
    %p120 = por %p118, %p119
    %p122 = scmp.ne.s32.totalorder %s107, %s121
    %p123 = scmp.eq.s32.totalorder %s20, 0
    %p124 = por %p122, %p123
    %s125 = ssub.s32 %s22, %s29
    %p126 = scmp.eq.s32.totalorder %s125, 0
    %s128 = sadd.s32 %s127, 1
    %s129 = scalar_select %p126, %s127, %s128
    %p132 = pneg %p126
    %p133 = scmp.eq.s32.totalorder %s14, 1
    %p134 = por %p132, %p133
    %p135 = scmp.ne.s32.totalorder %s127, %s130
    %p136 = scmp.eq.s32.totalorder %s14, 0
    %p137 = por %p135, %p136
    %p138 = scmp.ne.s32.totalorder %s127, %s130
    %p139 = scmp.eq.s32.totalorder %s19, 1
    %p140 = por %p138, %p139
    %p141 = scmp.ne.s32.totalorder %s130, %s131
    %p142 = scmp.eq.s32.totalorder %s19, 0
    %p143 = por %p141, %p142
    %p144 = scmp.ne.s32.totalorder %s130, %s131
    %p145 = scmp.eq.s32.totalorder %s20, 1
    %p146 = por %p144, %p145
    %p148 = scmp.ne.s32.totalorder %s131, %s147
    %p149 = scmp.eq.s32.totalorder %s20, 0
    %p150 = por %p148, %p149
    %s151 = ssub.s32 %s21, %s33
    %s152 = ssub.s32 %s22, %s29
    %s153 = sor.u32 %s151, %s152
    %p154 = scmp.eq.s32.totalorder %s153, 0
    %s156 = sadd.s32 %s155, 1
    %s157 = scalar_select %p154, %s155, %s156
    %p160 = pneg %p154
    %p161 = scmp.eq.s32.totalorder %s14, 1
    %p162 = por %p160, %p161
    %p163 = scmp.ne.s32.totalorder %s155, %s158
    %p164 = scmp.eq.s32.totalorder %s14, 0
    %p165 = por %p163, %p164
    %p166 = scmp.ne.s32.totalorder %s155, %s158
    %p167 = scmp.eq.s32.totalorder %s19, 1
    %p168 = por %p166, %p167
    %p169 = scmp.ne.s32.totalorder %s158, %s159
    %p170 = scmp.eq.s32.totalorder %s19, 0
    %p171 = por %p169, %p170
    %p172 = scmp.ne.s32.totalorder %s158, %s159
    %p173 = scmp.eq.s32.totalorder %s20, 1
    %p174 = por %p172, %p173
    %p176 = scmp.ne.s32.totalorder %s159, %s175
    %p177 = scmp.eq.s32.totalorder %s20, 0
    %p178 = por %p176, %p177
    %s179 = ssub.s32 %s21, %s33
    %p180 = scmp.eq.s32.totalorder %s179, 0
    %s182 = sadd.s32 %s181, 1
    %s183 = scalar_select %p180, %s181, %s182
    %p186 = pneg %p180
    %p187 = scmp.eq.s32.totalorder %s14, 1
    %p188 = por %p186, %p187
    %p189 = scmp.ne.s32.totalorder %s181, %s184
    %p190 = scmp.eq.s32.totalorder %s14, 0
    %p191 = por %p189, %p190
    %p192 = scmp.ne.s32.totalorder %s181, %s184
    %p193 = scmp.eq.s32.totalorder %s19, 1
    %p194 = por %p192, %p193
    %p195 = scmp.ne.s32.totalorder %s184, %s185
    %p196 = scmp.eq.s32.totalorder %s19, 0
    %p197 = por %p195, %p196
    %p198 = scmp.ne.s32.totalorder %s184, %s185
    %p199 = scmp.eq.s32.totalorder %s20, 1
    %p200 = por %p198, %p199
    %p202 = scmp.ne.s32.totalorder %s185, %s201
    %p203 = scmp.eq.s32.totalorder %s20, 0
    %p204 = por %p202, %p203
    %s205 = ssub.s32 %s21, %s33
    %p206 = scmp.eq.s32.totalorder %s205, 0
    %s208 = sadd.s32 %s207, 1
    %s209 = scalar_select %p206, %s207, %s208
    %p212 = pneg %p206
    %p213 = scmp.eq.s32.totalorder %s14, 1
    %p214 = por %p212, %p213
    %p215 = scmp.ne.s32.totalorder %s207, %s210
    %p216 = scmp.eq.s32.totalorder %s14, 0
    %p217 = por %p215, %p216
    %p218 = scmp.ne.s32.totalorder %s207, %s210
    %p219 = scmp.eq.s32.totalorder %s19, 1
    %p220 = por %p218, %p219
    %p221 = scmp.ne.s32.totalorder %s210, %s211
    %p222 = scmp.eq.s32.totalorder %s19, 0
    %p223 = por %p221, %p222
    %p224 = scmp.ne.s32.totalorder %s210, %s211
    %p225 = scmp.eq.s32.totalorder %s20, 1
    %p226 = por %p224, %p225
    %p228 = scmp.ne.s32.totalorder %s211, %s227
    %p229 = scmp.eq.s32.totalorder %s20, 0
    %p230 = por %p228, %p229
    %p231 = scmp.le.s32.totalorder 1, %s14
    %p232 = scmp.lt.s32.totalorder %s14, 3
    %p233 = pnand %p231, %p232
    %p234 = pneg %p233
    // Predicated region
    $region9: #{_forward_impl.6} parent=5 // pred_check
      _
    $region10: #{_forward_impl.6} parent=5 // pred_check_branch
      %236 = sbr.rel (%p233) target = $region12
    $region11: #{_forward_impl.6} parent=5 // pred_region
      %s237 = ssub.s32 %s14, 1
      // Predicated region
      $region13: #{_forward_impl.6} parent=11 // pred_check
        %p238 = pneg %p75
      $region14: #{_forward_impl.6} parent=11 // pred_check_branch
        %240 = sbr.rel (%p238) target = $region16
      $region15: #{_forward_impl.6} parent=11 // pred_region
        _
      $region16: #{_forward_impl.6} parent=11 // pred_fallthru
        _
      // Predicated region
      $region17: #{_forward_impl.6} parent=11 // pred_check
        %p241 = pneg %p96
      $region18: #{_forward_impl.6} parent=11 // pred_check_branch
        %243 = sbr.rel (%p241) target = $region20
      $region19: #{_forward_impl.6} parent=11 // pred_region
        _
      $region20: #{_forward_impl.6} parent=11 // pred_fallthru
        _
      // Predicated region
      $region21: #{_forward_impl.6} parent=11 // pred_check
        %p244 = pneg %p117
      $region22: #{_forward_impl.6} parent=11 // pred_check_branch
        %246 = sbr.rel (%p244) target = $region24
      $region23: #{_forward_impl.6} parent=11 // pred_region
        _
      $region24: #{_forward_impl.6} parent=11 // pred_fallthru
        _
      // Predicated region
      $region25: #{_forward_impl.6} parent=11 // pred_check
        %p247 = pneg %p143
      $region26: #{_forward_impl.6} parent=11 // pred_check_branch
        %249 = sbr.rel (%p247) target = $region28
      $region27: #{_forward_impl.6} parent=11 // pred_region
        %s250 = smul.u32 41, %s24
        %p251 = scmp.lt.s32.totalorder %s250, 40
        %s252 = scalar_select %p251, %s250, 40
        %s253 = smul.addr %s252, 8
        %s254 = scalar_lea.vmem %s4, %s253
        %s255 = smul.u32 41, %s24
      $region28: #{_forward_impl.6} parent=11 // pred_fallthru
        _
    $region12: #{_forward_impl.6} parent=5 // pred_fallthru
      _
    %p256 = scmp.lt.s32.totalorder %s14, 2
    // Predicated region
    $region29: #{_forward_impl.6} parent=5 // pred_check
      %p257 = pneg %p256
    $region30: #{_forward_impl.6} parent=5 // pred_check_branch
      %259 = sbr.rel (%p257) target = $region32
    $region31: #{_forward_impl.6} parent=5 // pred_region
      // Predicated region
      $region33: #{_forward_impl.6} parent=31 // pred_check
        %p260 = pneg %p48
      $region34: #{_forward_impl.6} parent=31 // pred_check_branch
        %262 = sbr.rel (%p260) target = $region36
      $region35: #{_forward_impl.6} parent=31 // pred_region
        %s263 = smul.u32 41, %s22
        %p264 = scmp.lt.s32.totalorder %s21, 1
        %s265 = scalar_select %p264, %s21, 1
        %p266 = scmp.lt.s32.totalorder %s263, 40
        %s267 = scalar_select %p266, %s263, 40
        %s268 = smul.addr %s265, 41
        %s269 = sadd.s32 %s267, %s268
        %s270 = smul.addr %s269, 4
        %s271 = scalar_lea.vmem %s0, %s270
        %s272 = smul.u32 41, %s22
      $region36: #{_forward_impl.6} parent=31 // pred_fallthru
        _
    $region32: #{_forward_impl.6} parent=5 // pred_fallthru
      _
    %p273 = scmp.le.s32.totalorder 1, %s14
    %p274 = scmp.lt.s32.totalorder %s14, 3
    %p275 = pnand %p273, %p274
    %p276 = pneg %p275
    // Predicated region
    $region37: #{_forward_impl.6} parent=5 // pred_check
      _
    $region38: #{_forward_impl.6} parent=5 // pred_check_branch
      %278 = sbr.rel (%p275) target = $region40
    $region39: #{_forward_impl.6} parent=5 // pred_region
      %s279 = ssub.s32 %s14, 1
      %s280 = smul.u32 41, %s24
      %p281 = scmp.lt.s32.totalorder %s23, 1
      %s282 = scalar_select %p281, %s23, 1
      %p283 = scmp.lt.s32.totalorder %s280, 40
      %s284 = scalar_select %p283, %s280, 40
      %s285 = smul.addr %s282, 41
      %s286 = sadd.s32 %s284, %s285
      %s287 = smul.addr %s286, 4
      %s288 = scalar_lea.vmem %s0, %s287
      %p289 = pneg %p54
      %p290 = pneg %p51
      %p291 = pneg %p75
      %p292 = pneg %p72
      %p293 = pneg %p96
      %p294 = pneg %p93
      %p295 = pneg %p117
      %p296 = pneg %p114
      %s297 = smul.u32 41, %s24
      %p298 = scmp.lt.s32.totalorder %s297, 40
      %s299 = scalar_select %p298, %s297, 40
      %s300 = smul.addr %s299, 8
      %s301 = scalar_lea.vmem %s4, %s300
      %p302 = pneg %p143
      %p303 = pneg %p140
      %p304 = pneg %p171
      %p305 = pneg %p168
      %s306 = smul.u32 41, %s24
      %p307 = scmp.lt.s32.totalorder %s23, 1
      %s308 = scalar_select %p307, %s23, 1
      %p309 = scmp.lt.s32.totalorder %s306, 40
      %s310 = scalar_select %p309, %s306, 40
      %s311 = smul.addr %s308, 41
      %s312 = sadd.s32 %s310, %s311
      %s313 = smul.addr %s312, 4
      %s314 = scalar_lea.vmem %s5, %s313
      %p315 = pneg %p197
      %p316 = pneg %p194
      %p317 = scmp.lt.s32.totalorder %s23, 1
      %s318 = scalar_select %p317, %s23, 1
      %s319 = scalar_lea.vmem %s6, %s318
      %p320 = pneg %p223
      %p321 = pneg %p220
      %p322 = scmp.lt.s32.totalorder %s23, 1
      %s323 = scalar_select %p322, %s23, 1
      %s324 = scalar_lea.vmem %s7, %s323
      %s325 = smul.u32 41, %s24
      %p326 = scmp.lt.s32.totalorder %s23, 1
      %s327 = scalar_select %p326, %s23, 1
      %p328 = scmp.lt.s32.totalorder %s325, 40
      %s329 = scalar_select %p328, %s325, 40
      %s330 = smul.addr %s327, 41
      %s331 = sadd.s32 %s329, %s330
      %s332 = smul.addr %s331, 4
      %s333 = scalar_lea.vmem %s0, %s332
      %s334 = smul.u32 41, %s24
      %s335 = smul.u32 41, %s24
      %p336 = scmp.lt.s32.totalorder %s335, 40
      %s337 = scalar_select %p336, %s335, 40
      %s338 = smul.addr %s337, 8
      %s339 = scalar_lea.vmem %s4, %s338
      %s340 = smul.u32 41, %s24
      %s341 = smul.u32 41, %s24
      %p342 = scmp.lt.s32.totalorder %s23, 1
      %s343 = scalar_select %p342, %s23, 1
      %p344 = scmp.lt.s32.totalorder %s341, 40
      %s345 = scalar_select %p344, %s341, 40
      %s346 = smul.addr %s343, 41
      %s347 = sadd.s32 %s345, %s346
      %s348 = smul.addr %s347, 4
      %s349 = scalar_lea.vmem %s5, %s348
      %s350 = smul.u32 41, %s24
      %p351 = scmp.lt.s32.totalorder %s23, 1
      %s352 = scalar_select %p351, %s23, 1
      %s353 = scalar_lea.vmem %s6, %s352
      %p354 = scmp.lt.s32.totalorder %s23, 1
      %s355 = scalar_select %p354, %s23, 1
      %s356 = scalar_lea.vmem %s7, %s355
      %v357 = vld [vmem:[%s333] sm:$0xf]
      %v358 = vld [vmem:[%s333 + $0x4] sm:$0xf]
      %v359 = vld [vmem:[%s333 + $0x8] sm:$0xf]
      %v360 = vld [vmem:[%s333 + $0xc] sm:$0xf]
      %v361 = vld [vmem:[%s333 + $0x10] sm:$0xf]
      %v362 = vld [vmem:[%s333 + $0x14] sm:$0xf]
      %v363 = vld [vmem:[%s333 + $0x18] sm:$0xf]
      %v364 = vld [vmem:[%s333 + $0x1c] sm:$0xf]
      %v365 = vld [vmem:[%s333 + $0x20] sm:$0xf]
      %v366 = vld [vmem:[%s333 + $0x24] sm:$0xf]
      %v367 = vld [vmem:[%s333 + $0x28] sm:$0xf]
      %v368 = vld [vmem:[%s333 + $0x2c] sm:$0xf]
      %v369 = vld [vmem:[%s333 + $0x30] sm:$0xf]
      %v370 = vld [vmem:[%s333 + $0x34] sm:$0xf]
      %v371 = vld [vmem:[%s333 + $0x38] sm:$0xf]
      %v372 = vld [vmem:[%s333 + $0x3c] sm:$0xf]
      %v373 = vld [vmem:[%s333 + $0x40] sm:$0xf]
      %v374 = vld [vmem:[%s333 + $0x44] sm:$0xf]
      %v375 = vld [vmem:[%s333 + $0x48] sm:$0xf]
      %v376 = vld [vmem:[%s333 + $0x4c] sm:$0xf]
      %v377 = vld [vmem:[%s333 + $0x50] sm:$0xf]
      %v378 = vld [vmem:[%s333 + $0x54] sm:$0xf]
      %v379 = vld [vmem:[%s333 + $0x58] sm:$0xf]
      %v380 = vld [vmem:[%s333 + $0x5c] sm:$0xf]
      %v381 = vld [vmem:[%s333 + $0x60] sm:$0xf]
      %v382 = vld [vmem:[%s333 + $0x64] sm:$0xf]
      %v383 = vld [vmem:[%s333 + $0x68] sm:$0xf]
      %v384 = vld [vmem:[%s333 + $0x6c] sm:$0xf]
      %v385 = vld [vmem:[%s333 + $0x70] sm:$0xf]
      %v386 = vld [vmem:[%s333 + $0x74] sm:$0xf]
      %v387 = vld [vmem:[%s333 + $0x78] sm:$0xf]
      %v388 = vld [vmem:[%s333 + $0x7c] sm:$0xf]
      %v389 = vld [vmem:[%s333 + $0x80] sm:$0xf]
      %v390 = vld [vmem:[%s333 + $0x84] sm:$0xf]
      %v391 = vld [vmem:[%s333 + $0x88] sm:$0xf]
      %v392 = vld [vmem:[%s333 + $0x8c] sm:$0xf]
      %v393 = vld [vmem:[%s333 + $0x90] sm:$0xf]
      %v394 = vld [vmem:[%s333 + $0x94] sm:$0xf]
      %v395 = vld [vmem:[%s333 + $0x98] sm:$0xf]
      %v396 = vld [vmem:[%s333 + $0x9c] sm:$0xf]
      %v397 = vld [vmem:[%s333 + $0xa0] sm:$0xf]
      %v398 = vunpack.c.l.bf16 %v357
      %v399 = vunpack.c.l.bf16 %v358
      %v400 = vunpack.c.l.bf16 %v359
      %v401 = vunpack.c.l.bf16 %v360
      %v402 = vunpack.c.l.bf16 %v361
      %v403 = vunpack.c.l.bf16 %v362
      %v404 = vunpack.c.l.bf16 %v363
      %v405 = vunpack.c.l.bf16 %v364
      %v406 = vunpack.c.l.bf16 %v365
      %v407 = vunpack.c.l.bf16 %v366
      %v408 = vunpack.c.l.bf16 %v367
      %v409 = vunpack.c.l.bf16 %v368
      %v410 = vunpack.c.l.bf16 %v369
      %v411 = vunpack.c.l.bf16 %v370
      %v412 = vunpack.c.l.bf16 %v371
      %v413 = vunpack.c.l.bf16 %v372
      %v414 = vunpack.c.l.bf16 %v373
      %v415 = vunpack.c.l.bf16 %v374
      %v416 = vunpack.c.l.bf16 %v375
      %v417 = vunpack.c.l.bf16 %v376
      %v418 = vunpack.c.l.bf16 %v377
      %v419 = vunpack.c.l.bf16 %v378
      %v420 = vunpack.c.l.bf16 %v379
      %v421 = vunpack.c.l.bf16 %v380
      %v422 = vunpack.c.l.bf16 %v381
      %v423 = vunpack.c.l.bf16 %v382
      %v424 = vunpack.c.l.bf16 %v383
      %v425 = vunpack.c.l.bf16 %v384
      %v426 = vunpack.c.l.bf16 %v385
      %v427 = vunpack.c.l.bf16 %v386
      %v428 = vunpack.c.l.bf16 %v387
      %v429 = vunpack.c.l.bf16 %v388
      %v430 = vunpack.c.l.bf16 %v389
      %v431 = vunpack.c.l.bf16 %v390
      %v432 = vunpack.c.l.bf16 %v391
      %v433 = vunpack.c.l.bf16 %v392
      %v434 = vunpack.c.l.bf16 %v393
      %v435 = vunpack.c.l.bf16 %v394
      %v436 = vunpack.c.l.bf16 %v395
      %v437 = vunpack.c.l.bf16 %v396
      %v438 = vunpack.c.l.bf16 %v397
      %v439 = vld [vmem:[%s1] sm:$0x1]
      %v441 = vperm.slane %v439, 0
      %v443 = vmul.f32 %v398, %v441
      %v444 = vmul.f32 %v399, %v441
      %v445 = vmul.f32 %v400, %v441
      %v446 = vmul.f32 %v401, %v441
      %v447 = vmul.f32 %v402, %v441
      %v448 = vmul.f32 %v403, %v441
      %v449 = vmul.f32 %v404, %v441
      %v450 = vmul.f32 %v405, %v441
      %v451 = vmul.f32 %v406, %v441
      %v452 = vmul.f32 %v407, %v441
      %v453 = vmul.f32 %v408, %v441
      %v454 = vmul.f32 %v409, %v441
      %v455 = vmul.f32 %v410, %v441
      %v456 = vmul.f32 %v411, %v441
      %v457 = vmul.f32 %v412, %v441
      %v458 = vmul.f32 %v413, %v441
      %v459 = vmul.f32 %v414, %v441
      %v460 = vmul.f32 %v415, %v441
      %v461 = vmul.f32 %v416, %v441
      %v462 = vmul.f32 %v417, %v441
      %v463 = vmul.f32 %v418, %v441
      %v464 = vmul.f32 %v419, %v441
      %v465 = vmul.f32 %v420, %v441
      %v466 = vmul.f32 %v421, %v441
      %v467 = vmul.f32 %v422, %v441
      %v468 = vmul.f32 %v423, %v441
      %v469 = vmul.f32 %v424, %v441
      %v470 = vmul.f32 %v425, %v441
      %v471 = vmul.f32 %v426, %v441
      %v472 = vmul.f32 %v427, %v441
      %v473 = vmul.f32 %v428, %v441
      %v474 = vmul.f32 %v429, %v441
      %v475 = vmul.f32 %v430, %v441
      %v476 = vmul.f32 %v431, %v441
      %v477 = vmul.f32 %v432, %v441
      %v478 = vmul.f32 %v433, %v441
      %v479 = vmul.f32 %v434, %v441
      %v480 = vmul.f32 %v435, %v441
      %v481 = vmul.f32 %v436, %v441
      %v482 = vmul.f32 %v437, %v441
      %v483 = vmul.f32 %v438, %v441
      %v484 = vld [vmem:[%s2] sm:$0x1]
      %v486 = vperm.slane %v484, 0
      %v488 = vadd.f32 %v443, %v486
      %v489 = vadd.f32 %v444, %v486
      %v490 = vadd.f32 %v445, %v486
      %v491 = vadd.f32 %v446, %v486
      %v492 = vadd.f32 %v447, %v486
      %v493 = vadd.f32 %v448, %v486
      %v494 = vadd.f32 %v449, %v486
      %v495 = vadd.f32 %v450, %v486
      %v496 = vadd.f32 %v451, %v486
      %v497 = vadd.f32 %v452, %v486
      %v498 = vadd.f32 %v453, %v486
      %v499 = vadd.f32 %v454, %v486
      %v500 = vadd.f32 %v455, %v486
      %v501 = vadd.f32 %v456, %v486
      %v502 = vadd.f32 %v457, %v486
      %v503 = vadd.f32 %v458, %v486
      %v504 = vadd.f32 %v459, %v486
      %v505 = vadd.f32 %v460, %v486
      %v506 = vadd.f32 %v461, %v486
      %v507 = vadd.f32 %v462, %v486
      %v508 = vadd.f32 %v463, %v486
      %v509 = vadd.f32 %v464, %v486
      %v510 = vadd.f32 %v465, %v486
      %v511 = vadd.f32 %v466, %v486
      %v512 = vadd.f32 %v467, %v486
      %v513 = vadd.f32 %v468, %v486
      %v514 = vadd.f32 %v469, %v486
      %v515 = vadd.f32 %v470, %v486
      %v516 = vadd.f32 %v471, %v486
      %v517 = vadd.f32 %v472, %v486
      %v518 = vadd.f32 %v473, %v486
      %v519 = vadd.f32 %v474, %v486
      %v520 = vadd.f32 %v475, %v486
      %v521 = vadd.f32 %v476, %v486
      %v522 = vadd.f32 %v477, %v486
      %v523 = vadd.f32 %v478, %v486
      %v524 = vadd.f32 %v479, %v486
      %v525 = vadd.f32 %v480, %v486
      %v526 = vadd.f32 %v481, %v486
      %v527 = vadd.f32 %v482, %v486
      %v528 = vadd.f32 %v483, %v486
      %v529 = vmax.f32 %v488, 0.0
      %v530 = vmax.f32 %v489, 0.0
      %v531 = vmax.f32 %v490, 0.0
      %v532 = vmax.f32 %v491, 0.0
      %v533 = vmax.f32 %v492, 0.0
      %v534 = vmax.f32 %v493, 0.0
      %v535 = vmax.f32 %v494, 0.0
      %v536 = vmax.f32 %v495, 0.0
      %v537 = vmax.f32 %v496, 0.0
      %v538 = vmax.f32 %v497, 0.0
      %v539 = vmax.f32 %v498, 0.0
      %v540 = vmax.f32 %v499, 0.0
      %v541 = vmax.f32 %v500, 0.0
      %v542 = vmax.f32 %v501, 0.0
      %v543 = vmax.f32 %v502, 0.0
      %v544 = vmax.f32 %v503, 0.0
      %v545 = vmax.f32 %v504, 0.0
      %v546 = vmax.f32 %v505, 0.0
      %v547 = vmax.f32 %v506, 0.0
      %v548 = vmax.f32 %v507, 0.0
      %v549 = vmax.f32 %v508, 0.0
      %v550 = vmax.f32 %v509, 0.0
      %v551 = vmax.f32 %v510, 0.0
      %v552 = vmax.f32 %v511, 0.0
      %v553 = vmax.f32 %v512, 0.0
      %v554 = vmax.f32 %v513, 0.0
      %v555 = vmax.f32 %v514, 0.0
      %v556 = vmax.f32 %v515, 0.0
      %v557 = vmax.f32 %v516, 0.0
      %v558 = vmax.f32 %v517, 0.0
      %v559 = vmax.f32 %v518, 0.0
      %v560 = vmax.f32 %v519, 0.0
      %v561 = vmax.f32 %v520, 0.0
      %v562 = vmax.f32 %v521, 0.0
      %v563 = vmax.f32 %v522, 0.0
      %v564 = vmax.f32 %v523, 0.0
      %v565 = vmax.f32 %v524, 0.0
      %v566 = vmax.f32 %v525, 0.0
      %v567 = vmax.f32 %v526, 0.0
      %v568 = vmax.f32 %v527, 0.0
      %v569 = vmax.f32 %v528, 0.0
      %v570 = vpack.c.bf16 %v530, %v529
      %v571 = vpack.c.bf16 %v532, %v531
      %v572 = vpack.c.bf16 %v534, %v533
      %v573 = vpack.c.bf16 %v536, %v535
      %v574 = vpack.c.bf16 %v538, %v537
      %v575 = vpack.c.bf16 %v540, %v539
      %v576 = vpack.c.bf16 %v542, %v541
      %v577 = vpack.c.bf16 %v544, %v543
      %v578 = vpack.c.bf16 %v546, %v545
      %v579 = vpack.c.bf16 %v548, %v547
      %v580 = vpack.c.bf16 %v550, %v549
      %v581 = vpack.c.bf16 %v552, %v551
      %v582 = vpack.c.bf16 %v554, %v553
      %v583 = vpack.c.bf16 %v556, %v555
      %v584 = vpack.c.bf16 %v558, %v557
      %v585 = vpack.c.bf16 %v560, %v559
      %v586 = vpack.c.bf16 %v562, %v561
      %v587 = vpack.c.bf16 %v564, %v563
      %v588 = vpack.c.bf16 %v566, %v565
      %v589 = vpack.c.bf16 %v568, %v567
      %v590 = vpack.c.bf16 %v569, %v569
      %v591 = vld [vmem:[%s3] sm:$0xf]
      %v592 = vld [vmem:[%s3 + $0x4] sm:$0xf]
      %v593 = vld [vmem:[%s3 + $0x8] sm:$0xf]
      %v594 = vld [vmem:[%s3 + $0xc] sm:$0xf]
      %v595 = vld [vmem:[%s3 + $0x10] sm:$0xf]
      %v596 = vld [vmem:[%s3 + $0x14] sm:$0xf]
      %v597 = vld [vmem:[%s3 + $0x18] sm:$0xf]
      %v598 = vld [vmem:[%s3 + $0x1c] sm:$0xf]
      %v599 = vld [vmem:[%s3 + $0x20] sm:$0xf]
      %v600 = vld [vmem:[%s3 + $0x24] sm:$0xf]
      %v601 = vld [vmem:[%s3 + $0x28] sm:$0xf]
      %v602 = vld [vmem:[%s3 + $0x2c] sm:$0xf]
      %v603 = vld [vmem:[%s3 + $0x30] sm:$0xf]
      %v604 = vld [vmem:[%s3 + $0x34] sm:$0xf]
      %v605 = vld [vmem:[%s3 + $0x38] sm:$0xf]
      %v606 = vld [vmem:[%s3 + $0x3c] sm:$0xf]
      %v623 = vunpack.c.l.b16 %v591
      %v624 = vunpack.c.l.b16 %v592
      %v625 = vunpack.c.l.b16 %v593
      %v626 = vunpack.c.l.b16 %v594
      %v627 = vunpack.c.l.b16 %v595
      %v628 = vunpack.c.l.b16 %v596
      %v629 = vunpack.c.l.b16 %v597
      %v630 = vunpack.c.l.b16 %v598
      %v631 = vunpack.c.l.b16 %v599
      %v632 = vunpack.c.l.b16 %v600
      %v633 = vunpack.c.l.b16 %v601
      %v634 = vunpack.c.l.b16 %v602
      %v635 = vunpack.c.l.b16 %v603
      %v636 = vunpack.c.l.b16 %v604
      %v637 = vunpack.c.l.b16 %v605
      %v638 = vunpack.c.l.b16 %v606
      %v639 = vpack.c.b16 %v624, %v623
      %v640 = vpack.c.b16 %v626, %v625
      %v641 = vpack.c.b16 %v628, %v627
      %v642 = vpack.c.b16 %v630, %v629
      %v643 = vpack.c.b16 %v632, %v631
      %v644 = vpack.c.b16 %v634, %v633
      %v645 = vpack.c.b16 %v636, %v635
      %v646 = vpack.c.b16 %v638, %v637
      %655 = vmatpush.bf16.msra.mxu0 %v646
      %656 = vmatpush.bf16.msra.mxu0 %v645
      %657 = vmatpush.bf16.msra.mxu0 %v644
      %658 = vmatpush.bf16.msra.mxu0 %v643
      %659 = vmatpush.bf16.msra.mxu0 %v642
      %660 = vmatpush.bf16.msra.mxu0 %v641
      %661 = vmatpush.bf16.msra.mxu0 %v640
      %662 = vmatpush.bf16.msra.mxu0 %v639
      %663 = vmatmul.bf16.gmra.mxu0 %v570
      %v664 = vpop.f32.mrf.mxu0
      %v665 = vadd.f32 0.0, %v664
      %v666 = vpop.f32.mrf.mxu0
      %v667 = vadd.f32 0.0, %v666
      %668 = vmatmul.bf16.gmra.mxu0 %v571
      %v669 = vpop.f32.mrf.mxu0
      %v670 = vadd.f32 0.0, %v669
      %v671 = vpop.f32.mrf.mxu0
      %v672 = vadd.f32 0.0, %v671
      %673 = vmatmul.bf16.gmra.mxu0 %v572
      %v674 = vpop.f32.mrf.mxu0
      %v675 = vadd.f32 0.0, %v674
      %v676 = vpop.f32.mrf.mxu0
      %v677 = vadd.f32 0.0, %v676
      %678 = vmatmul.bf16.gmra.mxu0 %v573
      %v679 = vpop.f32.mrf.mxu0
      %v680 = vadd.f32 0.0, %v679
      %v681 = vpop.f32.mrf.mxu0
      %v682 = vadd.f32 0.0, %v681
      %683 = vmatmul.bf16.gmra.mxu0 %v574
      %v684 = vpop.f32.mrf.mxu0
      %v685 = vadd.f32 0.0, %v684
      %v686 = vpop.f32.mrf.mxu0
      %v687 = vadd.f32 0.0, %v686
      %688 = vmatmul.bf16.gmra.mxu0 %v575
      %v689 = vpop.f32.mrf.mxu0
      %v690 = vadd.f32 0.0, %v689
      %v691 = vpop.f32.mrf.mxu0
      %v692 = vadd.f32 0.0, %v691
      %693 = vmatmul.bf16.gmra.mxu0 %v576
      %v694 = vpop.f32.mrf.mxu0
      %v695 = vadd.f32 0.0, %v694
      %v696 = vpop.f32.mrf.mxu0
      %v697 = vadd.f32 0.0, %v696
      %698 = vmatmul.bf16.gmra.mxu0 %v577
      %v699 = vpop.f32.mrf.mxu0
      %v700 = vadd.f32 0.0, %v699
      %v701 = vpop.f32.mrf.mxu0
      %v702 = vadd.f32 0.0, %v701
      %703 = vmatmul.bf16.gmra.mxu0 %v578
      %v704 = vpop.f32.mrf.mxu0
      %v705 = vadd.f32 0.0, %v704
      %v706 = vpop.f32.mrf.mxu0
      %v707 = vadd.f32 0.0, %v706
      %708 = vmatmul.bf16.gmra.mxu0 %v579
      %v709 = vpop.f32.mrf.mxu0
      %v710 = vadd.f32 0.0, %v709
      %v711 = vpop.f32.mrf.mxu0
      %v712 = vadd.f32 0.0, %v711
      %713 = vmatmul.bf16.gmra.mxu0 %v580
      %v714 = vpop.f32.mrf.mxu0
      %v715 = vadd.f32 0.0, %v714
      %v716 = vpop.f32.mrf.mxu0
      %v717 = vadd.f32 0.0, %v716
      %718 = vmatmul.bf16.gmra.mxu0 %v581
      %v719 = vpop.f32.mrf.mxu0
      %v720 = vadd.f32 0.0, %v719
      %v721 = vpop.f32.mrf.mxu0
      %v722 = vadd.f32 0.0, %v721
      %723 = vmatmul.bf16.gmra.mxu0 %v582
      %v724 = vpop.f32.mrf.mxu0
      %v725 = vadd.f32 0.0, %v724
      %v726 = vpop.f32.mrf.mxu0
      %v727 = vadd.f32 0.0, %v726
      %728 = vmatmul.bf16.gmra.mxu0 %v583
      %v729 = vpop.f32.mrf.mxu0
      %v730 = vadd.f32 0.0, %v729
      %v731 = vpop.f32.mrf.mxu0
      %v732 = vadd.f32 0.0, %v731
      %733 = vmatmul.bf16.gmra.mxu0 %v584
      %v734 = vpop.f32.mrf.mxu0
      %v735 = vadd.f32 0.0, %v734
      %v736 = vpop.f32.mrf.mxu0
      %v737 = vadd.f32 0.0, %v736
      %738 = vmatmul.bf16.gmra.mxu0 %v585
      %v739 = vpop.f32.mrf.mxu0
      %v740 = vadd.f32 0.0, %v739
      %v741 = vpop.f32.mrf.mxu0
      %v742 = vadd.f32 0.0, %v741
      %743 = vmatmul.bf16.gmra.mxu0 %v586
      %v744 = vpop.f32.mrf.mxu0
      %v745 = vadd.f32 0.0, %v744
      %v746 = vpop.f32.mrf.mxu0
      %v747 = vadd.f32 0.0, %v746
      %748 = vmatmul.bf16.gmra.mxu0 %v587
      %v749 = vpop.f32.mrf.mxu0
      %v750 = vadd.f32 0.0, %v749
      %v751 = vpop.f32.mrf.mxu0
      %v752 = vadd.f32 0.0, %v751
      %753 = vmatmul.bf16.gmra.mxu0 %v588
      %v754 = vpop.f32.mrf.mxu0
      %v755 = vadd.f32 0.0, %v754
      %v756 = vpop.f32.mrf.mxu0
      %v757 = vadd.f32 0.0, %v756
      %758 = vmatmul.bf16.gmra.mxu0 %v589
      %v759 = vpop.f32.mrf.mxu0
      %v760 = vadd.f32 0.0, %v759
      %v761 = vpop.f32.mrf.mxu0
      %v762 = vadd.f32 0.0, %v761
      %763 = vmatmul.bf16.gmra.mxu0 %v590
      %v764 = vpop.f32.mrf.mxu0
      %v765 = vadd.f32 0.0, %v764
      %v766 = vpop.f32.mrf.mxu0
      %767 = vdwg.mxu0
      %v768 = vpack.c.bf16 %v665, %v665
      %v769 = vpack.c.bf16 %v667, %v667
      %v770 = vpack.c.bf16 %v670, %v670
      %v771 = vpack.c.bf16 %v672, %v672
      %v772 = vpack.c.bf16 %v675, %v675
      %v773 = vpack.c.bf16 %v677, %v677
      %v774 = vpack.c.bf16 %v680, %v680
      %v775 = vpack.c.bf16 %v682, %v682
      %v776 = vpack.c.bf16 %v685, %v685
      %v777 = vpack.c.bf16 %v687, %v687
      %v778 = vpack.c.bf16 %v690, %v690
      %v779 = vpack.c.bf16 %v692, %v692
      %v780 = vpack.c.bf16 %v695, %v695
      %v781 = vpack.c.bf16 %v697, %v697
      %v782 = vpack.c.bf16 %v700, %v700
      %v783 = vpack.c.bf16 %v702, %v702
      %v784 = vpack.c.bf16 %v705, %v705
      %v785 = vpack.c.bf16 %v707, %v707
      %v786 = vpack.c.bf16 %v710, %v710
      %v787 = vpack.c.bf16 %v712, %v712
      %v788 = vpack.c.bf16 %v715, %v715
      %v789 = vpack.c.bf16 %v717, %v717
      %v790 = vpack.c.bf16 %v720, %v720
      %v791 = vpack.c.bf16 %v722, %v722
      %v792 = vpack.c.bf16 %v725, %v725
      %v793 = vpack.c.bf16 %v727, %v727
      %v794 = vpack.c.bf16 %v730, %v730
      %v795 = vpack.c.bf16 %v732, %v732
      %v796 = vpack.c.bf16 %v735, %v735
      %v797 = vpack.c.bf16 %v737, %v737
      %v798 = vpack.c.bf16 %v740, %v740
      %v799 = vpack.c.bf16 %v742, %v742
      %v800 = vpack.c.bf16 %v745, %v745
      %v801 = vpack.c.bf16 %v747, %v747
      %v802 = vpack.c.bf16 %v750, %v750
      %v803 = vpack.c.bf16 %v752, %v752
      %v804 = vpack.c.bf16 %v755, %v755
      %v805 = vpack.c.bf16 %v757, %v757
      %v806 = vpack.c.bf16 %v760, %v760
      %v807 = vpack.c.bf16 %v762, %v762
      %v808 = vpack.c.bf16 %v765, %v765
      %809 = vst [vmem:[%s349] sm:$0xf] %v768
      %810 = vst [vmem:[%s349 + $0x4] sm:$0xf] %v769
      %811 = vst [vmem:[%s349 + $0x8] sm:$0xf] %v770
      %812 = vst [vmem:[%s349 + $0xc] sm:$0xf] %v771
      %813 = vst [vmem:[%s349 + $0x10] sm:$0xf] %v772
      %814 = vst [vmem:[%s349 + $0x14] sm:$0xf] %v773
      %815 = vst [vmem:[%s349 + $0x18] sm:$0xf] %v774
      %816 = vst [vmem:[%s349 + $0x1c] sm:$0xf] %v775
      %817 = vst [vmem:[%s349 + $0x20] sm:$0xf] %v776
      %818 = vst [vmem:[%s349 + $0x24] sm:$0xf] %v777
      %819 = vst [vmem:[%s349 + $0x28] sm:$0xf] %v778
      %820 = vst [vmem:[%s349 + $0x2c] sm:$0xf] %v779
      %821 = vst [vmem:[%s349 + $0x30] sm:$0xf] %v780
      %822 = vst [vmem:[%s349 + $0x34] sm:$0xf] %v781
      %823 = vst [vmem:[%s349 + $0x38] sm:$0xf] %v782
      %824 = vst [vmem:[%s349 + $0x3c] sm:$0xf] %v783
      %825 = vst [vmem:[%s349 + $0x40] sm:$0xf] %v784
      %826 = vst [vmem:[%s349 + $0x44] sm:$0xf] %v785
      %827 = vst [vmem:[%s349 + $0x48] sm:$0xf] %v786
      %828 = vst [vmem:[%s349 + $0x4c] sm:$0xf] %v787
      %829 = vst [vmem:[%s349 + $0x50] sm:$0xf] %v788
      %830 = vst [vmem:[%s349 + $0x54] sm:$0xf] %v789
      %831 = vst [vmem:[%s349 + $0x58] sm:$0xf] %v790
      %832 = vst [vmem:[%s349 + $0x5c] sm:$0xf] %v791
      %833 = vst [vmem:[%s349 + $0x60] sm:$0xf] %v792
      %834 = vst [vmem:[%s349 + $0x64] sm:$0xf] %v793
      %835 = vst [vmem:[%s349 + $0x68] sm:$0xf] %v794
      %836 = vst [vmem:[%s349 + $0x6c] sm:$0xf] %v795
      %837 = vst [vmem:[%s349 + $0x70] sm:$0xf] %v796
      %838 = vst [vmem:[%s349 + $0x74] sm:$0xf] %v797
      %839 = vst [vmem:[%s349 + $0x78] sm:$0xf] %v798
      %840 = vst [vmem:[%s349 + $0x7c] sm:$0xf] %v799
      %841 = vst [vmem:[%s349 + $0x80] sm:$0xf] %v800
      %842 = vst [vmem:[%s349 + $0x84] sm:$0xf] %v801
      %843 = vst [vmem:[%s349 + $0x88] sm:$0xf] %v802
      %844 = vst [vmem:[%s349 + $0x8c] sm:$0xf] %v803
      %845 = vst [vmem:[%s349 + $0x90] sm:$0xf] %v804
      %846 = vst [vmem:[%s349 + $0x94] sm:$0xf] %v805
      %847 = vst [vmem:[%s349 + $0x98] sm:$0xf] %v806
      %848 = vst [vmem:[%s349 + $0x9c] sm:$0xf] %v807
      %849 = vst [vmem:[%s349 + $0xa0] sm:$0xf] %v808
      %p850 = scmp.eq.s32.totalorder %s24, 0
      // Predicated region
      $region41: #{_forward_impl.6} parent=39 // pred_check
        %p851 = pneg %p850
      $region42: #{_forward_impl.6} parent=39 // pred_check_branch
        %853 = sbr.rel (%p851) target = $region44
      $region43: #{_forward_impl.6} parent=39 // pred_region
        %854 = vst [vmem:[%s353] sm:$0x1] 0.0
        %855 = vst [vmem:[%s356] sm:$0x1] 0.0
      $region44: #{_forward_impl.6} parent=39 // pred_fallthru
        _
      %v856 = vld [vmem:[%s339] sm:$0xff]
      %v857 = vld [vmem:[%s339 + $0x8] sm:$0xff]
      %v858 = vld [vmem:[%s339 + $0x10] sm:$0xff]
      %v859 = vld [vmem:[%s339 + $0x18] sm:$0xff]
      %v860 = vld [vmem:[%s339 + $0x20] sm:$0xff]
      %v861 = vld [vmem:[%s339 + $0x28] sm:$0xff]
      %v862 = vld [vmem:[%s339 + $0x30] sm:$0xff]
      %v863 = vld [vmem:[%s339 + $0x38] sm:$0xff]
      %v864 = vld [vmem:[%s339 + $0x40] sm:$0xff]
      %v865 = vld [vmem:[%s339 + $0x48] sm:$0xff]
      %v866 = vld [vmem:[%s339 + $0x50] sm:$0xff]
      %v867 = vld [vmem:[%s339 + $0x58] sm:$0xff]
      %v868 = vld [vmem:[%s339 + $0x60] sm:$0xff]
      %v869 = vld [vmem:[%s339 + $0x68] sm:$0xff]
      %v870 = vld [vmem:[%s339 + $0x70] sm:$0xff]
      %v871 = vld [vmem:[%s339 + $0x78] sm:$0xff]
      %v872 = vld [vmem:[%s339 + $0x80] sm:$0xff]
      %v873 = vld [vmem:[%s339 + $0x88] sm:$0xff]
      %v874 = vld [vmem:[%s339 + $0x90] sm:$0xff]
      %v875 = vld [vmem:[%s339 + $0x98] sm:$0xff]
      %v876 = vld [vmem:[%s339 + $0xa0] sm:$0xff]
      %v877 = vld [vmem:[%s339 + $0xa8] sm:$0xff]
      %v878 = vld [vmem:[%s339 + $0xb0] sm:$0xff]
      %v879 = vld [vmem:[%s339 + $0xb8] sm:$0xff]
      %v880 = vld [vmem:[%s339 + $0xc0] sm:$0xff]
      %v881 = vld [vmem:[%s339 + $0xc8] sm:$0xff]
      %v882 = vld [vmem:[%s339 + $0xd0] sm:$0xff]
      %v883 = vld [vmem:[%s339 + $0xd8] sm:$0xff]
      %v884 = vld [vmem:[%s339 + $0xe0] sm:$0xff]
      %v885 = vld [vmem:[%s339 + $0xe8] sm:$0xff]
      %v886 = vld [vmem:[%s339 + $0xf0] sm:$0xff]
      %v887 = vld [vmem:[%s339 + $0xf8] sm:$0xff]
      %v888 = vld [vmem:[%s339 + $0x100] sm:$0xff]
      %v889 = vld [vmem:[%s339 + $0x108] sm:$0xff]
      %v890 = vld [vmem:[%s339 + $0x110] sm:$0xff]
      %v891 = vld [vmem:[%s339 + $0x118] sm:$0xff]
      %v892 = vld [vmem:[%s339 + $0x120] sm:$0xff]
      %v893 = vld [vmem:[%s339 + $0x128] sm:$0xff]
      %v894 = vld [vmem:[%s339 + $0x130] sm:$0xff]
      %v895 = vld [vmem:[%s339 + $0x138] sm:$0xff]
      %v896 = vld [vmem:[%s339 + $0x140] sm:$0xff]
      %898 = vset.pattern.permute.xlu0 0
      %899 = vperm.xlu0 %898, %v856
      %v900 = vpop.permute.xlu0 %899
      %903 = vset.pattern.permute.xlu0 0
      %904 = vperm.xlu0 %903, %v857
      %v905 = vpop.permute.xlu0 %904
      %908 = vset.pattern.permute.xlu0 0
      %909 = vperm.xlu0 %908, %v858
      %v910 = vpop.permute.xlu0 %909
      %913 = vset.pattern.permute.xlu0 0
      %914 = vperm.xlu0 %913, %v859
      %v915 = vpop.permute.xlu0 %914
      %918 = vset.pattern.permute.xlu0 0
      %919 = vperm.xlu0 %918, %v860
      %v920 = vpop.permute.xlu0 %919
      %923 = vset.pattern.permute.xlu0 0
      %924 = vperm.xlu0 %923, %v861
      %v925 = vpop.permute.xlu0 %924
      %928 = vset.pattern.permute.xlu0 0
      %929 = vperm.xlu0 %928, %v862
      %v930 = vpop.permute.xlu0 %929
      %933 = vset.pattern.permute.xlu0 0
      %934 = vperm.xlu0 %933, %v863
      %v935 = vpop.permute.xlu0 %934
      %938 = vset.pattern.permute.xlu0 0
      %939 = vperm.xlu0 %938, %v864
      %v940 = vpop.permute.xlu0 %939
      %943 = vset.pattern.permute.xlu0 0
      %944 = vperm.xlu0 %943, %v865
      %v945 = vpop.permute.xlu0 %944
      %948 = vset.pattern.permute.xlu0 0
      %949 = vperm.xlu0 %948, %v866
      %v950 = vpop.permute.xlu0 %949
      %953 = vset.pattern.permute.xlu0 0
      %954 = vperm.xlu0 %953, %v867
      %v955 = vpop.permute.xlu0 %954
      %958 = vset.pattern.permute.xlu0 0
      %959 = vperm.xlu0 %958, %v868
      %v960 = vpop.permute.xlu0 %959
      %963 = vset.pattern.permute.xlu0 0
      %964 = vperm.xlu0 %963, %v869
      %v965 = vpop.permute.xlu0 %964
      %968 = vset.pattern.permute.xlu0 0
      %969 = vperm.xlu0 %968, %v870
      %v970 = vpop.permute.xlu0 %969
      %973 = vset.pattern.permute.xlu0 0
      %974 = vperm.xlu0 %973, %v871
      %v975 = vpop.permute.xlu0 %974
      %978 = vset.pattern.permute.xlu0 0
      %979 = vperm.xlu0 %978, %v872
      %v980 = vpop.permute.xlu0 %979
      %983 = vset.pattern.permute.xlu0 0
      %984 = vperm.xlu0 %983, %v873
      %v985 = vpop.permute.xlu0 %984
      %988 = vset.pattern.permute.xlu0 0
      %989 = vperm.xlu0 %988, %v874
      %v990 = vpop.permute.xlu0 %989
      %993 = vset.pattern.permute.xlu0 0
      %994 = vperm.xlu0 %993, %v875
      %v995 = vpop.permute.xlu0 %994
      %998 = vset.pattern.permute.xlu0 0
      %999 = vperm.xlu0 %998, %v876
      %v1000 = vpop.permute.xlu0 %999
      %1003 = vset.pattern.permute.xlu0 0
      %1004 = vperm.xlu0 %1003, %v877
      %v1005 = vpop.permute.xlu0 %1004
      %1008 = vset.pattern.permute.xlu0 0
      %1009 = vperm.xlu0 %1008, %v878
      %v1010 = vpop.permute.xlu0 %1009
      %1013 = vset.pattern.permute.xlu0 0
      %1014 = vperm.xlu0 %1013, %v879
      %v1015 = vpop.permute.xlu0 %1014
      %1018 = vset.pattern.permute.xlu0 0
      %1019 = vperm.xlu0 %1018, %v880
      %v1020 = vpop.permute.xlu0 %1019
      %1023 = vset.pattern.permute.xlu0 0
      %1024 = vperm.xlu0 %1023, %v881
      %v1025 = vpop.permute.xlu0 %1024
      %1028 = vset.pattern.permute.xlu0 0
      %1029 = vperm.xlu0 %1028, %v882
      %v1030 = vpop.permute.xlu0 %1029
      %1033 = vset.pattern.permute.xlu0 0
      %1034 = vperm.xlu0 %1033, %v883
      %v1035 = vpop.permute.xlu0 %1034
      %1038 = vset.pattern.permute.xlu0 0
      %1039 = vperm.xlu0 %1038, %v884
      %v1040 = vpop.permute.xlu0 %1039
      %1043 = vset.pattern.permute.xlu0 0
      %1044 = vperm.xlu0 %1043, %v885
      %v1045 = vpop.permute.xlu0 %1044
      %1048 = vset.pattern.permute.xlu0 0
      %1049 = vperm.xlu0 %1048, %v886
      %v1050 = vpop.permute.xlu0 %1049
      %1053 = vset.pattern.permute.xlu0 0
      %1054 = vperm.xlu0 %1053, %v887
      %v1055 = vpop.permute.xlu0 %1054
      %1058 = vset.pattern.permute.xlu0 0
      %1059 = vperm.xlu0 %1058, %v888
      %v1060 = vpop.permute.xlu0 %1059
      %1063 = vset.pattern.permute.xlu0 0
      %1064 = vperm.xlu0 %1063, %v889
      %v1065 = vpop.permute.xlu0 %1064
      %1068 = vset.pattern.permute.xlu0 0
      %1069 = vperm.xlu0 %1068, %v890
      %v1070 = vpop.permute.xlu0 %1069
      %1073 = vset.pattern.permute.xlu0 0
      %1074 = vperm.xlu0 %1073, %v891
      %v1075 = vpop.permute.xlu0 %1074
      %1078 = vset.pattern.permute.xlu0 0
      %1079 = vperm.xlu0 %1078, %v892
      %v1080 = vpop.permute.xlu0 %1079
      %1083 = vset.pattern.permute.xlu0 0
      %1084 = vperm.xlu0 %1083, %v893
      %v1085 = vpop.permute.xlu0 %1084
      %1088 = vset.pattern.permute.xlu0 0
      %1089 = vperm.xlu0 %1088, %v894
      %v1090 = vpop.permute.xlu0 %1089
      %1093 = vset.pattern.permute.xlu0 0
      %1094 = vperm.xlu0 %1093, %v895
      %v1095 = vpop.permute.xlu0 %1094
      %1098 = vset.pattern.permute.xlu0 0
      %1099 = vperm.xlu0 %1098, %v896
      %v1100 = vpop.permute.xlu0 %1099
      %v1102 = vmul.f32 %v665, %v900
      %v1103 = vmul.f32 %v667, %v905
      %v1104 = vmul.f32 %v670, %v910
      %v1105 = vmul.f32 %v672, %v915
      %v1106 = vmul.f32 %v675, %v920
      %v1107 = vmul.f32 %v677, %v925
      %v1108 = vmul.f32 %v680, %v930
      %v1109 = vmul.f32 %v682, %v935
      %v1110 = vmul.f32 %v685, %v940
      %v1111 = vmul.f32 %v687, %v945
      %v1112 = vmul.f32 %v690, %v950
      %v1113 = vmul.f32 %v692, %v955
      %v1114 = vmul.f32 %v695, %v960
      %v1115 = vmul.f32 %v697, %v965
      %v1116 = vmul.f32 %v700, %v970
      %v1117 = vmul.f32 %v702, %v975
      %v1118 = vmul.f32 %v705, %v980
      %v1119 = vmul.f32 %v707, %v985
      %v1120 = vmul.f32 %v710, %v990
      %v1121 = vmul.f32 %v712, %v995
      %v1122 = vmul.f32 %v715, %v1000
      %v1123 = vmul.f32 %v717, %v1005
      %v1124 = vmul.f32 %v720, %v1010
      %v1125 = vmul.f32 %v722, %v1015
      %v1126 = vmul.f32 %v725, %v1020
      %v1127 = vmul.f32 %v727, %v1025
      %v1128 = vmul.f32 %v730, %v1030
      %v1129 = vmul.f32 %v732, %v1035
      %v1130 = vmul.f32 %v735, %v1040
      %v1131 = vmul.f32 %v737, %v1045
      %v1132 = vmul.f32 %v740, %v1050
      %v1133 = vmul.f32 %v742, %v1055
      %v1134 = vmul.f32 %v745, %v1060
      %v1135 = vmul.f32 %v747, %v1065
      %v1136 = vmul.f32 %v750, %v1070
      %v1137 = vmul.f32 %v752, %v1075
      %v1138 = vmul.f32 %v755, %v1080
      %v1139 = vmul.f32 %v757, %v1085
      %v1140 = vmul.f32 %v760, %v1090
      %v1141 = vmul.f32 %v762, %v1095
      %v1142 = vmul.f32 %v765, %v1100
      %v1143 = vld [vmem:[%s353] sm:$0x1]
      %v1144 = vadd.f32 %v1102, %v1103
      %v1145 = vadd.f32 %v1144, %v1104
      %v1146 = vadd.f32 %v1145, %v1105
      %v1147 = vadd.f32 %v1146, %v1106
      %v1148 = vadd.f32 %v1147, %v1107
      %v1149 = vadd.f32 %v1148, %v1108
      %v1150 = vadd.f32 %v1149, %v1109
      %v1151 = vadd.f32 %v1150, %v1110
      %v1152 = vadd.f32 %v1151, %v1111
      %v1153 = vadd.f32 %v1152, %v1112
      %v1154 = vadd.f32 %v1153, %v1113
      %v1155 = vadd.f32 %v1154, %v1114
      %v1156 = vadd.f32 %v1155, %v1115
      %v1157 = vadd.f32 %v1156, %v1116
      %v1158 = vadd.f32 %v1157, %v1117
      %v1159 = vadd.f32 %v1158, %v1118
      %v1160 = vadd.f32 %v1159, %v1119
      %v1161 = vadd.f32 %v1160, %v1120
      %v1162 = vadd.f32 %v1161, %v1121
      %v1163 = vadd.f32 %v1162, %v1122
      %v1164 = vadd.f32 %v1163, %v1123
      %v1165 = vadd.f32 %v1164, %v1124
      %v1166 = vadd.f32 %v1165, %v1125
      %v1167 = vadd.f32 %v1166, %v1126
      %v1168 = vadd.f32 %v1167, %v1127
      %v1169 = vadd.f32 %v1168, %v1128
      %v1170 = vadd.f32 %v1169, %v1129
      %v1171 = vadd.f32 %v1170, %v1130
      %v1172 = vadd.f32 %v1171, %v1131
      %v1173 = vadd.f32 %v1172, %v1132
      %v1174 = vadd.f32 %v1173, %v1133
      %v1175 = vadd.f32 %v1174, %v1134
      %v1176 = vadd.f32 %v1175, %v1135
      %v1177 = vadd.f32 %v1176, %v1136
      %v1178 = vadd.f32 %v1177, %v1137
      %v1179 = vadd.f32 %v1178, %v1138
      %v1180 = vadd.f32 %v1179, %v1139
      %v1181 = vadd.f32 %v1180, %v1140
      %v1182 = vadd.f32 %v1181, %v1141
      %v1183 = vadd.f32 %v1182, %v1142
      %v1184 = vrot.slane %v1183, 4
      %v1185 = vadd.f32 %v1183, %v1184
      %v1186 = vrot.slane %v1185, 2
      %v1187 = vadd.f32 %v1185, %v1186
      %v1188 = vrot.slane %v1187, 1
      %v1189 = vadd.f32 %v1187, %v1188
      %v1190 = vadd.f32 %v1143, %v1189
      %1191 = vst [vmem:[%s353] sm:$0x1] %v1190
      %v1192 = vld [vmem:[%s356] sm:$0x1]
      %v1193 = vmul.f32 %v665, %v1102
      %v1194 = vmul.f32 %v667, %v1103
      %v1195 = vmul.f32 %v670, %v1104
      %v1196 = vmul.f32 %v672, %v1105
      %v1197 = vmul.f32 %v675, %v1106
      %v1198 = vmul.f32 %v677, %v1107
      %v1199 = vmul.f32 %v680, %v1108
      %v1200 = vmul.f32 %v682, %v1109
      %v1201 = vmul.f32 %v685, %v1110
      %v1202 = vmul.f32 %v687, %v1111
      %v1203 = vmul.f32 %v690, %v1112
      %v1204 = vmul.f32 %v692, %v1113
      %v1205 = vmul.f32 %v695, %v1114
      %v1206 = vmul.f32 %v697, %v1115
      %v1207 = vmul.f32 %v700, %v1116
      %v1208 = vmul.f32 %v702, %v1117
      %v1209 = vmul.f32 %v705, %v1118
      %v1210 = vmul.f32 %v707, %v1119
      %v1211 = vmul.f32 %v710, %v1120
      %v1212 = vmul.f32 %v712, %v1121
      %v1213 = vmul.f32 %v715, %v1122
      %v1214 = vmul.f32 %v717, %v1123
      %v1215 = vmul.f32 %v720, %v1124
      %v1216 = vmul.f32 %v722, %v1125
      %v1217 = vmul.f32 %v725, %v1126
      %v1218 = vmul.f32 %v727, %v1127
      %v1219 = vmul.f32 %v730, %v1128
      %v1220 = vmul.f32 %v732, %v1129
      %v1221 = vmul.f32 %v735, %v1130
      %v1222 = vmul.f32 %v737, %v1131
      %v1223 = vmul.f32 %v740, %v1132
      %v1224 = vmul.f32 %v742, %v1133
      %v1225 = vmul.f32 %v745, %v1134
      %v1226 = vmul.f32 %v747, %v1135
      %v1227 = vmul.f32 %v750, %v1136
      %v1228 = vmul.f32 %v752, %v1137
      %v1229 = vmul.f32 %v755, %v1138
      %v1230 = vmul.f32 %v757, %v1139
      %v1231 = vmul.f32 %v760, %v1140
      %v1232 = vmul.f32 %v762, %v1141
      %v1233 = vmul.f32 %v765, %v1142
      %v1234 = vadd.f32 %v1193, %v1194
      %v1235 = vadd.f32 %v1234, %v1195
      %v1236 = vadd.f32 %v1235, %v1196
      %v1237 = vadd.f32 %v1236, %v1197
      %v1238 = vadd.f32 %v1237, %v1198
      %v1239 = vadd.f32 %v1238, %v1199
      %v1240 = vadd.f32 %v1239, %v1200
      %v1241 = vadd.f32 %v1240, %v1201
      %v1242 = vadd.f32 %v1241, %v1202
      %v1243 = vadd.f32 %v1242, %v1203
      %v1244 = vadd.f32 %v1243, %v1204
      %v1245 = vadd.f32 %v1244, %v1205
      %v1246 = vadd.f32 %v1245, %v1206
      %v1247 = vadd.f32 %v1246, %v1207
      %v1248 = vadd.f32 %v1247, %v1208
      %v1249 = vadd.f32 %v1248, %v1209
      %v1250 = vadd.f32 %v1249, %v1210
      %v1251 = vadd.f32 %v1250, %v1211
      %v1252 = vadd.f32 %v1251, %v1212
      %v1253 = vadd.f32 %v1252, %v1213
      %v1254 = vadd.f32 %v1253, %v1214
      %v1255 = vadd.f32 %v1254, %v1215
      %v1256 = vadd.f32 %v1255, %v1216
      %v1257 = vadd.f32 %v1256, %v1217
      %v1258 = vadd.f32 %v1257, %v1218
      %v1259 = vadd.f32 %v1258, %v1219
      %v1260 = vadd.f32 %v1259, %v1220
      %v1261 = vadd.f32 %v1260, %v1221
      %v1262 = vadd.f32 %v1261, %v1222
      %v1263 = vadd.f32 %v1262, %v1223
      %v1264 = vadd.f32 %v1263, %v1224
      %v1265 = vadd.f32 %v1264, %v1225
      %v1266 = vadd.f32 %v1265, %v1226
      %v1267 = vadd.f32 %v1266, %v1227
      %v1268 = vadd.f32 %v1267, %v1228
      %v1269 = vadd.f32 %v1268, %v1229
      %v1270 = vadd.f32 %v1269, %v1230
      %v1271 = vadd.f32 %v1270, %v1231
      %v1272 = vadd.f32 %v1271, %v1232
      %v1273 = vadd.f32 %v1272, %v1233
      %v1274 = vrot.slane %v1273, 4
      %v1275 = vadd.f32 %v1273, %v1274
      %v1276 = vrot.slane %v1275, 2
      %v1277 = vadd.f32 %v1275, %v1276
      %v1278 = vrot.slane %v1277, 1
      %v1279 = vadd.f32 %v1277, %v1278
      %v1280 = vadd.f32 %v1192, %v1279
      %1281 = vst [vmem:[%s356] sm:$0x1] %v1280
      %s1282 = smul.u32 41, %s24
      %p1283 = scmp.lt.s32.totalorder %s23, 1
      %s1284 = scalar_select %p1283, %s23, 1
      %p1285 = scmp.lt.s32.totalorder %s1282, 40
      %s1286 = scalar_select %p1285, %s1282, 40
      %s1287 = smul.addr %s1284, 41
      %s1288 = sadd.s32 %s1286, %s1287
      %s1289 = smul.addr %s1288, 4
      %s1290 = scalar_lea.vmem %s5, %s1289
      %p1291 = scmp.lt.s32.totalorder %s23, 1
      %s1292 = scalar_select %p1291, %s23, 1
      %s1293 = scalar_lea.vmem %s6, %s1292
      %p1294 = scmp.lt.s32.totalorder %s23, 1
      %s1295 = scalar_select %p1294, %s23, 1
      %s1296 = scalar_lea.vmem %s7, %s1295
      // Predicated region
      $region45: #{_forward_impl.6} parent=39 // pred_check
        %p1297 = pneg %p168
      $region46: #{_forward_impl.6} parent=39 // pred_check_branch
        %1299 = sbr.rel (%p1297) target = $region48
      $region47: #{_forward_impl.6} parent=39 // pred_region
        %s1300 = smul.u32 41, %s24
      $region48: #{_forward_impl.6} parent=39 // pred_fallthru
        _
      // Predicated region
      $region49: #{_forward_impl.6} parent=39 // pred_check
        %p1301 = pneg %p194
      $region50: #{_forward_impl.6} parent=39 // pred_check_branch
        %1303 = sbr.rel (%p1301) target = $region52
      $region51: #{_forward_impl.6} parent=39 // pred_region
        _
      $region52: #{_forward_impl.6} parent=39 // pred_fallthru
        _
      // Predicated region
      $region53: #{_forward_impl.6} parent=39 // pred_check
        %p1304 = pneg %p220
      $region54: #{_forward_impl.6} parent=39 // pred_check_branch
        %1306 = sbr.rel (%p1304) target = $region56
      $region55: #{_forward_impl.6} parent=39 // pred_region
        _
      $region56: #{_forward_impl.6} parent=39 // pred_fallthru
        _
    $region40: #{_forward_impl.6} parent=5 // pred_fallthru
      _
    %p1307 = scmp.le.s32.totalorder 2, %s14
    // Predicated region
    $region57: #{_forward_impl.6} parent=5 // pred_check
      %p1308 = pneg %p1307
    $region58: #{_forward_impl.6} parent=5 // pred_check_branch
      %1310 = sbr.rel (%p1308) target = $region60
    $region59: #{_forward_impl.6} parent=5 // pred_region
      %s1311 = ssub.s32 %s14, 2
      // Predicated region
      $region61: #{_forward_impl.6} parent=59 // pred_check
        %p1312 = pneg %p174
      $region62: #{_forward_impl.6} parent=59 // pred_check_branch
        %1314 = sbr.rel (%p1312) target = $region64
      $region63: #{_forward_impl.6} parent=59 // pred_region
        %s1315 = smul.u32 41, %s26
        %p1316 = scmp.lt.s32.totalorder %s25, 1
        %s1317 = scalar_select %p1316, %s25, 1
        %p1318 = scmp.lt.s32.totalorder %s1315, 40
        %s1319 = scalar_select %p1318, %s1315, 40
        %s1320 = smul.addr %s1317, 41
        %s1321 = sadd.s32 %s1319, %s1320
        %s1322 = smul.addr %s1321, 4
        %s1323 = scalar_lea.vmem %s5, %s1322
      $region64: #{_forward_impl.6} parent=59 // pred_fallthru
        _
      // Predicated region
      $region65: #{_forward_impl.6} parent=59 // pred_check
        %p1324 = pneg %p200
      $region66: #{_forward_impl.6} parent=59 // pred_check_branch
        %1326 = sbr.rel (%p1324) target = $region68
      $region67: #{_forward_impl.6} parent=59 // pred_region
        %p1327 = scmp.lt.s32.totalorder %s25, 1
        %s1328 = scalar_select %p1327, %s25, 1
        %s1329 = scalar_lea.vmem %s6, %s1328
      $region68: #{_forward_impl.6} parent=59 // pred_fallthru
        _
      // Predicated region
      $region69: #{_forward_impl.6} parent=59 // pred_check
        %p1330 = pneg %p226
      $region70: #{_forward_impl.6} parent=59 // pred_check_branch
        %1332 = sbr.rel (%p1330) target = $region72
      $region71: #{_forward_impl.6} parent=59 // pred_region
        %p1333 = scmp.lt.s32.totalorder %s25, 1
        %s1334 = scalar_select %p1333, %s25, 1
        %s1335 = scalar_lea.vmem %s7, %s1334
      $region72: #{_forward_impl.6} parent=59 // pred_fallthru
        _
    $region60: #{_forward_impl.6} parent=5 // pred_fallthru
      _
  $region6: #{_forward_impl.6} parent=0 // loop_footer
    %s18 = sadd.s32 1, %s14
  $region7: #{_forward_impl.6} parent=0 // loop_footer_branch
    %13 = sbr.rel target = $region3
  $region8: #{_forward_impl.6} parent=0 // loop_exit
    _

// kernel: _forward_impl.7
$region0: #{_forward_impl.7}
  #allocation0 [shape = 'u32[]', space=smem, size = 0x4, offset = 0x4, fixed_abs, tag = 'smem constant byte address 0x4 - core index']
  #allocation1 [shape = 'u32[72,128]{1,0:T(1,128)}', space=vmem, size = 0x9000, scoped, tag = 'internal scratch']
  %s0 = inlined_call_operand.vmem [shape: bf16[2,328,128], index: 0, kind: input, shape index: {}]
  %s1 = inlined_call_operand.vmem [shape: f32[2,328,128], index: 1, kind: input, shape index: {}, may-alias: {1,4}]
  %s2 = inlined_call_operand.vmem [shape: f32[1,1,128], index: 2, kind: input, shape index: {}]
  %s3 = inlined_call_operand.vmem [shape: f32[1,1,128], index: 3, kind: input, shape index: {}]
  %s4 = inlined_call_operand.vmem [shape: f32[2,328,128], index: 4, kind: output, shape index: {}, may-alias: {1,4}]
  %s5 = sld [smem:[#allocation0]]
  $region49: #{_forward_impl.7} parent=0
    _
  %s7 = ssub.s32 1, %s5
  %s8 = scalar_select 0, %s7, %s5
  loop: start=0, step=1, limit=4
  $region2: #{_forward_impl.7} parent=0 // loop_pre_header
    _
  $region3: #{_forward_impl.7} parent=0 // loop_header
    %s10 = sphi 0, %s14
    %p11 = scmp.ge.s32.totalorder %s10, 4
    %s17 = sphi 0, %s29
    %s18 = sphi 0, %s25
    %s19 = sphi 0, %s17
    %s20 = sphi 0, %s18
    %s21 = sphi 0, %s19
    %s22 = sphi 0, %s20
    %s34 = sphi 0, %s36
    %s37 = sphi 0, %s34
    %s38 = sphi 0, %s37
    %s54 = sphi 0, %s38
    %s62 = sphi 0, %s64
    %s65 = sphi 0, %s62
    %s66 = sphi 0, %s65
    %s82 = sphi 0, %s66
    %s86 = sphi 0, %s86
    %s88 = sphi 0, %s86
    %s89 = sphi 0, %s88
    %s103 = sphi 0, %s89
    %s107 = sphi 0, %s107
    %s109 = sphi 0, %s107
    %s110 = sphi 0, %s109
    %s124 = sphi 0, %s110
    %s132 = sphi 0, %s134
    %s135 = sphi 0, %s132
    %s136 = sphi 0, %s135
    %s152 = sphi 0, %s136
  $region4: #{_forward_impl.7} parent=0 // loop_header_branch
    %13 = sbr.rel (%p11) target = $region8
  $region5: #{_forward_impl.7} parent=0 // loop_body
    %s15 = ssub.s32 %s10, 1
    %s16 = ssub.s32 %s10, 2
    %s23 = sadd.s32 1, %s18
    %p24 = scmp.ge.s32.totalorder %s23, 1
    %s25 = scalar_select %p24, 0, %s23
    %s26 = sadd.s32 1, %s17
    %s27 = scalar_select %p24, %s26, %s17
    %p28 = scmp.ge.s32.totalorder %s27, 2
    %s29 = scalar_select %p28, 0, %s27
    %s30 = ssub.s32 %s17, %s29
    %s31 = ssub.s32 %s18, %s25
    %s32 = sor.u32 %s30, %s31
    %p33 = scmp.eq.s32.totalorder %s32, 0
    %s35 = sadd.s32 %s34, 1
    %s36 = scalar_select %p33, %s34, %s35
    %p39 = pneg %p33
    %p40 = scmp.eq.s32.totalorder %s10, 1
    %p41 = por %p39, %p40
    %p42 = scmp.ne.s32.totalorder %s34, %s37
    %p43 = scmp.eq.s32.totalorder %s10, 0
    %p44 = por %p42, %p43
    %p45 = scmp.ne.s32.totalorder %s34, %s37
    %p46 = scmp.eq.s32.totalorder %s15, 1
    %p47 = por %p45, %p46
    %p48 = scmp.ne.s32.totalorder %s37, %s38
    %p49 = scmp.eq.s32.totalorder %s15, 0
    %p50 = por %p48, %p49
    %p51 = scmp.ne.s32.totalorder %s37, %s38
    %p52 = scmp.eq.s32.totalorder %s16, 1
    %p53 = por %p51, %p52
    %p55 = scmp.ne.s32.totalorder %s38, %s54
    %p56 = scmp.eq.s32.totalorder %s16, 0
    %p57 = por %p55, %p56
    %s58 = ssub.s32 %s17, %s29
    %s59 = ssub.s32 %s18, %s25
    %s60 = sor.u32 %s58, %s59
    %p61 = scmp.eq.s32.totalorder %s60, 0
    %s63 = sadd.s32 %s62, 1
    %s64 = scalar_select %p61, %s62, %s63
    %p67 = pneg %p61
    %p68 = scmp.eq.s32.totalorder %s10, 1
    %p69 = por %p67, %p68
    %p70 = scmp.ne.s32.totalorder %s62, %s65
    %p71 = scmp.eq.s32.totalorder %s10, 0
    %p72 = por %p70, %p71
    %p73 = scmp.ne.s32.totalorder %s62, %s65
    %p74 = scmp.eq.s32.totalorder %s15, 1
    %p75 = por %p73, %p74
    %p76 = scmp.ne.s32.totalorder %s65, %s66
    %p77 = scmp.eq.s32.totalorder %s15, 0
    %p78 = por %p76, %p77
    %p79 = scmp.ne.s32.totalorder %s65, %s66
    %p80 = scmp.eq.s32.totalorder %s16, 1
    %p81 = por %p79, %p80
    %p83 = scmp.ne.s32.totalorder %s66, %s82
    %p84 = scmp.eq.s32.totalorder %s16, 0
    %p85 = por %p83, %p84
    %s87 = sadd.s32 %s86, 1
    %p90 = scmp.eq.s32.totalorder %s10, 1
    %p91 = scmp.ne.s32.totalorder %s86, %s88
    %p92 = scmp.eq.s32.totalorder %s10, 0
    %p93 = por %p91, %p92
    %p94 = scmp.ne.s32.totalorder %s86, %s88
    %p95 = scmp.eq.s32.totalorder %s15, 1
    %p96 = por %p94, %p95
    %p97 = scmp.ne.s32.totalorder %s88, %s89
    %p98 = scmp.eq.s32.totalorder %s15, 0
    %p99 = por %p97, %p98
    %p100 = scmp.ne.s32.totalorder %s88, %s89
    %p101 = scmp.eq.s32.totalorder %s16, 1
    %p102 = por %p100, %p101
    %p104 = scmp.ne.s32.totalorder %s89, %s103
    %p105 = scmp.eq.s32.totalorder %s16, 0
    %p106 = por %p104, %p105
    %s108 = sadd.s32 %s107, 1
    %p111 = scmp.eq.s32.totalorder %s10, 1
    %p112 = scmp.ne.s32.totalorder %s107, %s109
    %p113 = scmp.eq.s32.totalorder %s10, 0
    %p114 = por %p112, %p113
    %p115 = scmp.ne.s32.totalorder %s107, %s109
    %p116 = scmp.eq.s32.totalorder %s15, 1
    %p117 = por %p115, %p116
    %p118 = scmp.ne.s32.totalorder %s109, %s110
    %p119 = scmp.eq.s32.totalorder %s15, 0
    %p120 = por %p118, %p119
    %p121 = scmp.ne.s32.totalorder %s109, %s110
    %p122 = scmp.eq.s32.totalorder %s16, 1
    %p123 = por %p121, %p122
    %p125 = scmp.ne.s32.totalorder %s110, %s124
    %p126 = scmp.eq.s32.totalorder %s16, 0
    %p127 = por %p125, %p126
    %s128 = ssub.s32 %s17, %s29
    %s129 = ssub.s32 %s18, %s25
    %s130 = sor.u32 %s128, %s129
    %p131 = scmp.eq.s32.totalorder %s130, 0
    %s133 = sadd.s32 %s132, 1
    %s134 = scalar_select %p131, %s132, %s133
    %p137 = pneg %p131
    %p138 = scmp.eq.s32.totalorder %s10, 1
    %p139 = por %p137, %p138
    %p140 = scmp.ne.s32.totalorder %s132, %s135
    %p141 = scmp.eq.s32.totalorder %s10, 0
    %p142 = por %p140, %p141
    %p143 = scmp.ne.s32.totalorder %s132, %s135
    %p144 = scmp.eq.s32.totalorder %s15, 1
    %p145 = por %p143, %p144
    %p146 = scmp.ne.s32.totalorder %s135, %s136
    %p147 = scmp.eq.s32.totalorder %s15, 0
    %p148 = por %p146, %p147
    %p149 = scmp.ne.s32.totalorder %s135, %s136
    %p150 = scmp.eq.s32.totalorder %s16, 1
    %p151 = por %p149, %p150
    %p153 = scmp.ne.s32.totalorder %s136, %s152
    %p154 = scmp.eq.s32.totalorder %s16, 0
    %p155 = por %p153, %p154
    %p156 = scmp.le.s32.totalorder 1, %s10
    %p157 = scmp.lt.s32.totalorder %s10, 3
    %p158 = pnand %p156, %p157
    %p159 = pneg %p158
    // Predicated region
    $region9: #{_forward_impl.7} parent=5 // pred_check
      _
    $region10: #{_forward_impl.7} parent=5 // pred_check_branch
      %161 = sbr.rel (%p158) target = $region12
    $region11: #{_forward_impl.7} parent=5 // pred_region
      %s162 = ssub.s32 %s10, 1
      // Predicated region
      $region13: #{_forward_impl.7} parent=11 // pred_check
        %p163 = pneg %p99
      $region14: #{_forward_impl.7} parent=11 // pred_check_branch
        %165 = sbr.rel (%p163) target = $region16
      $region15: #{_forward_impl.7} parent=11 // pred_region
        _
      $region16: #{_forward_impl.7} parent=11 // pred_fallthru
        _
      // Predicated region
      $region17: #{_forward_impl.7} parent=11 // pred_check
        %p166 = pneg %p120
      $region18: #{_forward_impl.7} parent=11 // pred_check_branch
        %168 = sbr.rel (%p166) target = $region20
      $region19: #{_forward_impl.7} parent=11 // pred_region
        _
      $region20: #{_forward_impl.7} parent=11 // pred_fallthru
        _
    $region12: #{_forward_impl.7} parent=5 // pred_fallthru
      _
    %p169 = scmp.lt.s32.totalorder %s10, 2
    // Predicated region
    $region21: #{_forward_impl.7} parent=5 // pred_check
      %p170 = pneg %p169
    $region22: #{_forward_impl.7} parent=5 // pred_check_branch
      %172 = sbr.rel (%p170) target = $region24
    $region23: #{_forward_impl.7} parent=5 // pred_region
      // Predicated region
      $region25: #{_forward_impl.7} parent=23 // pred_check
        %p173 = pneg %p44
      $region26: #{_forward_impl.7} parent=23 // pred_check_branch
        %175 = sbr.rel (%p173) target = $region28
      $region27: #{_forward_impl.7} parent=23 // pred_region
        %s176 = smul.u32 41, %s18
        %p177 = scmp.lt.s32.totalorder %s17, 1
        %s178 = scalar_select %p177, %s17, 1
        %p179 = scmp.lt.s32.totalorder %s176, 40
        %s180 = scalar_select %p179, %s176, 40
        %s181 = smul.addr %s178, 41
        %s182 = sadd.s32 %s180, %s181
        %s183 = smul.addr %s182, 4
        %s184 = scalar_lea.vmem %s0, %s183
        %s185 = smul.u32 41, %s18
      $region28: #{_forward_impl.7} parent=23 // pred_fallthru
        _
      // Predicated region
      $region29: #{_forward_impl.7} parent=23 // pred_check
        %p186 = pneg %p72
      $region30: #{_forward_impl.7} parent=23 // pred_check_branch
        %188 = sbr.rel (%p186) target = $region32
      $region31: #{_forward_impl.7} parent=23 // pred_region
        %s189 = smul.u32 41, %s18
        %p190 = scmp.lt.s32.totalorder %s17, 1
        %s191 = scalar_select %p190, %s17, 1
        %p192 = scmp.lt.s32.totalorder %s189, 40
        %s193 = scalar_select %p192, %s189, 40
        %s194 = smul.addr %s191, 41
        %s195 = sadd.s32 %s193, %s194
        %s196 = smul.addr %s195, 8
        %s197 = scalar_lea.vmem %s1, %s196
        %s198 = smul.u32 41, %s18
      $region32: #{_forward_impl.7} parent=23 // pred_fallthru
        _
    $region24: #{_forward_impl.7} parent=5 // pred_fallthru
      _
    %p199 = scmp.le.s32.totalorder 1, %s10
    %p200 = scmp.lt.s32.totalorder %s10, 3
    %p201 = pnand %p199, %p200
    %p202 = pneg %p201
    // Predicated region
    $region33: #{_forward_impl.7} parent=5 // pred_check
      _
    $region34: #{_forward_impl.7} parent=5 // pred_check_branch
      %204 = sbr.rel (%p201) target = $region36
    $region35: #{_forward_impl.7} parent=5 // pred_region
      %s205 = ssub.s32 %s10, 1
      %s206 = smul.u32 41, %s20
      %p207 = scmp.lt.s32.totalorder %s19, 1
      %s208 = scalar_select %p207, %s19, 1
      %p209 = scmp.lt.s32.totalorder %s206, 40
      %s210 = scalar_select %p209, %s206, 40
      %s211 = smul.addr %s208, 41
      %s212 = sadd.s32 %s210, %s211
      %s213 = smul.addr %s212, 4
      %s214 = scalar_lea.vmem %s0, %s213
      %p215 = pneg %p50
      %p216 = pneg %p47
      %s217 = smul.u32 41, %s20
      %p218 = scmp.lt.s32.totalorder %s19, 1
      %s219 = scalar_select %p218, %s19, 1
      %p220 = scmp.lt.s32.totalorder %s217, 40
      %s221 = scalar_select %p220, %s217, 40
      %s222 = smul.addr %s219, 41
      %s223 = sadd.s32 %s221, %s222
      %s224 = smul.addr %s223, 8
      %s225 = scalar_lea.vmem %s1, %s224
      %p226 = pneg %p78
      %p227 = pneg %p75
      %p228 = pneg %p99
      %p229 = pneg %p96
      %p230 = pneg %p120
      %p231 = pneg %p117
      %p232 = pneg %p148
      %p233 = pneg %p145
      %s234 = smul.u32 41, %s20
      %p235 = scmp.lt.s32.totalorder %s19, 1
      %s236 = scalar_select %p235, %s19, 1
      %p237 = scmp.lt.s32.totalorder %s234, 40
      %s238 = scalar_select %p237, %s234, 40
      %s239 = smul.addr %s236, 41
      %s240 = sadd.s32 %s238, %s239
      %s241 = smul.addr %s240, 8
      %s242 = scalar_lea.vmem %s4, %s241
      %s243 = smul.u32 41, %s20
      %p244 = scmp.lt.s32.totalorder %s19, 1
      %s245 = scalar_select %p244, %s19, 1
      %p246 = scmp.lt.s32.totalorder %s243, 40
      %s247 = scalar_select %p246, %s243, 40
      %s248 = smul.addr %s245, 41
      %s249 = sadd.s32 %s247, %s248
      %s250 = smul.addr %s249, 4
      %s251 = scalar_lea.vmem %s0, %s250
      %s252 = smul.u32 41, %s20
      %s253 = smul.u32 41, %s20
      %p254 = scmp.lt.s32.totalorder %s19, 1
      %s255 = scalar_select %p254, %s19, 1
      %p256 = scmp.lt.s32.totalorder %s253, 40
      %s257 = scalar_select %p256, %s253, 40
      %s258 = smul.addr %s255, 41
      %s259 = sadd.s32 %s257, %s258
      %s260 = smul.addr %s259, 8
      %s261 = scalar_lea.vmem %s1, %s260
      %s262 = smul.u32 41, %s20
      %s263 = smul.u32 41, %s20
      %p264 = scmp.lt.s32.totalorder %s19, 1
      %s265 = scalar_select %p264, %s19, 1
      %p266 = scmp.lt.s32.totalorder %s263, 40
      %s267 = scalar_select %p266, %s263, 40
      %s268 = smul.addr %s265, 41
      %s269 = sadd.s32 %s267, %s268
      %s270 = smul.addr %s269, 8
      %s271 = scalar_lea.vmem %s4, %s270
      %s272 = smul.u32 41, %s20
      %v273 = vld [vmem:[%s251] sm:$0xf]
      %v274 = vld [vmem:[%s251 + $0x4] sm:$0xf]
      %v275 = vld [vmem:[%s251 + $0x8] sm:$0xf]
      %v276 = vld [vmem:[%s251 + $0xc] sm:$0xf]
      %v277 = vld [vmem:[%s251 + $0x10] sm:$0xf]
      %v278 = vld [vmem:[%s251 + $0x14] sm:$0xf]
      %v279 = vld [vmem:[%s251 + $0x18] sm:$0xf]
      %v280 = vld [vmem:[%s251 + $0x1c] sm:$0xf]
      %v281 = vld [vmem:[%s251 + $0x20] sm:$0xf]
      %v282 = vld [vmem:[%s251 + $0x24] sm:$0xf]
      %v283 = vld [vmem:[%s251 + $0x28] sm:$0xf]
      %v284 = vld [vmem:[%s251 + $0x2c] sm:$0xf]
      %v285 = vld [vmem:[%s251 + $0x30] sm:$0xf]
      %v286 = vld [vmem:[%s251 + $0x34] sm:$0xf]
      %v287 = vld [vmem:[%s251 + $0x38] sm:$0xf]
      %v288 = vld [vmem:[%s251 + $0x3c] sm:$0xf]
      %v289 = vld [vmem:[%s251 + $0x40] sm:$0xf]
      %v290 = vld [vmem:[%s251 + $0x44] sm:$0xf]
      %v291 = vld [vmem:[%s251 + $0x48] sm:$0xf]
      %v292 = vld [vmem:[%s251 + $0x4c] sm:$0xf]
      %v293 = vld [vmem:[%s251 + $0x50] sm:$0xf]
      %v294 = vld [vmem:[%s251 + $0x54] sm:$0xf]
      %v295 = vld [vmem:[%s251 + $0x58] sm:$0xf]
      %v296 = vld [vmem:[%s251 + $0x5c] sm:$0xf]
      %v297 = vld [vmem:[%s251 + $0x60] sm:$0xf]
      %v298 = vld [vmem:[%s251 + $0x64] sm:$0xf]
      %v299 = vld [vmem:[%s251 + $0x68] sm:$0xf]
      %v300 = vld [vmem:[%s251 + $0x6c] sm:$0xf]
      %v301 = vld [vmem:[%s251 + $0x70] sm:$0xf]
      %v302 = vld [vmem:[%s251 + $0x74] sm:$0xf]
      %v303 = vld [vmem:[%s251 + $0x78] sm:$0xf]
      %v304 = vld [vmem:[%s251 + $0x7c] sm:$0xf]
      %v305 = vld [vmem:[%s251 + $0x80] sm:$0xf]
      %v306 = vld [vmem:[%s251 + $0x84] sm:$0xf]
      %v307 = vld [vmem:[%s251 + $0x88] sm:$0xf]
      %v308 = vld [vmem:[%s251 + $0x8c] sm:$0xf]
      %v309 = vld [vmem:[%s251 + $0x90] sm:$0xf]
      %v310 = vld [vmem:[%s251 + $0x94] sm:$0xf]
      %v311 = vld [vmem:[%s251 + $0x98] sm:$0xf]
      %v312 = vld [vmem:[%s251 + $0x9c] sm:$0xf]
      %v313 = vld [vmem:[%s251 + $0xa0] sm:$0xf]
      %v314 = vunpack.c.l.bf16 %v273
      %v315 = vunpack.c.l.bf16 %v274
      %v316 = vunpack.c.l.bf16 %v275
      %v317 = vunpack.c.l.bf16 %v276
      %v318 = vunpack.c.l.bf16 %v277
      %v319 = vunpack.c.l.bf16 %v278
      %v320 = vunpack.c.l.bf16 %v279
      %v321 = vunpack.c.l.bf16 %v280
      %v322 = vunpack.c.l.bf16 %v281
      %v323 = vunpack.c.l.bf16 %v282
      %v324 = vunpack.c.l.bf16 %v283
      %v325 = vunpack.c.l.bf16 %v284
      %v326 = vunpack.c.l.bf16 %v285
      %v327 = vunpack.c.l.bf16 %v286
      %v328 = vunpack.c.l.bf16 %v287
      %v329 = vunpack.c.l.bf16 %v288
      %v330 = vunpack.c.l.bf16 %v289
      %v331 = vunpack.c.l.bf16 %v290
      %v332 = vunpack.c.l.bf16 %v291
      %v333 = vunpack.c.l.bf16 %v292
      %v334 = vunpack.c.l.bf16 %v293
      %v335 = vunpack.c.l.bf16 %v294
      %v336 = vunpack.c.l.bf16 %v295
      %v337 = vunpack.c.l.bf16 %v296
      %v338 = vunpack.c.l.bf16 %v297
      %v339 = vunpack.c.l.bf16 %v298
      %v340 = vunpack.c.l.bf16 %v299
      %v341 = vunpack.c.l.bf16 %v300
      %v342 = vunpack.c.l.bf16 %v301
      %v343 = vunpack.c.l.bf16 %v302
      %v344 = vunpack.c.l.bf16 %v303
      %v345 = vunpack.c.l.bf16 %v304
      %v346 = vunpack.c.l.bf16 %v305
      %v347 = vunpack.c.l.bf16 %v306
      %v348 = vunpack.c.l.bf16 %v307
      %v349 = vunpack.c.l.bf16 %v308
      %v350 = vunpack.c.l.bf16 %v309
      %v351 = vunpack.c.l.bf16 %v310
      %v352 = vunpack.c.l.bf16 %v311
      %v353 = vunpack.c.l.bf16 %v312
      %v354 = vunpack.c.l.bf16 %v313
      %v355 = vld [vmem:[%s2] sm:$0x1]
      %v357 = vperm.slane %v355, 0
      %v359 = vmul.f32 %v314, %v357
      %v360 = vmul.f32 %v315, %v357
      %v361 = vmul.f32 %v316, %v357
      %v362 = vmul.f32 %v317, %v357
      %v363 = vmul.f32 %v318, %v357
      %v364 = vmul.f32 %v319, %v357
      %v365 = vmul.f32 %v320, %v357
      %v366 = vmul.f32 %v321, %v357
      %v367 = vmul.f32 %v322, %v357
      %v368 = vmul.f32 %v323, %v357
      %v369 = vmul.f32 %v324, %v357
      %v370 = vmul.f32 %v325, %v357
      %v371 = vmul.f32 %v326, %v357
      %v372 = vmul.f32 %v327, %v357
      %v373 = vmul.f32 %v328, %v357
      %v374 = vmul.f32 %v329, %v357
      %v375 = vmul.f32 %v330, %v357
      %v376 = vmul.f32 %v331, %v357
      %v377 = vmul.f32 %v332, %v357
      %v378 = vmul.f32 %v333, %v357
      %v379 = vmul.f32 %v334, %v357
      %v380 = vmul.f32 %v335, %v357
      %v381 = vmul.f32 %v336, %v357
      %v382 = vmul.f32 %v337, %v357
      %v383 = vmul.f32 %v338, %v357
      %v384 = vmul.f32 %v339, %v357
      %v385 = vmul.f32 %v340, %v357
      %v386 = vmul.f32 %v341, %v357
      %v387 = vmul.f32 %v342, %v357
      %v388 = vmul.f32 %v343, %v357
      %v389 = vmul.f32 %v344, %v357
      %v390 = vmul.f32 %v345, %v357
      %v391 = vmul.f32 %v346, %v357
      %v392 = vmul.f32 %v347, %v357
      %v393 = vmul.f32 %v348, %v357
      %v394 = vmul.f32 %v349, %v357
      %v395 = vmul.f32 %v350, %v357
      %v396 = vmul.f32 %v351, %v357
      %v397 = vmul.f32 %v352, %v357
      %v398 = vmul.f32 %v353, %v357
      %v399 = vmul.f32 %v354, %v357
      %v400 = vld [vmem:[%s3] sm:$0x1]
      %v402 = vperm.slane %v400, 0
      %v404 = vadd.f32 %v359, %v402
      %v405 = vadd.f32 %v360, %v402
      %v406 = vadd.f32 %v361, %v402
      %v407 = vadd.f32 %v362, %v402
      %v408 = vadd.f32 %v363, %v402
      %v409 = vadd.f32 %v364, %v402
      %v410 = vadd.f32 %v365, %v402
      %v411 = vadd.f32 %v366, %v402
      %v412 = vadd.f32 %v367, %v402
      %v413 = vadd.f32 %v368, %v402
      %v414 = vadd.f32 %v369, %v402
      %v415 = vadd.f32 %v370, %v402
      %v416 = vadd.f32 %v371, %v402
      %v417 = vadd.f32 %v372, %v402
      %v418 = vadd.f32 %v373, %v402
      %v419 = vadd.f32 %v374, %v402
      %v420 = vadd.f32 %v375, %v402
      %v421 = vadd.f32 %v376, %v402
      %v422 = vadd.f32 %v377, %v402
      %v423 = vadd.f32 %v378, %v402
      %v424 = vadd.f32 %v379, %v402
      %v425 = vadd.f32 %v380, %v402
      %v426 = vadd.f32 %v381, %v402
      %v427 = vadd.f32 %v382, %v402
      %v428 = vadd.f32 %v383, %v402
      %v429 = vadd.f32 %v384, %v402
      %v430 = vadd.f32 %v385, %v402
      %v431 = vadd.f32 %v386, %v402
      %v432 = vadd.f32 %v387, %v402
      %v433 = vadd.f32 %v388, %v402
      %v434 = vadd.f32 %v389, %v402
      %v435 = vadd.f32 %v390, %v402
      %v436 = vadd.f32 %v391, %v402
      %v437 = vadd.f32 %v392, %v402
      %v438 = vadd.f32 %v393, %v402
      %v439 = vadd.f32 %v394, %v402
      %v440 = vadd.f32 %v395, %v402
      %v441 = vadd.f32 %v396, %v402
      %v442 = vadd.f32 %v397, %v402
      %v443 = vadd.f32 %v398, %v402
      %v444 = vadd.f32 %v399, %v402
      %v445 = vld [vmem:[%s261] sm:$0xff]
      %v446 = vld [vmem:[%s261 + $0x8] sm:$0xff]
      %v447 = vld [vmem:[%s261 + $0x10] sm:$0xff]
      %v448 = vld [vmem:[%s261 + $0x18] sm:$0xff]
      %v449 = vld [vmem:[%s261 + $0x20] sm:$0xff]
      %v450 = vld [vmem:[%s261 + $0x28] sm:$0xff]
      %v451 = vld [vmem:[%s261 + $0x30] sm:$0xff]
      %v452 = vld [vmem:[%s261 + $0x38] sm:$0xff]
      %v453 = vld [vmem:[%s261 + $0x40] sm:$0xff]
      %v454 = vld [vmem:[%s261 + $0x48] sm:$0xff]
      %v455 = vld [vmem:[%s261 + $0x50] sm:$0xff]
      %v456 = vld [vmem:[%s261 + $0x58] sm:$0xff]
      %v457 = vld [vmem:[%s261 + $0x60] sm:$0xff]
      %v458 = vld [vmem:[%s261 + $0x68] sm:$0xff]
      %v459 = vld [vmem:[%s261 + $0x70] sm:$0xff]
      %v460 = vld [vmem:[%s261 + $0x78] sm:$0xff]
      %v461 = vld [vmem:[%s261 + $0x80] sm:$0xff]
      %v462 = vld [vmem:[%s261 + $0x88] sm:$0xff]
      %v463 = vld [vmem:[%s261 + $0x90] sm:$0xff]
      %v464 = vld [vmem:[%s261 + $0x98] sm:$0xff]
      %v465 = vld [vmem:[%s261 + $0xa0] sm:$0xff]
      %v466 = vld [vmem:[%s261 + $0xa8] sm:$0xff]
      %v467 = vld [vmem:[%s261 + $0xb0] sm:$0xff]
      %v468 = vld [vmem:[%s261 + $0xb8] sm:$0xff]
      %v469 = vld [vmem:[%s261 + $0xc0] sm:$0xff]
      %v470 = vld [vmem:[%s261 + $0xc8] sm:$0xff]
      %v471 = vld [vmem:[%s261 + $0xd0] sm:$0xff]
      %v472 = vld [vmem:[%s261 + $0xd8] sm:$0xff]
      %v473 = vld [vmem:[%s261 + $0xe0] sm:$0xff]
      %v474 = vld [vmem:[%s261 + $0xe8] sm:$0xff]
      %v475 = vld [vmem:[%s261 + $0xf0] sm:$0xff]
      %v476 = vld [vmem:[%s261 + $0xf8] sm:$0xff]
      %v477 = vld [vmem:[%s261 + $0x100] sm:$0xff]
      %v478 = vld [vmem:[%s261 + $0x108] sm:$0xff]
      %v479 = vld [vmem:[%s261 + $0x110] sm:$0xff]
      %v480 = vld [vmem:[%s261 + $0x118] sm:$0xff]
      %v481 = vld [vmem:[%s261 + $0x120] sm:$0xff]
      %v482 = vld [vmem:[%s261 + $0x128] sm:$0xff]
      %v483 = vld [vmem:[%s261 + $0x130] sm:$0xff]
      %v484 = vld [vmem:[%s261 + $0x138] sm:$0xff]
      %v485 = vld [vmem:[%s261 + $0x140] sm:$0xff]
      %v486 = vadd.f32 %v404, %v445
      %v487 = vadd.f32 %v405, %v446
      %v488 = vadd.f32 %v406, %v447
      %v489 = vadd.f32 %v407, %v448
      %v490 = vadd.f32 %v408, %v449
      %v491 = vadd.f32 %v409, %v450
      %v492 = vadd.f32 %v410, %v451
      %v493 = vadd.f32 %v411, %v452
      %v494 = vadd.f32 %v412, %v453
      %v495 = vadd.f32 %v413, %v454
      %v496 = vadd.f32 %v414, %v455
      %v497 = vadd.f32 %v415, %v456
      %v498 = vadd.f32 %v416, %v457
      %v499 = vadd.f32 %v417, %v458
      %v500 = vadd.f32 %v418, %v459
      %v501 = vadd.f32 %v419, %v460
      %v502 = vadd.f32 %v420, %v461
      %v503 = vadd.f32 %v421, %v462
      %v504 = vadd.f32 %v422, %v463
      %v505 = vadd.f32 %v423, %v464
      %v506 = vadd.f32 %v424, %v465
      %v507 = vadd.f32 %v425, %v466
      %v508 = vadd.f32 %v426, %v467
      %v509 = vadd.f32 %v427, %v468
      %v510 = vadd.f32 %v428, %v469
      %v511 = vadd.f32 %v429, %v470
      %v512 = vadd.f32 %v430, %v471
      %v513 = vadd.f32 %v431, %v472
      %v514 = vadd.f32 %v432, %v473
      %v515 = vadd.f32 %v433, %v474
      %v516 = vadd.f32 %v434, %v475
      %v517 = vadd.f32 %v435, %v476
      %v518 = vadd.f32 %v436, %v477
      %v519 = vadd.f32 %v437, %v478
      %v520 = vadd.f32 %v438, %v479
      %v521 = vadd.f32 %v439, %v480
      %v522 = vadd.f32 %v440, %v481
      %v523 = vadd.f32 %v441, %v482
      %v524 = vadd.f32 %v442, %v483
      %v525 = vadd.f32 %v443, %v484
      %v526 = vadd.f32 %v444, %v485
      %v527 = vmax.f32 %v486, 0.0
      %v528 = vmax.f32 %v487, 0.0
      %v529 = vmax.f32 %v488, 0.0
      %v530 = vmax.f32 %v489, 0.0
      %v531 = vmax.f32 %v490, 0.0
      %v532 = vmax.f32 %v491, 0.0
      %v533 = vmax.f32 %v492, 0.0
      %v534 = vmax.f32 %v493, 0.0
      %v535 = vmax.f32 %v494, 0.0
      %v536 = vmax.f32 %v495, 0.0
      %v537 = vmax.f32 %v496, 0.0
      %v538 = vmax.f32 %v497, 0.0
      %v539 = vmax.f32 %v498, 0.0
      %v540 = vmax.f32 %v499, 0.0
      %v541 = vmax.f32 %v500, 0.0
      %v542 = vmax.f32 %v501, 0.0
      %v543 = vmax.f32 %v502, 0.0
      %v544 = vmax.f32 %v503, 0.0
      %v545 = vmax.f32 %v504, 0.0
      %v546 = vmax.f32 %v505, 0.0
      %v547 = vmax.f32 %v506, 0.0
      %v548 = vmax.f32 %v507, 0.0
      %v549 = vmax.f32 %v508, 0.0
      %v550 = vmax.f32 %v509, 0.0
      %v551 = vmax.f32 %v510, 0.0
      %v552 = vmax.f32 %v511, 0.0
      %v553 = vmax.f32 %v512, 0.0
      %v554 = vmax.f32 %v513, 0.0
      %v555 = vmax.f32 %v514, 0.0
      %v556 = vmax.f32 %v515, 0.0
      %v557 = vmax.f32 %v516, 0.0
      %v558 = vmax.f32 %v517, 0.0
      %v559 = vmax.f32 %v518, 0.0
      %v560 = vmax.f32 %v519, 0.0
      %v561 = vmax.f32 %v520, 0.0
      %v562 = vmax.f32 %v521, 0.0
      %v563 = vmax.f32 %v522, 0.0
      %v564 = vmax.f32 %v523, 0.0
      %v565 = vmax.f32 %v524, 0.0
      %v566 = vmax.f32 %v525, 0.0
      %v567 = vmax.f32 %v526, 0.0
      %568 = vst [vmem:[%s271] sm:$0xff] %v527
      %569 = vst [vmem:[%s271 + $0x8] sm:$0xff] %v528
      %570 = vst [vmem:[%s271 + $0x10] sm:$0xff] %v529
      %571 = vst [vmem:[%s271 + $0x18] sm:$0xff] %v530
      %572 = vst [vmem:[%s271 + $0x20] sm:$0xff] %v531
      %573 = vst [vmem:[%s271 + $0x28] sm:$0xff] %v532
      %574 = vst [vmem:[%s271 + $0x30] sm:$0xff] %v533
      %575 = vst [vmem:[%s271 + $0x38] sm:$0xff] %v534
      %576 = vst [vmem:[%s271 + $0x40] sm:$0xff] %v535
      %577 = vst [vmem:[%s271 + $0x48] sm:$0xff] %v536
      %578 = vst [vmem:[%s271 + $0x50] sm:$0xff] %v537
      %579 = vst [vmem:[%s271 + $0x58] sm:$0xff] %v538
      %580 = vst [vmem:[%s271 + $0x60] sm:$0xff] %v539
      %581 = vst [vmem:[%s271 + $0x68] sm:$0xff] %v540
      %582 = vst [vmem:[%s271 + $0x70] sm:$0xff] %v541
      %583 = vst [vmem:[%s271 + $0x78] sm:$0xff] %v542
      %584 = vst [vmem:[%s271 + $0x80] sm:$0xff] %v543
      %585 = vst [vmem:[%s271 + $0x88] sm:$0xff] %v544
      %586 = vst [vmem:[%s271 + $0x90] sm:$0xff] %v545
      %587 = vst [vmem:[%s271 + $0x98] sm:$0xff] %v546
      %588 = vst [vmem:[%s271 + $0xa0] sm:$0xff] %v547
      %589 = vst [vmem:[%s271 + $0xa8] sm:$0xff] %v548
      %590 = vst [vmem:[%s271 + $0xb0] sm:$0xff] %v549
      %591 = vst [vmem:[%s271 + $0xb8] sm:$0xff] %v550
      %592 = vst [vmem:[%s271 + $0xc0] sm:$0xff] %v551
      %593 = vst [vmem:[%s271 + $0xc8] sm:$0xff] %v552
      %594 = vst [vmem:[%s271 + $0xd0] sm:$0xff] %v553
      %595 = vst [vmem:[%s271 + $0xd8] sm:$0xff] %v554
      %596 = vst [vmem:[%s271 + $0xe0] sm:$0xff] %v555
      %597 = vst [vmem:[%s271 + $0xe8] sm:$0xff] %v556
      %598 = vst [vmem:[%s271 + $0xf0] sm:$0xff] %v557
      %599 = vst [vmem:[%s271 + $0xf8] sm:$0xff] %v558
      %600 = vst [vmem:[%s271 + $0x100] sm:$0xff] %v559
      %601 = vst [vmem:[%s271 + $0x108] sm:$0xff] %v560
      %602 = vst [vmem:[%s271 + $0x110] sm:$0xff] %v561
      %603 = vst [vmem:[%s271 + $0x118] sm:$0xff] %v562
      %604 = vst [vmem:[%s271 + $0x120] sm:$0xff] %v563
      %605 = vst [vmem:[%s271 + $0x128] sm:$0xff] %v564
      %606 = vst [vmem:[%s271 + $0x130] sm:$0xff] %v565
      %607 = vst [vmem:[%s271 + $0x138] sm:$0xff] %v566
      %608 = vst [vmem:[%s271 + $0x140] sm:$0xff] %v567
      %s609 = smul.u32 41, %s20
      %p610 = scmp.lt.s32.totalorder %s19, 1
      %s611 = scalar_select %p610, %s19, 1
      %p612 = scmp.lt.s32.totalorder %s609, 40
      %s613 = scalar_select %p612, %s609, 40
      %s614 = smul.addr %s611, 41
      %s615 = sadd.s32 %s613, %s614
      %s616 = smul.addr %s615, 8
      %s617 = scalar_lea.vmem %s4, %s616
      // Predicated region
      $region37: #{_forward_impl.7} parent=35 // pred_check
        %p618 = pneg %p145
      $region38: #{_forward_impl.7} parent=35 // pred_check_branch
        %620 = sbr.rel (%p618) target = $region40
      $region39: #{_forward_impl.7} parent=35 // pred_region
        %s621 = smul.u32 41, %s20
      $region40: #{_forward_impl.7} parent=35 // pred_fallthru
        _
    $region36: #{_forward_impl.7} parent=5 // pred_fallthru
      _
    %p622 = scmp.le.s32.totalorder 2, %s10
    // Predicated region
    $region41: #{_forward_impl.7} parent=5 // pred_check
      %p623 = pneg %p622
    $region42: #{_forward_impl.7} parent=5 // pred_check_branch
      %625 = sbr.rel (%p623) target = $region44
    $region43: #{_forward_impl.7} parent=5 // pred_region
      %s626 = ssub.s32 %s10, 2
      // Predicated region
      $region45: #{_forward_impl.7} parent=43 // pred_check
        %p627 = pneg %p151
      $region46: #{_forward_impl.7} parent=43 // pred_check_branch
        %629 = sbr.rel (%p627) target = $region48
      $region47: #{_forward_impl.7} parent=43 // pred_region
        %s630 = smul.u32 41, %s22
        %p631 = scmp.lt.s32.totalorder %s21, 1
        %s632 = scalar_select %p631, %s21, 1
        %p633 = scmp.lt.s32.totalorder %s630, 40
        %s634 = scalar_select %p633, %s630, 40
        %s635 = smul.addr %s632, 41
        %s636 = sadd.s32 %s634, %s635
        %s637 = smul.addr %s636, 8
        %s638 = scalar_lea.vmem %s4, %s637
      $region48: #{_forward_impl.7} parent=43 // pred_fallthru
        _
    $region44: #{_forward_impl.7} parent=5 // pred_fallthru
      _
  $region6: #{_forward_impl.7} parent=0 // loop_footer
    %s14 = sadd.s32 1, %s10
  $region7: #{_forward_impl.7} parent=0 // loop_footer_branch
    %9 = sbr.rel target = $region3
  $region8: #{_forward_impl.7} parent=0 // loop_exit
    _

// kernel: _forward_impl.5
$region0: #{_forward_impl.5}
  #allocation0 [shape = 'u32[]', space=smem, size = 0x4, offset = 0x4, fixed_abs, tag = 'smem constant byte address 0x4 - core index']
  #allocation1 [shape = 'u32[72,128]{1,0:T(1,128)}', space=vmem, size = 0x9000, scoped, tag = 'internal scratch']
  #allocation2 [shape = 'bf16[376,128]{1,0:T(8,128)(2,1)}', space=vmem, size = 0x17800, scoped, tag = 'scratch operand']
  #allocation3 [shape = 'f32[328,128]{1,0:T(8,128)}', space=vmem, size = 0x29000, scoped, tag = 'scratch operand']
  %s0 = inlined_call_operand.vmem [shape: bf16[2,328,128], index: 0, kind: input, shape index: {}]
  %s1 = inlined_call_operand.vmem [shape: f32[2,1,128], index: 1, kind: input, shape index: {}]
  %s2 = inlined_call_operand.vmem [shape: f32[2,1,128], index: 2, kind: input, shape index: {}]
  %s3 = inlined_call_operand.vmem [shape: bf16[9,128,128], index: 3, kind: input, shape index: {}]
  %s4 = inlined_call_operand.vmem [shape: f32[328,1], index: 4, kind: input, shape index: {}]
  %s5 = inlined_call_operand.vmem [shape: bf16[2,328,128], index: 5, kind: output, shape index: {0}]
  %s6 = inlined_call_operand.vmem [shape: f32[2,1,128], index: 6, kind: output, shape index: {1}]
  %s7 = inlined_call_operand.vmem [shape: f32[2,1,128], index: 7, kind: output, shape index: {2}]
  %8 = xla_tuple %s5, %s6, %s7
  %s9 = sld [smem:[#allocation0]]
  $region69: #{_forward_impl.5} parent=0
    _
  %s11 = ssub.s32 1, %s9
  %s12 = scalar_select 0, %s11, %s9
  loop: start=0, step=1, limit=4
  $region2: #{_forward_impl.5} parent=0 // loop_pre_header
    _
  $region3: #{_forward_impl.5} parent=0 // loop_header
    %s14 = sphi 0, %s18
    %p15 = scmp.ge.s32.totalorder %s14, 4
    %s24 = sphi 0, %s26
    %s27 = sphi 0, %s24
    %s28 = sphi 0, %s27
    %s44 = sphi 0, %s28
    %s50 = sphi 0, %s52
    %s53 = sphi 0, %s50
    %s54 = sphi 0, %s53
    %s70 = sphi 0, %s54
    %s76 = sphi 0, %s78
    %s79 = sphi 0, %s76
    %s80 = sphi 0, %s79
    %s96 = sphi 0, %s80
    %s100 = sphi 0, %s100
    %s102 = sphi 0, %s100
    %s103 = sphi 0, %s102
    %s117 = sphi 0, %s103
    %s121 = sphi 0, %s121
    %s123 = sphi 0, %s121
    %s124 = sphi 0, %s123
    %s138 = sphi 0, %s124
    %s144 = sphi 0, %s146
    %s147 = sphi 0, %s144
    %s148 = sphi 0, %s147
    %s164 = sphi 0, %s148
    %s170 = sphi 0, %s172
    %s173 = sphi 0, %s170
    %s174 = sphi 0, %s173
    %s190 = sphi 0, %s174
    %s196 = sphi 0, %s198
    %s199 = sphi 0, %s196
    %s200 = sphi 0, %s199
    %s216 = sphi 0, %s200
  $region4: #{_forward_impl.5} parent=0 // loop_header_branch
    %17 = sbr.rel (%p15) target = $region8
  $region5: #{_forward_impl.5} parent=0 // loop_body
    %s19 = ssub.s32 %s14, 1
    %s20 = ssub.s32 %s14, 2
    %s21 = sadd.s32 %s14, 1
    %s22 = ssub.s32 %s14, %s21
    %p23 = scmp.eq.s32.totalorder %s22, 0
    %s25 = sadd.s32 %s24, 1
    %s26 = scalar_select %p23, %s24, %s25
    %p29 = pneg %p23
    %p30 = scmp.eq.s32.totalorder %s14, 1
    %p31 = por %p29, %p30
    %p32 = scmp.ne.s32.totalorder %s24, %s27
    %p33 = scmp.eq.s32.totalorder %s14, 0
    %p34 = por %p32, %p33
    %p35 = scmp.ne.s32.totalorder %s24, %s27
    %p36 = scmp.eq.s32.totalorder %s19, 1
    %p37 = por %p35, %p36
    %p38 = scmp.ne.s32.totalorder %s27, %s28
    %p39 = scmp.eq.s32.totalorder %s19, 0
    %p40 = por %p38, %p39
    %p41 = scmp.ne.s32.totalorder %s27, %s28
    %p42 = scmp.eq.s32.totalorder %s20, 1
    %p43 = por %p41, %p42
    %p45 = scmp.ne.s32.totalorder %s28, %s44
    %p46 = scmp.eq.s32.totalorder %s20, 0
    %p47 = por %p45, %p46
    %s48 = ssub.s32 %s14, %s21
    %p49 = scmp.eq.s32.totalorder %s48, 0
    %s51 = sadd.s32 %s50, 1
    %s52 = scalar_select %p49, %s50, %s51
    %p55 = pneg %p49
    %p56 = scmp.eq.s32.totalorder %s14, 1
    %p57 = por %p55, %p56
    %p58 = scmp.ne.s32.totalorder %s50, %s53
    %p59 = scmp.eq.s32.totalorder %s14, 0
    %p60 = por %p58, %p59
    %p61 = scmp.ne.s32.totalorder %s50, %s53
    %p62 = scmp.eq.s32.totalorder %s19, 1
    %p63 = por %p61, %p62
    %p64 = scmp.ne.s32.totalorder %s53, %s54
    %p65 = scmp.eq.s32.totalorder %s19, 0
    %p66 = por %p64, %p65
    %p67 = scmp.ne.s32.totalorder %s53, %s54
    %p68 = scmp.eq.s32.totalorder %s20, 1
    %p69 = por %p67, %p68
    %p71 = scmp.ne.s32.totalorder %s54, %s70
    %p72 = scmp.eq.s32.totalorder %s20, 0
    %p73 = por %p71, %p72
    %s74 = ssub.s32 %s14, %s21
    %p75 = scmp.eq.s32.totalorder %s74, 0
    %s77 = sadd.s32 %s76, 1
    %s78 = scalar_select %p75, %s76, %s77
    %p81 = pneg %p75
    %p82 = scmp.eq.s32.totalorder %s14, 1
    %p83 = por %p81, %p82
    %p84 = scmp.ne.s32.totalorder %s76, %s79
    %p85 = scmp.eq.s32.totalorder %s14, 0
    %p86 = por %p84, %p85
    %p87 = scmp.ne.s32.totalorder %s76, %s79
    %p88 = scmp.eq.s32.totalorder %s19, 1
    %p89 = por %p87, %p88
    %p90 = scmp.ne.s32.totalorder %s79, %s80
    %p91 = scmp.eq.s32.totalorder %s19, 0
    %p92 = por %p90, %p91
    %p93 = scmp.ne.s32.totalorder %s79, %s80
    %p94 = scmp.eq.s32.totalorder %s20, 1
    %p95 = por %p93, %p94
    %p97 = scmp.ne.s32.totalorder %s80, %s96
    %p98 = scmp.eq.s32.totalorder %s20, 0
    %p99 = por %p97, %p98
    %s101 = sadd.s32 %s100, 1
    %p104 = scmp.eq.s32.totalorder %s14, 1
    %p105 = scmp.ne.s32.totalorder %s100, %s102
    %p106 = scmp.eq.s32.totalorder %s14, 0
    %p107 = por %p105, %p106
    %p108 = scmp.ne.s32.totalorder %s100, %s102
    %p109 = scmp.eq.s32.totalorder %s19, 1
    %p110 = por %p108, %p109
    %p111 = scmp.ne.s32.totalorder %s102, %s103
    %p112 = scmp.eq.s32.totalorder %s19, 0
    %p113 = por %p111, %p112
    %p114 = scmp.ne.s32.totalorder %s102, %s103
    %p115 = scmp.eq.s32.totalorder %s20, 1
    %p116 = por %p114, %p115
    %p118 = scmp.ne.s32.totalorder %s103, %s117
    %p119 = scmp.eq.s32.totalorder %s20, 0
    %p120 = por %p118, %p119
    %s122 = sadd.s32 %s121, 1
    %p125 = scmp.eq.s32.totalorder %s14, 1
    %p126 = scmp.ne.s32.totalorder %s121, %s123
    %p127 = scmp.eq.s32.totalorder %s14, 0
    %p128 = por %p126, %p127
    %p129 = scmp.ne.s32.totalorder %s121, %s123
    %p130 = scmp.eq.s32.totalorder %s19, 1
    %p131 = por %p129, %p130
    %p132 = scmp.ne.s32.totalorder %s123, %s124
    %p133 = scmp.eq.s32.totalorder %s19, 0
    %p134 = por %p132, %p133
    %p135 = scmp.ne.s32.totalorder %s123, %s124
    %p136 = scmp.eq.s32.totalorder %s20, 1
    %p137 = por %p135, %p136
    %p139 = scmp.ne.s32.totalorder %s124, %s138
    %p140 = scmp.eq.s32.totalorder %s20, 0
    %p141 = por %p139, %p140
    %s142 = ssub.s32 %s14, %s21
    %p143 = scmp.eq.s32.totalorder %s142, 0
    %s145 = sadd.s32 %s144, 1
    %s146 = scalar_select %p143, %s144, %s145
    %p149 = pneg %p143
    %p150 = scmp.eq.s32.totalorder %s14, 1
    %p151 = por %p149, %p150
    %p152 = scmp.ne.s32.totalorder %s144, %s147
    %p153 = scmp.eq.s32.totalorder %s14, 0
    %p154 = por %p152, %p153
    %p155 = scmp.ne.s32.totalorder %s144, %s147
    %p156 = scmp.eq.s32.totalorder %s19, 1
    %p157 = por %p155, %p156
    %p158 = scmp.ne.s32.totalorder %s147, %s148
    %p159 = scmp.eq.s32.totalorder %s19, 0
    %p160 = por %p158, %p159
    %p161 = scmp.ne.s32.totalorder %s147, %s148
    %p162 = scmp.eq.s32.totalorder %s20, 1
    %p163 = por %p161, %p162
    %p165 = scmp.ne.s32.totalorder %s148, %s164
    %p166 = scmp.eq.s32.totalorder %s20, 0
    %p167 = por %p165, %p166
    %s168 = ssub.s32 %s14, %s21
    %p169 = scmp.eq.s32.totalorder %s168, 0
    %s171 = sadd.s32 %s170, 1
    %s172 = scalar_select %p169, %s170, %s171
    %p175 = pneg %p169
    %p176 = scmp.eq.s32.totalorder %s14, 1
    %p177 = por %p175, %p176
    %p178 = scmp.ne.s32.totalorder %s170, %s173
    %p179 = scmp.eq.s32.totalorder %s14, 0
    %p180 = por %p178, %p179
    %p181 = scmp.ne.s32.totalorder %s170, %s173
    %p182 = scmp.eq.s32.totalorder %s19, 1
    %p183 = por %p181, %p182
    %p184 = scmp.ne.s32.totalorder %s173, %s174
    %p185 = scmp.eq.s32.totalorder %s19, 0
    %p186 = por %p184, %p185
    %p187 = scmp.ne.s32.totalorder %s173, %s174
    %p188 = scmp.eq.s32.totalorder %s20, 1
    %p189 = por %p187, %p188
    %p191 = scmp.ne.s32.totalorder %s174, %s190
    %p192 = scmp.eq.s32.totalorder %s20, 0
    %p193 = por %p191, %p192
    %s194 = ssub.s32 %s14, %s21
    %p195 = scmp.eq.s32.totalorder %s194, 0
    %s197 = sadd.s32 %s196, 1
    %s198 = scalar_select %p195, %s196, %s197
    %p201 = pneg %p195
    %p202 = scmp.eq.s32.totalorder %s14, 1
    %p203 = por %p201, %p202
    %p204 = scmp.ne.s32.totalorder %s196, %s199
    %p205 = scmp.eq.s32.totalorder %s14, 0
    %p206 = por %p204, %p205
    %p207 = scmp.ne.s32.totalorder %s196, %s199
    %p208 = scmp.eq.s32.totalorder %s19, 1
    %p209 = por %p207, %p208
    %p210 = scmp.ne.s32.totalorder %s199, %s200
    %p211 = scmp.eq.s32.totalorder %s19, 0
    %p212 = por %p210, %p211
    %p213 = scmp.ne.s32.totalorder %s199, %s200
    %p214 = scmp.eq.s32.totalorder %s20, 1
    %p215 = por %p213, %p214
    %p217 = scmp.ne.s32.totalorder %s200, %s216
    %p218 = scmp.eq.s32.totalorder %s20, 0
    %p219 = por %p217, %p218
    %p220 = scmp.le.s32.totalorder 1, %s14
    %p221 = scmp.lt.s32.totalorder %s14, 3
    %p222 = pnand %p220, %p221
    %p223 = pneg %p222
    // Predicated region
    $region9: #{_forward_impl.5} parent=5 // pred_check
      _
    $region10: #{_forward_impl.5} parent=5 // pred_check_branch
      %225 = sbr.rel (%p222) target = $region12
    $region11: #{_forward_impl.5} parent=5 // pred_region
      %s226 = ssub.s32 %s14, 1
      // Predicated region
      $region13: #{_forward_impl.5} parent=11 // pred_check
        %p227 = pneg %p113
      $region14: #{_forward_impl.5} parent=11 // pred_check_branch
        %229 = sbr.rel (%p227) target = $region16
      $region15: #{_forward_impl.5} parent=11 // pred_region
        _
      $region16: #{_forward_impl.5} parent=11 // pred_fallthru
        _
      // Predicated region
      $region17: #{_forward_impl.5} parent=11 // pred_check
        %p230 = pneg %p134
      $region18: #{_forward_impl.5} parent=11 // pred_check_branch
        %232 = sbr.rel (%p230) target = $region20
      $region19: #{_forward_impl.5} parent=11 // pred_region
        _
      $region20: #{_forward_impl.5} parent=11 // pred_fallthru
        _
    $region12: #{_forward_impl.5} parent=5 // pred_fallthru
      _
    %p233 = scmp.lt.s32.totalorder %s14, 2
    // Predicated region
    $region21: #{_forward_impl.5} parent=5 // pred_check
      %p234 = pneg %p233
    $region22: #{_forward_impl.5} parent=5 // pred_check_branch
      %236 = sbr.rel (%p234) target = $region24
    $region23: #{_forward_impl.5} parent=5 // pred_region
      // Predicated region
      $region25: #{_forward_impl.5} parent=23 // pred_check
        %p237 = pneg %p34
      $region26: #{_forward_impl.5} parent=23 // pred_check_branch
        %239 = sbr.rel (%p237) target = $region28
      $region27: #{_forward_impl.5} parent=23 // pred_region
        %p240 = scmp.lt.s32.totalorder %s14, 1
        %s241 = scalar_select %p240, %s14, 1
        %s242 = smul.addr %s241, 41
        %s243 = smul.addr %s242, 4
        %s244 = scalar_lea.vmem %s0, %s243
      $region28: #{_forward_impl.5} parent=23 // pred_fallthru
        _
      // Predicated region
      $region29: #{_forward_impl.5} parent=23 // pred_check
        %p245 = pneg %p60
      $region30: #{_forward_impl.5} parent=23 // pred_check_branch
        %247 = sbr.rel (%p245) target = $region32
      $region31: #{_forward_impl.5} parent=23 // pred_region
        %p248 = scmp.lt.s32.totalorder %s14, 1
        %s249 = scalar_select %p248, %s14, 1
        %s250 = scalar_lea.vmem %s1, %s249
      $region32: #{_forward_impl.5} parent=23 // pred_fallthru
        _
      // Predicated region
      $region33: #{_forward_impl.5} parent=23 // pred_check
        %p251 = pneg %p86
      $region34: #{_forward_impl.5} parent=23 // pred_check_branch
        %253 = sbr.rel (%p251) target = $region36
      $region35: #{_forward_impl.5} parent=23 // pred_region
        %p254 = scmp.lt.s32.totalorder %s14, 1
        %s255 = scalar_select %p254, %s14, 1
        %s256 = scalar_lea.vmem %s2, %s255
      $region36: #{_forward_impl.5} parent=23 // pred_fallthru
        _
    $region24: #{_forward_impl.5} parent=5 // pred_fallthru
      _
    %p257 = scmp.le.s32.totalorder 1, %s14
    %p258 = scmp.lt.s32.totalorder %s14, 3
    %p259 = pnand %p257, %p258
    %p260 = pneg %p259
    // Predicated region
    $region37: #{_forward_impl.5} parent=5 // pred_check
      _
    $region38: #{_forward_impl.5} parent=5 // pred_check_branch
      %262 = sbr.rel (%p259) target = $region40
    $region39: #{_forward_impl.5} parent=5 // pred_region
      %s263 = ssub.s32 %s14, 1
      %p264 = scmp.lt.s32.totalorder %s19, 1
      %s265 = scalar_select %p264, %s19, 1
      %s266 = smul.addr %s265, 41
      %s267 = smul.addr %s266, 4
      %s268 = scalar_lea.vmem %s0, %s267
      %p269 = pneg %p40
      %p270 = pneg %p37
      %p271 = scmp.lt.s32.totalorder %s19, 1
      %s272 = scalar_select %p271, %s19, 1
      %s273 = scalar_lea.vmem %s1, %s272
      %p274 = pneg %p66
      %p275 = pneg %p63
      %p276 = scmp.lt.s32.totalorder %s19, 1
      %s277 = scalar_select %p276, %s19, 1
      %s278 = scalar_lea.vmem %s2, %s277
      %p279 = pneg %p92
      %p280 = pneg %p89
      %p281 = pneg %p113
      %p282 = pneg %p110
      %p283 = pneg %p134
      %p284 = pneg %p131
      %p285 = pneg %p160
      %p286 = pneg %p157
      %p287 = scmp.lt.s32.totalorder %s19, 1
      %s288 = scalar_select %p287, %s19, 1
      %s289 = smul.addr %s288, 41
      %s290 = smul.addr %s289, 4
      %s291 = scalar_lea.vmem %s5, %s290
      %p292 = pneg %p186
      %p293 = pneg %p183
      %p294 = scmp.lt.s32.totalorder %s19, 1
      %s295 = scalar_select %p294, %s19, 1
      %s296 = scalar_lea.vmem %s6, %s295
      %p297 = pneg %p212
      %p298 = pneg %p209
      %p299 = scmp.lt.s32.totalorder %s19, 1
      %s300 = scalar_select %p299, %s19, 1
      %s301 = scalar_lea.vmem %s7, %s300
      %p302 = scmp.lt.s32.totalorder %s19, 1
      %s303 = scalar_select %p302, %s19, 1
      %s304 = smul.addr %s303, 41
      %s305 = smul.addr %s304, 4
      %s306 = scalar_lea.vmem %s0, %s305
      %p307 = scmp.lt.s32.totalorder %s19, 1
      %s308 = scalar_select %p307, %s19, 1
      %s309 = scalar_lea.vmem %s1, %s308
      %p310 = scmp.lt.s32.totalorder %s19, 1
      %s311 = scalar_select %p310, %s19, 1
      %s312 = scalar_lea.vmem %s2, %s311
      %p313 = scmp.lt.s32.totalorder %s19, 1
      %s314 = scalar_select %p313, %s19, 1
      %s315 = smul.addr %s314, 41
      %s316 = smul.addr %s315, 4
      %s317 = scalar_lea.vmem %s5, %s316
      %p318 = scmp.lt.s32.totalorder %s19, 1
      %s319 = scalar_select %p318, %s19, 1
      %s320 = scalar_lea.vmem %s6, %s319
      %p321 = scmp.lt.s32.totalorder %s19, 1
      %s322 = scalar_select %p321, %s19, 1
      %s323 = scalar_lea.vmem %s7, %s322
      %v325 = vld [vmem:[%s4] sm:$0xff]
      %v326 = vld [vmem:[%s4 + $0x8] sm:$0xff]
      %v327 = vld [vmem:[%s4 + $0x10] sm:$0xff]
      %v328 = vld [vmem:[%s4 + $0x18] sm:$0xff]
      %v329 = vld [vmem:[%s4 + $0x20] sm:$0xff]
      %v330 = vld [vmem:[%s4 + $0x28] sm:$0xff]
      %v331 = vld [vmem:[%s4 + $0x30] sm:$0xff]
      %v332 = vld [vmem:[%s4 + $0x38] sm:$0xff]
      %v333 = vld [vmem:[%s4 + $0x40] sm:$0xff]
      %v334 = vld [vmem:[%s4 + $0x48] sm:$0xff]
      %v335 = vld [vmem:[%s4 + $0x50] sm:$0xff]
      %v336 = vld [vmem:[%s4 + $0x58] sm:$0xff]
      %v337 = vld [vmem:[%s4 + $0x60] sm:$0xff]
      %v338 = vld [vmem:[%s4 + $0x68] sm:$0xff]
      %v339 = vld [vmem:[%s4 + $0x70] sm:$0xff]
      %v340 = vld [vmem:[%s4 + $0x78] sm:$0xff]
      %v341 = vld [vmem:[%s4 + $0x80] sm:$0xff]
      %v342 = vld [vmem:[%s4 + $0x88] sm:$0xff]
      %v343 = vld [vmem:[%s4 + $0x90] sm:$0xff]
      %v344 = vld [vmem:[%s4 + $0x98] sm:$0xff]
      %v345 = vld [vmem:[%s4 + $0xa0] sm:$0xff]
      %v346 = vld [vmem:[%s4 + $0xa8] sm:$0xff]
      %v347 = vld [vmem:[%s4 + $0xb0] sm:$0xff]
      %v348 = vld [vmem:[%s4 + $0xb8] sm:$0xff]
      %v349 = vld [vmem:[%s4 + $0xc0] sm:$0xff]
      %v350 = vld [vmem:[%s4 + $0xc8] sm:$0xff]
      %v351 = vld [vmem:[%s4 + $0xd0] sm:$0xff]
      %v352 = vld [vmem:[%s4 + $0xd8] sm:$0xff]
      %v353 = vld [vmem:[%s4 + $0xe0] sm:$0xff]
      %v354 = vld [vmem:[%s4 + $0xe8] sm:$0xff]
      %v355 = vld [vmem:[%s4 + $0xf0] sm:$0xff]
      %v356 = vld [vmem:[%s4 + $0xf8] sm:$0xff]
      %v357 = vld [vmem:[%s4 + $0x100] sm:$0xff]
      %v358 = vld [vmem:[%s4 + $0x108] sm:$0xff]
      %v359 = vld [vmem:[%s4 + $0x110] sm:$0xff]
      %v360 = vld [vmem:[%s4 + $0x118] sm:$0xff]
      %v361 = vld [vmem:[%s4 + $0x120] sm:$0xff]
      %v362 = vld [vmem:[%s4 + $0x128] sm:$0xff]
      %v363 = vld [vmem:[%s4 + $0x130] sm:$0xff]
      %v364 = vld [vmem:[%s4 + $0x138] sm:$0xff]
      %v365 = vld [vmem:[%s4 + $0x140] sm:$0xff]
      %v366 = vld [vmem:[%s306] sm:$0xf]
      %v367 = vld [vmem:[%s306 + $0x4] sm:$0xf]
      %v368 = vld [vmem:[%s306 + $0x8] sm:$0xf]
      %v369 = vld [vmem:[%s306 + $0xc] sm:$0xf]
      %v370 = vld [vmem:[%s306 + $0x10] sm:$0xf]
      %v371 = vld [vmem:[%s306 + $0x14] sm:$0xf]
      %v372 = vld [vmem:[%s306 + $0x18] sm:$0xf]
      %v373 = vld [vmem:[%s306 + $0x1c] sm:$0xf]
      %v374 = vld [vmem:[%s306 + $0x20] sm:$0xf]
      %v375 = vld [vmem:[%s306 + $0x24] sm:$0xf]
      %v376 = vld [vmem:[%s306 + $0x28] sm:$0xf]
      %v377 = vld [vmem:[%s306 + $0x2c] sm:$0xf]
      %v378 = vld [vmem:[%s306 + $0x30] sm:$0xf]
      %v379 = vld [vmem:[%s306 + $0x34] sm:$0xf]
      %v380 = vld [vmem:[%s306 + $0x38] sm:$0xf]
      %v381 = vld [vmem:[%s306 + $0x3c] sm:$0xf]
      %v382 = vld [vmem:[%s306 + $0x40] sm:$0xf]
      %v383 = vld [vmem:[%s306 + $0x44] sm:$0xf]
      %v384 = vld [vmem:[%s306 + $0x48] sm:$0xf]
      %v385 = vld [vmem:[%s306 + $0x4c] sm:$0xf]
      %v386 = vld [vmem:[%s306 + $0x50] sm:$0xf]
      %v387 = vld [vmem:[%s306 + $0x54] sm:$0xf]
      %v388 = vld [vmem:[%s306 + $0x58] sm:$0xf]
      %v389 = vld [vmem:[%s306 + $0x5c] sm:$0xf]
      %v390 = vld [vmem:[%s306 + $0x60] sm:$0xf]
      %v391 = vld [vmem:[%s306 + $0x64] sm:$0xf]
      %v392 = vld [vmem:[%s306 + $0x68] sm:$0xf]
      %v393 = vld [vmem:[%s306 + $0x6c] sm:$0xf]
      %v394 = vld [vmem:[%s306 + $0x70] sm:$0xf]
      %v395 = vld [vmem:[%s306 + $0x74] sm:$0xf]
      %v396 = vld [vmem:[%s306 + $0x78] sm:$0xf]
      %v397 = vld [vmem:[%s306 + $0x7c] sm:$0xf]
      %v398 = vld [vmem:[%s306 + $0x80] sm:$0xf]
      %v399 = vld [vmem:[%s306 + $0x84] sm:$0xf]
      %v400 = vld [vmem:[%s306 + $0x88] sm:$0xf]
      %v401 = vld [vmem:[%s306 + $0x8c] sm:$0xf]
      %v402 = vld [vmem:[%s306 + $0x90] sm:$0xf]
      %v403 = vld [vmem:[%s306 + $0x94] sm:$0xf]
      %v404 = vld [vmem:[%s306 + $0x98] sm:$0xf]
      %v405 = vld [vmem:[%s306 + $0x9c] sm:$0xf]
      %v406 = vld [vmem:[%s306 + $0xa0] sm:$0xf]
      %v407 = vunpack.c.l.bf16 %v366
      %v408 = vunpack.c.l.bf16 %v367
      %v409 = vunpack.c.l.bf16 %v368
      %v410 = vunpack.c.l.bf16 %v369
      %v411 = vunpack.c.l.bf16 %v370
      %v412 = vunpack.c.l.bf16 %v371
      %v413 = vunpack.c.l.bf16 %v372
      %v414 = vunpack.c.l.bf16 %v373
      %v415 = vunpack.c.l.bf16 %v374
      %v416 = vunpack.c.l.bf16 %v375
      %v417 = vunpack.c.l.bf16 %v376
      %v418 = vunpack.c.l.bf16 %v377
      %v419 = vunpack.c.l.bf16 %v378
      %v420 = vunpack.c.l.bf16 %v379
      %v421 = vunpack.c.l.bf16 %v380
      %v422 = vunpack.c.l.bf16 %v381
      %v423 = vunpack.c.l.bf16 %v382
      %v424 = vunpack.c.l.bf16 %v383
      %v425 = vunpack.c.l.bf16 %v384
      %v426 = vunpack.c.l.bf16 %v385
      %v427 = vunpack.c.l.bf16 %v386
      %v428 = vunpack.c.l.bf16 %v387
      %v429 = vunpack.c.l.bf16 %v388
      %v430 = vunpack.c.l.bf16 %v389
      %v431 = vunpack.c.l.bf16 %v390
      %v432 = vunpack.c.l.bf16 %v391
      %v433 = vunpack.c.l.bf16 %v392
      %v434 = vunpack.c.l.bf16 %v393
      %v435 = vunpack.c.l.bf16 %v394
      %v436 = vunpack.c.l.bf16 %v395
      %v437 = vunpack.c.l.bf16 %v396
      %v438 = vunpack.c.l.bf16 %v397
      %v439 = vunpack.c.l.bf16 %v398
      %v440 = vunpack.c.l.bf16 %v399
      %v441 = vunpack.c.l.bf16 %v400
      %v442 = vunpack.c.l.bf16 %v401
      %v443 = vunpack.c.l.bf16 %v402
      %v444 = vunpack.c.l.bf16 %v403
      %v445 = vunpack.c.l.bf16 %v404
      %v446 = vunpack.c.l.bf16 %v405
      %v447 = vunpack.c.l.bf16 %v406
      %v448 = vld [vmem:[%s309] sm:$0x1]
      %v450 = vperm.slane %v448, 0
      %v452 = vmul.f32 %v407, %v450
      %v453 = vmul.f32 %v408, %v450
      %v454 = vmul.f32 %v409, %v450
      %v455 = vmul.f32 %v410, %v450
      %v456 = vmul.f32 %v411, %v450
      %v457 = vmul.f32 %v412, %v450
      %v458 = vmul.f32 %v413, %v450
      %v459 = vmul.f32 %v414, %v450
      %v460 = vmul.f32 %v415, %v450
      %v461 = vmul.f32 %v416, %v450
      %v462 = vmul.f32 %v417, %v450
      %v463 = vmul.f32 %v418, %v450
      %v464 = vmul.f32 %v419, %v450
      %v465 = vmul.f32 %v420, %v450
      %v466 = vmul.f32 %v421, %v450
      %v467 = vmul.f32 %v422, %v450
      %v468 = vmul.f32 %v423, %v450
      %v469 = vmul.f32 %v424, %v450
      %v470 = vmul.f32 %v425, %v450
      %v471 = vmul.f32 %v426, %v450
      %v472 = vmul.f32 %v427, %v450
      %v473 = vmul.f32 %v428, %v450
      %v474 = vmul.f32 %v429, %v450
      %v475 = vmul.f32 %v430, %v450
      %v476 = vmul.f32 %v431, %v450
      %v477 = vmul.f32 %v432, %v450
      %v478 = vmul.f32 %v433, %v450
      %v479 = vmul.f32 %v434, %v450
      %v480 = vmul.f32 %v435, %v450
      %v481 = vmul.f32 %v436, %v450
      %v482 = vmul.f32 %v437, %v450
      %v483 = vmul.f32 %v438, %v450
      %v484 = vmul.f32 %v439, %v450
      %v485 = vmul.f32 %v440, %v450
      %v486 = vmul.f32 %v441, %v450
      %v487 = vmul.f32 %v442, %v450
      %v488 = vmul.f32 %v443, %v450
      %v489 = vmul.f32 %v444, %v450
      %v490 = vmul.f32 %v445, %v450
      %v491 = vmul.f32 %v446, %v450
      %v492 = vmul.f32 %v447, %v450
      %v493 = vld [vmem:[%s312] sm:$0x1]
      %v495 = vperm.slane %v493, 0
      %v497 = vadd.f32 %v452, %v495
      %v498 = vadd.f32 %v453, %v495
      %v499 = vadd.f32 %v454, %v495
      %v500 = vadd.f32 %v455, %v495
      %v501 = vadd.f32 %v456, %v495
      %v502 = vadd.f32 %v457, %v495
      %v503 = vadd.f32 %v458, %v495
      %v504 = vadd.f32 %v459, %v495
      %v505 = vadd.f32 %v460, %v495
      %v506 = vadd.f32 %v461, %v495
      %v507 = vadd.f32 %v462, %v495
      %v508 = vadd.f32 %v463, %v495
      %v509 = vadd.f32 %v464, %v495
      %v510 = vadd.f32 %v465, %v495
      %v511 = vadd.f32 %v466, %v495
      %v512 = vadd.f32 %v467, %v495
      %v513 = vadd.f32 %v468, %v495
      %v514 = vadd.f32 %v469, %v495
      %v515 = vadd.f32 %v470, %v495
      %v516 = vadd.f32 %v471, %v495
      %v517 = vadd.f32 %v472, %v495
      %v518 = vadd.f32 %v473, %v495
      %v519 = vadd.f32 %v474, %v495
      %v520 = vadd.f32 %v475, %v495
      %v521 = vadd.f32 %v476, %v495
      %v522 = vadd.f32 %v477, %v495
      %v523 = vadd.f32 %v478, %v495
      %v524 = vadd.f32 %v479, %v495
      %v525 = vadd.f32 %v480, %v495
      %v526 = vadd.f32 %v481, %v495
      %v527 = vadd.f32 %v482, %v495
      %v528 = vadd.f32 %v483, %v495
      %v529 = vadd.f32 %v484, %v495
      %v530 = vadd.f32 %v485, %v495
      %v531 = vadd.f32 %v486, %v495
      %v532 = vadd.f32 %v487, %v495
      %v533 = vadd.f32 %v488, %v495
      %v534 = vadd.f32 %v489, %v495
      %v535 = vadd.f32 %v490, %v495
      %v536 = vadd.f32 %v491, %v495
      %v537 = vadd.f32 %v492, %v495
      %v538 = vmax.f32 %v497, 0.0
      %v539 = vmax.f32 %v498, 0.0
      %v540 = vmax.f32 %v499, 0.0
      %v541 = vmax.f32 %v500, 0.0
      %v542 = vmax.f32 %v501, 0.0
      %v543 = vmax.f32 %v502, 0.0
      %v544 = vmax.f32 %v503, 0.0
      %v545 = vmax.f32 %v504, 0.0
      %v546 = vmax.f32 %v505, 0.0
      %v547 = vmax.f32 %v506, 0.0
      %v548 = vmax.f32 %v507, 0.0
      %v549 = vmax.f32 %v508, 0.0
      %v550 = vmax.f32 %v509, 0.0
      %v551 = vmax.f32 %v510, 0.0
      %v552 = vmax.f32 %v511, 0.0
      %v553 = vmax.f32 %v512, 0.0
      %v554 = vmax.f32 %v513, 0.0
      %v555 = vmax.f32 %v514, 0.0
      %v556 = vmax.f32 %v515, 0.0
      %v557 = vmax.f32 %v516, 0.0
      %v558 = vmax.f32 %v517, 0.0
      %v559 = vmax.f32 %v518, 0.0
      %v560 = vmax.f32 %v519, 0.0
      %v561 = vmax.f32 %v520, 0.0
      %v562 = vmax.f32 %v521, 0.0
      %v563 = vmax.f32 %v522, 0.0
      %v564 = vmax.f32 %v523, 0.0
      %v565 = vmax.f32 %v524, 0.0
      %v566 = vmax.f32 %v525, 0.0
      %v567 = vmax.f32 %v526, 0.0
      %v568 = vmax.f32 %v527, 0.0
      %v569 = vmax.f32 %v528, 0.0
      %v570 = vmax.f32 %v529, 0.0
      %v571 = vmax.f32 %v530, 0.0
      %v572 = vmax.f32 %v531, 0.0
      %v573 = vmax.f32 %v532, 0.0
      %v574 = vmax.f32 %v533, 0.0
      %v575 = vmax.f32 %v534, 0.0
      %v576 = vmax.f32 %v535, 0.0
      %v577 = vmax.f32 %v536, 0.0
      %v578 = vmax.f32 %v537, 0.0
      %580 = vset.pattern.permute.xlu0 0
      %581 = vperm.xlu0 %580, %v325
      %v582 = vpop.permute.xlu0 %581
      %585 = vset.pattern.permute.xlu0 0
      %586 = vperm.xlu0 %585, %v326
      %v587 = vpop.permute.xlu0 %586
      %590 = vset.pattern.permute.xlu0 0
      %591 = vperm.xlu0 %590, %v327
      %v592 = vpop.permute.xlu0 %591
      %595 = vset.pattern.permute.xlu0 0
      %596 = vperm.xlu0 %595, %v328
      %v597 = vpop.permute.xlu0 %596
      %600 = vset.pattern.permute.xlu0 0
      %601 = vperm.xlu0 %600, %v329
      %v602 = vpop.permute.xlu0 %601
      %605 = vset.pattern.permute.xlu0 0
      %606 = vperm.xlu0 %605, %v330
      %v607 = vpop.permute.xlu0 %606
      %610 = vset.pattern.permute.xlu0 0
      %611 = vperm.xlu0 %610, %v331
      %v612 = vpop.permute.xlu0 %611
      %615 = vset.pattern.permute.xlu0 0
      %616 = vperm.xlu0 %615, %v332
      %v617 = vpop.permute.xlu0 %616
      %620 = vset.pattern.permute.xlu0 0
      %621 = vperm.xlu0 %620, %v333
      %v622 = vpop.permute.xlu0 %621
      %625 = vset.pattern.permute.xlu0 0
      %626 = vperm.xlu0 %625, %v334
      %v627 = vpop.permute.xlu0 %626
      %630 = vset.pattern.permute.xlu0 0
      %631 = vperm.xlu0 %630, %v335
      %v632 = vpop.permute.xlu0 %631
      %635 = vset.pattern.permute.xlu0 0
      %636 = vperm.xlu0 %635, %v336
      %v637 = vpop.permute.xlu0 %636
      %640 = vset.pattern.permute.xlu0 0
      %641 = vperm.xlu0 %640, %v337
      %v642 = vpop.permute.xlu0 %641
      %645 = vset.pattern.permute.xlu0 0
      %646 = vperm.xlu0 %645, %v338
      %v647 = vpop.permute.xlu0 %646
      %650 = vset.pattern.permute.xlu0 0
      %651 = vperm.xlu0 %650, %v339
      %v652 = vpop.permute.xlu0 %651
      %655 = vset.pattern.permute.xlu0 0
      %656 = vperm.xlu0 %655, %v340
      %v657 = vpop.permute.xlu0 %656
      %660 = vset.pattern.permute.xlu0 0
      %661 = vperm.xlu0 %660, %v341
      %v662 = vpop.permute.xlu0 %661
      %665 = vset.pattern.permute.xlu0 0
      %666 = vperm.xlu0 %665, %v342
      %v667 = vpop.permute.xlu0 %666
      %670 = vset.pattern.permute.xlu0 0
      %671 = vperm.xlu0 %670, %v343
      %v672 = vpop.permute.xlu0 %671
      %675 = vset.pattern.permute.xlu0 0
      %676 = vperm.xlu0 %675, %v344
      %v677 = vpop.permute.xlu0 %676
      %680 = vset.pattern.permute.xlu0 0
      %681 = vperm.xlu0 %680, %v345
      %v682 = vpop.permute.xlu0 %681
      %685 = vset.pattern.permute.xlu0 0
      %686 = vperm.xlu0 %685, %v346
      %v687 = vpop.permute.xlu0 %686
      %690 = vset.pattern.permute.xlu0 0
      %691 = vperm.xlu0 %690, %v347
      %v692 = vpop.permute.xlu0 %691
      %695 = vset.pattern.permute.xlu0 0
      %696 = vperm.xlu0 %695, %v348
      %v697 = vpop.permute.xlu0 %696
      %700 = vset.pattern.permute.xlu0 0
      %701 = vperm.xlu0 %700, %v349
      %v702 = vpop.permute.xlu0 %701
      %705 = vset.pattern.permute.xlu0 0
      %706 = vperm.xlu0 %705, %v350
      %v707 = vpop.permute.xlu0 %706
      %710 = vset.pattern.permute.xlu0 0
      %711 = vperm.xlu0 %710, %v351
      %v712 = vpop.permute.xlu0 %711
      %715 = vset.pattern.permute.xlu0 0
      %716 = vperm.xlu0 %715, %v352
      %v717 = vpop.permute.xlu0 %716
      %720 = vset.pattern.permute.xlu0 0
      %721 = vperm.xlu0 %720, %v353
      %v722 = vpop.permute.xlu0 %721
      %725 = vset.pattern.permute.xlu0 0
      %726 = vperm.xlu0 %725, %v354
      %v727 = vpop.permute.xlu0 %726
      %730 = vset.pattern.permute.xlu0 0
      %731 = vperm.xlu0 %730, %v355
      %v732 = vpop.permute.xlu0 %731
      %735 = vset.pattern.permute.xlu0 0
      %736 = vperm.xlu0 %735, %v356
      %v737 = vpop.permute.xlu0 %736
      %740 = vset.pattern.permute.xlu0 0
      %741 = vperm.xlu0 %740, %v357
      %v742 = vpop.permute.xlu0 %741
      %745 = vset.pattern.permute.xlu0 0
      %746 = vperm.xlu0 %745, %v358
      %v747 = vpop.permute.xlu0 %746
      %750 = vset.pattern.permute.xlu0 0
      %751 = vperm.xlu0 %750, %v359
      %v752 = vpop.permute.xlu0 %751
      %755 = vset.pattern.permute.xlu0 0
      %756 = vperm.xlu0 %755, %v360
      %v757 = vpop.permute.xlu0 %756
      %760 = vset.pattern.permute.xlu0 0
      %761 = vperm.xlu0 %760, %v361
      %v762 = vpop.permute.xlu0 %761
      %765 = vset.pattern.permute.xlu0 0
      %766 = vperm.xlu0 %765, %v362
      %v767 = vpop.permute.xlu0 %766
      %770 = vset.pattern.permute.xlu0 0
      %771 = vperm.xlu0 %770, %v363
      %v772 = vpop.permute.xlu0 %771
      %775 = vset.pattern.permute.xlu0 0
      %776 = vperm.xlu0 %775, %v364
      %v777 = vpop.permute.xlu0 %776
      %780 = vset.pattern.permute.xlu0 0
      %781 = vperm.xlu0 %780, %v365
      %v782 = vpop.permute.xlu0 %781
      %v784 = vmul.f32 %v538, %v582
      %v785 = vmul.f32 %v539, %v587
      %v786 = vmul.f32 %v540, %v592
      %v787 = vmul.f32 %v541, %v597
      %v788 = vmul.f32 %v542, %v602
      %v789 = vmul.f32 %v543, %v607
      %v790 = vmul.f32 %v544, %v612
      %v791 = vmul.f32 %v545, %v617
      %v792 = vmul.f32 %v546, %v622
      %v793 = vmul.f32 %v547, %v627
      %v794 = vmul.f32 %v548, %v632
      %v795 = vmul.f32 %v549, %v637
      %v796 = vmul.f32 %v550, %v642
      %v797 = vmul.f32 %v551, %v647
      %v798 = vmul.f32 %v552, %v652
      %v799 = vmul.f32 %v553, %v657
      %v800 = vmul.f32 %v554, %v662
      %v801 = vmul.f32 %v555, %v667
      %v802 = vmul.f32 %v556, %v672
      %v803 = vmul.f32 %v557, %v677
      %v804 = vmul.f32 %v558, %v682
      %v805 = vmul.f32 %v559, %v687
      %v806 = vmul.f32 %v560, %v692
      %v807 = vmul.f32 %v561, %v697
      %v808 = vmul.f32 %v562, %v702
      %v809 = vmul.f32 %v563, %v707
      %v810 = vmul.f32 %v564, %v712
      %v811 = vmul.f32 %v565, %v717
      %v812 = vmul.f32 %v566, %v722
      %v813 = vmul.f32 %v567, %v727
      %v814 = vmul.f32 %v568, %v732
      %v815 = vmul.f32 %v569, %v737
      %v816 = vmul.f32 %v570, %v742
      %v817 = vmul.f32 %v571, %v747
      %v818 = vmul.f32 %v572, %v752
      %v819 = vmul.f32 %v573, %v757
      %v820 = vmul.f32 %v574, %v762
      %v821 = vmul.f32 %v575, %v767
      %v822 = vmul.f32 %v576, %v772
      %v823 = vmul.f32 %v577, %v777
      %v824 = vmul.f32 %v578, %v782
      %825 = vst [vmem:[#allocation2] sm:$0xf] 0
      %826 = vst [vmem:[#allocation2 + $0x4] sm:$0xf] 0
      %827 = vst [vmem:[#allocation2 + $0x8] sm:$0xf] 0
      %828 = vst [vmem:[#allocation2 + $0xb0] sm:$0xf] 0
      %829 = vst [vmem:[#allocation2 + $0xb4] sm:$0xf] 0
      %830 = vst [vmem:[#allocation2 + $0xb8] sm:$0xf] 0
      %v831 = vpack.c.bf16 %v784, %v784
      %v832 = vpack.c.bf16 %v785, %v785
      %v833 = vpack.c.bf16 %v786, %v786
      %v834 = vpack.c.bf16 %v787, %v787
      %v835 = vpack.c.bf16 %v788, %v788
      %v836 = vpack.c.bf16 %v789, %v789
      %v837 = vpack.c.bf16 %v790, %v790
      %v838 = vpack.c.bf16 %v791, %v791
      %v839 = vpack.c.bf16 %v792, %v792
      %v840 = vpack.c.bf16 %v793, %v793
      %v841 = vpack.c.bf16 %v794, %v794
      %v842 = vpack.c.bf16 %v795, %v795
      %v843 = vpack.c.bf16 %v796, %v796
      %v844 = vpack.c.bf16 %v797, %v797
      %v845 = vpack.c.bf16 %v798, %v798
      %v846 = vpack.c.bf16 %v799, %v799
      %v847 = vpack.c.bf16 %v800, %v800
      %v848 = vpack.c.bf16 %v801, %v801
      %v849 = vpack.c.bf16 %v802, %v802
      %v850 = vpack.c.bf16 %v803, %v803
      %v851 = vpack.c.bf16 %v804, %v804
      %v852 = vpack.c.bf16 %v805, %v805
      %v853 = vpack.c.bf16 %v806, %v806
      %v854 = vpack.c.bf16 %v807, %v807
      %v855 = vpack.c.bf16 %v808, %v808
      %v856 = vpack.c.bf16 %v809, %v809
      %v857 = vpack.c.bf16 %v810, %v810
      %v858 = vpack.c.bf16 %v811, %v811
      %v859 = vpack.c.bf16 %v812, %v812
      %v860 = vpack.c.bf16 %v813, %v813
      %v861 = vpack.c.bf16 %v814, %v814
      %v862 = vpack.c.bf16 %v815, %v815
      %v863 = vpack.c.bf16 %v816, %v816
      %v864 = vpack.c.bf16 %v817, %v817
      %v865 = vpack.c.bf16 %v818, %v818
      %v866 = vpack.c.bf16 %v819, %v819
      %v867 = vpack.c.bf16 %v820, %v820
      %v868 = vpack.c.bf16 %v821, %v821
      %v869 = vpack.c.bf16 %v822, %v822
      %v870 = vpack.c.bf16 %v823, %v823
      %v871 = vpack.c.bf16 %v824, %v824
      %872 = vst [vmem:[#allocation2 + $0xc] sm:$0xf] %v831
      %873 = vst [vmem:[#allocation2 + $0x10] sm:$0xf] %v832
      %874 = vst [vmem:[#allocation2 + $0x14] sm:$0xf] %v833
      %875 = vst [vmem:[#allocation2 + $0x18] sm:$0xf] %v834
      %876 = vst [vmem:[#allocation2 + $0x1c] sm:$0xf] %v835
      %877 = vst [vmem:[#allocation2 + $0x20] sm:$0xf] %v836
      %878 = vst [vmem:[#allocation2 + $0x24] sm:$0xf] %v837
      %879 = vst [vmem:[#allocation2 + $0x28] sm:$0xf] %v838
      %880 = vst [vmem:[#allocation2 + $0x2c] sm:$0xf] %v839
      %881 = vst [vmem:[#allocation2 + $0x30] sm:$0xf] %v840
      %882 = vst [vmem:[#allocation2 + $0x34] sm:$0xf] %v841
      %883 = vst [vmem:[#allocation2 + $0x38] sm:$0xf] %v842
      %884 = vst [vmem:[#allocation2 + $0x3c] sm:$0xf] %v843
      %885 = vst [vmem:[#allocation2 + $0x40] sm:$0xf] %v844
      %886 = vst [vmem:[#allocation2 + $0x44] sm:$0xf] %v845
      %887 = vst [vmem:[#allocation2 + $0x48] sm:$0xf] %v846
      %888 = vst [vmem:[#allocation2 + $0x4c] sm:$0xf] %v847
      %889 = vst [vmem:[#allocation2 + $0x50] sm:$0xf] %v848
      %890 = vst [vmem:[#allocation2 + $0x54] sm:$0xf] %v849
      %891 = vst [vmem:[#allocation2 + $0x58] sm:$0xf] %v850
      %892 = vst [vmem:[#allocation2 + $0x5c] sm:$0xf] %v851
      %893 = vst [vmem:[#allocation2 + $0x60] sm:$0xf] %v852
      %894 = vst [vmem:[#allocation2 + $0x64] sm:$0xf] %v853
      %895 = vst [vmem:[#allocation2 + $0x68] sm:$0xf] %v854
      %896 = vst [vmem:[#allocation2 + $0x6c] sm:$0xf] %v855
      %897 = vst [vmem:[#allocation2 + $0x70] sm:$0xf] %v856
      %898 = vst [vmem:[#allocation2 + $0x74] sm:$0xf] %v857
      %899 = vst [vmem:[#allocation2 + $0x78] sm:$0xf] %v858
      %900 = vst [vmem:[#allocation2 + $0x7c] sm:$0xf] %v859
      %901 = vst [vmem:[#allocation2 + $0x80] sm:$0xf] %v860
      %902 = vst [vmem:[#allocation2 + $0x84] sm:$0xf] %v861
      %903 = vst [vmem:[#allocation2 + $0x88] sm:$0xf] %v862
      %904 = vst [vmem:[#allocation2 + $0x8c] sm:$0xf] %v863
      %905 = vst [vmem:[#allocation2 + $0x90] sm:$0xf] %v864
      %906 = vst [vmem:[#allocation2 + $0x94] sm:$0xf] %v865
      %907 = vst [vmem:[#allocation2 + $0x98] sm:$0xf] %v866
      %908 = vst [vmem:[#allocation2 + $0x9c] sm:$0xf] %v867
      %909 = vst [vmem:[#allocation2 + $0xa0] sm:$0xf] %v868
      %910 = vst [vmem:[#allocation2 + $0xa4] sm:$0xf] %v869
      %911 = vst [vmem:[#allocation2 + $0xa8] sm:$0xf] %v870
      %912 = vst [vmem:[#allocation2 + $0xac] sm:$0xf] %v871
      %913 = vst [vmem:[#allocation3] sm:$0xff] 0.0
      %914 = vst [vmem:[#allocation3 + $0x8] sm:$0xff] 0.0
      %915 = vst [vmem:[#allocation3 + $0x10] sm:$0xff] 0.0
      %916 = vst [vmem:[#allocation3 + $0x18] sm:$0xff] 0.0
      %917 = vst [vmem:[#allocation3 + $0x20] sm:$0xff] 0.0
      %918 = vst [vmem:[#allocation3 + $0x28] sm:$0xff] 0.0
      %919 = vst [vmem:[#allocation3 + $0x30] sm:$0xff] 0.0
      %920 = vst [vmem:[#allocation3 + $0x38] sm:$0xff] 0.0
      %921 = vst [vmem:[#allocation3 + $0x40] sm:$0xff] 0.0
      %922 = vst [vmem:[#allocation3 + $0x48] sm:$0xff] 0.0
      %923 = vst [vmem:[#allocation3 + $0x50] sm:$0xff] 0.0
      %924 = vst [vmem:[#allocation3 + $0x58] sm:$0xff] 0.0
      %925 = vst [vmem:[#allocation3 + $0x60] sm:$0xff] 0.0
      %926 = vst [vmem:[#allocation3 + $0x68] sm:$0xff] 0.0
      %927 = vst [vmem:[#allocation3 + $0x70] sm:$0xff] 0.0
      %928 = vst [vmem:[#allocation3 + $0x78] sm:$0xff] 0.0
      %929 = vst [vmem:[#allocation3 + $0x80] sm:$0xff] 0.0
      %930 = vst [vmem:[#allocation3 + $0x88] sm:$0xff] 0.0
      %931 = vst [vmem:[#allocation3 + $0x90] sm:$0xff] 0.0
      %932 = vst [vmem:[#allocation3 + $0x98] sm:$0xff] 0.0
      %933 = vst [vmem:[#allocation3 + $0xa0] sm:$0xff] 0.0
      %934 = vst [vmem:[#allocation3 + $0xa8] sm:$0xff] 0.0
      %935 = vst [vmem:[#allocation3 + $0xb0] sm:$0xff] 0.0
      %936 = vst [vmem:[#allocation3 + $0xb8] sm:$0xff] 0.0
      %937 = vst [vmem:[#allocation3 + $0xc0] sm:$0xff] 0.0
      %938 = vst [vmem:[#allocation3 + $0xc8] sm:$0xff] 0.0
      %939 = vst [vmem:[#allocation3 + $0xd0] sm:$0xff] 0.0
      %940 = vst [vmem:[#allocation3 + $0xd8] sm:$0xff] 0.0
      %941 = vst [vmem:[#allocation3 + $0xe0] sm:$0xff] 0.0
      %942 = vst [vmem:[#allocation3 + $0xe8] sm:$0xff] 0.0
      %943 = vst [vmem:[#allocation3 + $0xf0] sm:$0xff] 0.0
      %944 = vst [vmem:[#allocation3 + $0xf8] sm:$0xff] 0.0
      %945 = vst [vmem:[#allocation3 + $0x100] sm:$0xff] 0.0
      %946 = vst [vmem:[#allocation3 + $0x108] sm:$0xff] 0.0
      %947 = vst [vmem:[#allocation3 + $0x110] sm:$0xff] 0.0
      %948 = vst [vmem:[#allocation3 + $0x118] sm:$0xff] 0.0
      %949 = vst [vmem:[#allocation3 + $0x120] sm:$0xff] 0.0
      %950 = vst [vmem:[#allocation3 + $0x128] sm:$0xff] 0.0
      %951 = vst [vmem:[#allocation3 + $0x130] sm:$0xff] 0.0
      %952 = vst [vmem:[#allocation3 + $0x138] sm:$0xff] 0.0
      %953 = vst [vmem:[#allocation3 + $0x140] sm:$0xff] 0.0
      %v954 = vld [vmem:[#allocation3] sm:$0xff]
      %v955 = vld [vmem:[#allocation3 + $0x8] sm:$0xff]
      %v956 = vld [vmem:[#allocation3 + $0x10] sm:$0xff]
      %v957 = vld [vmem:[#allocation3 + $0x18] sm:$0xff]
      %v958 = vld [vmem:[#allocation3 + $0x20] sm:$0xff]
      %v959 = vld [vmem:[#allocation3 + $0x28] sm:$0xff]
      %v960 = vld [vmem:[#allocation3 + $0x30] sm:$0xff]
      %v961 = vld [vmem:[#allocation3 + $0x38] sm:$0xff]
      %v962 = vld [vmem:[#allocation3 + $0x40] sm:$0xff]
      %v963 = vld [vmem:[#allocation3 + $0x48] sm:$0xff]
      %v964 = vld [vmem:[#allocation3 + $0x50] sm:$0xff]
      %v965 = vld [vmem:[#allocation3 + $0x58] sm:$0xff]
      %v966 = vld [vmem:[#allocation3 + $0x60] sm:$0xff]
      %v967 = vld [vmem:[#allocation3 + $0x68] sm:$0xff]
      %v968 = vld [vmem:[#allocation3 + $0x70] sm:$0xff]
      %v969 = vld [vmem:[#allocation3 + $0x78] sm:$0xff]
      %v970 = vld [vmem:[#allocation3 + $0x80] sm:$0xff]
      %v971 = vld [vmem:[#allocation3 + $0x88] sm:$0xff]
      %v972 = vld [vmem:[#allocation3 + $0x90] sm:$0xff]
      %v973 = vld [vmem:[#allocation3 + $0x98] sm:$0xff]
      %v974 = vld [vmem:[#allocation3 + $0xa0] sm:$0xff]
      %v975 = vld [vmem:[#allocation3 + $0xa8] sm:$0xff]
      %v976 = vld [vmem:[#allocation3 + $0xb0] sm:$0xff]
      %v977 = vld [vmem:[#allocation3 + $0xb8] sm:$0xff]
      %v978 = vld [vmem:[#allocation3 + $0xc0] sm:$0xff]
      %v979 = vld [vmem:[#allocation3 + $0xc8] sm:$0xff]
      %v980 = vld [vmem:[#allocation3 + $0xd0] sm:$0xff]
      %v981 = vld [vmem:[#allocation3 + $0xd8] sm:$0xff]
      %v982 = vld [vmem:[#allocation3 + $0xe0] sm:$0xff]
      %v983 = vld [vmem:[#allocation3 + $0xe8] sm:$0xff]
      %v984 = vld [vmem:[#allocation3 + $0xf0] sm:$0xff]
      %v985 = vld [vmem:[#allocation3 + $0xf8] sm:$0xff]
      %v986 = vld [vmem:[#allocation3 + $0x100] sm:$0xff]
      %v987 = vld [vmem:[#allocation3 + $0x108] sm:$0xff]
      %v988 = vld [vmem:[#allocation3 + $0x110] sm:$0xff]
      %v989 = vld [vmem:[#allocation3 + $0x118] sm:$0xff]
      %v990 = vld [vmem:[#allocation3 + $0x120] sm:$0xff]
      %v991 = vld [vmem:[#allocation3 + $0x128] sm:$0xff]
      %v992 = vld [vmem:[#allocation3 + $0x130] sm:$0xff]
      %v993 = vld [vmem:[#allocation3 + $0x138] sm:$0xff]
      %v994 = vld [vmem:[#allocation3 + $0x140] sm:$0xff]
      %v995 = vld [vmem:[#allocation2] sm:$0xc]
      %v996 = vld [vmem:[#allocation2 + $0x4] sm:$0xf]
      %v997 = vld [vmem:[#allocation2 + $0x8] sm:$0xf]
      %v998 = vld [vmem:[#allocation2 + $0xc] sm:$0xf]
      %v999 = vld [vmem:[#allocation2 + $0x10] sm:$0xf]
      %v1000 = vld [vmem:[#allocation2 + $0x14] sm:$0xf]
      %v1001 = vld [vmem:[#allocation2 + $0x18] sm:$0xf]
      %v1002 = vld [vmem:[#allocation2 + $0x1c] sm:$0xf]
      %v1003 = vld [vmem:[#allocation2 + $0x20] sm:$0xf]
      %v1004 = vld [vmem:[#allocation2 + $0x24] sm:$0xf]
      %v1005 = vld [vmem:[#allocation2 + $0x28] sm:$0xf]
      %v1006 = vld [vmem:[#allocation2 + $0x2c] sm:$0xf]
      %v1007 = vld [vmem:[#allocation2 + $0x30] sm:$0xf]
      %v1008 = vld [vmem:[#allocation2 + $0x34] sm:$0xf]
      %v1009 = vld [vmem:[#allocation2 + $0x38] sm:$0xf]
      %v1010 = vld [vmem:[#allocation2 + $0x3c] sm:$0xf]
      %v1011 = vld [vmem:[#allocation2 + $0x40] sm:$0xf]
      %v1012 = vld [vmem:[#allocation2 + $0x44] sm:$0xf]
      %v1013 = vld [vmem:[#allocation2 + $0x48] sm:$0xf]
      %v1014 = vld [vmem:[#allocation2 + $0x4c] sm:$0xf]
      %v1015 = vld [vmem:[#allocation2 + $0x50] sm:$0xf]
      %v1016 = vld [vmem:[#allocation2 + $0x54] sm:$0xf]
      %v1017 = vld [vmem:[#allocation2 + $0x58] sm:$0xf]
      %v1018 = vld [vmem:[#allocation2 + $0x5c] sm:$0xf]
      %v1019 = vld [vmem:[#allocation2 + $0x60] sm:$0xf]
      %v1020 = vld [vmem:[#allocation2 + $0x64] sm:$0xf]
      %v1021 = vld [vmem:[#allocation2 + $0x68] sm:$0xf]
      %v1022 = vld [vmem:[#allocation2 + $0x6c] sm:$0xf]
      %v1023 = vld [vmem:[#allocation2 + $0x70] sm:$0xf]
      %v1024 = vld [vmem:[#allocation2 + $0x74] sm:$0xf]
      %v1025 = vld [vmem:[#allocation2 + $0x78] sm:$0xf]
      %v1026 = vld [vmem:[#allocation2 + $0x7c] sm:$0xf]
      %v1027 = vld [vmem:[#allocation2 + $0x80] sm:$0xf]
      %v1028 = vld [vmem:[#allocation2 + $0x84] sm:$0xf]
      %v1029 = vld [vmem:[#allocation2 + $0x88] sm:$0xf]
      %v1030 = vld [vmem:[#allocation2 + $0x8c] sm:$0xf]
      %v1031 = vld [vmem:[#allocation2 + $0x90] sm:$0xf]
      %v1032 = vld [vmem:[#allocation2 + $0x94] sm:$0xf]
      %v1033 = vld [vmem:[#allocation2 + $0x98] sm:$0xf]
      %v1034 = vld [vmem:[#allocation2 + $0x9c] sm:$0xf]
      %v1035 = vld [vmem:[#allocation2 + $0xa0] sm:$0xf]
      %v1036 = vld [vmem:[#allocation2 + $0xa4] sm:$0x7]
      %v1037 = vld [vmem:[%s3] sm:$0xf]
      %v1038 = vld [vmem:[%s3 + $0x4] sm:$0xf]
      %v1039 = vld [vmem:[%s3 + $0x8] sm:$0xf]
      %v1040 = vld [vmem:[%s3 + $0xc] sm:$0xf]
      %v1041 = vld [vmem:[%s3 + $0x10] sm:$0xf]
      %v1042 = vld [vmem:[%s3 + $0x14] sm:$0xf]
      %v1043 = vld [vmem:[%s3 + $0x18] sm:$0xf]
      %v1044 = vld [vmem:[%s3 + $0x1c] sm:$0xf]
      %v1045 = vld [vmem:[%s3 + $0x20] sm:$0xf]
      %v1046 = vld [vmem:[%s3 + $0x24] sm:$0xf]
      %v1047 = vld [vmem:[%s3 + $0x28] sm:$0xf]
      %v1048 = vld [vmem:[%s3 + $0x2c] sm:$0xf]
      %v1049 = vld [vmem:[%s3 + $0x30] sm:$0xf]
      %v1050 = vld [vmem:[%s3 + $0x34] sm:$0xf]
      %v1051 = vld [vmem:[%s3 + $0x38] sm:$0xf]
      %v1052 = vld [vmem:[%s3 + $0x3c] sm:$0xf]
      %v1095 = vunpack.c.l.b16 %v995
      %v1096 = vunpack.c.l.b16 %v996
      %v1097 = vunpack.c.l.b16 %v997
      %v1098 = vunpack.c.l.b16 %v998
      %v1099 = vunpack.c.l.b16 %v999
      %v1100 = vunpack.c.l.b16 %v1000
      %v1101 = vunpack.c.l.b16 %v1001
      %v1102 = vunpack.c.l.b16 %v1002
      %v1103 = vunpack.c.l.b16 %v1003
      %v1104 = vunpack.c.l.b16 %v1004
      %v1105 = vunpack.c.l.b16 %v1005
      %v1106 = vunpack.c.l.b16 %v1006
      %v1107 = vunpack.c.l.b16 %v1007
      %v1108 = vunpack.c.l.b16 %v1008
      %v1109 = vunpack.c.l.b16 %v1009
      %v1110 = vunpack.c.l.b16 %v1010
      %v1111 = vunpack.c.l.b16 %v1011
      %v1112 = vunpack.c.l.b16 %v1012
      %v1113 = vunpack.c.l.b16 %v1013
      %v1114 = vunpack.c.l.b16 %v1014
      %v1115 = vunpack.c.l.b16 %v1015
      %v1116 = vunpack.c.l.b16 %v1016
      %v1117 = vunpack.c.l.b16 %v1017
      %v1118 = vunpack.c.l.b16 %v1018
      %v1119 = vunpack.c.l.b16 %v1019
      %v1120 = vunpack.c.l.b16 %v1020
      %v1121 = vunpack.c.l.b16 %v1021
      %v1122 = vunpack.c.l.b16 %v1022
      %v1123 = vunpack.c.l.b16 %v1023
      %v1124 = vunpack.c.l.b16 %v1024
      %v1125 = vunpack.c.l.b16 %v1025
      %v1126 = vunpack.c.l.b16 %v1026
      %v1127 = vunpack.c.l.b16 %v1027
      %v1128 = vunpack.c.l.b16 %v1028
      %v1129 = vunpack.c.l.b16 %v1029
      %v1130 = vunpack.c.l.b16 %v1030
      %v1131 = vunpack.c.l.b16 %v1031
      %v1132 = vunpack.c.l.b16 %v1032
      %v1133 = vunpack.c.l.b16 %v1033
      %v1134 = vunpack.c.l.b16 %v1034
      %v1135 = vunpack.c.l.b16 %v1035
      %v1136 = vunpack.c.l.b16 %v1036
      %v1137 = vpack.c.b16 %v1096, %v1095
      %v1138 = vpack.c.b16 %v1098, %v1097
      %v1139 = vpack.c.b16 %v1100, %v1099
      %v1140 = vpack.c.b16 %v1102, %v1101
      %v1141 = vpack.c.b16 %v1104, %v1103
      %v1142 = vpack.c.b16 %v1106, %v1105
      %v1143 = vpack.c.b16 %v1108, %v1107
      %v1144 = vpack.c.b16 %v1110, %v1109
      %v1145 = vpack.c.b16 %v1112, %v1111
      %v1146 = vpack.c.b16 %v1114, %v1113
      %v1147 = vpack.c.b16 %v1116, %v1115
      %v1148 = vpack.c.b16 %v1118, %v1117
      %v1149 = vpack.c.b16 %v1120, %v1119
      %v1150 = vpack.c.b16 %v1122, %v1121
      %v1151 = vpack.c.b16 %v1124, %v1123
      %v1152 = vpack.c.b16 %v1126, %v1125
      %v1153 = vpack.c.b16 %v1128, %v1127
      %v1154 = vpack.c.b16 %v1130, %v1129
      %v1155 = vpack.c.b16 %v1132, %v1131
      %v1156 = vpack.c.b16 %v1134, %v1133
      %v1157 = vpack.c.b16 %v1136, %v1135
      %vm1158 = vsmask.f32 5376
      %v1160 = vshrl.u32 %v1137, 16
      %v1162 = vrot.slane %v1160, 2
      %v1163 = vshll.u32 %v1137, 16
      %v1165 = vrot.slane %v1163, 3
      %v1166 = vor.u32 %v1162, %v1165
      %v1168 = vshrl.u32 %v1138, 16
      %v1170 = vrot.slane %v1168, 2
      %v1171 = vshll.u32 %v1138, 16
      %v1173 = vrot.slane %v1171, 3
      %v1174 = vor.u32 %v1170, %v1173
      %v1175 = vsel %vm1158, %v1166, %v1174
      %v1177 = vshrl.u32 %v1139, 16
      %v1179 = vrot.slane %v1177, 2
      %v1180 = vshll.u32 %v1139, 16
      %v1182 = vrot.slane %v1180, 3
      %v1183 = vor.u32 %v1179, %v1182
      %v1184 = vsel %vm1158, %v1174, %v1183
      %v1186 = vshrl.u32 %v1140, 16
      %v1188 = vrot.slane %v1186, 2
      %v1189 = vshll.u32 %v1140, 16
      %v1191 = vrot.slane %v1189, 3
      %v1192 = vor.u32 %v1188, %v1191
      %v1193 = vsel %vm1158, %v1183, %v1192
      %v1195 = vshrl.u32 %v1141, 16
      %v1197 = vrot.slane %v1195, 2
      %v1198 = vshll.u32 %v1141, 16
      %v1200 = vrot.slane %v1198, 3
      %v1201 = vor.u32 %v1197, %v1200
      %v1202 = vsel %vm1158, %v1192, %v1201
      %v1204 = vshrl.u32 %v1142, 16
      %v1206 = vrot.slane %v1204, 2
      %v1207 = vshll.u32 %v1142, 16
      %v1209 = vrot.slane %v1207, 3
      %v1210 = vor.u32 %v1206, %v1209
      %v1211 = vsel %vm1158, %v1201, %v1210
      %v1213 = vshrl.u32 %v1143, 16
      %v1215 = vrot.slane %v1213, 2
      %v1216 = vshll.u32 %v1143, 16
      %v1218 = vrot.slane %v1216, 3
      %v1219 = vor.u32 %v1215, %v1218
      %v1220 = vsel %vm1158, %v1210, %v1219
      %v1222 = vshrl.u32 %v1144, 16
      %v1224 = vrot.slane %v1222, 2
      %v1225 = vshll.u32 %v1144, 16
      %v1227 = vrot.slane %v1225, 3
      %v1228 = vor.u32 %v1224, %v1227
      %v1229 = vsel %vm1158, %v1219, %v1228
      %v1231 = vshrl.u32 %v1145, 16
      %v1233 = vrot.slane %v1231, 2
      %v1234 = vshll.u32 %v1145, 16
      %v1236 = vrot.slane %v1234, 3
      %v1237 = vor.u32 %v1233, %v1236
      %v1238 = vsel %vm1158, %v1228, %v1237
      %v1240 = vshrl.u32 %v1146, 16
      %v1242 = vrot.slane %v1240, 2
      %v1243 = vshll.u32 %v1146, 16
      %v1245 = vrot.slane %v1243, 3
      %v1246 = vor.u32 %v1242, %v1245
      %v1247 = vsel %vm1158, %v1237, %v1246
      %v1249 = vshrl.u32 %v1147, 16
      %v1251 = vrot.slane %v1249, 2
      %v1252 = vshll.u32 %v1147, 16
      %v1254 = vrot.slane %v1252, 3
      %v1255 = vor.u32 %v1251, %v1254
      %v1256 = vsel %vm1158, %v1246, %v1255
      %v1258 = vshrl.u32 %v1148, 16
      %v1260 = vrot.slane %v1258, 2
      %v1261 = vshll.u32 %v1148, 16
      %v1263 = vrot.slane %v1261, 3
      %v1264 = vor.u32 %v1260, %v1263
      %v1265 = vsel %vm1158, %v1255, %v1264
      %v1267 = vshrl.u32 %v1149, 16
      %v1269 = vrot.slane %v1267, 2
      %v1270 = vshll.u32 %v1149, 16
      %v1272 = vrot.slane %v1270, 3
      %v1273 = vor.u32 %v1269, %v1272
      %v1274 = vsel %vm1158, %v1264, %v1273
      %v1276 = vshrl.u32 %v1150, 16
      %v1278 = vrot.slane %v1276, 2
      %v1279 = vshll.u32 %v1150, 16
      %v1281 = vrot.slane %v1279, 3
      %v1282 = vor.u32 %v1278, %v1281
      %v1283 = vsel %vm1158, %v1273, %v1282
      %v1285 = vshrl.u32 %v1151, 16
      %v1287 = vrot.slane %v1285, 2
      %v1288 = vshll.u32 %v1151, 16
      %v1290 = vrot.slane %v1288, 3
      %v1291 = vor.u32 %v1287, %v1290
      %v1292 = vsel %vm1158, %v1282, %v1291
      %v1294 = vshrl.u32 %v1152, 16
      %v1296 = vrot.slane %v1294, 2
      %v1297 = vshll.u32 %v1152, 16
      %v1299 = vrot.slane %v1297, 3
      %v1300 = vor.u32 %v1296, %v1299
      %v1301 = vsel %vm1158, %v1291, %v1300
      %v1303 = vshrl.u32 %v1153, 16
      %v1305 = vrot.slane %v1303, 2
      %v1306 = vshll.u32 %v1153, 16
      %v1308 = vrot.slane %v1306, 3
      %v1309 = vor.u32 %v1305, %v1308
      %v1310 = vsel %vm1158, %v1300, %v1309
      %v1312 = vshrl.u32 %v1154, 16
      %v1314 = vrot.slane %v1312, 2
      %v1315 = vshll.u32 %v1154, 16
      %v1317 = vrot.slane %v1315, 3
      %v1318 = vor.u32 %v1314, %v1317
      %v1319 = vsel %vm1158, %v1309, %v1318
      %v1321 = vshrl.u32 %v1155, 16
      %v1323 = vrot.slane %v1321, 2
      %v1324 = vshll.u32 %v1155, 16
      %v1326 = vrot.slane %v1324, 3
      %v1327 = vor.u32 %v1323, %v1326
      %v1328 = vsel %vm1158, %v1318, %v1327
      %v1330 = vshrl.u32 %v1156, 16
      %v1332 = vrot.slane %v1330, 2
      %v1333 = vshll.u32 %v1156, 16
      %v1335 = vrot.slane %v1333, 3
      %v1336 = vor.u32 %v1332, %v1335
      %v1337 = vsel %vm1158, %v1327, %v1336
      %v1339 = vshrl.u32 %v1157, 16
      %v1341 = vrot.slane %v1339, 2
      %v1342 = vshll.u32 %v1157, 16
      %v1344 = vrot.slane %v1342, 3
      %v1345 = vor.u32 %v1341, %v1344
      %v1346 = vsel %vm1158, %v1336, %v1345
      %v1384 = vunpack.c.l.b16 %v1037
      %v1385 = vunpack.c.l.b16 %v1038
      %v1386 = vunpack.c.l.b16 %v1039
      %v1387 = vunpack.c.l.b16 %v1040
      %v1388 = vunpack.c.l.b16 %v1041
      %v1389 = vunpack.c.l.b16 %v1042
      %v1390 = vunpack.c.l.b16 %v1043
      %v1391 = vunpack.c.l.b16 %v1044
      %v1392 = vunpack.c.l.b16 %v1045
      %v1393 = vunpack.c.l.b16 %v1046
      %v1394 = vunpack.c.l.b16 %v1047
      %v1395 = vunpack.c.l.b16 %v1048
      %v1396 = vunpack.c.l.b16 %v1049
      %v1397 = vunpack.c.l.b16 %v1050
      %v1398 = vunpack.c.l.b16 %v1051
      %v1399 = vunpack.c.l.b16 %v1052
      %v1400 = vpack.c.b16 %v1385, %v1384
      %v1401 = vpack.c.b16 %v1387, %v1386
      %v1402 = vpack.c.b16 %v1389, %v1388
      %v1403 = vpack.c.b16 %v1391, %v1390
      %v1404 = vpack.c.b16 %v1393, %v1392
      %v1405 = vpack.c.b16 %v1395, %v1394
      %v1406 = vpack.c.b16 %v1397, %v1396
      %v1407 = vpack.c.b16 %v1399, %v1398
      %1416 = vmatpush.bf16.msra.mxu0 %v1407
      %1417 = vmatpush.bf16.msra.mxu0 %v1406
      %1418 = vmatpush.bf16.msra.mxu0 %v1405
      %1419 = vmatpush.bf16.msra.mxu0 %v1404
      %1420 = vmatpush.bf16.msra.mxu0 %v1403
      %1421 = vmatpush.bf16.msra.mxu0 %v1402
      %1422 = vmatpush.bf16.msra.mxu0 %v1401
      %1423 = vmatpush.bf16.msra.mxu0 %v1400
      %1424 = vmatmul.bf16.gmra.mxu0 %v1175
      %v1425 = vpop.f32.mrf.mxu0
      %v1426 = vadd.f32 0.0, %v1425
      %v1427 = vpop.f32.mrf.mxu0
      %v1428 = vadd.f32 0.0, %v1427
      %1429 = vmatmul.bf16.gmra.mxu0 %v1184
      %v1430 = vpop.f32.mrf.mxu0
      %v1431 = vadd.f32 0.0, %v1430
      %v1432 = vpop.f32.mrf.mxu0
      %v1433 = vadd.f32 0.0, %v1432
      %1434 = vmatmul.bf16.gmra.mxu0 %v1193
      %v1435 = vpop.f32.mrf.mxu0
      %v1436 = vadd.f32 0.0, %v1435
      %v1437 = vpop.f32.mrf.mxu0
      %v1438 = vadd.f32 0.0, %v1437
      %1439 = vmatmul.bf16.gmra.mxu0 %v1202
      %v1440 = vpop.f32.mrf.mxu0
      %v1441 = vadd.f32 0.0, %v1440
      %v1442 = vpop.f32.mrf.mxu0
      %v1443 = vadd.f32 0.0, %v1442
      %1444 = vmatmul.bf16.gmra.mxu0 %v1211
      %v1445 = vpop.f32.mrf.mxu0
      %v1446 = vadd.f32 0.0, %v1445
      %v1447 = vpop.f32.mrf.mxu0
      %v1448 = vadd.f32 0.0, %v1447
      %1449 = vmatmul.bf16.gmra.mxu0 %v1220
      %v1450 = vpop.f32.mrf.mxu0
      %v1451 = vadd.f32 0.0, %v1450
      %v1452 = vpop.f32.mrf.mxu0
      %v1453 = vadd.f32 0.0, %v1452
      %1454 = vmatmul.bf16.gmra.mxu0 %v1229
      %v1455 = vpop.f32.mrf.mxu0
      %v1456 = vadd.f32 0.0, %v1455
      %v1457 = vpop.f32.mrf.mxu0
      %v1458 = vadd.f32 0.0, %v1457
      %1459 = vmatmul.bf16.gmra.mxu0 %v1238
      %v1460 = vpop.f32.mrf.mxu0
      %v1461 = vadd.f32 0.0, %v1460
      %v1462 = vpop.f32.mrf.mxu0
      %v1463 = vadd.f32 0.0, %v1462
      %1464 = vmatmul.bf16.gmra.mxu0 %v1247
      %v1465 = vpop.f32.mrf.mxu0
      %v1466 = vadd.f32 0.0, %v1465
      %v1467 = vpop.f32.mrf.mxu0
      %v1468 = vadd.f32 0.0, %v1467
      %1469 = vmatmul.bf16.gmra.mxu0 %v1256
      %v1470 = vpop.f32.mrf.mxu0
      %v1471 = vadd.f32 0.0, %v1470
      %v1472 = vpop.f32.mrf.mxu0
      %v1473 = vadd.f32 0.0, %v1472
      %1474 = vmatmul.bf16.gmra.mxu0 %v1265
      %v1475 = vpop.f32.mrf.mxu0
      %v1476 = vadd.f32 0.0, %v1475
      %v1477 = vpop.f32.mrf.mxu0
      %v1478 = vadd.f32 0.0, %v1477
      %1479 = vmatmul.bf16.gmra.mxu0 %v1274
      %v1480 = vpop.f32.mrf.mxu0
      %v1481 = vadd.f32 0.0, %v1480
      %v1482 = vpop.f32.mrf.mxu0
      %v1483 = vadd.f32 0.0, %v1482
      %1484 = vmatmul.bf16.gmra.mxu0 %v1283
      %v1485 = vpop.f32.mrf.mxu0
      %v1486 = vadd.f32 0.0, %v1485
      %v1487 = vpop.f32.mrf.mxu0
      %v1488 = vadd.f32 0.0, %v1487
      %1489 = vmatmul.bf16.gmra.mxu0 %v1292
      %v1490 = vpop.f32.mrf.mxu0
      %v1491 = vadd.f32 0.0, %v1490
      %v1492 = vpop.f32.mrf.mxu0
      %v1493 = vadd.f32 0.0, %v1492
      %1494 = vmatmul.bf16.gmra.mxu0 %v1301
      %v1495 = vpop.f32.mrf.mxu0
      %v1496 = vadd.f32 0.0, %v1495
      %v1497 = vpop.f32.mrf.mxu0
      %v1498 = vadd.f32 0.0, %v1497
      %1499 = vmatmul.bf16.gmra.mxu0 %v1310
      %v1500 = vpop.f32.mrf.mxu0
      %v1501 = vadd.f32 0.0, %v1500
      %v1502 = vpop.f32.mrf.mxu0
      %v1503 = vadd.f32 0.0, %v1502
      %1504 = vmatmul.bf16.gmra.mxu0 %v1319
      %v1505 = vpop.f32.mrf.mxu0
      %v1506 = vadd.f32 0.0, %v1505
      %v1507 = vpop.f32.mrf.mxu0
      %v1508 = vadd.f32 0.0, %v1507
      %1509 = vmatmul.bf16.gmra.mxu0 %v1328
      %v1510 = vpop.f32.mrf.mxu0
      %v1511 = vadd.f32 0.0, %v1510
      %v1512 = vpop.f32.mrf.mxu0
      %v1513 = vadd.f32 0.0, %v1512
      %1514 = vmatmul.bf16.gmra.mxu0 %v1337
      %v1515 = vpop.f32.mrf.mxu0
      %v1516 = vadd.f32 0.0, %v1515
      %v1517 = vpop.f32.mrf.mxu0
      %v1518 = vadd.f32 0.0, %v1517
      %1519 = vmatmul.bf16.gmra.mxu0 %v1346
      %v1520 = vpop.f32.mrf.mxu0
      %v1521 = vadd.f32 0.0, %v1520
      %v1522 = vpop.f32.mrf.mxu0
      %v1523 = vadd.f32 0.0, %v1522
      %1524 = vmatmul.bf16.gmra.mxu0 %v1345
      %v1525 = vpop.f32.mrf.mxu0
      %v1526 = vadd.f32 0.0, %v1525
      %v1527 = vpop.f32.mrf.mxu0
      %1528 = vdwg.mxu0
      %v1529 = vadd.f32 %v954, %v1426
      %v1530 = vadd.f32 %v955, %v1428
      %v1531 = vadd.f32 %v956, %v1431
      %v1532 = vadd.f32 %v957, %v1433
      %v1533 = vadd.f32 %v958, %v1436
      %v1534 = vadd.f32 %v959, %v1438
      %v1535 = vadd.f32 %v960, %v1441
      %v1536 = vadd.f32 %v961, %v1443
      %v1537 = vadd.f32 %v962, %v1446
      %v1538 = vadd.f32 %v963, %v1448
      %v1539 = vadd.f32 %v964, %v1451
      %v1540 = vadd.f32 %v965, %v1453
      %v1541 = vadd.f32 %v966, %v1456
      %v1542 = vadd.f32 %v967, %v1458
      %v1543 = vadd.f32 %v968, %v1461
      %v1544 = vadd.f32 %v969, %v1463
      %v1545 = vadd.f32 %v970, %v1466
      %v1546 = vadd.f32 %v971, %v1468
      %v1547 = vadd.f32 %v972, %v1471
      %v1548 = vadd.f32 %v973, %v1473
      %v1549 = vadd.f32 %v974, %v1476
      %v1550 = vadd.f32 %v975, %v1478
      %v1551 = vadd.f32 %v976, %v1481
      %v1552 = vadd.f32 %v977, %v1483
      %v1553 = vadd.f32 %v978, %v1486
      %v1554 = vadd.f32 %v979, %v1488
      %v1555 = vadd.f32 %v980, %v1491
      %v1556 = vadd.f32 %v981, %v1493
      %v1557 = vadd.f32 %v982, %v1496
      %v1558 = vadd.f32 %v983, %v1498
      %v1559 = vadd.f32 %v984, %v1501
      %v1560 = vadd.f32 %v985, %v1503
      %v1561 = vadd.f32 %v986, %v1506
      %v1562 = vadd.f32 %v987, %v1508
      %v1563 = vadd.f32 %v988, %v1511
      %v1564 = vadd.f32 %v989, %v1513
      %v1565 = vadd.f32 %v990, %v1516
      %v1566 = vadd.f32 %v991, %v1518
      %v1567 = vadd.f32 %v992, %v1521
      %v1568 = vadd.f32 %v993, %v1523
      %v1569 = vadd.f32 %v994, %v1526
      %1570 = vst [vmem:[#allocation3] sm:$0xff] %v1529
      %1571 = vst [vmem:[#allocation3 + $0x8] sm:$0xff] %v1530
      %1572 = vst [vmem:[#allocation3 + $0x10] sm:$0xff] %v1531
      %1573 = vst [vmem:[#allocation3 + $0x18] sm:$0xff] %v1532
      %1574 = vst [vmem:[#allocation3 + $0x20] sm:$0xff] %v1533
      %1575 = vst [vmem:[#allocation3 + $0x28] sm:$0xff] %v1534
      %1576 = vst [vmem:[#allocation3 + $0x30] sm:$0xff] %v1535
      %1577 = vst [vmem:[#allocation3 + $0x38] sm:$0xff] %v1536
      %1578 = vst [vmem:[#allocation3 + $0x40] sm:$0xff] %v1537
      %1579 = vst [vmem:[#allocation3 + $0x48] sm:$0xff] %v1538
      %1580 = vst [vmem:[#allocation3 + $0x50] sm:$0xff] %v1539
      %1581 = vst [vmem:[#allocation3 + $0x58] sm:$0xff] %v1540
      %1582 = vst [vmem:[#allocation3 + $0x60] sm:$0xff] %v1541
      %1583 = vst [vmem:[#allocation3 + $0x68] sm:$0xff] %v1542
      %1584 = vst [vmem:[#allocation3 + $0x70] sm:$0xff] %v1543
      %1585 = vst [vmem:[#allocation3 + $0x78] sm:$0xff] %v1544
      %1586 = vst [vmem:[#allocation3 + $0x80] sm:$0xff] %v1545
      %1587 = vst [vmem:[#allocation3 + $0x88] sm:$0xff] %v1546
      %1588 = vst [vmem:[#allocation3 + $0x90] sm:$0xff] %v1547
      %1589 = vst [vmem:[#allocation3 + $0x98] sm:$0xff] %v1548
      %1590 = vst [vmem:[#allocation3 + $0xa0] sm:$0xff] %v1549
      %1591 = vst [vmem:[#allocation3 + $0xa8] sm:$0xff] %v1550
      %1592 = vst [vmem:[#allocation3 + $0xb0] sm:$0xff] %v1551
      %1593 = vst [vmem:[#allocation3 + $0xb8] sm:$0xff] %v1552
      %1594 = vst [vmem:[#allocation3 + $0xc0] sm:$0xff] %v1553
      %1595 = vst [vmem:[#allocation3 + $0xc8] sm:$0xff] %v1554
      %1596 = vst [vmem:[#allocation3 + $0xd0] sm:$0xff] %v1555
      %1597 = vst [vmem:[#allocation3 + $0xd8] sm:$0xff] %v1556
      %1598 = vst [vmem:[#allocation3 + $0xe0] sm:$0xff] %v1557
      %1599 = vst [vmem:[#allocation3 + $0xe8] sm:$0xff] %v1558
      %1600 = vst [vmem:[#allocation3 + $0xf0] sm:$0xff] %v1559
      %1601 = vst [vmem:[#allocation3 + $0xf8] sm:$0xff] %v1560
      %1602 = vst [vmem:[#allocation3 + $0x100] sm:$0xff] %v1561
      %1603 = vst [vmem:[#allocation3 + $0x108] sm:$0xff] %v1562
      %1604 = vst [vmem:[#allocation3 + $0x110] sm:$0xff] %v1563
      %1605 = vst [vmem:[#allocation3 + $0x118] sm:$0xff] %v1564
      %1606 = vst [vmem:[#allocation3 + $0x120] sm:$0xff] %v1565
      %1607 = vst [vmem:[#allocation3 + $0x128] sm:$0xff] %v1566
      %1608 = vst [vmem:[#allocation3 + $0x130] sm:$0xff] %v1567
      %1609 = vst [vmem:[#allocation3 + $0x138] sm:$0xff] %v1568
      %1610 = vst [vmem:[#allocation3 + $0x140] sm:$0xff] %v1569
      %v1611 = vld [vmem:[#allocation3] sm:$0xff]
      %v1612 = vld [vmem:[#allocation3 + $0x8] sm:$0xff]
      %v1613 = vld [vmem:[#allocation3 + $0x10] sm:$0xff]
      %v1614 = vld [vmem:[#allocation3 + $0x18] sm:$0xff]
      %v1615 = vld [vmem:[#allocation3 + $0x20] sm:$0xff]
      %v1616 = vld [vmem:[#allocation3 + $0x28] sm:$0xff]
      %v1617 = vld [vmem:[#allocation3 + $0x30] sm:$0xff]
      %v1618 = vld [vmem:[#allocation3 + $0x38] sm:$0xff]
      %v1619 = vld [vmem:[#allocation3 + $0x40] sm:$0xff]
      %v1620 = vld [vmem:[#allocation3 + $0x48] sm:$0xff]
      %v1621 = vld [vmem:[#allocation3 + $0x50] sm:$0xff]
      %v1622 = vld [vmem:[#allocation3 + $0x58] sm:$0xff]
      %v1623 = vld [vmem:[#allocation3 + $0x60] sm:$0xff]
      %v1624 = vld [vmem:[#allocation3 + $0x68] sm:$0xff]
      %v1625 = vld [vmem:[#allocation3 + $0x70] sm:$0xff]
      %v1626 = vld [vmem:[#allocation3 + $0x78] sm:$0xff]
      %v1627 = vld [vmem:[#allocation3 + $0x80] sm:$0xff]
      %v1628 = vld [vmem:[#allocation3 + $0x88] sm:$0xff]
      %v1629 = vld [vmem:[#allocation3 + $0x90] sm:$0xff]
      %v1630 = vld [vmem:[#allocation3 + $0x98] sm:$0xff]
      %v1631 = vld [vmem:[#allocation3 + $0xa0] sm:$0xff]
      %v1632 = vld [vmem:[#allocation3 + $0xa8] sm:$0xff]
      %v1633 = vld [vmem:[#allocation3 + $0xb0] sm:$0xff]
      %v1634 = vld [vmem:[#allocation3 + $0xb8] sm:$0xff]
      %v1635 = vld [vmem:[#allocation3 + $0xc0] sm:$0xff]
      %v1636 = vld [vmem:[#allocation3 + $0xc8] sm:$0xff]
      %v1637 = vld [vmem:[#allocation3 + $0xd0] sm:$0xff]
      %v1638 = vld [vmem:[#allocation3 + $0xd8] sm:$0xff]
      %v1639 = vld [vmem:[#allocation3 + $0xe0] sm:$0xff]
      %v1640 = vld [vmem:[#allocation3 + $0xe8] sm:$0xff]
      %v1641 = vld [vmem:[#allocation3 + $0xf0] sm:$0xff]
      %v1642 = vld [vmem:[#allocation3 + $0xf8] sm:$0xff]
      %v1643 = vld [vmem:[#allocation3 + $0x100] sm:$0xff]
      %v1644 = vld [vmem:[#allocation3 + $0x108] sm:$0xff]
      %v1645 = vld [vmem:[#allocation3 + $0x110] sm:$0xff]
      %v1646 = vld [vmem:[#allocation3 + $0x118] sm:$0xff]
      %v1647 = vld [vmem:[#allocation3 + $0x120] sm:$0xff]
      %v1648 = vld [vmem:[#allocation3 + $0x128] sm:$0xff]
      %v1649 = vld [vmem:[#allocation3 + $0x130] sm:$0xff]
      %v1650 = vld [vmem:[#allocation3 + $0x138] sm:$0xff]
      %v1651 = vld [vmem:[#allocation3 + $0x140] sm:$0xff]
      %v1652 = vld [vmem:[#allocation2] sm:$0x8]
      %v1653 = vld [vmem:[#allocation2 + $0x4] sm:$0xf]
      %v1654 = vld [vmem:[#allocation2 + $0x8] sm:$0xf]
      %v1655 = vld [vmem:[#allocation2 + $0xc] sm:$0xf]
      %v1656 = vld [vmem:[#allocation2 + $0x10] sm:$0xf]
      %v1657 = vld [vmem:[#allocation2 + $0x14] sm:$0xf]
      %v1658 = vld [vmem:[#allocation2 + $0x18] sm:$0xf]
      %v1659 = vld [vmem:[#allocation2 + $0x1c] sm:$0xf]
      %v1660 = vld [vmem:[#allocation2 + $0x20] sm:$0xf]
      %v1661 = vld [vmem:[#allocation2 + $0x24] sm:$0xf]
      %v1662 = vld [vmem:[#allocation2 + $0x28] sm:$0xf]
      %v1663 = vld [vmem:[#allocation2 + $0x2c] sm:$0xf]
      %v1664 = vld [vmem:[#allocation2 + $0x30] sm:$0xf]
      %v1665 = vld [vmem:[#allocation2 + $0x34] sm:$0xf]
      %v1666 = vld [vmem:[#allocation2 + $0x38] sm:$0xf]
      %v1667 = vld [vmem:[#allocation2 + $0x3c] sm:$0xf]
      %v1668 = vld [vmem:[#allocation2 + $0x40] sm:$0xf]
      %v1669 = vld [vmem:[#allocation2 + $0x44] sm:$0xf]
      %v1670 = vld [vmem:[#allocation2 + $0x48] sm:$0xf]
      %v1671 = vld [vmem:[#allocation2 + $0x4c] sm:$0xf]
      %v1672 = vld [vmem:[#allocation2 + $0x50] sm:$0xf]
      %v1673 = vld [vmem:[#allocation2 + $0x54] sm:$0xf]
      %v1674 = vld [vmem:[#allocation2 + $0x58] sm:$0xf]
      %v1675 = vld [vmem:[#allocation2 + $0x5c] sm:$0xf]
      %v1676 = vld [vmem:[#allocation2 + $0x60] sm:$0xf]
      %v1677 = vld [vmem:[#allocation2 + $0x64] sm:$0xf]
      %v1678 = vld [vmem:[#allocation2 + $0x68] sm:$0xf]
      %v1679 = vld [vmem:[#allocation2 + $0x6c] sm:$0xf]
      %v1680 = vld [vmem:[#allocation2 + $0x70] sm:$0xf]
      %v1681 = vld [vmem:[#allocation2 + $0x74] sm:$0xf]
      %v1682 = vld [vmem:[#allocation2 + $0x78] sm:$0xf]
      %v1683 = vld [vmem:[#allocation2 + $0x7c] sm:$0xf]
      %v1684 = vld [vmem:[#allocation2 + $0x80] sm:$0xf]
      %v1685 = vld [vmem:[#allocation2 + $0x84] sm:$0xf]
      %v1686 = vld [vmem:[#allocation2 + $0x88] sm:$0xf]
      %v1687 = vld [vmem:[#allocation2 + $0x8c] sm:$0xf]
      %v1688 = vld [vmem:[#allocation2 + $0x90] sm:$0xf]
      %v1689 = vld [vmem:[#allocation2 + $0x94] sm:$0xf]
      %v1690 = vld [vmem:[#allocation2 + $0x98] sm:$0xf]
      %v1691 = vld [vmem:[#allocation2 + $0x9c] sm:$0xf]
      %v1692 = vld [vmem:[#allocation2 + $0xa0] sm:$0xf]
      %v1693 = vld [vmem:[#allocation2 + $0xa4] sm:$0x7]
      %s1694 = scalar_lea.vmem %s3, 64
      %v1695 = vld [vmem:[%s1694] sm:$0xf]
      %v1696 = vld [vmem:[%s1694 + $0x4] sm:$0xf]
      %v1697 = vld [vmem:[%s1694 + $0x8] sm:$0xf]
      %v1698 = vld [vmem:[%s1694 + $0xc] sm:$0xf]
      %v1699 = vld [vmem:[%s1694 + $0x10] sm:$0xf]
      %v1700 = vld [vmem:[%s1694 + $0x14] sm:$0xf]
      %v1701 = vld [vmem:[%s1694 + $0x18] sm:$0xf]
      %v1702 = vld [vmem:[%s1694 + $0x1c] sm:$0xf]
      %v1703 = vld [vmem:[%s1694 + $0x20] sm:$0xf]
      %v1704 = vld [vmem:[%s1694 + $0x24] sm:$0xf]
      %v1705 = vld [vmem:[%s1694 + $0x28] sm:$0xf]
      %v1706 = vld [vmem:[%s1694 + $0x2c] sm:$0xf]
      %v1707 = vld [vmem:[%s1694 + $0x30] sm:$0xf]
      %v1708 = vld [vmem:[%s1694 + $0x34] sm:$0xf]
      %v1709 = vld [vmem:[%s1694 + $0x38] sm:$0xf]
      %v1710 = vld [vmem:[%s1694 + $0x3c] sm:$0xf]
      %v1753 = vunpack.c.l.b16 %v1652
      %v1754 = vunpack.c.l.b16 %v1653
      %v1755 = vunpack.c.l.b16 %v1654
      %v1756 = vunpack.c.l.b16 %v1655
      %v1757 = vunpack.c.l.b16 %v1656
      %v1758 = vunpack.c.l.b16 %v1657
      %v1759 = vunpack.c.l.b16 %v1658
      %v1760 = vunpack.c.l.b16 %v1659
      %v1761 = vunpack.c.l.b16 %v1660
      %v1762 = vunpack.c.l.b16 %v1661
      %v1763 = vunpack.c.l.b16 %v1662
      %v1764 = vunpack.c.l.b16 %v1663
      %v1765 = vunpack.c.l.b16 %v1664
      %v1766 = vunpack.c.l.b16 %v1665
      %v1767 = vunpack.c.l.b16 %v1666
      %v1768 = vunpack.c.l.b16 %v1667
      %v1769 = vunpack.c.l.b16 %v1668
      %v1770 = vunpack.c.l.b16 %v1669
      %v1771 = vunpack.c.l.b16 %v1670
      %v1772 = vunpack.c.l.b16 %v1671
      %v1773 = vunpack.c.l.b16 %v1672
      %v1774 = vunpack.c.l.b16 %v1673
      %v1775 = vunpack.c.l.b16 %v1674
      %v1776 = vunpack.c.l.b16 %v1675
      %v1777 = vunpack.c.l.b16 %v1676
      %v1778 = vunpack.c.l.b16 %v1677
      %v1779 = vunpack.c.l.b16 %v1678
      %v1780 = vunpack.c.l.b16 %v1679
      %v1781 = vunpack.c.l.b16 %v1680
      %v1782 = vunpack.c.l.b16 %v1681
      %v1783 = vunpack.c.l.b16 %v1682
      %v1784 = vunpack.c.l.b16 %v1683
      %v1785 = vunpack.c.l.b16 %v1684
      %v1786 = vunpack.c.l.b16 %v1685
      %v1787 = vunpack.c.l.b16 %v1686
      %v1788 = vunpack.c.l.b16 %v1687
      %v1789 = vunpack.c.l.b16 %v1688
      %v1790 = vunpack.c.l.b16 %v1689
      %v1791 = vunpack.c.l.b16 %v1690
      %v1792 = vunpack.c.l.b16 %v1691
      %v1793 = vunpack.c.l.b16 %v1692
      %v1794 = vunpack.c.l.b16 %v1693
      %v1795 = vpack.c.b16 %v1754, %v1753
      %v1796 = vpack.c.b16 %v1756, %v1755
      %v1797 = vpack.c.b16 %v1758, %v1757
      %v1798 = vpack.c.b16 %v1760, %v1759
      %v1799 = vpack.c.b16 %v1762, %v1761
      %v1800 = vpack.c.b16 %v1764, %v1763
      %v1801 = vpack.c.b16 %v1766, %v1765
      %v1802 = vpack.c.b16 %v1768, %v1767
      %v1803 = vpack.c.b16 %v1770, %v1769
      %v1804 = vpack.c.b16 %v1772, %v1771
      %v1805 = vpack.c.b16 %v1774, %v1773
      %v1806 = vpack.c.b16 %v1776, %v1775
      %v1807 = vpack.c.b16 %v1778, %v1777
      %v1808 = vpack.c.b16 %v1780, %v1779
      %v1809 = vpack.c.b16 %v1782, %v1781
      %v1810 = vpack.c.b16 %v1784, %v1783
      %v1811 = vpack.c.b16 %v1786, %v1785
      %v1812 = vpack.c.b16 %v1788, %v1787
      %v1813 = vpack.c.b16 %v1790, %v1789
      %v1814 = vpack.c.b16 %v1792, %v1791
      %v1815 = vpack.c.b16 %v1794, %v1793
      %vm1816 = vcmask 1044480
      %v1817 = vrot.slane %v1795, 3
      %v1818 = vrot.slane %v1796, 3
      %v1819 = vsel %vm1816, %v1817, %v1818
      %v1820 = vrot.slane %v1797, 3
      %v1821 = vsel %vm1816, %v1818, %v1820
      %v1822 = vrot.slane %v1798, 3
      %v1823 = vsel %vm1816, %v1820, %v1822
      %v1824 = vrot.slane %v1799, 3
      %v1825 = vsel %vm1816, %v1822, %v1824
      %v1826 = vrot.slane %v1800, 3
      %v1827 = vsel %vm1816, %v1824, %v1826
      %v1828 = vrot.slane %v1801, 3
      %v1829 = vsel %vm1816, %v1826, %v1828
      %v1830 = vrot.slane %v1802, 3
      %v1831 = vsel %vm1816, %v1828, %v1830
      %v1832 = vrot.slane %v1803, 3
      %v1833 = vsel %vm1816, %v1830, %v1832
      %v1834 = vrot.slane %v1804, 3
      %v1835 = vsel %vm1816, %v1832, %v1834
      %v1836 = vrot.slane %v1805, 3
      %v1837 = vsel %vm1816, %v1834, %v1836
      %v1838 = vrot.slane %v1806, 3
      %v1839 = vsel %vm1816, %v1836, %v1838
      %v1840 = vrot.slane %v1807, 3
      %v1841 = vsel %vm1816, %v1838, %v1840
      %v1842 = vrot.slane %v1808, 3
      %v1843 = vsel %vm1816, %v1840, %v1842
      %v1844 = vrot.slane %v1809, 3
      %v1845 = vsel %vm1816, %v1842, %v1844
      %v1846 = vrot.slane %v1810, 3
      %v1847 = vsel %vm1816, %v1844, %v1846
      %v1848 = vrot.slane %v1811, 3
      %v1849 = vsel %vm1816, %v1846, %v1848
      %v1850 = vrot.slane %v1812, 3
      %v1851 = vsel %vm1816, %v1848, %v1850
      %v1852 = vrot.slane %v1813, 3
      %v1853 = vsel %vm1816, %v1850, %v1852
      %v1854 = vrot.slane %v1814, 3
      %v1855 = vsel %vm1816, %v1852, %v1854
      %v1856 = vrot.slane %v1815, 3
      %v1857 = vsel %vm1816, %v1854, %v1856
      %v1895 = vunpack.c.l.b16 %v1695
      %v1896 = vunpack.c.l.b16 %v1696
      %v1897 = vunpack.c.l.b16 %v1697
      %v1898 = vunpack.c.l.b16 %v1698
      %v1899 = vunpack.c.l.b16 %v1699
      %v1900 = vunpack.c.l.b16 %v1700
      %v1901 = vunpack.c.l.b16 %v1701
      %v1902 = vunpack.c.l.b16 %v1702
      %v1903 = vunpack.c.l.b16 %v1703
      %v1904 = vunpack.c.l.b16 %v1704
      %v1905 = vunpack.c.l.b16 %v1705
      %v1906 = vunpack.c.l.b16 %v1706
      %v1907 = vunpack.c.l.b16 %v1707
      %v1908 = vunpack.c.l.b16 %v1708
      %v1909 = vunpack.c.l.b16 %v1709
      %v1910 = vunpack.c.l.b16 %v1710
      %v1911 = vpack.c.b16 %v1896, %v1895
      %v1912 = vpack.c.b16 %v1898, %v1897
      %v1913 = vpack.c.b16 %v1900, %v1899
      %v1914 = vpack.c.b16 %v1902, %v1901
      %v1915 = vpack.c.b16 %v1904, %v1903
      %v1916 = vpack.c.b16 %v1906, %v1905
      %v1917 = vpack.c.b16 %v1908, %v1907
      %v1918 = vpack.c.b16 %v1910, %v1909
      %1927 = vmatpush.bf16.msra.mxu0 %v1918
      %1928 = vmatpush.bf16.msra.mxu0 %v1917
      %1929 = vmatpush.bf16.msra.mxu0 %v1916
      %1930 = vmatpush.bf16.msra.mxu0 %v1915
      %1931 = vmatpush.bf16.msra.mxu0 %v1914
      %1932 = vmatpush.bf16.msra.mxu0 %v1913
      %1933 = vmatpush.bf16.msra.mxu0 %v1912
      %1934 = vmatpush.bf16.msra.mxu0 %v1911
      %1935 = vmatmul.bf16.gmra.mxu0 %v1819
      %v1936 = vpop.f32.mrf.mxu0
      %v1937 = vadd.f32 0.0, %v1936
      %v1938 = vpop.f32.mrf.mxu0
      %v1939 = vadd.f32 0.0, %v1938
      %1940 = vmatmul.bf16.gmra.mxu0 %v1821
      %v1941 = vpop.f32.mrf.mxu0
      %v1942 = vadd.f32 0.0, %v1941
      %v1943 = vpop.f32.mrf.mxu0
      %v1944 = vadd.f32 0.0, %v1943
      %1945 = vmatmul.bf16.gmra.mxu0 %v1823
      %v1946 = vpop.f32.mrf.mxu0
      %v1947 = vadd.f32 0.0, %v1946
      %v1948 = vpop.f32.mrf.mxu0
      %v1949 = vadd.f32 0.0, %v1948
      %1950 = vmatmul.bf16.gmra.mxu0 %v1825
      %v1951 = vpop.f32.mrf.mxu0
      %v1952 = vadd.f32 0.0, %v1951
      %v1953 = vpop.f32.mrf.mxu0
      %v1954 = vadd.f32 0.0, %v1953
      %1955 = vmatmul.bf16.gmra.mxu0 %v1827
      %v1956 = vpop.f32.mrf.mxu0
      %v1957 = vadd.f32 0.0, %v1956
      %v1958 = vpop.f32.mrf.mxu0
      %v1959 = vadd.f32 0.0, %v1958
      %1960 = vmatmul.bf16.gmra.mxu0 %v1829
      %v1961 = vpop.f32.mrf.mxu0
      %v1962 = vadd.f32 0.0, %v1961
      %v1963 = vpop.f32.mrf.mxu0
      %v1964 = vadd.f32 0.0, %v1963
      %1965 = vmatmul.bf16.gmra.mxu0 %v1831
      %v1966 = vpop.f32.mrf.mxu0
      %v1967 = vadd.f32 0.0, %v1966
      %v1968 = vpop.f32.mrf.mxu0
      %v1969 = vadd.f32 0.0, %v1968
      %1970 = vmatmul.bf16.gmra.mxu0 %v1833
      %v1971 = vpop.f32.mrf.mxu0
      %v1972 = vadd.f32 0.0, %v1971
      %v1973 = vpop.f32.mrf.mxu0
      %v1974 = vadd.f32 0.0, %v1973
      %1975 = vmatmul.bf16.gmra.mxu0 %v1835
      %v1976 = vpop.f32.mrf.mxu0
      %v1977 = vadd.f32 0.0, %v1976
      %v1978 = vpop.f32.mrf.mxu0
      %v1979 = vadd.f32 0.0, %v1978
      %1980 = vmatmul.bf16.gmra.mxu0 %v1837
      %v1981 = vpop.f32.mrf.mxu0
      %v1982 = vadd.f32 0.0, %v1981
      %v1983 = vpop.f32.mrf.mxu0
      %v1984 = vadd.f32 0.0, %v1983
      %1985 = vmatmul.bf16.gmra.mxu0 %v1839
      %v1986 = vpop.f32.mrf.mxu0
      %v1987 = vadd.f32 0.0, %v1986
      %v1988 = vpop.f32.mrf.mxu0
      %v1989 = vadd.f32 0.0, %v1988
      %1990 = vmatmul.bf16.gmra.mxu0 %v1841
      %v1991 = vpop.f32.mrf.mxu0
      %v1992 = vadd.f32 0.0, %v1991
      %v1993 = vpop.f32.mrf.mxu0
      %v1994 = vadd.f32 0.0, %v1993
      %1995 = vmatmul.bf16.gmra.mxu0 %v1843
      %v1996 = vpop.f32.mrf.mxu0
      %v1997 = vadd.f32 0.0, %v1996
      %v1998 = vpop.f32.mrf.mxu0
      %v1999 = vadd.f32 0.0, %v1998
      %2000 = vmatmul.bf16.gmra.mxu0 %v1845
      %v2001 = vpop.f32.mrf.mxu0
      %v2002 = vadd.f32 0.0, %v2001
      %v2003 = vpop.f32.mrf.mxu0
      %v2004 = vadd.f32 0.0, %v2003
      %2005 = vmatmul.bf16.gmra.mxu0 %v1847
      %v2006 = vpop.f32.mrf.mxu0
      %v2007 = vadd.f32 0.0, %v2006
      %v2008 = vpop.f32.mrf.mxu0
      %v2009 = vadd.f32 0.0, %v2008
      %2010 = vmatmul.bf16.gmra.mxu0 %v1849
      %v2011 = vpop.f32.mrf.mxu0
      %v2012 = vadd.f32 0.0, %v2011
      %v2013 = vpop.f32.mrf.mxu0
      %v2014 = vadd.f32 0.0, %v2013
      %2015 = vmatmul.bf16.gmra.mxu0 %v1851
      %v2016 = vpop.f32.mrf.mxu0
      %v2017 = vadd.f32 0.0, %v2016
      %v2018 = vpop.f32.mrf.mxu0
      %v2019 = vadd.f32 0.0, %v2018
      %2020 = vmatmul.bf16.gmra.mxu0 %v1853
      %v2021 = vpop.f32.mrf.mxu0
      %v2022 = vadd.f32 0.0, %v2021
      %v2023 = vpop.f32.mrf.mxu0
      %v2024 = vadd.f32 0.0, %v2023
      %2025 = vmatmul.bf16.gmra.mxu0 %v1855
      %v2026 = vpop.f32.mrf.mxu0
      %v2027 = vadd.f32 0.0, %v2026
      %v2028 = vpop.f32.mrf.mxu0
      %v2029 = vadd.f32 0.0, %v2028
      %2030 = vmatmul.bf16.gmra.mxu0 %v1857
      %v2031 = vpop.f32.mrf.mxu0
      %v2032 = vadd.f32 0.0, %v2031
      %v2033 = vpop.f32.mrf.mxu0
      %v2034 = vadd.f32 0.0, %v2033
      %2035 = vmatmul.bf16.gmra.mxu0 %v1856
      %v2036 = vpop.f32.mrf.mxu0
      %v2037 = vadd.f32 0.0, %v2036
      %v2038 = vpop.f32.mrf.mxu0
      %2039 = vdwg.mxu0
      %v2040 = vadd.f32 %v1611, %v1937
      %v2041 = vadd.f32 %v1612, %v1939
      %v2042 = vadd.f32 %v1613, %v1942
      %v2043 = vadd.f32 %v1614, %v1944
      %v2044 = vadd.f32 %v1615, %v1947
      %v2045 = vadd.f32 %v1616, %v1949
      %v2046 = vadd.f32 %v1617, %v1952
      %v2047 = vadd.f32 %v1618, %v1954
      %v2048 = vadd.f32 %v1619, %v1957
      %v2049 = vadd.f32 %v1620, %v1959
      %v2050 = vadd.f32 %v1621, %v1962
      %v2051 = vadd.f32 %v1622, %v1964
      %v2052 = vadd.f32 %v1623, %v1967
      %v2053 = vadd.f32 %v1624, %v1969
      %v2054 = vadd.f32 %v1625, %v1972
      %v2055 = vadd.f32 %v1626, %v1974
      %v2056 = vadd.f32 %v1627, %v1977
      %v2057 = vadd.f32 %v1628, %v1979
      %v2058 = vadd.f32 %v1629, %v1982
      %v2059 = vadd.f32 %v1630, %v1984
      %v2060 = vadd.f32 %v1631, %v1987
      %v2061 = vadd.f32 %v1632, %v1989
      %v2062 = vadd.f32 %v1633, %v1992
      %v2063 = vadd.f32 %v1634, %v1994
      %v2064 = vadd.f32 %v1635, %v1997
      %v2065 = vadd.f32 %v1636, %v1999
      %v2066 = vadd.f32 %v1637, %v2002
      %v2067 = vadd.f32 %v1638, %v2004
      %v2068 = vadd.f32 %v1639, %v2007
      %v2069 = vadd.f32 %v1640, %v2009
      %v2070 = vadd.f32 %v1641, %v2012
      %v2071 = vadd.f32 %v1642, %v2014
      %v2072 = vadd.f32 %v1643, %v2017
      %v2073 = vadd.f32 %v1644, %v2019
      %v2074 = vadd.f32 %v1645, %v2022
      %v2075 = vadd.f32 %v1646, %v2024
      %v2076 = vadd.f32 %v1647, %v2027
      %v2077 = vadd.f32 %v1648, %v2029
      %v2078 = vadd.f32 %v1649, %v2032
      %v2079 = vadd.f32 %v1650, %v2034
      %v2080 = vadd.f32 %v1651, %v2037
      %2081 = vst [vmem:[#allocation3] sm:$0xff] %v2040
      %2082 = vst [vmem:[#allocation3 + $0x8] sm:$0xff] %v2041
      %2083 = vst [vmem:[#allocation3 + $0x10] sm:$0xff] %v2042
      %2084 = vst [vmem:[#allocation3 + $0x18] sm:$0xff] %v2043
      %2085 = vst [vmem:[#allocation3 + $0x20] sm:$0xff] %v2044
      %2086 = vst [vmem:[#allocation3 + $0x28] sm:$0xff] %v2045
      %2087 = vst [vmem:[#allocation3 + $0x30] sm:$0xff] %v2046
      %2088 = vst [vmem:[#allocation3 + $0x38] sm:$0xff] %v2047
      %2089 = vst [vmem:[#allocation3 + $0x40] sm:$0xff] %v2048
      %2090 = vst [vmem:[#allocation3 + $0x48] sm:$0xff] %v2049
      %2091 = vst [vmem:[#allocation3 + $0x50] sm:$0xff] %v2050
      %2092 = vst [vmem:[#allocation3 + $0x58] sm:$0xff] %v2051
      %2093 = vst [vmem:[#allocation3 + $0x60] sm:$0xff] %v2052
      %2094 = vst [vmem:[#allocation3 + $0x68] sm:$0xff] %v2053
      %2095 = vst [vmem:[#allocation3 + $0x70] sm:$0xff] %v2054
      %2096 = vst [vmem:[#allocation3 + $0x78] sm:$0xff] %v2055
      %2097 = vst [vmem:[#allocation3 + $0x80] sm:$0xff] %v2056
      %2098 = vst [vmem:[#allocation3 + $0x88] sm:$0xff] %v2057
      %2099 = vst [vmem:[#allocation3 + $0x90] sm:$0xff] %v2058
      %2100 = vst [vmem:[#allocation3 + $0x98] sm:$0xff] %v2059
      %2101 = vst [vmem:[#allocation3 + $0xa0] sm:$0xff] %v2060
      %2102 = vst [vmem:[#allocation3 + $0xa8] sm:$0xff] %v2061
      %2103 = vst [vmem:[#allocation3 + $0xb0] sm:$0xff] %v2062
      %2104 = vst [vmem:[#allocation3 + $0xb8] sm:$0xff] %v2063
      %2105 = vst [vmem:[#allocation3 + $0xc0] sm:$0xff] %v2064
      %2106 = vst [vmem:[#allocation3 + $0xc8] sm:$0xff] %v2065
      %2107 = vst [vmem:[#allocation3 + $0xd0] sm:$0xff] %v2066
      %2108 = vst [vmem:[#allocation3 + $0xd8] sm:$0xff] %v2067
      %2109 = vst [vmem:[#allocation3 + $0xe0] sm:$0xff] %v2068
      %2110 = vst [vmem:[#allocation3 + $0xe8] sm:$0xff] %v2069
      %2111 = vst [vmem:[#allocation3 + $0xf0] sm:$0xff] %v2070
      %2112 = vst [vmem:[#allocation3 + $0xf8] sm:$0xff] %v2071
      %2113 = vst [vmem:[#allocation3 + $0x100] sm:$0xff] %v2072
      %2114 = vst [vmem:[#allocation3 + $0x108] sm:$0xff] %v2073
      %2115 = vst [vmem:[#allocation3 + $0x110] sm:$0xff] %v2074
      %2116 = vst [vmem:[#allocation3 + $0x118] sm:$0xff] %v2075
      %2117 = vst [vmem:[#allocation3 + $0x120] sm:$0xff] %v2076
      %2118 = vst [vmem:[#allocation3 + $0x128] sm:$0xff] %v2077
      %2119 = vst [vmem:[#allocation3 + $0x130] sm:$0xff] %v2078
      %2120 = vst [vmem:[#allocation3 + $0x138] sm:$0xff] %v2079
      %2121 = vst [vmem:[#allocation3 + $0x140] sm:$0xff] %v2080
      %v2122 = vld [vmem:[#allocation3] sm:$0xff]
      %v2123 = vld [vmem:[#allocation3 + $0x8] sm:$0xff]
      %v2124 = vld [vmem:[#allocation3 + $0x10] sm:$0xff]
      %v2125 = vld [vmem:[#allocation3 + $0x18] sm:$0xff]
      %v2126 = vld [vmem:[#allocation3 + $0x20] sm:$0xff]
      %v2127 = vld [vmem:[#allocation3 + $0x28] sm:$0xff]
      %v2128 = vld [vmem:[#allocation3 + $0x30] sm:$0xff]
      %v2129 = vld [vmem:[#allocation3 + $0x38] sm:$0xff]
      %v2130 = vld [vmem:[#allocation3 + $0x40] sm:$0xff]
      %v2131 = vld [vmem:[#allocation3 + $0x48] sm:$0xff]
      %v2132 = vld [vmem:[#allocation3 + $0x50] sm:$0xff]
      %v2133 = vld [vmem:[#allocation3 + $0x58] sm:$0xff]
      %v2134 = vld [vmem:[#allocation3 + $0x60] sm:$0xff]
      %v2135 = vld [vmem:[#allocation3 + $0x68] sm:$0xff]
      %v2136 = vld [vmem:[#allocation3 + $0x70] sm:$0xff]
      %v2137 = vld [vmem:[#allocation3 + $0x78] sm:$0xff]
      %v2138 = vld [vmem:[#allocation3 + $0x80] sm:$0xff]
      %v2139 = vld [vmem:[#allocation3 + $0x88] sm:$0xff]
      %v2140 = vld [vmem:[#allocation3 + $0x90] sm:$0xff]
      %v2141 = vld [vmem:[#allocation3 + $0x98] sm:$0xff]
      %v2142 = vld [vmem:[#allocation3 + $0xa0] sm:$0xff]
      %v2143 = vld [vmem:[#allocation3 + $0xa8] sm:$0xff]
      %v2144 = vld [vmem:[#allocation3 + $0xb0] sm:$0xff]
      %v2145 = vld [vmem:[#allocation3 + $0xb8] sm:$0xff]
      %v2146 = vld [vmem:[#allocation3 + $0xc0] sm:$0xff]
      %v2147 = vld [vmem:[#allocation3 + $0xc8] sm:$0xff]
      %v2148 = vld [vmem:[#allocation3 + $0xd0] sm:$0xff]
      %v2149 = vld [vmem:[#allocation3 + $0xd8] sm:$0xff]
      %v2150 = vld [vmem:[#allocation3 + $0xe0] sm:$0xff]
      %v2151 = vld [vmem:[#allocation3 + $0xe8] sm:$0xff]
      %v2152 = vld [vmem:[#allocation3 + $0xf0] sm:$0xff]
      %v2153 = vld [vmem:[#allocation3 + $0xf8] sm:$0xff]
      %v2154 = vld [vmem:[#allocation3 + $0x100] sm:$0xff]
      %v2155 = vld [vmem:[#allocation3 + $0x108] sm:$0xff]
      %v2156 = vld [vmem:[#allocation3 + $0x110] sm:$0xff]
      %v2157 = vld [vmem:[#allocation3 + $0x118] sm:$0xff]
      %v2158 = vld [vmem:[#allocation3 + $0x120] sm:$0xff]
      %v2159 = vld [vmem:[#allocation3 + $0x128] sm:$0xff]
      %v2160 = vld [vmem:[#allocation3 + $0x130] sm:$0xff]
      %v2161 = vld [vmem:[#allocation3 + $0x138] sm:$0xff]
      %v2162 = vld [vmem:[#allocation3 + $0x140] sm:$0xff]
      %v2163 = vld [vmem:[#allocation2] sm:$0x8]
      %v2164 = vld [vmem:[#allocation2 + $0x4] sm:$0xf]
      %v2165 = vld [vmem:[#allocation2 + $0x8] sm:$0xf]
      %v2166 = vld [vmem:[#allocation2 + $0xc] sm:$0xf]
      %v2167 = vld [vmem:[#allocation2 + $0x10] sm:$0xf]
      %v2168 = vld [vmem:[#allocation2 + $0x14] sm:$0xf]
      %v2169 = vld [vmem:[#allocation2 + $0x18] sm:$0xf]
      %v2170 = vld [vmem:[#allocation2 + $0x1c] sm:$0xf]
      %v2171 = vld [vmem:[#allocation2 + $0x20] sm:$0xf]
      %v2172 = vld [vmem:[#allocation2 + $0x24] sm:$0xf]
      %v2173 = vld [vmem:[#allocation2 + $0x28] sm:$0xf]
      %v2174 = vld [vmem:[#allocation2 + $0x2c] sm:$0xf]
      %v2175 = vld [vmem:[#allocation2 + $0x30] sm:$0xf]
      %v2176 = vld [vmem:[#allocation2 + $0x34] sm:$0xf]
      %v2177 = vld [vmem:[#allocation2 + $0x38] sm:$0xf]
      %v2178 = vld [vmem:[#allocation2 + $0x3c] sm:$0xf]
      %v2179 = vld [vmem:[#allocation2 + $0x40] sm:$0xf]
      %v2180 = vld [vmem:[#allocation2 + $0x44] sm:$0xf]
      %v2181 = vld [vmem:[#allocation2 + $0x48] sm:$0xf]
      %v2182 = vld [vmem:[#allocation2 + $0x4c] sm:$0xf]
      %v2183 = vld [vmem:[#allocation2 + $0x50] sm:$0xf]
      %v2184 = vld [vmem:[#allocation2 + $0x54] sm:$0xf]
      %v2185 = vld [vmem:[#allocation2 + $0x58] sm:$0xf]
      %v2186 = vld [vmem:[#allocation2 + $0x5c] sm:$0xf]
      %v2187 = vld [vmem:[#allocation2 + $0x60] sm:$0xf]
      %v2188 = vld [vmem:[#allocation2 + $0x64] sm:$0xf]
      %v2189 = vld [vmem:[#allocation2 + $0x68] sm:$0xf]
      %v2190 = vld [vmem:[#allocation2 + $0x6c] sm:$0xf]
      %v2191 = vld [vmem:[#allocation2 + $0x70] sm:$0xf]
      %v2192 = vld [vmem:[#allocation2 + $0x74] sm:$0xf]
      %v2193 = vld [vmem:[#allocation2 + $0x78] sm:$0xf]
      %v2194 = vld [vmem:[#allocation2 + $0x7c] sm:$0xf]
      %v2195 = vld [vmem:[#allocation2 + $0x80] sm:$0xf]
      %v2196 = vld [vmem:[#allocation2 + $0x84] sm:$0xf]
      %v2197 = vld [vmem:[#allocation2 + $0x88] sm:$0xf]
      %v2198 = vld [vmem:[#allocation2 + $0x8c] sm:$0xf]
      %v2199 = vld [vmem:[#allocation2 + $0x90] sm:$0xf]
      %v2200 = vld [vmem:[#allocation2 + $0x94] sm:$0xf]
      %v2201 = vld [vmem:[#allocation2 + $0x98] sm:$0xf]
      %v2202 = vld [vmem:[#allocation2 + $0x9c] sm:$0xf]
      %v2203 = vld [vmem:[#allocation2 + $0xa0] sm:$0xf]
      %v2204 = vld [vmem:[#allocation2 + $0xa4] sm:$0xf]
      %s2205 = scalar_lea.vmem %s3, 128
      %v2206 = vld [vmem:[%s2205] sm:$0xf]
      %v2207 = vld [vmem:[%s2205 + $0x4] sm:$0xf]
      %v2208 = vld [vmem:[%s2205 + $0x8] sm:$0xf]
      %v2209 = vld [vmem:[%s2205 + $0xc] sm:$0xf]
      %v2210 = vld [vmem:[%s2205 + $0x10] sm:$0xf]
      %v2211 = vld [vmem:[%s2205 + $0x14] sm:$0xf]
      %v2212 = vld [vmem:[%s2205 + $0x18] sm:$0xf]
      %v2213 = vld [vmem:[%s2205 + $0x1c] sm:$0xf]
      %v2214 = vld [vmem:[%s2205 + $0x20] sm:$0xf]
      %v2215 = vld [vmem:[%s2205 + $0x24] sm:$0xf]
      %v2216 = vld [vmem:[%s2205 + $0x28] sm:$0xf]
      %v2217 = vld [vmem:[%s2205 + $0x2c] sm:$0xf]
      %v2218 = vld [vmem:[%s2205 + $0x30] sm:$0xf]
      %v2219 = vld [vmem:[%s2205 + $0x34] sm:$0xf]
      %v2220 = vld [vmem:[%s2205 + $0x38] sm:$0xf]
      %v2221 = vld [vmem:[%s2205 + $0x3c] sm:$0xf]
      %v2264 = vunpack.c.l.b16 %v2163
      %v2265 = vunpack.c.l.b16 %v2164
      %v2266 = vunpack.c.l.b16 %v2165
      %v2267 = vunpack.c.l.b16 %v2166
      %v2268 = vunpack.c.l.b16 %v2167
      %v2269 = vunpack.c.l.b16 %v2168
      %v2270 = vunpack.c.l.b16 %v2169
      %v2271 = vunpack.c.l.b16 %v2170
      %v2272 = vunpack.c.l.b16 %v2171
      %v2273 = vunpack.c.l.b16 %v2172
      %v2274 = vunpack.c.l.b16 %v2173
      %v2275 = vunpack.c.l.b16 %v2174
      %v2276 = vunpack.c.l.b16 %v2175
      %v2277 = vunpack.c.l.b16 %v2176
      %v2278 = vunpack.c.l.b16 %v2177
      %v2279 = vunpack.c.l.b16 %v2178
      %v2280 = vunpack.c.l.b16 %v2179
      %v2281 = vunpack.c.l.b16 %v2180
      %v2282 = vunpack.c.l.b16 %v2181
      %v2283 = vunpack.c.l.b16 %v2182
      %v2284 = vunpack.c.l.b16 %v2183
      %v2285 = vunpack.c.l.b16 %v2184
      %v2286 = vunpack.c.l.b16 %v2185
      %v2287 = vunpack.c.l.b16 %v2186
      %v2288 = vunpack.c.l.b16 %v2187
      %v2289 = vunpack.c.l.b16 %v2188
      %v2290 = vunpack.c.l.b16 %v2189
      %v2291 = vunpack.c.l.b16 %v2190
      %v2292 = vunpack.c.l.b16 %v2191
      %v2293 = vunpack.c.l.b16 %v2192
      %v2294 = vunpack.c.l.b16 %v2193
      %v2295 = vunpack.c.l.b16 %v2194
      %v2296 = vunpack.c.l.b16 %v2195
      %v2297 = vunpack.c.l.b16 %v2196
      %v2298 = vunpack.c.l.b16 %v2197
      %v2299 = vunpack.c.l.b16 %v2198
      %v2300 = vunpack.c.l.b16 %v2199
      %v2301 = vunpack.c.l.b16 %v2200
      %v2302 = vunpack.c.l.b16 %v2201
      %v2303 = vunpack.c.l.b16 %v2202
      %v2304 = vunpack.c.l.b16 %v2203
      %v2305 = vunpack.c.l.b16 %v2204
      %v2306 = vpack.c.b16 %v2265, %v2264
      %v2307 = vpack.c.b16 %v2267, %v2266
      %v2308 = vpack.c.b16 %v2269, %v2268
      %v2309 = vpack.c.b16 %v2271, %v2270
      %v2310 = vpack.c.b16 %v2273, %v2272
      %v2311 = vpack.c.b16 %v2275, %v2274
      %v2312 = vpack.c.b16 %v2277, %v2276
      %v2313 = vpack.c.b16 %v2279, %v2278
      %v2314 = vpack.c.b16 %v2281, %v2280
      %v2315 = vpack.c.b16 %v2283, %v2282
      %v2316 = vpack.c.b16 %v2285, %v2284
      %v2317 = vpack.c.b16 %v2287, %v2286
      %v2318 = vpack.c.b16 %v2289, %v2288
      %v2319 = vpack.c.b16 %v2291, %v2290
      %v2320 = vpack.c.b16 %v2293, %v2292
      %v2321 = vpack.c.b16 %v2295, %v2294
      %v2322 = vpack.c.b16 %v2297, %v2296
      %v2323 = vpack.c.b16 %v2299, %v2298
      %v2324 = vpack.c.b16 %v2301, %v2300
      %v2325 = vpack.c.b16 %v2303, %v2302
      %v2326 = vpack.c.b16 %v2305, %v2304
      %vm2327 = vsmask.f32 4352
      %v2329 = vshrl.u32 %v2306, 16
      %v2331 = vrot.slane %v2329, 3
      %v2332 = vshll.u32 %v2306, 16
      %v2334 = vrot.slane %v2332, 4
      %v2335 = vor.u32 %v2331, %v2334
      %v2337 = vshrl.u32 %v2307, 16
      %v2339 = vrot.slane %v2337, 3
      %v2340 = vshll.u32 %v2307, 16
      %v2342 = vrot.slane %v2340, 4
      %v2343 = vor.u32 %v2339, %v2342
      %v2344 = vsel %vm2327, %v2335, %v2343
      %v2346 = vshrl.u32 %v2308, 16
      %v2348 = vrot.slane %v2346, 3
      %v2349 = vshll.u32 %v2308, 16
      %v2351 = vrot.slane %v2349, 4
      %v2352 = vor.u32 %v2348, %v2351
      %v2353 = vsel %vm2327, %v2343, %v2352
      %v2355 = vshrl.u32 %v2309, 16
      %v2357 = vrot.slane %v2355, 3
      %v2358 = vshll.u32 %v2309, 16
      %v2360 = vrot.slane %v2358, 4
      %v2361 = vor.u32 %v2357, %v2360
      %v2362 = vsel %vm2327, %v2352, %v2361
      %v2364 = vshrl.u32 %v2310, 16
      %v2366 = vrot.slane %v2364, 3
      %v2367 = vshll.u32 %v2310, 16
      %v2369 = vrot.slane %v2367, 4
      %v2370 = vor.u32 %v2366, %v2369
      %v2371 = vsel %vm2327, %v2361, %v2370
      %v2373 = vshrl.u32 %v2311, 16
      %v2375 = vrot.slane %v2373, 3
      %v2376 = vshll.u32 %v2311, 16
      %v2378 = vrot.slane %v2376, 4
      %v2379 = vor.u32 %v2375, %v2378
      %v2380 = vsel %vm2327, %v2370, %v2379
      %v2382 = vshrl.u32 %v2312, 16
      %v2384 = vrot.slane %v2382, 3
      %v2385 = vshll.u32 %v2312, 16
      %v2387 = vrot.slane %v2385, 4
      %v2388 = vor.u32 %v2384, %v2387
      %v2389 = vsel %vm2327, %v2379, %v2388
      %v2391 = vshrl.u32 %v2313, 16
      %v2393 = vrot.slane %v2391, 3
      %v2394 = vshll.u32 %v2313, 16
      %v2396 = vrot.slane %v2394, 4
      %v2397 = vor.u32 %v2393, %v2396
      %v2398 = vsel %vm2327, %v2388, %v2397
      %v2400 = vshrl.u32 %v2314, 16
      %v2402 = vrot.slane %v2400, 3
      %v2403 = vshll.u32 %v2314, 16
      %v2405 = vrot.slane %v2403, 4
      %v2406 = vor.u32 %v2402, %v2405
      %v2407 = vsel %vm2327, %v2397, %v2406
      %v2409 = vshrl.u32 %v2315, 16
      %v2411 = vrot.slane %v2409, 3
      %v2412 = vshll.u32 %v2315, 16
      %v2414 = vrot.slane %v2412, 4
      %v2415 = vor.u32 %v2411, %v2414
      %v2416 = vsel %vm2327, %v2406, %v2415
      %v2418 = vshrl.u32 %v2316, 16
      %v2420 = vrot.slane %v2418, 3
      %v2421 = vshll.u32 %v2316, 16
      %v2423 = vrot.slane %v2421, 4
      %v2424 = vor.u32 %v2420, %v2423
      %v2425 = vsel %vm2327, %v2415, %v2424
      %v2427 = vshrl.u32 %v2317, 16
      %v2429 = vrot.slane %v2427, 3
      %v2430 = vshll.u32 %v2317, 16
      %v2432 = vrot.slane %v2430, 4
      %v2433 = vor.u32 %v2429, %v2432
      %v2434 = vsel %vm2327, %v2424, %v2433
      %v2436 = vshrl.u32 %v2318, 16
      %v2438 = vrot.slane %v2436, 3
      %v2439 = vshll.u32 %v2318, 16
      %v2441 = vrot.slane %v2439, 4
      %v2442 = vor.u32 %v2438, %v2441
      %v2443 = vsel %vm2327, %v2433, %v2442
      %v2445 = vshrl.u32 %v2319, 16
      %v2447 = vrot.slane %v2445, 3
      %v2448 = vshll.u32 %v2319, 16
      %v2450 = vrot.slane %v2448, 4
      %v2451 = vor.u32 %v2447, %v2450
      %v2452 = vsel %vm2327, %v2442, %v2451
      %v2454 = vshrl.u32 %v2320, 16
      %v2456 = vrot.slane %v2454, 3
      %v2457 = vshll.u32 %v2320, 16
      %v2459 = vrot.slane %v2457, 4
      %v2460 = vor.u32 %v2456, %v2459
      %v2461 = vsel %vm2327, %v2451, %v2460
      %v2463 = vshrl.u32 %v2321, 16
      %v2465 = vrot.slane %v2463, 3
      %v2466 = vshll.u32 %v2321, 16
      %v2468 = vrot.slane %v2466, 4
      %v2469 = vor.u32 %v2465, %v2468
      %v2470 = vsel %vm2327, %v2460, %v2469
      %v2472 = vshrl.u32 %v2322, 16
      %v2474 = vrot.slane %v2472, 3
      %v2475 = vshll.u32 %v2322, 16
      %v2477 = vrot.slane %v2475, 4
      %v2478 = vor.u32 %v2474, %v2477
      %v2479 = vsel %vm2327, %v2469, %v2478
      %v2481 = vshrl.u32 %v2323, 16
      %v2483 = vrot.slane %v2481, 3
      %v2484 = vshll.u32 %v2323, 16
      %v2486 = vrot.slane %v2484, 4
      %v2487 = vor.u32 %v2483, %v2486
      %v2488 = vsel %vm2327, %v2478, %v2487
      %v2490 = vshrl.u32 %v2324, 16
      %v2492 = vrot.slane %v2490, 3
      %v2493 = vshll.u32 %v2324, 16
      %v2495 = vrot.slane %v2493, 4
      %v2496 = vor.u32 %v2492, %v2495
      %v2497 = vsel %vm2327, %v2487, %v2496
      %v2499 = vshrl.u32 %v2325, 16
      %v2501 = vrot.slane %v2499, 3
      %v2502 = vshll.u32 %v2325, 16
      %v2504 = vrot.slane %v2502, 4
      %v2505 = vor.u32 %v2501, %v2504
      %v2506 = vsel %vm2327, %v2496, %v2505
      %v2508 = vshrl.u32 %v2326, 16
      %v2510 = vrot.slane %v2508, 3
      %v2511 = vshll.u32 %v2326, 16
      %v2513 = vrot.slane %v2511, 4
      %v2514 = vor.u32 %v2510, %v2513
      %v2515 = vsel %vm2327, %v2505, %v2514
      %v2553 = vunpack.c.l.b16 %v2206
      %v2554 = vunpack.c.l.b16 %v2207
      %v2555 = vunpack.c.l.b16 %v2208
      %v2556 = vunpack.c.l.b16 %v2209
      %v2557 = vunpack.c.l.b16 %v2210
      %v2558 = vunpack.c.l.b16 %v2211
      %v2559 = vunpack.c.l.b16 %v2212
      %v2560 = vunpack.c.l.b16 %v2213
      %v2561 = vunpack.c.l.b16 %v2214
      %v2562 = vunpack.c.l.b16 %v2215
      %v2563 = vunpack.c.l.b16 %v2216
      %v2564 = vunpack.c.l.b16 %v2217
      %v2565 = vunpack.c.l.b16 %v2218
      %v2566 = vunpack.c.l.b16 %v2219
      %v2567 = vunpack.c.l.b16 %v2220
      %v2568 = vunpack.c.l.b16 %v2221
      %v2569 = vpack.c.b16 %v2554, %v2553
      %v2570 = vpack.c.b16 %v2556, %v2555
      %v2571 = vpack.c.b16 %v2558, %v2557
      %v2572 = vpack.c.b16 %v2560, %v2559
      %v2573 = vpack.c.b16 %v2562, %v2561
      %v2574 = vpack.c.b16 %v2564, %v2563
      %v2575 = vpack.c.b16 %v2566, %v2565
      %v2576 = vpack.c.b16 %v2568, %v2567
      %2585 = vmatpush.bf16.msra.mxu0 %v2576
      %2586 = vmatpush.bf16.msra.mxu0 %v2575
      %2587 = vmatpush.bf16.msra.mxu0 %v2574
      %2588 = vmatpush.bf16.msra.mxu0 %v2573
      %2589 = vmatpush.bf16.msra.mxu0 %v2572
      %2590 = vmatpush.bf16.msra.mxu0 %v2571
      %2591 = vmatpush.bf16.msra.mxu0 %v2570
      %2592 = vmatpush.bf16.msra.mxu0 %v2569
      %2593 = vmatmul.bf16.gmra.mxu0 %v2344
      %v2594 = vpop.f32.mrf.mxu0
      %v2595 = vadd.f32 0.0, %v2594
      %v2596 = vpop.f32.mrf.mxu0
      %v2597 = vadd.f32 0.0, %v2596
      %2598 = vmatmul.bf16.gmra.mxu0 %v2353
      %v2599 = vpop.f32.mrf.mxu0
      %v2600 = vadd.f32 0.0, %v2599
      %v2601 = vpop.f32.mrf.mxu0
      %v2602 = vadd.f32 0.0, %v2601
      %2603 = vmatmul.bf16.gmra.mxu0 %v2362
      %v2604 = vpop.f32.mrf.mxu0
      %v2605 = vadd.f32 0.0, %v2604
      %v2606 = vpop.f32.mrf.mxu0
      %v2607 = vadd.f32 0.0, %v2606
      %2608 = vmatmul.bf16.gmra.mxu0 %v2371
      %v2609 = vpop.f32.mrf.mxu0
      %v2610 = vadd.f32 0.0, %v2609
      %v2611 = vpop.f32.mrf.mxu0
      %v2612 = vadd.f32 0.0, %v2611
      %2613 = vmatmul.bf16.gmra.mxu0 %v2380
      %v2614 = vpop.f32.mrf.mxu0
      %v2615 = vadd.f32 0.0, %v2614
      %v2616 = vpop.f32.mrf.mxu0
      %v2617 = vadd.f32 0.0, %v2616
      %2618 = vmatmul.bf16.gmra.mxu0 %v2389
      %v2619 = vpop.f32.mrf.mxu0
      %v2620 = vadd.f32 0.0, %v2619
      %v2621 = vpop.f32.mrf.mxu0
      %v2622 = vadd.f32 0.0, %v2621
      %2623 = vmatmul.bf16.gmra.mxu0 %v2398
      %v2624 = vpop.f32.mrf.mxu0
      %v2625 = vadd.f32 0.0, %v2624
      %v2626 = vpop.f32.mrf.mxu0
      %v2627 = vadd.f32 0.0, %v2626
      %2628 = vmatmul.bf16.gmra.mxu0 %v2407
      %v2629 = vpop.f32.mrf.mxu0
      %v2630 = vadd.f32 0.0, %v2629
      %v2631 = vpop.f32.mrf.mxu0
      %v2632 = vadd.f32 0.0, %v2631
      %2633 = vmatmul.bf16.gmra.mxu0 %v2416
      %v2634 = vpop.f32.mrf.mxu0
      %v2635 = vadd.f32 0.0, %v2634
      %v2636 = vpop.f32.mrf.mxu0
      %v2637 = vadd.f32 0.0, %v2636
      %2638 = vmatmul.bf16.gmra.mxu0 %v2425
      %v2639 = vpop.f32.mrf.mxu0
      %v2640 = vadd.f32 0.0, %v2639
      %v2641 = vpop.f32.mrf.mxu0
      %v2642 = vadd.f32 0.0, %v2641
      %2643 = vmatmul.bf16.gmra.mxu0 %v2434
      %v2644 = vpop.f32.mrf.mxu0
      %v2645 = vadd.f32 0.0, %v2644
      %v2646 = vpop.f32.mrf.mxu0
      %v2647 = vadd.f32 0.0, %v2646
      %2648 = vmatmul.bf16.gmra.mxu0 %v2443
      %v2649 = vpop.f32.mrf.mxu0
      %v2650 = vadd.f32 0.0, %v2649
      %v2651 = vpop.f32.mrf.mxu0
      %v2652 = vadd.f32 0.0, %v2651
      %2653 = vmatmul.bf16.gmra.mxu0 %v2452
      %v2654 = vpop.f32.mrf.mxu0
      %v2655 = vadd.f32 0.0, %v2654
      %v2656 = vpop.f32.mrf.mxu0
      %v2657 = vadd.f32 0.0, %v2656
      %2658 = vmatmul.bf16.gmra.mxu0 %v2461
      %v2659 = vpop.f32.mrf.mxu0
      %v2660 = vadd.f32 0.0, %v2659
      %v2661 = vpop.f32.mrf.mxu0
      %v2662 = vadd.f32 0.0, %v2661
      %2663 = vmatmul.bf16.gmra.mxu0 %v2470
      %v2664 = vpop.f32.mrf.mxu0
      %v2665 = vadd.f32 0.0, %v2664
      %v2666 = vpop.f32.mrf.mxu0
      %v2667 = vadd.f32 0.0, %v2666
      %2668 = vmatmul.bf16.gmra.mxu0 %v2479
      %v2669 = vpop.f32.mrf.mxu0
      %v2670 = vadd.f32 0.0, %v2669
      %v2671 = vpop.f32.mrf.mxu0
      %v2672 = vadd.f32 0.0, %v2671
      %2673 = vmatmul.bf16.gmra.mxu0 %v2488
      %v2674 = vpop.f32.mrf.mxu0
      %v2675 = vadd.f32 0.0, %v2674
      %v2676 = vpop.f32.mrf.mxu0
      %v2677 = vadd.f32 0.0, %v2676
      %2678 = vmatmul.bf16.gmra.mxu0 %v2497
      %v2679 = vpop.f32.mrf.mxu0
      %v2680 = vadd.f32 0.0, %v2679
      %v2681 = vpop.f32.mrf.mxu0
      %v2682 = vadd.f32 0.0, %v2681
      %2683 = vmatmul.bf16.gmra.mxu0 %v2506
      %v2684 = vpop.f32.mrf.mxu0
      %v2685 = vadd.f32 0.0, %v2684
      %v2686 = vpop.f32.mrf.mxu0
      %v2687 = vadd.f32 0.0, %v2686
      %2688 = vmatmul.bf16.gmra.mxu0 %v2515
      %v2689 = vpop.f32.mrf.mxu0
      %v2690 = vadd.f32 0.0, %v2689
      %v2691 = vpop.f32.mrf.mxu0
      %v2692 = vadd.f32 0.0, %v2691
      %2693 = vmatmul.bf16.gmra.mxu0 %v2514
      %v2694 = vpop.f32.mrf.mxu0
      %v2695 = vadd.f32 0.0, %v2694
      %v2696 = vpop.f32.mrf.mxu0
      %2697 = vdwg.mxu0
      %v2698 = vadd.f32 %v2122, %v2595
      %v2699 = vadd.f32 %v2123, %v2597
      %v2700 = vadd.f32 %v2124, %v2600
      %v2701 = vadd.f32 %v2125, %v2602
      %v2702 = vadd.f32 %v2126, %v2605
      %v2703 = vadd.f32 %v2127, %v2607
      %v2704 = vadd.f32 %v2128, %v2610
      %v2705 = vadd.f32 %v2129, %v2612
      %v2706 = vadd.f32 %v2130, %v2615
      %v2707 = vadd.f32 %v2131, %v2617
      %v2708 = vadd.f32 %v2132, %v2620
      %v2709 = vadd.f32 %v2133, %v2622
      %v2710 = vadd.f32 %v2134, %v2625
      %v2711 = vadd.f32 %v2135, %v2627
      %v2712 = vadd.f32 %v2136, %v2630
      %v2713 = vadd.f32 %v2137, %v2632
      %v2714 = vadd.f32 %v2138, %v2635
      %v2715 = vadd.f32 %v2139, %v2637
      %v2716 = vadd.f32 %v2140, %v2640
      %v2717 = vadd.f32 %v2141, %v2642
      %v2718 = vadd.f32 %v2142, %v2645
      %v2719 = vadd.f32 %v2143, %v2647
      %v2720 = vadd.f32 %v2144, %v2650
      %v2721 = vadd.f32 %v2145, %v2652
      %v2722 = vadd.f32 %v2146, %v2655
      %v2723 = vadd.f32 %v2147, %v2657
      %v2724 = vadd.f32 %v2148, %v2660
      %v2725 = vadd.f32 %v2149, %v2662
      %v2726 = vadd.f32 %v2150, %v2665
      %v2727 = vadd.f32 %v2151, %v2667
      %v2728 = vadd.f32 %v2152, %v2670
      %v2729 = vadd.f32 %v2153, %v2672
      %v2730 = vadd.f32 %v2154, %v2675
      %v2731 = vadd.f32 %v2155, %v2677
      %v2732 = vadd.f32 %v2156, %v2680
      %v2733 = vadd.f32 %v2157, %v2682
      %v2734 = vadd.f32 %v2158, %v2685
      %v2735 = vadd.f32 %v2159, %v2687
      %v2736 = vadd.f32 %v2160, %v2690
      %v2737 = vadd.f32 %v2161, %v2692
      %v2738 = vadd.f32 %v2162, %v2695
      %2739 = vst [vmem:[#allocation3] sm:$0xff] %v2698
      %2740 = vst [vmem:[#allocation3 + $0x8] sm:$0xff] %v2699
      %2741 = vst [vmem:[#allocation3 + $0x10] sm:$0xff] %v2700
      %2742 = vst [vmem:[#allocation3 + $0x18] sm:$0xff] %v2701
      %2743 = vst [vmem:[#allocation3 + $0x20] sm:$0xff] %v2702
      %2744 = vst [vmem:[#allocation3 + $0x28] sm:$0xff] %v2703
      %2745 = vst [vmem:[#allocation3 + $0x30] sm:$0xff] %v2704
      %2746 = vst [vmem:[#allocation3 + $0x38] sm:$0xff] %v2705
      %2747 = vst [vmem:[#allocation3 + $0x40] sm:$0xff] %v2706
      %2748 = vst [vmem:[#allocation3 + $0x48] sm:$0xff] %v2707
      %2749 = vst [vmem:[#allocation3 + $0x50] sm:$0xff] %v2708
      %2750 = vst [vmem:[#allocation3 + $0x58] sm:$0xff] %v2709
      %2751 = vst [vmem:[#allocation3 + $0x60] sm:$0xff] %v2710
      %2752 = vst [vmem:[#allocation3 + $0x68] sm:$0xff] %v2711
      %2753 = vst [vmem:[#allocation3 + $0x70] sm:$0xff] %v2712
      %2754 = vst [vmem:[#allocation3 + $0x78] sm:$0xff] %v2713
      %2755 = vst [vmem:[#allocation3 + $0x80] sm:$0xff] %v2714
      %2756 = vst [vmem:[#allocation3 + $0x88] sm:$0xff] %v2715
      %2757 = vst [vmem:[#allocation3 + $0x90] sm:$0xff] %v2716
      %2758 = vst [vmem:[#allocation3 + $0x98] sm:$0xff] %v2717
      %2759 = vst [vmem:[#allocation3 + $0xa0] sm:$0xff] %v2718
      %2760 = vst [vmem:[#allocation3 + $0xa8] sm:$0xff] %v2719
      %2761 = vst [vmem:[#allocation3 + $0xb0] sm:$0xff] %v2720
      %2762 = vst [vmem:[#allocation3 + $0xb8] sm:$0xff] %v2721
      %2763 = vst [vmem:[#allocation3 + $0xc0] sm:$0xff] %v2722
      %2764 = vst [vmem:[#allocation3 + $0xc8] sm:$0xff] %v2723
      %2765 = vst [vmem:[#allocation3 + $0xd0] sm:$0xff] %v2724
      %2766 = vst [vmem:[#allocation3 + $0xd8] sm:$0xff] %v2725
      %2767 = vst [vmem:[#allocation3 + $0xe0] sm:$0xff] %v2726
      %2768 = vst [vmem:[#allocation3 + $0xe8] sm:$0xff] %v2727
      %2769 = vst [vmem:[#allocation3 + $0xf0] sm:$0xff] %v2728
      %2770 = vst [vmem:[#allocation3 + $0xf8] sm:$0xff] %v2729
      %2771 = vst [vmem:[#allocation3 + $0x100] sm:$0xff] %v2730
      %2772 = vst [vmem:[#allocation3 + $0x108] sm:$0xff] %v2731
      %2773 = vst [vmem:[#allocation3 + $0x110] sm:$0xff] %v2732
      %2774 = vst [vmem:[#allocation3 + $0x118] sm:$0xff] %v2733
      %2775 = vst [vmem:[#allocation3 + $0x120] sm:$0xff] %v2734
      %2776 = vst [vmem:[#allocation3 + $0x128] sm:$0xff] %v2735
      %2777 = vst [vmem:[#allocation3 + $0x130] sm:$0xff] %v2736
      %2778 = vst [vmem:[#allocation3 + $0x138] sm:$0xff] %v2737
      %2779 = vst [vmem:[#allocation3 + $0x140] sm:$0xff] %v2738
      %v2780 = vld [vmem:[#allocation3] sm:$0xff]
      %v2781 = vld [vmem:[#allocation3 + $0x8] sm:$0xff]
      %v2782 = vld [vmem:[#allocation3 + $0x10] sm:$0xff]
      %v2783 = vld [vmem:[#allocation3 + $0x18] sm:$0xff]
      %v2784 = vld [vmem:[#allocation3 + $0x20] sm:$0xff]
      %v2785 = vld [vmem:[#allocation3 + $0x28] sm:$0xff]
      %v2786 = vld [vmem:[#allocation3 + $0x30] sm:$0xff]
      %v2787 = vld [vmem:[#allocation3 + $0x38] sm:$0xff]
      %v2788 = vld [vmem:[#allocation3 + $0x40] sm:$0xff]
      %v2789 = vld [vmem:[#allocation3 + $0x48] sm:$0xff]
      %v2790 = vld [vmem:[#allocation3 + $0x50] sm:$0xff]
      %v2791 = vld [vmem:[#allocation3 + $0x58] sm:$0xff]
      %v2792 = vld [vmem:[#allocation3 + $0x60] sm:$0xff]
      %v2793 = vld [vmem:[#allocation3 + $0x68] sm:$0xff]
      %v2794 = vld [vmem:[#allocation3 + $0x70] sm:$0xff]
      %v2795 = vld [vmem:[#allocation3 + $0x78] sm:$0xff]
      %v2796 = vld [vmem:[#allocation3 + $0x80] sm:$0xff]
      %v2797 = vld [vmem:[#allocation3 + $0x88] sm:$0xff]
      %v2798 = vld [vmem:[#allocation3 + $0x90] sm:$0xff]
      %v2799 = vld [vmem:[#allocation3 + $0x98] sm:$0xff]
      %v2800 = vld [vmem:[#allocation3 + $0xa0] sm:$0xff]
      %v2801 = vld [vmem:[#allocation3 + $0xa8] sm:$0xff]
      %v2802 = vld [vmem:[#allocation3 + $0xb0] sm:$0xff]
      %v2803 = vld [vmem:[#allocation3 + $0xb8] sm:$0xff]
      %v2804 = vld [vmem:[#allocation3 + $0xc0] sm:$0xff]
      %v2805 = vld [vmem:[#allocation3 + $0xc8] sm:$0xff]
      %v2806 = vld [vmem:[#allocation3 + $0xd0] sm:$0xff]
      %v2807 = vld [vmem:[#allocation3 + $0xd8] sm:$0xff]
      %v2808 = vld [vmem:[#allocation3 + $0xe0] sm:$0xff]
      %v2809 = vld [vmem:[#allocation3 + $0xe8] sm:$0xff]
      %v2810 = vld [vmem:[#allocation3 + $0xf0] sm:$0xff]
      %v2811 = vld [vmem:[#allocation3 + $0xf8] sm:$0xff]
      %v2812 = vld [vmem:[#allocation3 + $0x100] sm:$0xff]
      %v2813 = vld [vmem:[#allocation3 + $0x108] sm:$0xff]
      %v2814 = vld [vmem:[#allocation3 + $0x110] sm:$0xff]
      %v2815 = vld [vmem:[#allocation3 + $0x118] sm:$0xff]
      %v2816 = vld [vmem:[#allocation3 + $0x120] sm:$0xff]
      %v2817 = vld [vmem:[#allocation3 + $0x128] sm:$0xff]
      %v2818 = vld [vmem:[#allocation3 + $0x130] sm:$0xff]
      %v2819 = vld [vmem:[#allocation3 + $0x138] sm:$0xff]
      %v2820 = vld [vmem:[#allocation3 + $0x140] sm:$0xff]
      %v2821 = vld [vmem:[#allocation2 + $0x8] sm:$0x8]
      %v2822 = vld [vmem:[#allocation2 + $0xc] sm:$0xf]
      %v2823 = vld [vmem:[#allocation2 + $0x10] sm:$0xf]
      %v2824 = vld [vmem:[#allocation2 + $0x14] sm:$0xf]
      %v2825 = vld [vmem:[#allocation2 + $0x18] sm:$0xf]
      %v2826 = vld [vmem:[#allocation2 + $0x1c] sm:$0xf]
      %v2827 = vld [vmem:[#allocation2 + $0x20] sm:$0xf]
      %v2828 = vld [vmem:[#allocation2 + $0x24] sm:$0xf]
      %v2829 = vld [vmem:[#allocation2 + $0x28] sm:$0xf]
      %v2830 = vld [vmem:[#allocation2 + $0x2c] sm:$0xf]
      %v2831 = vld [vmem:[#allocation2 + $0x30] sm:$0xf]
      %v2832 = vld [vmem:[#allocation2 + $0x34] sm:$0xf]
      %v2833 = vld [vmem:[#allocation2 + $0x38] sm:$0xf]
      %v2834 = vld [vmem:[#allocation2 + $0x3c] sm:$0xf]
      %v2835 = vld [vmem:[#allocation2 + $0x40] sm:$0xf]
      %v2836 = vld [vmem:[#allocation2 + $0x44] sm:$0xf]
      %v2837 = vld [vmem:[#allocation2 + $0x48] sm:$0xf]
      %v2838 = vld [vmem:[#allocation2 + $0x4c] sm:$0xf]
      %v2839 = vld [vmem:[#allocation2 + $0x50] sm:$0xf]
      %v2840 = vld [vmem:[#allocation2 + $0x54] sm:$0xf]
      %v2841 = vld [vmem:[#allocation2 + $0x58] sm:$0xf]
      %v2842 = vld [vmem:[#allocation2 + $0x5c] sm:$0xf]
      %v2843 = vld [vmem:[#allocation2 + $0x60] sm:$0xf]
      %v2844 = vld [vmem:[#allocation2 + $0x64] sm:$0xf]
      %v2845 = vld [vmem:[#allocation2 + $0x68] sm:$0xf]
      %v2846 = vld [vmem:[#allocation2 + $0x6c] sm:$0xf]
      %v2847 = vld [vmem:[#allocation2 + $0x70] sm:$0xf]
      %v2848 = vld [vmem:[#allocation2 + $0x74] sm:$0xf]
      %v2849 = vld [vmem:[#allocation2 + $0x78] sm:$0xf]
      %v2850 = vld [vmem:[#allocation2 + $0x7c] sm:$0xf]
      %v2851 = vld [vmem:[#allocation2 + $0x80] sm:$0xf]
      %v2852 = vld [vmem:[#allocation2 + $0x84] sm:$0xf]
      %v2853 = vld [vmem:[#allocation2 + $0x88] sm:$0xf]
      %v2854 = vld [vmem:[#allocation2 + $0x8c] sm:$0xf]
      %v2855 = vld [vmem:[#allocation2 + $0x90] sm:$0xf]
      %v2856 = vld [vmem:[#allocation2 + $0x94] sm:$0xf]
      %v2857 = vld [vmem:[#allocation2 + $0x98] sm:$0xf]
      %v2858 = vld [vmem:[#allocation2 + $0x9c] sm:$0xf]
      %v2859 = vld [vmem:[#allocation2 + $0xa0] sm:$0xf]
      %v2860 = vld [vmem:[#allocation2 + $0xa4] sm:$0xf]
      %v2861 = vld [vmem:[#allocation2 + $0xa8] sm:$0xf]
      %v2862 = vld [vmem:[#allocation2 + $0xac] sm:$0xf]
      %s2863 = scalar_lea.vmem %s3, 192
      %v2864 = vld [vmem:[%s2863] sm:$0xf]
      %v2865 = vld [vmem:[%s2863 + $0x4] sm:$0xf]
      %v2866 = vld [vmem:[%s2863 + $0x8] sm:$0xf]
      %v2867 = vld [vmem:[%s2863 + $0xc] sm:$0xf]
      %v2868 = vld [vmem:[%s2863 + $0x10] sm:$0xf]
      %v2869 = vld [vmem:[%s2863 + $0x14] sm:$0xf]
      %v2870 = vld [vmem:[%s2863 + $0x18] sm:$0xf]
      %v2871 = vld [vmem:[%s2863 + $0x1c] sm:$0xf]
      %v2872 = vld [vmem:[%s2863 + $0x20] sm:$0xf]
      %v2873 = vld [vmem:[%s2863 + $0x24] sm:$0xf]
      %v2874 = vld [vmem:[%s2863 + $0x28] sm:$0xf]
      %v2875 = vld [vmem:[%s2863 + $0x2c] sm:$0xf]
      %v2876 = vld [vmem:[%s2863 + $0x30] sm:$0xf]
      %v2877 = vld [vmem:[%s2863 + $0x34] sm:$0xf]
      %v2878 = vld [vmem:[%s2863 + $0x38] sm:$0xf]
      %v2879 = vld [vmem:[%s2863 + $0x3c] sm:$0xf]
      %v2922 = vunpack.c.l.b16 %v2821
      %v2923 = vunpack.c.l.b16 %v2822
      %v2924 = vunpack.c.l.b16 %v2823
      %v2925 = vunpack.c.l.b16 %v2824
      %v2926 = vunpack.c.l.b16 %v2825
      %v2927 = vunpack.c.l.b16 %v2826
      %v2928 = vunpack.c.l.b16 %v2827
      %v2929 = vunpack.c.l.b16 %v2828
      %v2930 = vunpack.c.l.b16 %v2829
      %v2931 = vunpack.c.l.b16 %v2830
      %v2932 = vunpack.c.l.b16 %v2831
      %v2933 = vunpack.c.l.b16 %v2832
      %v2934 = vunpack.c.l.b16 %v2833
      %v2935 = vunpack.c.l.b16 %v2834
      %v2936 = vunpack.c.l.b16 %v2835
      %v2937 = vunpack.c.l.b16 %v2836
      %v2938 = vunpack.c.l.b16 %v2837
      %v2939 = vunpack.c.l.b16 %v2838
      %v2940 = vunpack.c.l.b16 %v2839
      %v2941 = vunpack.c.l.b16 %v2840
      %v2942 = vunpack.c.l.b16 %v2841
      %v2943 = vunpack.c.l.b16 %v2842
      %v2944 = vunpack.c.l.b16 %v2843
      %v2945 = vunpack.c.l.b16 %v2844
      %v2946 = vunpack.c.l.b16 %v2845
      %v2947 = vunpack.c.l.b16 %v2846
      %v2948 = vunpack.c.l.b16 %v2847
      %v2949 = vunpack.c.l.b16 %v2848
      %v2950 = vunpack.c.l.b16 %v2849
      %v2951 = vunpack.c.l.b16 %v2850
      %v2952 = vunpack.c.l.b16 %v2851
      %v2953 = vunpack.c.l.b16 %v2852
      %v2954 = vunpack.c.l.b16 %v2853
      %v2955 = vunpack.c.l.b16 %v2854
      %v2956 = vunpack.c.l.b16 %v2855
      %v2957 = vunpack.c.l.b16 %v2856
      %v2958 = vunpack.c.l.b16 %v2857
      %v2959 = vunpack.c.l.b16 %v2858
      %v2960 = vunpack.c.l.b16 %v2859
      %v2961 = vunpack.c.l.b16 %v2860
      %v2962 = vunpack.c.l.b16 %v2861
      %v2963 = vunpack.c.l.b16 %v2862
      %v2964 = vpack.c.b16 %v2923, %v2922
      %v2965 = vpack.c.b16 %v2925, %v2924
      %v2966 = vpack.c.b16 %v2927, %v2926
      %v2967 = vpack.c.b16 %v2929, %v2928
      %v2968 = vpack.c.b16 %v2931, %v2930
      %v2969 = vpack.c.b16 %v2933, %v2932
      %v2970 = vpack.c.b16 %v2935, %v2934
      %v2971 = vpack.c.b16 %v2937, %v2936
      %v2972 = vpack.c.b16 %v2939, %v2938
      %v2973 = vpack.c.b16 %v2941, %v2940
      %v2974 = vpack.c.b16 %v2943, %v2942
      %v2975 = vpack.c.b16 %v2945, %v2944
      %v2976 = vpack.c.b16 %v2947, %v2946
      %v2977 = vpack.c.b16 %v2949, %v2948
      %v2978 = vpack.c.b16 %v2951, %v2950
      %v2979 = vpack.c.b16 %v2953, %v2952
      %v2980 = vpack.c.b16 %v2955, %v2954
      %v2981 = vpack.c.b16 %v2957, %v2956
      %v2982 = vpack.c.b16 %v2959, %v2958
      %v2983 = vpack.c.b16 %v2961, %v2960
      %v2984 = vpack.c.b16 %v2963, %v2962
      %v2986 = vshrl.u32 %v2964, 16
      %v2988 = vrot.slane %v2986, 3
      %v2989 = vshll.u32 %v2964, 16
      %v2991 = vrot.slane %v2989, 4
      %v2992 = vor.u32 %v2988, %v2991
      %v2994 = vshrl.u32 %v2965, 16
      %v2996 = vrot.slane %v2994, 3
      %v2997 = vshll.u32 %v2965, 16
      %v2999 = vrot.slane %v2997, 4
      %v3000 = vor.u32 %v2996, %v2999
      %v3001 = vsel %vm2327, %v2992, %v3000
      %v3003 = vshrl.u32 %v2966, 16
      %v3005 = vrot.slane %v3003, 3
      %v3006 = vshll.u32 %v2966, 16
      %v3008 = vrot.slane %v3006, 4
      %v3009 = vor.u32 %v3005, %v3008
      %v3010 = vsel %vm2327, %v3000, %v3009
      %v3012 = vshrl.u32 %v2967, 16
      %v3014 = vrot.slane %v3012, 3
      %v3015 = vshll.u32 %v2967, 16
      %v3017 = vrot.slane %v3015, 4
      %v3018 = vor.u32 %v3014, %v3017
      %v3019 = vsel %vm2327, %v3009, %v3018
      %v3021 = vshrl.u32 %v2968, 16
      %v3023 = vrot.slane %v3021, 3
      %v3024 = vshll.u32 %v2968, 16
      %v3026 = vrot.slane %v3024, 4
      %v3027 = vor.u32 %v3023, %v3026
      %v3028 = vsel %vm2327, %v3018, %v3027
      %v3030 = vshrl.u32 %v2969, 16
      %v3032 = vrot.slane %v3030, 3
      %v3033 = vshll.u32 %v2969, 16
      %v3035 = vrot.slane %v3033, 4
      %v3036 = vor.u32 %v3032, %v3035
      %v3037 = vsel %vm2327, %v3027, %v3036
      %v3039 = vshrl.u32 %v2970, 16
      %v3041 = vrot.slane %v3039, 3
      %v3042 = vshll.u32 %v2970, 16
      %v3044 = vrot.slane %v3042, 4
      %v3045 = vor.u32 %v3041, %v3044
      %v3046 = vsel %vm2327, %v3036, %v3045
      %v3048 = vshrl.u32 %v2971, 16
      %v3050 = vrot.slane %v3048, 3
      %v3051 = vshll.u32 %v2971, 16
      %v3053 = vrot.slane %v3051, 4
      %v3054 = vor.u32 %v3050, %v3053
      %v3055 = vsel %vm2327, %v3045, %v3054
      %v3057 = vshrl.u32 %v2972, 16
      %v3059 = vrot.slane %v3057, 3
      %v3060 = vshll.u32 %v2972, 16
      %v3062 = vrot.slane %v3060, 4
      %v3063 = vor.u32 %v3059, %v3062
      %v3064 = vsel %vm2327, %v3054, %v3063
      %v3066 = vshrl.u32 %v2973, 16
      %v3068 = vrot.slane %v3066, 3
      %v3069 = vshll.u32 %v2973, 16
      %v3071 = vrot.slane %v3069, 4
      %v3072 = vor.u32 %v3068, %v3071
      %v3073 = vsel %vm2327, %v3063, %v3072
      %v3075 = vshrl.u32 %v2974, 16
      %v3077 = vrot.slane %v3075, 3
      %v3078 = vshll.u32 %v2974, 16
      %v3080 = vrot.slane %v3078, 4
      %v3081 = vor.u32 %v3077, %v3080
      %v3082 = vsel %vm2327, %v3072, %v3081
      %v3084 = vshrl.u32 %v2975, 16
      %v3086 = vrot.slane %v3084, 3
      %v3087 = vshll.u32 %v2975, 16
      %v3089 = vrot.slane %v3087, 4
      %v3090 = vor.u32 %v3086, %v3089
      %v3091 = vsel %vm2327, %v3081, %v3090
      %v3093 = vshrl.u32 %v2976, 16
      %v3095 = vrot.slane %v3093, 3
      %v3096 = vshll.u32 %v2976, 16
      %v3098 = vrot.slane %v3096, 4
      %v3099 = vor.u32 %v3095, %v3098
      %v3100 = vsel %vm2327, %v3090, %v3099
      %v3102 = vshrl.u32 %v2977, 16
      %v3104 = vrot.slane %v3102, 3
      %v3105 = vshll.u32 %v2977, 16
      %v3107 = vrot.slane %v3105, 4
      %v3108 = vor.u32 %v3104, %v3107
      %v3109 = vsel %vm2327, %v3099, %v3108
      %v3111 = vshrl.u32 %v2978, 16
      %v3113 = vrot.slane %v3111, 3
      %v3114 = vshll.u32 %v2978, 16
      %v3116 = vrot.slane %v3114, 4
      %v3117 = vor.u32 %v3113, %v3116
      %v3118 = vsel %vm2327, %v3108, %v3117
      %v3120 = vshrl.u32 %v2979, 16
      %v3122 = vrot.slane %v3120, 3
      %v3123 = vshll.u32 %v2979, 16
      %v3125 = vrot.slane %v3123, 4
      %v3126 = vor.u32 %v3122, %v3125
      %v3127 = vsel %vm2327, %v3117, %v3126
      %v3129 = vshrl.u32 %v2980, 16
      %v3131 = vrot.slane %v3129, 3
      %v3132 = vshll.u32 %v2980, 16
      %v3134 = vrot.slane %v3132, 4
      %v3135 = vor.u32 %v3131, %v3134
      %v3136 = vsel %vm2327, %v3126, %v3135
      %v3138 = vshrl.u32 %v2981, 16
      %v3140 = vrot.slane %v3138, 3
      %v3141 = vshll.u32 %v2981, 16
      %v3143 = vrot.slane %v3141, 4
      %v3144 = vor.u32 %v3140, %v3143
      %v3145 = vsel %vm2327, %v3135, %v3144
      %v3147 = vshrl.u32 %v2982, 16
      %v3149 = vrot.slane %v3147, 3
      %v3150 = vshll.u32 %v2982, 16
      %v3152 = vrot.slane %v3150, 4
      %v3153 = vor.u32 %v3149, %v3152
      %v3154 = vsel %vm2327, %v3144, %v3153
      %v3156 = vshrl.u32 %v2983, 16
      %v3158 = vrot.slane %v3156, 3
      %v3159 = vshll.u32 %v2983, 16
      %v3161 = vrot.slane %v3159, 4
      %v3162 = vor.u32 %v3158, %v3161
      %v3163 = vsel %vm2327, %v3153, %v3162
      %v3165 = vshrl.u32 %v2984, 16
      %v3167 = vrot.slane %v3165, 3
      %v3168 = vshll.u32 %v2984, 16
      %v3170 = vrot.slane %v3168, 4
      %v3171 = vor.u32 %v3167, %v3170
      %v3172 = vsel %vm2327, %v3162, %v3171
      %v3210 = vunpack.c.l.b16 %v2864
      %v3211 = vunpack.c.l.b16 %v2865
      %v3212 = vunpack.c.l.b16 %v2866
      %v3213 = vunpack.c.l.b16 %v2867
      %v3214 = vunpack.c.l.b16 %v2868
      %v3215 = vunpack.c.l.b16 %v2869
      %v3216 = vunpack.c.l.b16 %v2870
      %v3217 = vunpack.c.l.b16 %v2871
      %v3218 = vunpack.c.l.b16 %v2872
      %v3219 = vunpack.c.l.b16 %v2873
      %v3220 = vunpack.c.l.b16 %v2874
      %v3221 = vunpack.c.l.b16 %v2875
      %v3222 = vunpack.c.l.b16 %v2876
      %v3223 = vunpack.c.l.b16 %v2877
      %v3224 = vunpack.c.l.b16 %v2878
      %v3225 = vunpack.c.l.b16 %v2879
      %v3226 = vpack.c.b16 %v3211, %v3210
      %v3227 = vpack.c.b16 %v3213, %v3212
      %v3228 = vpack.c.b16 %v3215, %v3214
      %v3229 = vpack.c.b16 %v3217, %v3216
      %v3230 = vpack.c.b16 %v3219, %v3218
      %v3231 = vpack.c.b16 %v3221, %v3220
      %v3232 = vpack.c.b16 %v3223, %v3222
      %v3233 = vpack.c.b16 %v3225, %v3224
      %3242 = vmatpush.bf16.msra.mxu0 %v3233
      %3243 = vmatpush.bf16.msra.mxu0 %v3232
      %3244 = vmatpush.bf16.msra.mxu0 %v3231
      %3245 = vmatpush.bf16.msra.mxu0 %v3230
      %3246 = vmatpush.bf16.msra.mxu0 %v3229
      %3247 = vmatpush.bf16.msra.mxu0 %v3228
      %3248 = vmatpush.bf16.msra.mxu0 %v3227
      %3249 = vmatpush.bf16.msra.mxu0 %v3226
      %3250 = vmatmul.bf16.gmra.mxu0 %v3001
      %v3251 = vpop.f32.mrf.mxu0
      %v3252 = vadd.f32 0.0, %v3251
      %v3253 = vpop.f32.mrf.mxu0
      %v3254 = vadd.f32 0.0, %v3253
      %3255 = vmatmul.bf16.gmra.mxu0 %v3010
      %v3256 = vpop.f32.mrf.mxu0
      %v3257 = vadd.f32 0.0, %v3256
      %v3258 = vpop.f32.mrf.mxu0
      %v3259 = vadd.f32 0.0, %v3258
      %3260 = vmatmul.bf16.gmra.mxu0 %v3019
      %v3261 = vpop.f32.mrf.mxu0
      %v3262 = vadd.f32 0.0, %v3261
      %v3263 = vpop.f32.mrf.mxu0
      %v3264 = vadd.f32 0.0, %v3263
      %3265 = vmatmul.bf16.gmra.mxu0 %v3028
      %v3266 = vpop.f32.mrf.mxu0
      %v3267 = vadd.f32 0.0, %v3266
      %v3268 = vpop.f32.mrf.mxu0
      %v3269 = vadd.f32 0.0, %v3268
      %3270 = vmatmul.bf16.gmra.mxu0 %v3037
      %v3271 = vpop.f32.mrf.mxu0
      %v3272 = vadd.f32 0.0, %v3271
      %v3273 = vpop.f32.mrf.mxu0
      %v3274 = vadd.f32 0.0, %v3273
      %3275 = vmatmul.bf16.gmra.mxu0 %v3046
      %v3276 = vpop.f32.mrf.mxu0
      %v3277 = vadd.f32 0.0, %v3276
      %v3278 = vpop.f32.mrf.mxu0
      %v3279 = vadd.f32 0.0, %v3278
      %3280 = vmatmul.bf16.gmra.mxu0 %v3055
      %v3281 = vpop.f32.mrf.mxu0
      %v3282 = vadd.f32 0.0, %v3281
      %v3283 = vpop.f32.mrf.mxu0
      %v3284 = vadd.f32 0.0, %v3283
      %3285 = vmatmul.bf16.gmra.mxu0 %v3064
      %v3286 = vpop.f32.mrf.mxu0
      %v3287 = vadd.f32 0.0, %v3286
      %v3288 = vpop.f32.mrf.mxu0
      %v3289 = vadd.f32 0.0, %v3288
      %3290 = vmatmul.bf16.gmra.mxu0 %v3073
      %v3291 = vpop.f32.mrf.mxu0
      %v3292 = vadd.f32 0.0, %v3291
      %v3293 = vpop.f32.mrf.mxu0
      %v3294 = vadd.f32 0.0, %v3293
      %3295 = vmatmul.bf16.gmra.mxu0 %v3082
      %v3296 = vpop.f32.mrf.mxu0
      %v3297 = vadd.f32 0.0, %v3296
      %v3298 = vpop.f32.mrf.mxu0
      %v3299 = vadd.f32 0.0, %v3298
      %3300 = vmatmul.bf16.gmra.mxu0 %v3091
      %v3301 = vpop.f32.mrf.mxu0
      %v3302 = vadd.f32 0.0, %v3301
      %v3303 = vpop.f32.mrf.mxu0
      %v3304 = vadd.f32 0.0, %v3303
      %3305 = vmatmul.bf16.gmra.mxu0 %v3100
      %v3306 = vpop.f32.mrf.mxu0
      %v3307 = vadd.f32 0.0, %v3306
      %v3308 = vpop.f32.mrf.mxu0
      %v3309 = vadd.f32 0.0, %v3308
      %3310 = vmatmul.bf16.gmra.mxu0 %v3109
      %v3311 = vpop.f32.mrf.mxu0
      %v3312 = vadd.f32 0.0, %v3311
      %v3313 = vpop.f32.mrf.mxu0
      %v3314 = vadd.f32 0.0, %v3313
      %3315 = vmatmul.bf16.gmra.mxu0 %v3118
      %v3316 = vpop.f32.mrf.mxu0
      %v3317 = vadd.f32 0.0, %v3316
      %v3318 = vpop.f32.mrf.mxu0
      %v3319 = vadd.f32 0.0, %v3318
      %3320 = vmatmul.bf16.gmra.mxu0 %v3127
      %v3321 = vpop.f32.mrf.mxu0
      %v3322 = vadd.f32 0.0, %v3321
      %v3323 = vpop.f32.mrf.mxu0
      %v3324 = vadd.f32 0.0, %v3323
      %3325 = vmatmul.bf16.gmra.mxu0 %v3136
      %v3326 = vpop.f32.mrf.mxu0
      %v3327 = vadd.f32 0.0, %v3326
      %v3328 = vpop.f32.mrf.mxu0
      %v3329 = vadd.f32 0.0, %v3328
      %3330 = vmatmul.bf16.gmra.mxu0 %v3145
      %v3331 = vpop.f32.mrf.mxu0
      %v3332 = vadd.f32 0.0, %v3331
      %v3333 = vpop.f32.mrf.mxu0
      %v3334 = vadd.f32 0.0, %v3333
      %3335 = vmatmul.bf16.gmra.mxu0 %v3154
      %v3336 = vpop.f32.mrf.mxu0
      %v3337 = vadd.f32 0.0, %v3336
      %v3338 = vpop.f32.mrf.mxu0
      %v3339 = vadd.f32 0.0, %v3338
      %3340 = vmatmul.bf16.gmra.mxu0 %v3163
      %v3341 = vpop.f32.mrf.mxu0
      %v3342 = vadd.f32 0.0, %v3341
      %v3343 = vpop.f32.mrf.mxu0
      %v3344 = vadd.f32 0.0, %v3343
      %3345 = vmatmul.bf16.gmra.mxu0 %v3172
      %v3346 = vpop.f32.mrf.mxu0
      %v3347 = vadd.f32 0.0, %v3346
      %v3348 = vpop.f32.mrf.mxu0
      %v3349 = vadd.f32 0.0, %v3348
      %3350 = vmatmul.bf16.gmra.mxu0 %v3171
      %v3351 = vpop.f32.mrf.mxu0
      %v3352 = vadd.f32 0.0, %v3351
      %v3353 = vpop.f32.mrf.mxu0
      %3354 = vdwg.mxu0
      %v3355 = vadd.f32 %v2780, %v3252
      %v3356 = vadd.f32 %v2781, %v3254
      %v3357 = vadd.f32 %v2782, %v3257
      %v3358 = vadd.f32 %v2783, %v3259
      %v3359 = vadd.f32 %v2784, %v3262
      %v3360 = vadd.f32 %v2785, %v3264
      %v3361 = vadd.f32 %v2786, %v3267
      %v3362 = vadd.f32 %v2787, %v3269
      %v3363 = vadd.f32 %v2788, %v3272
      %v3364 = vadd.f32 %v2789, %v3274
      %v3365 = vadd.f32 %v2790, %v3277
      %v3366 = vadd.f32 %v2791, %v3279
      %v3367 = vadd.f32 %v2792, %v3282
      %v3368 = vadd.f32 %v2793, %v3284
      %v3369 = vadd.f32 %v2794, %v3287
      %v3370 = vadd.f32 %v2795, %v3289
      %v3371 = vadd.f32 %v2796, %v3292
      %v3372 = vadd.f32 %v2797, %v3294
      %v3373 = vadd.f32 %v2798, %v3297
      %v3374 = vadd.f32 %v2799, %v3299
      %v3375 = vadd.f32 %v2800, %v3302
      %v3376 = vadd.f32 %v2801, %v3304
      %v3377 = vadd.f32 %v2802, %v3307
      %v3378 = vadd.f32 %v2803, %v3309
      %v3379 = vadd.f32 %v2804, %v3312
      %v3380 = vadd.f32 %v2805, %v3314
      %v3381 = vadd.f32 %v2806, %v3317
      %v3382 = vadd.f32 %v2807, %v3319
      %v3383 = vadd.f32 %v2808, %v3322
      %v3384 = vadd.f32 %v2809, %v3324
      %v3385 = vadd.f32 %v2810, %v3327
      %v3386 = vadd.f32 %v2811, %v3329
      %v3387 = vadd.f32 %v2812, %v3332
      %v3388 = vadd.f32 %v2813, %v3334
      %v3389 = vadd.f32 %v2814, %v3337
      %v3390 = vadd.f32 %v2815, %v3339
      %v3391 = vadd.f32 %v2816, %v3342
      %v3392 = vadd.f32 %v2817, %v3344
      %v3393 = vadd.f32 %v2818, %v3347
      %v3394 = vadd.f32 %v2819, %v3349
      %v3395 = vadd.f32 %v2820, %v3352
      %3396 = vst [vmem:[#allocation3] sm:$0xff] %v3355
      %3397 = vst [vmem:[#allocation3 + $0x8] sm:$0xff] %v3356
      %3398 = vst [vmem:[#allocation3 + $0x10] sm:$0xff] %v3357
      %3399 = vst [vmem:[#allocation3 + $0x18] sm:$0xff] %v3358
      %3400 = vst [vmem:[#allocation3 + $0x20] sm:$0xff] %v3359
      %3401 = vst [vmem:[#allocation3 + $0x28] sm:$0xff] %v3360
      %3402 = vst [vmem:[#allocation3 + $0x30] sm:$0xff] %v3361
      %3403 = vst [vmem:[#allocation3 + $0x38] sm:$0xff] %v3362
      %3404 = vst [vmem:[#allocation3 + $0x40] sm:$0xff] %v3363
      %3405 = vst [vmem:[#allocation3 + $0x48] sm:$0xff] %v3364
      %3406 = vst [vmem:[#allocation3 + $0x50] sm:$0xff] %v3365
      %3407 = vst [vmem:[#allocation3 + $0x58] sm:$0xff] %v3366
      %3408 = vst [vmem:[#allocation3 + $0x60] sm:$0xff] %v3367
      %3409 = vst [vmem:[#allocation3 + $0x68] sm:$0xff] %v3368
      %3410 = vst [vmem:[#allocation3 + $0x70] sm:$0xff] %v3369
      %3411 = vst [vmem:[#allocation3 + $0x78] sm:$0xff] %v3370
      %3412 = vst [vmem:[#allocation3 + $0x80] sm:$0xff] %v3371
      %3413 = vst [vmem:[#allocation3 + $0x88] sm:$0xff] %v3372
      %3414 = vst [vmem:[#allocation3 + $0x90] sm:$0xff] %v3373
      %3415 = vst [vmem:[#allocation3 + $0x98] sm:$0xff] %v3374
      %3416 = vst [vmem:[#allocation3 + $0xa0] sm:$0xff] %v3375
      %3417 = vst [vmem:[#allocation3 + $0xa8] sm:$0xff] %v3376
      %3418 = vst [vmem:[#allocation3 + $0xb0] sm:$0xff] %v3377
      %3419 = vst [vmem:[#allocation3 + $0xb8] sm:$0xff] %v3378
      %3420 = vst [vmem:[#allocation3 + $0xc0] sm:$0xff] %v3379
      %3421 = vst [vmem:[#allocation3 + $0xc8] sm:$0xff] %v3380
      %3422 = vst [vmem:[#allocation3 + $0xd0] sm:$0xff] %v3381
      %3423 = vst [vmem:[#allocation3 + $0xd8] sm:$0xff] %v3382
      %3424 = vst [vmem:[#allocation3 + $0xe0] sm:$0xff] %v3383
      %3425 = vst [vmem:[#allocation3 + $0xe8] sm:$0xff] %v3384
      %3426 = vst [vmem:[#allocation3 + $0xf0] sm:$0xff] %v3385
      %3427 = vst [vmem:[#allocation3 + $0xf8] sm:$0xff] %v3386
      %3428 = vst [vmem:[#allocation3 + $0x100] sm:$0xff] %v3387
      %3429 = vst [vmem:[#allocation3 + $0x108] sm:$0xff] %v3388
      %3430 = vst [vmem:[#allocation3 + $0x110] sm:$0xff] %v3389
      %3431 = vst [vmem:[#allocation3 + $0x118] sm:$0xff] %v3390
      %3432 = vst [vmem:[#allocation3 + $0x120] sm:$0xff] %v3391
      %3433 = vst [vmem:[#allocation3 + $0x128] sm:$0xff] %v3392
      %3434 = vst [vmem:[#allocation3 + $0x130] sm:$0xff] %v3393
      %3435 = vst [vmem:[#allocation3 + $0x138] sm:$0xff] %v3394
      %3436 = vst [vmem:[#allocation3 + $0x140] sm:$0xff] %v3395
      %v3437 = vld [vmem:[#allocation3] sm:$0xff]
      %v3438 = vld [vmem:[#allocation3 + $0x8] sm:$0xff]
      %v3439 = vld [vmem:[#allocation3 + $0x10] sm:$0xff]
      %v3440 = vld [vmem:[#allocation3 + $0x18] sm:$0xff]
      %v3441 = vld [vmem:[#allocation3 + $0x20] sm:$0xff]
      %v3442 = vld [vmem:[#allocation3 + $0x28] sm:$0xff]
      %v3443 = vld [vmem:[#allocation3 + $0x30] sm:$0xff]
      %v3444 = vld [vmem:[#allocation3 + $0x38] sm:$0xff]
      %v3445 = vld [vmem:[#allocation3 + $0x40] sm:$0xff]
      %v3446 = vld [vmem:[#allocation3 + $0x48] sm:$0xff]
      %v3447 = vld [vmem:[#allocation3 + $0x50] sm:$0xff]
      %v3448 = vld [vmem:[#allocation3 + $0x58] sm:$0xff]
      %v3449 = vld [vmem:[#allocation3 + $0x60] sm:$0xff]
      %v3450 = vld [vmem:[#allocation3 + $0x68] sm:$0xff]
      %v3451 = vld [vmem:[#allocation3 + $0x70] sm:$0xff]
      %v3452 = vld [vmem:[#allocation3 + $0x78] sm:$0xff]
      %v3453 = vld [vmem:[#allocation3 + $0x80] sm:$0xff]
      %v3454 = vld [vmem:[#allocation3 + $0x88] sm:$0xff]
      %v3455 = vld [vmem:[#allocation3 + $0x90] sm:$0xff]
      %v3456 = vld [vmem:[#allocation3 + $0x98] sm:$0xff]
      %v3457 = vld [vmem:[#allocation3 + $0xa0] sm:$0xff]
      %v3458 = vld [vmem:[#allocation3 + $0xa8] sm:$0xff]
      %v3459 = vld [vmem:[#allocation3 + $0xb0] sm:$0xff]
      %v3460 = vld [vmem:[#allocation3 + $0xb8] sm:$0xff]
      %v3461 = vld [vmem:[#allocation3 + $0xc0] sm:$0xff]
      %v3462 = vld [vmem:[#allocation3 + $0xc8] sm:$0xff]
      %v3463 = vld [vmem:[#allocation3 + $0xd0] sm:$0xff]
      %v3464 = vld [vmem:[#allocation3 + $0xd8] sm:$0xff]
      %v3465 = vld [vmem:[#allocation3 + $0xe0] sm:$0xff]
      %v3466 = vld [vmem:[#allocation3 + $0xe8] sm:$0xff]
      %v3467 = vld [vmem:[#allocation3 + $0xf0] sm:$0xff]
      %v3468 = vld [vmem:[#allocation3 + $0xf8] sm:$0xff]
      %v3469 = vld [vmem:[#allocation3 + $0x100] sm:$0xff]
      %v3470 = vld [vmem:[#allocation3 + $0x108] sm:$0xff]
      %v3471 = vld [vmem:[#allocation3 + $0x110] sm:$0xff]
      %v3472 = vld [vmem:[#allocation3 + $0x118] sm:$0xff]
      %v3473 = vld [vmem:[#allocation3 + $0x120] sm:$0xff]
      %v3474 = vld [vmem:[#allocation3 + $0x128] sm:$0xff]
      %v3475 = vld [vmem:[#allocation3 + $0x130] sm:$0xff]
      %v3476 = vld [vmem:[#allocation3 + $0x138] sm:$0xff]
      %v3477 = vld [vmem:[#allocation3 + $0x140] sm:$0xff]
      %v3478 = vld [vmem:[#allocation2 + $0xc] sm:$0xf]
      %v3479 = vld [vmem:[#allocation2 + $0x10] sm:$0xf]
      %v3480 = vld [vmem:[#allocation2 + $0x14] sm:$0xf]
      %v3481 = vld [vmem:[#allocation2 + $0x18] sm:$0xf]
      %v3482 = vld [vmem:[#allocation2 + $0x1c] sm:$0xf]
      %v3483 = vld [vmem:[#allocation2 + $0x20] sm:$0xf]
      %v3484 = vld [vmem:[#allocation2 + $0x24] sm:$0xf]
      %v3485 = vld [vmem:[#allocation2 + $0x28] sm:$0xf]
      %v3486 = vld [vmem:[#allocation2 + $0x2c] sm:$0xf]
      %v3487 = vld [vmem:[#allocation2 + $0x30] sm:$0xf]
      %v3488 = vld [vmem:[#allocation2 + $0x34] sm:$0xf]
      %v3489 = vld [vmem:[#allocation2 + $0x38] sm:$0xf]
      %v3490 = vld [vmem:[#allocation2 + $0x3c] sm:$0xf]
      %v3491 = vld [vmem:[#allocation2 + $0x40] sm:$0xf]
      %v3492 = vld [vmem:[#allocation2 + $0x44] sm:$0xf]
      %v3493 = vld [vmem:[#allocation2 + $0x48] sm:$0xf]
      %v3494 = vld [vmem:[#allocation2 + $0x4c] sm:$0xf]
      %v3495 = vld [vmem:[#allocation2 + $0x50] sm:$0xf]
      %v3496 = vld [vmem:[#allocation2 + $0x54] sm:$0xf]
      %v3497 = vld [vmem:[#allocation2 + $0x58] sm:$0xf]
      %v3498 = vld [vmem:[#allocation2 + $0x5c] sm:$0xf]
      %v3499 = vld [vmem:[#allocation2 + $0x60] sm:$0xf]
      %v3500 = vld [vmem:[#allocation2 + $0x64] sm:$0xf]
      %v3501 = vld [vmem:[#allocation2 + $0x68] sm:$0xf]
      %v3502 = vld [vmem:[#allocation2 + $0x6c] sm:$0xf]
      %v3503 = vld [vmem:[#allocation2 + $0x70] sm:$0xf]
      %v3504 = vld [vmem:[#allocation2 + $0x74] sm:$0xf]
      %v3505 = vld [vmem:[#allocation2 + $0x78] sm:$0xf]
      %v3506 = vld [vmem:[#allocation2 + $0x7c] sm:$0xf]
      %v3507 = vld [vmem:[#allocation2 + $0x80] sm:$0xf]
      %v3508 = vld [vmem:[#allocation2 + $0x84] sm:$0xf]
      %v3509 = vld [vmem:[#allocation2 + $0x88] sm:$0xf]
      %v3510 = vld [vmem:[#allocation2 + $0x8c] sm:$0xf]
      %v3511 = vld [vmem:[#allocation2 + $0x90] sm:$0xf]
      %v3512 = vld [vmem:[#allocation2 + $0x94] sm:$0xf]
      %v3513 = vld [vmem:[#allocation2 + $0x98] sm:$0xf]
      %v3514 = vld [vmem:[#allocation2 + $0x9c] sm:$0xf]
      %v3515 = vld [vmem:[#allocation2 + $0xa0] sm:$0xf]
      %v3516 = vld [vmem:[#allocation2 + $0xa4] sm:$0xf]
      %v3517 = vld [vmem:[#allocation2 + $0xa8] sm:$0xf]
      %v3518 = vld [vmem:[#allocation2 + $0xac] sm:$0xf]
      %s3519 = scalar_lea.vmem %s3, 256
      %v3520 = vld [vmem:[%s3519] sm:$0xf]
      %v3521 = vld [vmem:[%s3519 + $0x4] sm:$0xf]
      %v3522 = vld [vmem:[%s3519 + $0x8] sm:$0xf]
      %v3523 = vld [vmem:[%s3519 + $0xc] sm:$0xf]
      %v3524 = vld [vmem:[%s3519 + $0x10] sm:$0xf]
      %v3525 = vld [vmem:[%s3519 + $0x14] sm:$0xf]
      %v3526 = vld [vmem:[%s3519 + $0x18] sm:$0xf]
      %v3527 = vld [vmem:[%s3519 + $0x1c] sm:$0xf]
      %v3528 = vld [vmem:[%s3519 + $0x20] sm:$0xf]
      %v3529 = vld [vmem:[%s3519 + $0x24] sm:$0xf]
      %v3530 = vld [vmem:[%s3519 + $0x28] sm:$0xf]
      %v3531 = vld [vmem:[%s3519 + $0x2c] sm:$0xf]
      %v3532 = vld [vmem:[%s3519 + $0x30] sm:$0xf]
      %v3533 = vld [vmem:[%s3519 + $0x34] sm:$0xf]
      %v3534 = vld [vmem:[%s3519 + $0x38] sm:$0xf]
      %v3535 = vld [vmem:[%s3519 + $0x3c] sm:$0xf]
      %v3577 = vunpack.c.l.b16 %v3478
      %v3578 = vunpack.c.l.b16 %v3479
      %v3579 = vunpack.c.l.b16 %v3480
      %v3580 = vunpack.c.l.b16 %v3481
      %v3581 = vunpack.c.l.b16 %v3482
      %v3582 = vunpack.c.l.b16 %v3483
      %v3583 = vunpack.c.l.b16 %v3484
      %v3584 = vunpack.c.l.b16 %v3485
      %v3585 = vunpack.c.l.b16 %v3486
      %v3586 = vunpack.c.l.b16 %v3487
      %v3587 = vunpack.c.l.b16 %v3488
      %v3588 = vunpack.c.l.b16 %v3489
      %v3589 = vunpack.c.l.b16 %v3490
      %v3590 = vunpack.c.l.b16 %v3491
      %v3591 = vunpack.c.l.b16 %v3492
      %v3592 = vunpack.c.l.b16 %v3493
      %v3593 = vunpack.c.l.b16 %v3494
      %v3594 = vunpack.c.l.b16 %v3495
      %v3595 = vunpack.c.l.b16 %v3496
      %v3596 = vunpack.c.l.b16 %v3497
      %v3597 = vunpack.c.l.b16 %v3498
      %v3598 = vunpack.c.l.b16 %v3499
      %v3599 = vunpack.c.l.b16 %v3500
      %v3600 = vunpack.c.l.b16 %v3501
      %v3601 = vunpack.c.l.b16 %v3502
      %v3602 = vunpack.c.l.b16 %v3503
      %v3603 = vunpack.c.l.b16 %v3504
      %v3604 = vunpack.c.l.b16 %v3505
      %v3605 = vunpack.c.l.b16 %v3506
      %v3606 = vunpack.c.l.b16 %v3507
      %v3607 = vunpack.c.l.b16 %v3508
      %v3608 = vunpack.c.l.b16 %v3509
      %v3609 = vunpack.c.l.b16 %v3510
      %v3610 = vunpack.c.l.b16 %v3511
      %v3611 = vunpack.c.l.b16 %v3512
      %v3612 = vunpack.c.l.b16 %v3513
      %v3613 = vunpack.c.l.b16 %v3514
      %v3614 = vunpack.c.l.b16 %v3515
      %v3615 = vunpack.c.l.b16 %v3516
      %v3616 = vunpack.c.l.b16 %v3517
      %v3617 = vunpack.c.l.b16 %v3518
      %v3618 = vpack.c.b16 %v3578, %v3577
      %v3619 = vpack.c.b16 %v3580, %v3579
      %v3620 = vpack.c.b16 %v3582, %v3581
      %v3621 = vpack.c.b16 %v3584, %v3583
      %v3622 = vpack.c.b16 %v3586, %v3585
      %v3623 = vpack.c.b16 %v3588, %v3587
      %v3624 = vpack.c.b16 %v3590, %v3589
      %v3625 = vpack.c.b16 %v3592, %v3591
      %v3626 = vpack.c.b16 %v3594, %v3593
      %v3627 = vpack.c.b16 %v3596, %v3595
      %v3628 = vpack.c.b16 %v3598, %v3597
      %v3629 = vpack.c.b16 %v3600, %v3599
      %v3630 = vpack.c.b16 %v3602, %v3601
      %v3631 = vpack.c.b16 %v3604, %v3603
      %v3632 = vpack.c.b16 %v3606, %v3605
      %v3633 = vpack.c.b16 %v3608, %v3607
      %v3634 = vpack.c.b16 %v3610, %v3609
      %v3635 = vpack.c.b16 %v3612, %v3611
      %v3636 = vpack.c.b16 %v3614, %v3613
      %v3637 = vpack.c.b16 %v3616, %v3615
      %v3638 = vpack.c.b16 %v3617, %v3617
      %v3676 = vunpack.c.l.b16 %v3520
      %v3677 = vunpack.c.l.b16 %v3521
      %v3678 = vunpack.c.l.b16 %v3522
      %v3679 = vunpack.c.l.b16 %v3523
      %v3680 = vunpack.c.l.b16 %v3524
      %v3681 = vunpack.c.l.b16 %v3525
      %v3682 = vunpack.c.l.b16 %v3526
      %v3683 = vunpack.c.l.b16 %v3527
      %v3684 = vunpack.c.l.b16 %v3528
      %v3685 = vunpack.c.l.b16 %v3529
      %v3686 = vunpack.c.l.b16 %v3530
      %v3687 = vunpack.c.l.b16 %v3531
      %v3688 = vunpack.c.l.b16 %v3532
      %v3689 = vunpack.c.l.b16 %v3533
      %v3690 = vunpack.c.l.b16 %v3534
      %v3691 = vunpack.c.l.b16 %v3535
      %v3692 = vpack.c.b16 %v3677, %v3676
      %v3693 = vpack.c.b16 %v3679, %v3678
      %v3694 = vpack.c.b16 %v3681, %v3680
      %v3695 = vpack.c.b16 %v3683, %v3682
      %v3696 = vpack.c.b16 %v3685, %v3684
      %v3697 = vpack.c.b16 %v3687, %v3686
      %v3698 = vpack.c.b16 %v3689, %v3688
      %v3699 = vpack.c.b16 %v3691, %v3690
      %3708 = vmatpush.bf16.msra.mxu0 %v3699
      %3709 = vmatpush.bf16.msra.mxu0 %v3698
      %3710 = vmatpush.bf16.msra.mxu0 %v3697
      %3711 = vmatpush.bf16.msra.mxu0 %v3696
      %3712 = vmatpush.bf16.msra.mxu0 %v3695
      %3713 = vmatpush.bf16.msra.mxu0 %v3694
      %3714 = vmatpush.bf16.msra.mxu0 %v3693
      %3715 = vmatpush.bf16.msra.mxu0 %v3692
      %3716 = vmatmul.bf16.gmra.mxu0 %v3618
      %v3717 = vpop.f32.mrf.mxu0
      %v3718 = vadd.f32 0.0, %v3717
      %v3719 = vpop.f32.mrf.mxu0
      %v3720 = vadd.f32 0.0, %v3719
      %3721 = vmatmul.bf16.gmra.mxu0 %v3619
      %v3722 = vpop.f32.mrf.mxu0
      %v3723 = vadd.f32 0.0, %v3722
      %v3724 = vpop.f32.mrf.mxu0
      %v3725 = vadd.f32 0.0, %v3724
      %3726 = vmatmul.bf16.gmra.mxu0 %v3620
      %v3727 = vpop.f32.mrf.mxu0
      %v3728 = vadd.f32 0.0, %v3727
      %v3729 = vpop.f32.mrf.mxu0
      %v3730 = vadd.f32 0.0, %v3729
      %3731 = vmatmul.bf16.gmra.mxu0 %v3621
      %v3732 = vpop.f32.mrf.mxu0
      %v3733 = vadd.f32 0.0, %v3732
      %v3734 = vpop.f32.mrf.mxu0
      %v3735 = vadd.f32 0.0, %v3734
      %3736 = vmatmul.bf16.gmra.mxu0 %v3622
      %v3737 = vpop.f32.mrf.mxu0
      %v3738 = vadd.f32 0.0, %v3737
      %v3739 = vpop.f32.mrf.mxu0
      %v3740 = vadd.f32 0.0, %v3739
      %3741 = vmatmul.bf16.gmra.mxu0 %v3623
      %v3742 = vpop.f32.mrf.mxu0
      %v3743 = vadd.f32 0.0, %v3742
      %v3744 = vpop.f32.mrf.mxu0
      %v3745 = vadd.f32 0.0, %v3744
      %3746 = vmatmul.bf16.gmra.mxu0 %v3624
      %v3747 = vpop.f32.mrf.mxu0
      %v3748 = vadd.f32 0.0, %v3747
      %v3749 = vpop.f32.mrf.mxu0
      %v3750 = vadd.f32 0.0, %v3749
      %3751 = vmatmul.bf16.gmra.mxu0 %v3625
      %v3752 = vpop.f32.mrf.mxu0
      %v3753 = vadd.f32 0.0, %v3752
      %v3754 = vpop.f32.mrf.mxu0
      %v3755 = vadd.f32 0.0, %v3754
      %3756 = vmatmul.bf16.gmra.mxu0 %v3626
      %v3757 = vpop.f32.mrf.mxu0
      %v3758 = vadd.f32 0.0, %v3757
      %v3759 = vpop.f32.mrf.mxu0
      %v3760 = vadd.f32 0.0, %v3759
      %3761 = vmatmul.bf16.gmra.mxu0 %v3627
      %v3762 = vpop.f32.mrf.mxu0
      %v3763 = vadd.f32 0.0, %v3762
      %v3764 = vpop.f32.mrf.mxu0
      %v3765 = vadd.f32 0.0, %v3764
      %3766 = vmatmul.bf16.gmra.mxu0 %v3628
      %v3767 = vpop.f32.mrf.mxu0
      %v3768 = vadd.f32 0.0, %v3767
      %v3769 = vpop.f32.mrf.mxu0
      %v3770 = vadd.f32 0.0, %v3769
      %3771 = vmatmul.bf16.gmra.mxu0 %v3629
      %v3772 = vpop.f32.mrf.mxu0
      %v3773 = vadd.f32 0.0, %v3772
      %v3774 = vpop.f32.mrf.mxu0
      %v3775 = vadd.f32 0.0, %v3774
      %3776 = vmatmul.bf16.gmra.mxu0 %v3630
      %v3777 = vpop.f32.mrf.mxu0
      %v3778 = vadd.f32 0.0, %v3777
      %v3779 = vpop.f32.mrf.mxu0
      %v3780 = vadd.f32 0.0, %v3779
      %3781 = vmatmul.bf16.gmra.mxu0 %v3631
      %v3782 = vpop.f32.mrf.mxu0
      %v3783 = vadd.f32 0.0, %v3782
      %v3784 = vpop.f32.mrf.mxu0
      %v3785 = vadd.f32 0.0, %v3784
      %3786 = vmatmul.bf16.gmra.mxu0 %v3632
      %v3787 = vpop.f32.mrf.mxu0
      %v3788 = vadd.f32 0.0, %v3787
      %v3789 = vpop.f32.mrf.mxu0
      %v3790 = vadd.f32 0.0, %v3789
      %3791 = vmatmul.bf16.gmra.mxu0 %v3633
      %v3792 = vpop.f32.mrf.mxu0
      %v3793 = vadd.f32 0.0, %v3792
      %v3794 = vpop.f32.mrf.mxu0
      %v3795 = vadd.f32 0.0, %v3794
      %3796 = vmatmul.bf16.gmra.mxu0 %v3634
      %v3797 = vpop.f32.mrf.mxu0
      %v3798 = vadd.f32 0.0, %v3797
      %v3799 = vpop.f32.mrf.mxu0
      %v3800 = vadd.f32 0.0, %v3799
      %3801 = vmatmul.bf16.gmra.mxu0 %v3635
      %v3802 = vpop.f32.mrf.mxu0
      %v3803 = vadd.f32 0.0, %v3802
      %v3804 = vpop.f32.mrf.mxu0
      %v3805 = vadd.f32 0.0, %v3804
      %3806 = vmatmul.bf16.gmra.mxu0 %v3636
      %v3807 = vpop.f32.mrf.mxu0
      %v3808 = vadd.f32 0.0, %v3807
      %v3809 = vpop.f32.mrf.mxu0
      %v3810 = vadd.f32 0.0, %v3809
      %3811 = vmatmul.bf16.gmra.mxu0 %v3637
      %v3812 = vpop.f32.mrf.mxu0
      %v3813 = vadd.f32 0.0, %v3812
      %v3814 = vpop.f32.mrf.mxu0
      %v3815 = vadd.f32 0.0, %v3814
      %3816 = vmatmul.bf16.gmra.mxu0 %v3638
      %v3817 = vpop.f32.mrf.mxu0
      %v3818 = vadd.f32 0.0, %v3817
      %v3819 = vpop.f32.mrf.mxu0
      %3820 = vdwg.mxu0
      %v3821 = vadd.f32 %v3437, %v3718
      %v3822 = vadd.f32 %v3438, %v3720
      %v3823 = vadd.f32 %v3439, %v3723
      %v3824 = vadd.f32 %v3440, %v3725
      %v3825 = vadd.f32 %v3441, %v3728
      %v3826 = vadd.f32 %v3442, %v3730
      %v3827 = vadd.f32 %v3443, %v3733
      %v3828 = vadd.f32 %v3444, %v3735
      %v3829 = vadd.f32 %v3445, %v3738
      %v3830 = vadd.f32 %v3446, %v3740
      %v3831 = vadd.f32 %v3447, %v3743
      %v3832 = vadd.f32 %v3448, %v3745
      %v3833 = vadd.f32 %v3449, %v3748
      %v3834 = vadd.f32 %v3450, %v3750
      %v3835 = vadd.f32 %v3451, %v3753
      %v3836 = vadd.f32 %v3452, %v3755
      %v3837 = vadd.f32 %v3453, %v3758
      %v3838 = vadd.f32 %v3454, %v3760
      %v3839 = vadd.f32 %v3455, %v3763
      %v3840 = vadd.f32 %v3456, %v3765
      %v3841 = vadd.f32 %v3457, %v3768
      %v3842 = vadd.f32 %v3458, %v3770
      %v3843 = vadd.f32 %v3459, %v3773
      %v3844 = vadd.f32 %v3460, %v3775
      %v3845 = vadd.f32 %v3461, %v3778
      %v3846 = vadd.f32 %v3462, %v3780
      %v3847 = vadd.f32 %v3463, %v3783
      %v3848 = vadd.f32 %v3464, %v3785
      %v3849 = vadd.f32 %v3465, %v3788
      %v3850 = vadd.f32 %v3466, %v3790
      %v3851 = vadd.f32 %v3467, %v3793
      %v3852 = vadd.f32 %v3468, %v3795
      %v3853 = vadd.f32 %v3469, %v3798
      %v3854 = vadd.f32 %v3470, %v3800
      %v3855 = vadd.f32 %v3471, %v3803
      %v3856 = vadd.f32 %v3472, %v3805
      %v3857 = vadd.f32 %v3473, %v3808
      %v3858 = vadd.f32 %v3474, %v3810
      %v3859 = vadd.f32 %v3475, %v3813
      %v3860 = vadd.f32 %v3476, %v3815
      %v3861 = vadd.f32 %v3477, %v3818
      %3862 = vst [vmem:[#allocation3] sm:$0xff] %v3821
      %3863 = vst [vmem:[#allocation3 + $0x8] sm:$0xff] %v3822
      %3864 = vst [vmem:[#allocation3 + $0x10] sm:$0xff] %v3823
      %3865 = vst [vmem:[#allocation3 + $0x18] sm:$0xff] %v3824
      %3866 = vst [vmem:[#allocation3 + $0x20] sm:$0xff] %v3825
      %3867 = vst [vmem:[#allocation3 + $0x28] sm:$0xff] %v3826
      %3868 = vst [vmem:[#allocation3 + $0x30] sm:$0xff] %v3827
      %3869 = vst [vmem:[#allocation3 + $0x38] sm:$0xff] %v3828
      %3870 = vst [vmem:[#allocation3 + $0x40] sm:$0xff] %v3829
      %3871 = vst [vmem:[#allocation3 + $0x48] sm:$0xff] %v3830
      %3872 = vst [vmem:[#allocation3 + $0x50] sm:$0xff] %v3831
      %3873 = vst [vmem:[#allocation3 + $0x58] sm:$0xff] %v3832
      %3874 = vst [vmem:[#allocation3 + $0x60] sm:$0xff] %v3833
      %3875 = vst [vmem:[#allocation3 + $0x68] sm:$0xff] %v3834
      %3876 = vst [vmem:[#allocation3 + $0x70] sm:$0xff] %v3835
      %3877 = vst [vmem:[#allocation3 + $0x78] sm:$0xff] %v3836
      %3878 = vst [vmem:[#allocation3 + $0x80] sm:$0xff] %v3837
      %3879 = vst [vmem:[#allocation3 + $0x88] sm:$0xff] %v3838
      %3880 = vst [vmem:[#allocation3 + $0x90] sm:$0xff] %v3839
      %3881 = vst [vmem:[#allocation3 + $0x98] sm:$0xff] %v3840
      %3882 = vst [vmem:[#allocation3 + $0xa0] sm:$0xff] %v3841
      %3883 = vst [vmem:[#allocation3 + $0xa8] sm:$0xff] %v3842
      %3884 = vst [vmem:[#allocation3 + $0xb0] sm:$0xff] %v3843
      %3885 = vst [vmem:[#allocation3 + $0xb8] sm:$0xff] %v3844
      %3886 = vst [vmem:[#allocation3 + $0xc0] sm:$0xff] %v3845
      %3887 = vst [vmem:[#allocation3 + $0xc8] sm:$0xff] %v3846
      %3888 = vst [vmem:[#allocation3 + $0xd0] sm:$0xff] %v3847
      %3889 = vst [vmem:[#allocation3 + $0xd8] sm:$0xff] %v3848
      %3890 = vst [vmem:[#allocation3 + $0xe0] sm:$0xff] %v3849
      %3891 = vst [vmem:[#allocation3 + $0xe8] sm:$0xff] %v3850
      %3892 = vst [vmem:[#allocation3 + $0xf0] sm:$0xff] %v3851
      %3893 = vst [vmem:[#allocation3 + $0xf8] sm:$0xff] %v3852
      %3894 = vst [vmem:[#allocation3 + $0x100] sm:$0xff] %v3853
      %3895 = vst [vmem:[#allocation3 + $0x108] sm:$0xff] %v3854
      %3896 = vst [vmem:[#allocation3 + $0x110] sm:$0xff] %v3855
      %3897 = vst [vmem:[#allocation3 + $0x118] sm:$0xff] %v3856
      %3898 = vst [vmem:[#allocation3 + $0x120] sm:$0xff] %v3857
      %3899 = vst [vmem:[#allocation3 + $0x128] sm:$0xff] %v3858
      %3900 = vst [vmem:[#allocation3 + $0x130] sm:$0xff] %v3859
      %3901 = vst [vmem:[#allocation3 + $0x138] sm:$0xff] %v3860
      %3902 = vst [vmem:[#allocation3 + $0x140] sm:$0xff] %v3861
      %v3903 = vld [vmem:[#allocation3] sm:$0xff]
      %v3904 = vld [vmem:[#allocation3 + $0x8] sm:$0xff]
      %v3905 = vld [vmem:[#allocation3 + $0x10] sm:$0xff]
      %v3906 = vld [vmem:[#allocation3 + $0x18] sm:$0xff]
      %v3907 = vld [vmem:[#allocation3 + $0x20] sm:$0xff]
      %v3908 = vld [vmem:[#allocation3 + $0x28] sm:$0xff]
      %v3909 = vld [vmem:[#allocation3 + $0x30] sm:$0xff]
      %v3910 = vld [vmem:[#allocation3 + $0x38] sm:$0xff]
      %v3911 = vld [vmem:[#allocation3 + $0x40] sm:$0xff]
      %v3912 = vld [vmem:[#allocation3 + $0x48] sm:$0xff]
      %v3913 = vld [vmem:[#allocation3 + $0x50] sm:$0xff]
      %v3914 = vld [vmem:[#allocation3 + $0x58] sm:$0xff]
      %v3915 = vld [vmem:[#allocation3 + $0x60] sm:$0xff]
      %v3916 = vld [vmem:[#allocation3 + $0x68] sm:$0xff]
      %v3917 = vld [vmem:[#allocation3 + $0x70] sm:$0xff]
      %v3918 = vld [vmem:[#allocation3 + $0x78] sm:$0xff]
      %v3919 = vld [vmem:[#allocation3 + $0x80] sm:$0xff]
      %v3920 = vld [vmem:[#allocation3 + $0x88] sm:$0xff]
      %v3921 = vld [vmem:[#allocation3 + $0x90] sm:$0xff]
      %v3922 = vld [vmem:[#allocation3 + $0x98] sm:$0xff]
      %v3923 = vld [vmem:[#allocation3 + $0xa0] sm:$0xff]
      %v3924 = vld [vmem:[#allocation3 + $0xa8] sm:$0xff]
      %v3925 = vld [vmem:[#allocation3 + $0xb0] sm:$0xff]
      %v3926 = vld [vmem:[#allocation3 + $0xb8] sm:$0xff]
      %v3927 = vld [vmem:[#allocation3 + $0xc0] sm:$0xff]
      %v3928 = vld [vmem:[#allocation3 + $0xc8] sm:$0xff]
      %v3929 = vld [vmem:[#allocation3 + $0xd0] sm:$0xff]
      %v3930 = vld [vmem:[#allocation3 + $0xd8] sm:$0xff]
      %v3931 = vld [vmem:[#allocation3 + $0xe0] sm:$0xff]
      %v3932 = vld [vmem:[#allocation3 + $0xe8] sm:$0xff]
      %v3933 = vld [vmem:[#allocation3 + $0xf0] sm:$0xff]
      %v3934 = vld [vmem:[#allocation3 + $0xf8] sm:$0xff]
      %v3935 = vld [vmem:[#allocation3 + $0x100] sm:$0xff]
      %v3936 = vld [vmem:[#allocation3 + $0x108] sm:$0xff]
      %v3937 = vld [vmem:[#allocation3 + $0x110] sm:$0xff]
      %v3938 = vld [vmem:[#allocation3 + $0x118] sm:$0xff]
      %v3939 = vld [vmem:[#allocation3 + $0x120] sm:$0xff]
      %v3940 = vld [vmem:[#allocation3 + $0x128] sm:$0xff]
      %v3941 = vld [vmem:[#allocation3 + $0x130] sm:$0xff]
      %v3942 = vld [vmem:[#allocation3 + $0x138] sm:$0xff]
      %v3943 = vld [vmem:[#allocation3 + $0x140] sm:$0xff]
      %v3944 = vld [vmem:[#allocation2 + $0xc] sm:$0xf]
      %v3945 = vld [vmem:[#allocation2 + $0x10] sm:$0xf]
      %v3946 = vld [vmem:[#allocation2 + $0x14] sm:$0xf]
      %v3947 = vld [vmem:[#allocation2 + $0x18] sm:$0xf]
      %v3948 = vld [vmem:[#allocation2 + $0x1c] sm:$0xf]
      %v3949 = vld [vmem:[#allocation2 + $0x20] sm:$0xf]
      %v3950 = vld [vmem:[#allocation2 + $0x24] sm:$0xf]
      %v3951 = vld [vmem:[#allocation2 + $0x28] sm:$0xf]
      %v3952 = vld [vmem:[#allocation2 + $0x2c] sm:$0xf]
      %v3953 = vld [vmem:[#allocation2 + $0x30] sm:$0xf]
      %v3954 = vld [vmem:[#allocation2 + $0x34] sm:$0xf]
      %v3955 = vld [vmem:[#allocation2 + $0x38] sm:$0xf]
      %v3956 = vld [vmem:[#allocation2 + $0x3c] sm:$0xf]
      %v3957 = vld [vmem:[#allocation2 + $0x40] sm:$0xf]
      %v3958 = vld [vmem:[#allocation2 + $0x44] sm:$0xf]
      %v3959 = vld [vmem:[#allocation2 + $0x48] sm:$0xf]
      %v3960 = vld [vmem:[#allocation2 + $0x4c] sm:$0xf]
      %v3961 = vld [vmem:[#allocation2 + $0x50] sm:$0xf]
      %v3962 = vld [vmem:[#allocation2 + $0x54] sm:$0xf]
      %v3963 = vld [vmem:[#allocation2 + $0x58] sm:$0xf]
      %v3964 = vld [vmem:[#allocation2 + $0x5c] sm:$0xf]
      %v3965 = vld [vmem:[#allocation2 + $0x60] sm:$0xf]
      %v3966 = vld [vmem:[#allocation2 + $0x64] sm:$0xf]
      %v3967 = vld [vmem:[#allocation2 + $0x68] sm:$0xf]
      %v3968 = vld [vmem:[#allocation2 + $0x6c] sm:$0xf]
      %v3969 = vld [vmem:[#allocation2 + $0x70] sm:$0xf]
      %v3970 = vld [vmem:[#allocation2 + $0x74] sm:$0xf]
      %v3971 = vld [vmem:[#allocation2 + $0x78] sm:$0xf]
      %v3972 = vld [vmem:[#allocation2 + $0x7c] sm:$0xf]
      %v3973 = vld [vmem:[#allocation2 + $0x80] sm:$0xf]
      %v3974 = vld [vmem:[#allocation2 + $0x84] sm:$0xf]
      %v3975 = vld [vmem:[#allocation2 + $0x88] sm:$0xf]
      %v3976 = vld [vmem:[#allocation2 + $0x8c] sm:$0xf]
      %v3977 = vld [vmem:[#allocation2 + $0x90] sm:$0xf]
      %v3978 = vld [vmem:[#allocation2 + $0x94] sm:$0xf]
      %v3979 = vld [vmem:[#allocation2 + $0x98] sm:$0xf]
      %v3980 = vld [vmem:[#allocation2 + $0x9c] sm:$0xf]
      %v3981 = vld [vmem:[#allocation2 + $0xa0] sm:$0xf]
      %v3982 = vld [vmem:[#allocation2 + $0xa4] sm:$0xf]
      %v3983 = vld [vmem:[#allocation2 + $0xa8] sm:$0xf]
      %v3984 = vld [vmem:[#allocation2 + $0xac] sm:$0xf]
      %v3985 = vld [vmem:[#allocation2 + $0xb0] sm:$0x1]
      %s3986 = scalar_lea.vmem %s3, 320
      %v3987 = vld [vmem:[%s3986] sm:$0xf]
      %v3988 = vld [vmem:[%s3986 + $0x4] sm:$0xf]
      %v3989 = vld [vmem:[%s3986 + $0x8] sm:$0xf]
      %v3990 = vld [vmem:[%s3986 + $0xc] sm:$0xf]
      %v3991 = vld [vmem:[%s3986 + $0x10] sm:$0xf]
      %v3992 = vld [vmem:[%s3986 + $0x14] sm:$0xf]
      %v3993 = vld [vmem:[%s3986 + $0x18] sm:$0xf]
      %v3994 = vld [vmem:[%s3986 + $0x1c] sm:$0xf]
      %v3995 = vld [vmem:[%s3986 + $0x20] sm:$0xf]
      %v3996 = vld [vmem:[%s3986 + $0x24] sm:$0xf]
      %v3997 = vld [vmem:[%s3986 + $0x28] sm:$0xf]
      %v3998 = vld [vmem:[%s3986 + $0x2c] sm:$0xf]
      %v3999 = vld [vmem:[%s3986 + $0x30] sm:$0xf]
      %v4000 = vld [vmem:[%s3986 + $0x34] sm:$0xf]
      %v4001 = vld [vmem:[%s3986 + $0x38] sm:$0xf]
      %v4002 = vld [vmem:[%s3986 + $0x3c] sm:$0xf]
      %v4045 = vunpack.c.l.b16 %v3944
      %v4046 = vunpack.c.l.b16 %v3945
      %v4047 = vunpack.c.l.b16 %v3946
      %v4048 = vunpack.c.l.b16 %v3947
      %v4049 = vunpack.c.l.b16 %v3948
      %v4050 = vunpack.c.l.b16 %v3949
      %v4051 = vunpack.c.l.b16 %v3950
      %v4052 = vunpack.c.l.b16 %v3951
      %v4053 = vunpack.c.l.b16 %v3952
      %v4054 = vunpack.c.l.b16 %v3953
      %v4055 = vunpack.c.l.b16 %v3954
      %v4056 = vunpack.c.l.b16 %v3955
      %v4057 = vunpack.c.l.b16 %v3956
      %v4058 = vunpack.c.l.b16 %v3957
      %v4059 = vunpack.c.l.b16 %v3958
      %v4060 = vunpack.c.l.b16 %v3959
      %v4061 = vunpack.c.l.b16 %v3960
      %v4062 = vunpack.c.l.b16 %v3961
      %v4063 = vunpack.c.l.b16 %v3962
      %v4064 = vunpack.c.l.b16 %v3963
      %v4065 = vunpack.c.l.b16 %v3964
      %v4066 = vunpack.c.l.b16 %v3965
      %v4067 = vunpack.c.l.b16 %v3966
      %v4068 = vunpack.c.l.b16 %v3967
      %v4069 = vunpack.c.l.b16 %v3968
      %v4070 = vunpack.c.l.b16 %v3969
      %v4071 = vunpack.c.l.b16 %v3970
      %v4072 = vunpack.c.l.b16 %v3971
      %v4073 = vunpack.c.l.b16 %v3972
      %v4074 = vunpack.c.l.b16 %v3973
      %v4075 = vunpack.c.l.b16 %v3974
      %v4076 = vunpack.c.l.b16 %v3975
      %v4077 = vunpack.c.l.b16 %v3976
      %v4078 = vunpack.c.l.b16 %v3977
      %v4079 = vunpack.c.l.b16 %v3978
      %v4080 = vunpack.c.l.b16 %v3979
      %v4081 = vunpack.c.l.b16 %v3980
      %v4082 = vunpack.c.l.b16 %v3981
      %v4083 = vunpack.c.l.b16 %v3982
      %v4084 = vunpack.c.l.b16 %v3983
      %v4085 = vunpack.c.l.b16 %v3984
      %v4086 = vunpack.c.l.b16 %v3985
      %v4087 = vpack.c.b16 %v4046, %v4045
      %v4088 = vpack.c.b16 %v4048, %v4047
      %v4089 = vpack.c.b16 %v4050, %v4049
      %v4090 = vpack.c.b16 %v4052, %v4051
      %v4091 = vpack.c.b16 %v4054, %v4053
      %v4092 = vpack.c.b16 %v4056, %v4055
      %v4093 = vpack.c.b16 %v4058, %v4057
      %v4094 = vpack.c.b16 %v4060, %v4059
      %v4095 = vpack.c.b16 %v4062, %v4061
      %v4096 = vpack.c.b16 %v4064, %v4063
      %v4097 = vpack.c.b16 %v4066, %v4065
      %v4098 = vpack.c.b16 %v4068, %v4067
      %v4099 = vpack.c.b16 %v4070, %v4069
      %v4100 = vpack.c.b16 %v4072, %v4071
      %v4101 = vpack.c.b16 %v4074, %v4073
      %v4102 = vpack.c.b16 %v4076, %v4075
      %v4103 = vpack.c.b16 %v4078, %v4077
      %v4104 = vpack.c.b16 %v4080, %v4079
      %v4105 = vpack.c.b16 %v4082, %v4081
      %v4106 = vpack.c.b16 %v4084, %v4083
      %v4107 = vpack.c.b16 %v4086, %v4085
      %vm4108 = vsmask.f32 7424
      %v4110 = vshrl.u32 %v4087, 16
      %v4112 = vshll.u32 %v4087, 16
      %v4114 = vrot.slane %v4112, 1
      %v4115 = vor.u32 %v4110, %v4114
      %v4117 = vshll.u32 %v4088, 16
      %v4119 = vrot.slane %v4117, 1
      %v4120 = vsel %vm4108, %v4115, %v4119
      %v4121 = vshrl.u32 %v4088, 16
      %v4123 = vor.u32 %v4121, %v4119
      %v4125 = vshll.u32 %v4089, 16
      %v4127 = vrot.slane %v4125, 1
      %v4128 = vsel %vm4108, %v4123, %v4127
      %v4129 = vshrl.u32 %v4089, 16
      %v4131 = vor.u32 %v4129, %v4127
      %v4133 = vshll.u32 %v4090, 16
      %v4135 = vrot.slane %v4133, 1
      %v4136 = vsel %vm4108, %v4131, %v4135
      %v4137 = vshrl.u32 %v4090, 16
      %v4139 = vor.u32 %v4137, %v4135
      %v4141 = vshll.u32 %v4091, 16
      %v4143 = vrot.slane %v4141, 1
      %v4144 = vsel %vm4108, %v4139, %v4143
      %v4145 = vshrl.u32 %v4091, 16
      %v4147 = vor.u32 %v4145, %v4143
      %v4149 = vshll.u32 %v4092, 16
      %v4151 = vrot.slane %v4149, 1
      %v4152 = vsel %vm4108, %v4147, %v4151
      %v4153 = vshrl.u32 %v4092, 16
      %v4155 = vor.u32 %v4153, %v4151
      %v4157 = vshll.u32 %v4093, 16
      %v4159 = vrot.slane %v4157, 1
      %v4160 = vsel %vm4108, %v4155, %v4159
      %v4161 = vshrl.u32 %v4093, 16
      %v4163 = vor.u32 %v4161, %v4159
      %v4165 = vshll.u32 %v4094, 16
      %v4167 = vrot.slane %v4165, 1
      %v4168 = vsel %vm4108, %v4163, %v4167
      %v4169 = vshrl.u32 %v4094, 16
      %v4171 = vor.u32 %v4169, %v4167
      %v4173 = vshll.u32 %v4095, 16
      %v4175 = vrot.slane %v4173, 1
      %v4176 = vsel %vm4108, %v4171, %v4175
      %v4177 = vshrl.u32 %v4095, 16
      %v4179 = vor.u32 %v4177, %v4175
      %v4181 = vshll.u32 %v4096, 16
      %v4183 = vrot.slane %v4181, 1
      %v4184 = vsel %vm4108, %v4179, %v4183
      %v4185 = vshrl.u32 %v4096, 16
      %v4187 = vor.u32 %v4185, %v4183
      %v4189 = vshll.u32 %v4097, 16
      %v4191 = vrot.slane %v4189, 1
      %v4192 = vsel %vm4108, %v4187, %v4191
      %v4193 = vshrl.u32 %v4097, 16
      %v4195 = vor.u32 %v4193, %v4191
      %v4197 = vshll.u32 %v4098, 16
      %v4199 = vrot.slane %v4197, 1
      %v4200 = vsel %vm4108, %v4195, %v4199
      %v4201 = vshrl.u32 %v4098, 16
      %v4203 = vor.u32 %v4201, %v4199
      %v4205 = vshll.u32 %v4099, 16
      %v4207 = vrot.slane %v4205, 1
      %v4208 = vsel %vm4108, %v4203, %v4207
      %v4209 = vshrl.u32 %v4099, 16
      %v4211 = vor.u32 %v4209, %v4207
      %v4213 = vshll.u32 %v4100, 16
      %v4215 = vrot.slane %v4213, 1
      %v4216 = vsel %vm4108, %v4211, %v4215
      %v4217 = vshrl.u32 %v4100, 16
      %v4219 = vor.u32 %v4217, %v4215
      %v4221 = vshll.u32 %v4101, 16
      %v4223 = vrot.slane %v4221, 1
      %v4224 = vsel %vm4108, %v4219, %v4223
      %v4225 = vshrl.u32 %v4101, 16
      %v4227 = vor.u32 %v4225, %v4223
      %v4229 = vshll.u32 %v4102, 16
      %v4231 = vrot.slane %v4229, 1
      %v4232 = vsel %vm4108, %v4227, %v4231
      %v4233 = vshrl.u32 %v4102, 16
      %v4235 = vor.u32 %v4233, %v4231
      %v4237 = vshll.u32 %v4103, 16
      %v4239 = vrot.slane %v4237, 1
      %v4240 = vsel %vm4108, %v4235, %v4239
      %v4241 = vshrl.u32 %v4103, 16
      %v4243 = vor.u32 %v4241, %v4239
      %v4245 = vshll.u32 %v4104, 16
      %v4247 = vrot.slane %v4245, 1
      %v4248 = vsel %vm4108, %v4243, %v4247
      %v4249 = vshrl.u32 %v4104, 16
      %v4251 = vor.u32 %v4249, %v4247
      %v4253 = vshll.u32 %v4105, 16
      %v4255 = vrot.slane %v4253, 1
      %v4256 = vsel %vm4108, %v4251, %v4255
      %v4257 = vshrl.u32 %v4105, 16
      %v4259 = vor.u32 %v4257, %v4255
      %v4261 = vshll.u32 %v4106, 16
      %v4263 = vrot.slane %v4261, 1
      %v4264 = vsel %vm4108, %v4259, %v4263
      %v4265 = vshrl.u32 %v4106, 16
      %v4267 = vor.u32 %v4265, %v4263
      %v4269 = vshll.u32 %v4107, 16
      %v4271 = vrot.slane %v4269, 1
      %v4272 = vsel %vm4108, %v4267, %v4271
      %v4273 = vshrl.u32 %v4107, 16
      %v4275 = vor.u32 %v4273, %v4271
      %v4313 = vunpack.c.l.b16 %v3987
      %v4314 = vunpack.c.l.b16 %v3988
      %v4315 = vunpack.c.l.b16 %v3989
      %v4316 = vunpack.c.l.b16 %v3990
      %v4317 = vunpack.c.l.b16 %v3991
      %v4318 = vunpack.c.l.b16 %v3992
      %v4319 = vunpack.c.l.b16 %v3993
      %v4320 = vunpack.c.l.b16 %v3994
      %v4321 = vunpack.c.l.b16 %v3995
      %v4322 = vunpack.c.l.b16 %v3996
      %v4323 = vunpack.c.l.b16 %v3997
      %v4324 = vunpack.c.l.b16 %v3998
      %v4325 = vunpack.c.l.b16 %v3999
      %v4326 = vunpack.c.l.b16 %v4000
      %v4327 = vunpack.c.l.b16 %v4001
      %v4328 = vunpack.c.l.b16 %v4002
      %v4329 = vpack.c.b16 %v4314, %v4313
      %v4330 = vpack.c.b16 %v4316, %v4315
      %v4331 = vpack.c.b16 %v4318, %v4317
      %v4332 = vpack.c.b16 %v4320, %v4319
      %v4333 = vpack.c.b16 %v4322, %v4321
      %v4334 = vpack.c.b16 %v4324, %v4323
      %v4335 = vpack.c.b16 %v4326, %v4325
      %v4336 = vpack.c.b16 %v4328, %v4327
      %4345 = vmatpush.bf16.msra.mxu0 %v4336
      %4346 = vmatpush.bf16.msra.mxu0 %v4335
      %4347 = vmatpush.bf16.msra.mxu0 %v4334
      %4348 = vmatpush.bf16.msra.mxu0 %v4333
      %4349 = vmatpush.bf16.msra.mxu0 %v4332
      %4350 = vmatpush.bf16.msra.mxu0 %v4331
      %4351 = vmatpush.bf16.msra.mxu0 %v4330
      %4352 = vmatpush.bf16.msra.mxu0 %v4329
      %4353 = vmatmul.bf16.gmra.mxu0 %v4120
      %v4354 = vpop.f32.mrf.mxu0
      %v4355 = vadd.f32 0.0, %v4354
      %v4356 = vpop.f32.mrf.mxu0
      %v4357 = vadd.f32 0.0, %v4356
      %4358 = vmatmul.bf16.gmra.mxu0 %v4128
      %v4359 = vpop.f32.mrf.mxu0
      %v4360 = vadd.f32 0.0, %v4359
      %v4361 = vpop.f32.mrf.mxu0
      %v4362 = vadd.f32 0.0, %v4361
      %4363 = vmatmul.bf16.gmra.mxu0 %v4136
      %v4364 = vpop.f32.mrf.mxu0
      %v4365 = vadd.f32 0.0, %v4364
      %v4366 = vpop.f32.mrf.mxu0
      %v4367 = vadd.f32 0.0, %v4366
      %4368 = vmatmul.bf16.gmra.mxu0 %v4144
      %v4369 = vpop.f32.mrf.mxu0
      %v4370 = vadd.f32 0.0, %v4369
      %v4371 = vpop.f32.mrf.mxu0
      %v4372 = vadd.f32 0.0, %v4371
      %4373 = vmatmul.bf16.gmra.mxu0 %v4152
      %v4374 = vpop.f32.mrf.mxu0
      %v4375 = vadd.f32 0.0, %v4374
      %v4376 = vpop.f32.mrf.mxu0
      %v4377 = vadd.f32 0.0, %v4376
      %4378 = vmatmul.bf16.gmra.mxu0 %v4160
      %v4379 = vpop.f32.mrf.mxu0
      %v4380 = vadd.f32 0.0, %v4379
      %v4381 = vpop.f32.mrf.mxu0
      %v4382 = vadd.f32 0.0, %v4381
      %4383 = vmatmul.bf16.gmra.mxu0 %v4168
      %v4384 = vpop.f32.mrf.mxu0
      %v4385 = vadd.f32 0.0, %v4384
      %v4386 = vpop.f32.mrf.mxu0
      %v4387 = vadd.f32 0.0, %v4386
      %4388 = vmatmul.bf16.gmra.mxu0 %v4176
      %v4389 = vpop.f32.mrf.mxu0
      %v4390 = vadd.f32 0.0, %v4389
      %v4391 = vpop.f32.mrf.mxu0
      %v4392 = vadd.f32 0.0, %v4391
      %4393 = vmatmul.bf16.gmra.mxu0 %v4184
      %v4394 = vpop.f32.mrf.mxu0
      %v4395 = vadd.f32 0.0, %v4394
      %v4396 = vpop.f32.mrf.mxu0
      %v4397 = vadd.f32 0.0, %v4396
      %4398 = vmatmul.bf16.gmra.mxu0 %v4192
      %v4399 = vpop.f32.mrf.mxu0
      %v4400 = vadd.f32 0.0, %v4399
      %v4401 = vpop.f32.mrf.mxu0
      %v4402 = vadd.f32 0.0, %v4401
      %4403 = vmatmul.bf16.gmra.mxu0 %v4200
      %v4404 = vpop.f32.mrf.mxu0
      %v4405 = vadd.f32 0.0, %v4404
      %v4406 = vpop.f32.mrf.mxu0
      %v4407 = vadd.f32 0.0, %v4406
      %4408 = vmatmul.bf16.gmra.mxu0 %v4208
      %v4409 = vpop.f32.mrf.mxu0
      %v4410 = vadd.f32 0.0, %v4409
      %v4411 = vpop.f32.mrf.mxu0
      %v4412 = vadd.f32 0.0, %v4411
      %4413 = vmatmul.bf16.gmra.mxu0 %v4216
      %v4414 = vpop.f32.mrf.mxu0
      %v4415 = vadd.f32 0.0, %v4414
      %v4416 = vpop.f32.mrf.mxu0
      %v4417 = vadd.f32 0.0, %v4416
      %4418 = vmatmul.bf16.gmra.mxu0 %v4224
      %v4419 = vpop.f32.mrf.mxu0
      %v4420 = vadd.f32 0.0, %v4419
      %v4421 = vpop.f32.mrf.mxu0
      %v4422 = vadd.f32 0.0, %v4421
      %4423 = vmatmul.bf16.gmra.mxu0 %v4232
      %v4424 = vpop.f32.mrf.mxu0
      %v4425 = vadd.f32 0.0, %v4424
      %v4426 = vpop.f32.mrf.mxu0
      %v4427 = vadd.f32 0.0, %v4426
      %4428 = vmatmul.bf16.gmra.mxu0 %v4240
      %v4429 = vpop.f32.mrf.mxu0
      %v4430 = vadd.f32 0.0, %v4429
      %v4431 = vpop.f32.mrf.mxu0
      %v4432 = vadd.f32 0.0, %v4431
      %4433 = vmatmul.bf16.gmra.mxu0 %v4248
      %v4434 = vpop.f32.mrf.mxu0
      %v4435 = vadd.f32 0.0, %v4434
      %v4436 = vpop.f32.mrf.mxu0
      %v4437 = vadd.f32 0.0, %v4436
      %4438 = vmatmul.bf16.gmra.mxu0 %v4256
      %v4439 = vpop.f32.mrf.mxu0
      %v4440 = vadd.f32 0.0, %v4439
      %v4441 = vpop.f32.mrf.mxu0
      %v4442 = vadd.f32 0.0, %v4441
      %4443 = vmatmul.bf16.gmra.mxu0 %v4264
      %v4444 = vpop.f32.mrf.mxu0
      %v4445 = vadd.f32 0.0, %v4444
      %v4446 = vpop.f32.mrf.mxu0
      %v4447 = vadd.f32 0.0, %v4446
      %4448 = vmatmul.bf16.gmra.mxu0 %v4272
      %v4449 = vpop.f32.mrf.mxu0
      %v4450 = vadd.f32 0.0, %v4449
      %v4451 = vpop.f32.mrf.mxu0
      %v4452 = vadd.f32 0.0, %v4451
      %4453 = vmatmul.bf16.gmra.mxu0 %v4275
      %v4454 = vpop.f32.mrf.mxu0
      %v4455 = vadd.f32 0.0, %v4454
      %v4456 = vpop.f32.mrf.mxu0
      %4457 = vdwg.mxu0
      %v4458 = vadd.f32 %v3903, %v4355
      %v4459 = vadd.f32 %v3904, %v4357
      %v4460 = vadd.f32 %v3905, %v4360
      %v4461 = vadd.f32 %v3906, %v4362
      %v4462 = vadd.f32 %v3907, %v4365
      %v4463 = vadd.f32 %v3908, %v4367
      %v4464 = vadd.f32 %v3909, %v4370
      %v4465 = vadd.f32 %v3910, %v4372
      %v4466 = vadd.f32 %v3911, %v4375
      %v4467 = vadd.f32 %v3912, %v4377
      %v4468 = vadd.f32 %v3913, %v4380
      %v4469 = vadd.f32 %v3914, %v4382
      %v4470 = vadd.f32 %v3915, %v4385
      %v4471 = vadd.f32 %v3916, %v4387
      %v4472 = vadd.f32 %v3917, %v4390
      %v4473 = vadd.f32 %v3918, %v4392
      %v4474 = vadd.f32 %v3919, %v4395
      %v4475 = vadd.f32 %v3920, %v4397
      %v4476 = vadd.f32 %v3921, %v4400
      %v4477 = vadd.f32 %v3922, %v4402
      %v4478 = vadd.f32 %v3923, %v4405
      %v4479 = vadd.f32 %v3924, %v4407
      %v4480 = vadd.f32 %v3925, %v4410
      %v4481 = vadd.f32 %v3926, %v4412
      %v4482 = vadd.f32 %v3927, %v4415
      %v4483 = vadd.f32 %v3928, %v4417
      %v4484 = vadd.f32 %v3929, %v4420
      %v4485 = vadd.f32 %v3930, %v4422
      %v4486 = vadd.f32 %v3931, %v4425
      %v4487 = vadd.f32 %v3932, %v4427
      %v4488 = vadd.f32 %v3933, %v4430
      %v4489 = vadd.f32 %v3934, %v4432
      %v4490 = vadd.f32 %v3935, %v4435
      %v4491 = vadd.f32 %v3936, %v4437
      %v4492 = vadd.f32 %v3937, %v4440
      %v4493 = vadd.f32 %v3938, %v4442
      %v4494 = vadd.f32 %v3939, %v4445
      %v4495 = vadd.f32 %v3940, %v4447
      %v4496 = vadd.f32 %v3941, %v4450
      %v4497 = vadd.f32 %v3942, %v4452
      %v4498 = vadd.f32 %v3943, %v4455
      %4499 = vst [vmem:[#allocation3] sm:$0xff] %v4458
      %4500 = vst [vmem:[#allocation3 + $0x8] sm:$0xff] %v4459
      %4501 = vst [vmem:[#allocation3 + $0x10] sm:$0xff] %v4460
      %4502 = vst [vmem:[#allocation3 + $0x18] sm:$0xff] %v4461
      %4503 = vst [vmem:[#allocation3 + $0x20] sm:$0xff] %v4462
      %4504 = vst [vmem:[#allocation3 + $0x28] sm:$0xff] %v4463
      %4505 = vst [vmem:[#allocation3 + $0x30] sm:$0xff] %v4464
      %4506 = vst [vmem:[#allocation3 + $0x38] sm:$0xff] %v4465
      %4507 = vst [vmem:[#allocation3 + $0x40] sm:$0xff] %v4466
      %4508 = vst [vmem:[#allocation3 + $0x48] sm:$0xff] %v4467
      %4509 = vst [vmem:[#allocation3 + $0x50] sm:$0xff] %v4468
      %4510 = vst [vmem:[#allocation3 + $0x58] sm:$0xff] %v4469
      %4511 = vst [vmem:[#allocation3 + $0x60] sm:$0xff] %v4470
      %4512 = vst [vmem:[#allocation3 + $0x68] sm:$0xff] %v4471
      %4513 = vst [vmem:[#allocation3 + $0x70] sm:$0xff] %v4472
      %4514 = vst [vmem:[#allocation3 + $0x78] sm:$0xff] %v4473
      %4515 = vst [vmem:[#allocation3 + $0x80] sm:$0xff] %v4474
      %4516 = vst [vmem:[#allocation3 + $0x88] sm:$0xff] %v4475
      %4517 = vst [vmem:[#allocation3 + $0x90] sm:$0xff] %v4476
      %4518 = vst [vmem:[#allocation3 + $0x98] sm:$0xff] %v4477
      %4519 = vst [vmem:[#allocation3 + $0xa0] sm:$0xff] %v4478
      %4520 = vst [vmem:[#allocation3 + $0xa8] sm:$0xff] %v4479
      %4521 = vst [vmem:[#allocation3 + $0xb0] sm:$0xff] %v4480
      %4522 = vst [vmem:[#allocation3 + $0xb8] sm:$0xff] %v4481
      %4523 = vst [vmem:[#allocation3 + $0xc0] sm:$0xff] %v4482
      %4524 = vst [vmem:[#allocation3 + $0xc8] sm:$0xff] %v4483
      %4525 = vst [vmem:[#allocation3 + $0xd0] sm:$0xff] %v4484
      %4526 = vst [vmem:[#allocation3 + $0xd8] sm:$0xff] %v4485
      %4527 = vst [vmem:[#allocation3 + $0xe0] sm:$0xff] %v4486
      %4528 = vst [vmem:[#allocation3 + $0xe8] sm:$0xff] %v4487
      %4529 = vst [vmem:[#allocation3 + $0xf0] sm:$0xff] %v4488
      %4530 = vst [vmem:[#allocation3 + $0xf8] sm:$0xff] %v4489
      %4531 = vst [vmem:[#allocation3 + $0x100] sm:$0xff] %v4490
      %4532 = vst [vmem:[#allocation3 + $0x108] sm:$0xff] %v4491
      %4533 = vst [vmem:[#allocation3 + $0x110] sm:$0xff] %v4492
      %4534 = vst [vmem:[#allocation3 + $0x118] sm:$0xff] %v4493
      %4535 = vst [vmem:[#allocation3 + $0x120] sm:$0xff] %v4494
      %4536 = vst [vmem:[#allocation3 + $0x128] sm:$0xff] %v4495
      %4537 = vst [vmem:[#allocation3 + $0x130] sm:$0xff] %v4496
      %4538 = vst [vmem:[#allocation3 + $0x138] sm:$0xff] %v4497
      %4539 = vst [vmem:[#allocation3 + $0x140] sm:$0xff] %v4498
      %v4540 = vld [vmem:[#allocation3] sm:$0xff]
      %v4541 = vld [vmem:[#allocation3 + $0x8] sm:$0xff]
      %v4542 = vld [vmem:[#allocation3 + $0x10] sm:$0xff]
      %v4543 = vld [vmem:[#allocation3 + $0x18] sm:$0xff]
      %v4544 = vld [vmem:[#allocation3 + $0x20] sm:$0xff]
      %v4545 = vld [vmem:[#allocation3 + $0x28] sm:$0xff]
      %v4546 = vld [vmem:[#allocation3 + $0x30] sm:$0xff]
      %v4547 = vld [vmem:[#allocation3 + $0x38] sm:$0xff]
      %v4548 = vld [vmem:[#allocation3 + $0x40] sm:$0xff]
      %v4549 = vld [vmem:[#allocation3 + $0x48] sm:$0xff]
      %v4550 = vld [vmem:[#allocation3 + $0x50] sm:$0xff]
      %v4551 = vld [vmem:[#allocation3 + $0x58] sm:$0xff]
      %v4552 = vld [vmem:[#allocation3 + $0x60] sm:$0xff]
      %v4553 = vld [vmem:[#allocation3 + $0x68] sm:$0xff]
      %v4554 = vld [vmem:[#allocation3 + $0x70] sm:$0xff]
      %v4555 = vld [vmem:[#allocation3 + $0x78] sm:$0xff]
      %v4556 = vld [vmem:[#allocation3 + $0x80] sm:$0xff]
      %v4557 = vld [vmem:[#allocation3 + $0x88] sm:$0xff]
      %v4558 = vld [vmem:[#allocation3 + $0x90] sm:$0xff]
      %v4559 = vld [vmem:[#allocation3 + $0x98] sm:$0xff]
      %v4560 = vld [vmem:[#allocation3 + $0xa0] sm:$0xff]
      %v4561 = vld [vmem:[#allocation3 + $0xa8] sm:$0xff]
      %v4562 = vld [vmem:[#allocation3 + $0xb0] sm:$0xff]
      %v4563 = vld [vmem:[#allocation3 + $0xb8] sm:$0xff]
      %v4564 = vld [vmem:[#allocation3 + $0xc0] sm:$0xff]
      %v4565 = vld [vmem:[#allocation3 + $0xc8] sm:$0xff]
      %v4566 = vld [vmem:[#allocation3 + $0xd0] sm:$0xff]
      %v4567 = vld [vmem:[#allocation3 + $0xd8] sm:$0xff]
      %v4568 = vld [vmem:[#allocation3 + $0xe0] sm:$0xff]
      %v4569 = vld [vmem:[#allocation3 + $0xe8] sm:$0xff]
      %v4570 = vld [vmem:[#allocation3 + $0xf0] sm:$0xff]
      %v4571 = vld [vmem:[#allocation3 + $0xf8] sm:$0xff]
      %v4572 = vld [vmem:[#allocation3 + $0x100] sm:$0xff]
      %v4573 = vld [vmem:[#allocation3 + $0x108] sm:$0xff]
      %v4574 = vld [vmem:[#allocation3 + $0x110] sm:$0xff]
      %v4575 = vld [vmem:[#allocation3 + $0x118] sm:$0xff]
      %v4576 = vld [vmem:[#allocation3 + $0x120] sm:$0xff]
      %v4577 = vld [vmem:[#allocation3 + $0x128] sm:$0xff]
      %v4578 = vld [vmem:[#allocation3 + $0x130] sm:$0xff]
      %v4579 = vld [vmem:[#allocation3 + $0x138] sm:$0xff]
      %v4580 = vld [vmem:[#allocation3 + $0x140] sm:$0xff]
      %v4581 = vld [vmem:[#allocation2 + $0x14] sm:$0xf]
      %v4582 = vld [vmem:[#allocation2 + $0x18] sm:$0xf]
      %v4583 = vld [vmem:[#allocation2 + $0x1c] sm:$0xf]
      %v4584 = vld [vmem:[#allocation2 + $0x20] sm:$0xf]
      %v4585 = vld [vmem:[#allocation2 + $0x24] sm:$0xf]
      %v4586 = vld [vmem:[#allocation2 + $0x28] sm:$0xf]
      %v4587 = vld [vmem:[#allocation2 + $0x2c] sm:$0xf]
      %v4588 = vld [vmem:[#allocation2 + $0x30] sm:$0xf]
      %v4589 = vld [vmem:[#allocation2 + $0x34] sm:$0xf]
      %v4590 = vld [vmem:[#allocation2 + $0x38] sm:$0xf]
      %v4591 = vld [vmem:[#allocation2 + $0x3c] sm:$0xf]
      %v4592 = vld [vmem:[#allocation2 + $0x40] sm:$0xf]
      %v4593 = vld [vmem:[#allocation2 + $0x44] sm:$0xf]
      %v4594 = vld [vmem:[#allocation2 + $0x48] sm:$0xf]
      %v4595 = vld [vmem:[#allocation2 + $0x4c] sm:$0xf]
      %v4596 = vld [vmem:[#allocation2 + $0x50] sm:$0xf]
      %v4597 = vld [vmem:[#allocation2 + $0x54] sm:$0xf]
      %v4598 = vld [vmem:[#allocation2 + $0x58] sm:$0xf]
      %v4599 = vld [vmem:[#allocation2 + $0x5c] sm:$0xf]
      %v4600 = vld [vmem:[#allocation2 + $0x60] sm:$0xf]
      %v4601 = vld [vmem:[#allocation2 + $0x64] sm:$0xf]
      %v4602 = vld [vmem:[#allocation2 + $0x68] sm:$0xf]
      %v4603 = vld [vmem:[#allocation2 + $0x6c] sm:$0xf]
      %v4604 = vld [vmem:[#allocation2 + $0x70] sm:$0xf]
      %v4605 = vld [vmem:[#allocation2 + $0x74] sm:$0xf]
      %v4606 = vld [vmem:[#allocation2 + $0x78] sm:$0xf]
      %v4607 = vld [vmem:[#allocation2 + $0x7c] sm:$0xf]
      %v4608 = vld [vmem:[#allocation2 + $0x80] sm:$0xf]
      %v4609 = vld [vmem:[#allocation2 + $0x84] sm:$0xf]
      %v4610 = vld [vmem:[#allocation2 + $0x88] sm:$0xf]
      %v4611 = vld [vmem:[#allocation2 + $0x8c] sm:$0xf]
      %v4612 = vld [vmem:[#allocation2 + $0x90] sm:$0xf]
      %v4613 = vld [vmem:[#allocation2 + $0x94] sm:$0xf]
      %v4614 = vld [vmem:[#allocation2 + $0x98] sm:$0xf]
      %v4615 = vld [vmem:[#allocation2 + $0x9c] sm:$0xf]
      %v4616 = vld [vmem:[#allocation2 + $0xa0] sm:$0xf]
      %v4617 = vld [vmem:[#allocation2 + $0xa4] sm:$0xf]
      %v4618 = vld [vmem:[#allocation2 + $0xa8] sm:$0xf]
      %v4619 = vld [vmem:[#allocation2 + $0xac] sm:$0xf]
      %v4620 = vld [vmem:[#allocation2 + $0xb0] sm:$0xf]
      %v4621 = vld [vmem:[#allocation2 + $0xb4] sm:$0xf]
      %v4622 = vld [vmem:[#allocation2 + $0xb8] sm:$0x1]
      %s4623 = scalar_lea.vmem %s3, 384
      %v4624 = vld [vmem:[%s4623] sm:$0xf]
      %v4625 = vld [vmem:[%s4623 + $0x4] sm:$0xf]
      %v4626 = vld [vmem:[%s4623 + $0x8] sm:$0xf]
      %v4627 = vld [vmem:[%s4623 + $0xc] sm:$0xf]
      %v4628 = vld [vmem:[%s4623 + $0x10] sm:$0xf]
      %v4629 = vld [vmem:[%s4623 + $0x14] sm:$0xf]
      %v4630 = vld [vmem:[%s4623 + $0x18] sm:$0xf]
      %v4631 = vld [vmem:[%s4623 + $0x1c] sm:$0xf]
      %v4632 = vld [vmem:[%s4623 + $0x20] sm:$0xf]
      %v4633 = vld [vmem:[%s4623 + $0x24] sm:$0xf]
      %v4634 = vld [vmem:[%s4623 + $0x28] sm:$0xf]
      %v4635 = vld [vmem:[%s4623 + $0x2c] sm:$0xf]
      %v4636 = vld [vmem:[%s4623 + $0x30] sm:$0xf]
      %v4637 = vld [vmem:[%s4623 + $0x34] sm:$0xf]
      %v4638 = vld [vmem:[%s4623 + $0x38] sm:$0xf]
      %v4639 = vld [vmem:[%s4623 + $0x3c] sm:$0xf]
      %v4682 = vunpack.c.l.b16 %v4581
      %v4683 = vunpack.c.l.b16 %v4582
      %v4684 = vunpack.c.l.b16 %v4583
      %v4685 = vunpack.c.l.b16 %v4584
      %v4686 = vunpack.c.l.b16 %v4585
      %v4687 = vunpack.c.l.b16 %v4586
      %v4688 = vunpack.c.l.b16 %v4587
      %v4689 = vunpack.c.l.b16 %v4588
      %v4690 = vunpack.c.l.b16 %v4589
      %v4691 = vunpack.c.l.b16 %v4590
      %v4692 = vunpack.c.l.b16 %v4591
      %v4693 = vunpack.c.l.b16 %v4592
      %v4694 = vunpack.c.l.b16 %v4593
      %v4695 = vunpack.c.l.b16 %v4594
      %v4696 = vunpack.c.l.b16 %v4595
      %v4697 = vunpack.c.l.b16 %v4596
      %v4698 = vunpack.c.l.b16 %v4597
      %v4699 = vunpack.c.l.b16 %v4598
      %v4700 = vunpack.c.l.b16 %v4599
      %v4701 = vunpack.c.l.b16 %v4600
      %v4702 = vunpack.c.l.b16 %v4601
      %v4703 = vunpack.c.l.b16 %v4602
      %v4704 = vunpack.c.l.b16 %v4603
      %v4705 = vunpack.c.l.b16 %v4604
      %v4706 = vunpack.c.l.b16 %v4605
      %v4707 = vunpack.c.l.b16 %v4606
      %v4708 = vunpack.c.l.b16 %v4607
      %v4709 = vunpack.c.l.b16 %v4608
      %v4710 = vunpack.c.l.b16 %v4609
      %v4711 = vunpack.c.l.b16 %v4610
      %v4712 = vunpack.c.l.b16 %v4611
      %v4713 = vunpack.c.l.b16 %v4612
      %v4714 = vunpack.c.l.b16 %v4613
      %v4715 = vunpack.c.l.b16 %v4614
      %v4716 = vunpack.c.l.b16 %v4615
      %v4717 = vunpack.c.l.b16 %v4616
      %v4718 = vunpack.c.l.b16 %v4617
      %v4719 = vunpack.c.l.b16 %v4618
      %v4720 = vunpack.c.l.b16 %v4619
      %v4721 = vunpack.c.l.b16 %v4620
      %v4722 = vunpack.c.l.b16 %v4621
      %v4723 = vunpack.c.l.b16 %v4622
      %v4724 = vpack.c.b16 %v4683, %v4682
      %v4725 = vpack.c.b16 %v4685, %v4684
      %v4726 = vpack.c.b16 %v4687, %v4686
      %v4727 = vpack.c.b16 %v4689, %v4688
      %v4728 = vpack.c.b16 %v4691, %v4690
      %v4729 = vpack.c.b16 %v4693, %v4692
      %v4730 = vpack.c.b16 %v4695, %v4694
      %v4731 = vpack.c.b16 %v4697, %v4696
      %v4732 = vpack.c.b16 %v4699, %v4698
      %v4733 = vpack.c.b16 %v4701, %v4700
      %v4734 = vpack.c.b16 %v4703, %v4702
      %v4735 = vpack.c.b16 %v4705, %v4704
      %v4736 = vpack.c.b16 %v4707, %v4706
      %v4737 = vpack.c.b16 %v4709, %v4708
      %v4738 = vpack.c.b16 %v4711, %v4710
      %v4739 = vpack.c.b16 %v4713, %v4712
      %v4740 = vpack.c.b16 %v4715, %v4714
      %v4741 = vpack.c.b16 %v4717, %v4716
      %v4742 = vpack.c.b16 %v4719, %v4718
      %v4743 = vpack.c.b16 %v4721, %v4720
      %v4744 = vpack.c.b16 %v4723, %v4722
      %v4746 = vshrl.u32 %v4724, 16
      %v4748 = vshll.u32 %v4724, 16
      %v4750 = vrot.slane %v4748, 1
      %v4751 = vor.u32 %v4746, %v4750
      %v4753 = vshll.u32 %v4725, 16
      %v4755 = vrot.slane %v4753, 1
      %v4756 = vsel %vm4108, %v4751, %v4755
      %v4757 = vshrl.u32 %v4725, 16
      %v4759 = vor.u32 %v4757, %v4755
      %v4761 = vshll.u32 %v4726, 16
      %v4763 = vrot.slane %v4761, 1
      %v4764 = vsel %vm4108, %v4759, %v4763
      %v4765 = vshrl.u32 %v4726, 16
      %v4767 = vor.u32 %v4765, %v4763
      %v4769 = vshll.u32 %v4727, 16
      %v4771 = vrot.slane %v4769, 1
      %v4772 = vsel %vm4108, %v4767, %v4771
      %v4773 = vshrl.u32 %v4727, 16
      %v4775 = vor.u32 %v4773, %v4771
      %v4777 = vshll.u32 %v4728, 16
      %v4779 = vrot.slane %v4777, 1
      %v4780 = vsel %vm4108, %v4775, %v4779
      %v4781 = vshrl.u32 %v4728, 16
      %v4783 = vor.u32 %v4781, %v4779
      %v4785 = vshll.u32 %v4729, 16
      %v4787 = vrot.slane %v4785, 1
      %v4788 = vsel %vm4108, %v4783, %v4787
      %v4789 = vshrl.u32 %v4729, 16
      %v4791 = vor.u32 %v4789, %v4787
      %v4793 = vshll.u32 %v4730, 16
      %v4795 = vrot.slane %v4793, 1
      %v4796 = vsel %vm4108, %v4791, %v4795
      %v4797 = vshrl.u32 %v4730, 16
      %v4799 = vor.u32 %v4797, %v4795
      %v4801 = vshll.u32 %v4731, 16
      %v4803 = vrot.slane %v4801, 1
      %v4804 = vsel %vm4108, %v4799, %v4803
      %v4805 = vshrl.u32 %v4731, 16
      %v4807 = vor.u32 %v4805, %v4803
      %v4809 = vshll.u32 %v4732, 16
      %v4811 = vrot.slane %v4809, 1
      %v4812 = vsel %vm4108, %v4807, %v4811
      %v4813 = vshrl.u32 %v4732, 16
      %v4815 = vor.u32 %v4813, %v4811
      %v4817 = vshll.u32 %v4733, 16
      %v4819 = vrot.slane %v4817, 1
      %v4820 = vsel %vm4108, %v4815, %v4819
      %v4821 = vshrl.u32 %v4733, 16
      %v4823 = vor.u32 %v4821, %v4819
      %v4825 = vshll.u32 %v4734, 16
      %v4827 = vrot.slane %v4825, 1
      %v4828 = vsel %vm4108, %v4823, %v4827
      %v4829 = vshrl.u32 %v4734, 16
      %v4831 = vor.u32 %v4829, %v4827
      %v4833 = vshll.u32 %v4735, 16
      %v4835 = vrot.slane %v4833, 1
      %v4836 = vsel %vm4108, %v4831, %v4835
      %v4837 = vshrl.u32 %v4735, 16
      %v4839 = vor.u32 %v4837, %v4835
      %v4841 = vshll.u32 %v4736, 16
      %v4843 = vrot.slane %v4841, 1
      %v4844 = vsel %vm4108, %v4839, %v4843
      %v4845 = vshrl.u32 %v4736, 16
      %v4847 = vor.u32 %v4845, %v4843
      %v4849 = vshll.u32 %v4737, 16
      %v4851 = vrot.slane %v4849, 1
      %v4852 = vsel %vm4108, %v4847, %v4851
      %v4853 = vshrl.u32 %v4737, 16
      %v4855 = vor.u32 %v4853, %v4851
      %v4857 = vshll.u32 %v4738, 16
      %v4859 = vrot.slane %v4857, 1
      %v4860 = vsel %vm4108, %v4855, %v4859
      %v4861 = vshrl.u32 %v4738, 16
      %v4863 = vor.u32 %v4861, %v4859
      %v4865 = vshll.u32 %v4739, 16
      %v4867 = vrot.slane %v4865, 1
      %v4868 = vsel %vm4108, %v4863, %v4867
      %v4869 = vshrl.u32 %v4739, 16
      %v4871 = vor.u32 %v4869, %v4867
      %v4873 = vshll.u32 %v4740, 16
      %v4875 = vrot.slane %v4873, 1
      %v4876 = vsel %vm4108, %v4871, %v4875
      %v4877 = vshrl.u32 %v4740, 16
      %v4879 = vor.u32 %v4877, %v4875
      %v4881 = vshll.u32 %v4741, 16
      %v4883 = vrot.slane %v4881, 1
      %v4884 = vsel %vm4108, %v4879, %v4883
      %v4885 = vshrl.u32 %v4741, 16
      %v4887 = vor.u32 %v4885, %v4883
      %v4889 = vshll.u32 %v4742, 16
      %v4891 = vrot.slane %v4889, 1
      %v4892 = vsel %vm4108, %v4887, %v4891
      %v4893 = vshrl.u32 %v4742, 16
      %v4895 = vor.u32 %v4893, %v4891
      %v4897 = vshll.u32 %v4743, 16
      %v4899 = vrot.slane %v4897, 1
      %v4900 = vsel %vm4108, %v4895, %v4899
      %v4901 = vshrl.u32 %v4743, 16
      %v4903 = vor.u32 %v4901, %v4899
      %v4905 = vshll.u32 %v4744, 16
      %v4907 = vrot.slane %v4905, 1
      %v4908 = vsel %vm4108, %v4903, %v4907
      %v4909 = vshrl.u32 %v4744, 16
      %v4911 = vor.u32 %v4909, %v4907
      %v4949 = vunpack.c.l.b16 %v4624
      %v4950 = vunpack.c.l.b16 %v4625
      %v4951 = vunpack.c.l.b16 %v4626
      %v4952 = vunpack.c.l.b16 %v4627
      %v4953 = vunpack.c.l.b16 %v4628
      %v4954 = vunpack.c.l.b16 %v4629
      %v4955 = vunpack.c.l.b16 %v4630
      %v4956 = vunpack.c.l.b16 %v4631
      %v4957 = vunpack.c.l.b16 %v4632
      %v4958 = vunpack.c.l.b16 %v4633
      %v4959 = vunpack.c.l.b16 %v4634
      %v4960 = vunpack.c.l.b16 %v4635
      %v4961 = vunpack.c.l.b16 %v4636
      %v4962 = vunpack.c.l.b16 %v4637
      %v4963 = vunpack.c.l.b16 %v4638
      %v4964 = vunpack.c.l.b16 %v4639
      %v4965 = vpack.c.b16 %v4950, %v4949
      %v4966 = vpack.c.b16 %v4952, %v4951
      %v4967 = vpack.c.b16 %v4954, %v4953
      %v4968 = vpack.c.b16 %v4956, %v4955
      %v4969 = vpack.c.b16 %v4958, %v4957
      %v4970 = vpack.c.b16 %v4960, %v4959
      %v4971 = vpack.c.b16 %v4962, %v4961
      %v4972 = vpack.c.b16 %v4964, %v4963
      %4981 = vmatpush.bf16.msra.mxu0 %v4972
      %4982 = vmatpush.bf16.msra.mxu0 %v4971
      %4983 = vmatpush.bf16.msra.mxu0 %v4970
      %4984 = vmatpush.bf16.msra.mxu0 %v4969
      %4985 = vmatpush.bf16.msra.mxu0 %v4968
      %4986 = vmatpush.bf16.msra.mxu0 %v4967
      %4987 = vmatpush.bf16.msra.mxu0 %v4966
      %4988 = vmatpush.bf16.msra.mxu0 %v4965
      %4989 = vmatmul.bf16.gmra.mxu0 %v4756
      %v4990 = vpop.f32.mrf.mxu0
      %v4991 = vadd.f32 0.0, %v4990
      %v4992 = vpop.f32.mrf.mxu0
      %v4993 = vadd.f32 0.0, %v4992
      %4994 = vmatmul.bf16.gmra.mxu0 %v4764
      %v4995 = vpop.f32.mrf.mxu0
      %v4996 = vadd.f32 0.0, %v4995
      %v4997 = vpop.f32.mrf.mxu0
      %v4998 = vadd.f32 0.0, %v4997
      %4999 = vmatmul.bf16.gmra.mxu0 %v4772
      %v5000 = vpop.f32.mrf.mxu0
      %v5001 = vadd.f32 0.0, %v5000
      %v5002 = vpop.f32.mrf.mxu0
      %v5003 = vadd.f32 0.0, %v5002
      %5004 = vmatmul.bf16.gmra.mxu0 %v4780
      %v5005 = vpop.f32.mrf.mxu0
      %v5006 = vadd.f32 0.0, %v5005
      %v5007 = vpop.f32.mrf.mxu0
      %v5008 = vadd.f32 0.0, %v5007
      %5009 = vmatmul.bf16.gmra.mxu0 %v4788
      %v5010 = vpop.f32.mrf.mxu0
      %v5011 = vadd.f32 0.0, %v5010
      %v5012 = vpop.f32.mrf.mxu0
      %v5013 = vadd.f32 0.0, %v5012
      %5014 = vmatmul.bf16.gmra.mxu0 %v4796
      %v5015 = vpop.f32.mrf.mxu0
      %v5016 = vadd.f32 0.0, %v5015
      %v5017 = vpop.f32.mrf.mxu0
      %v5018 = vadd.f32 0.0, %v5017
      %5019 = vmatmul.bf16.gmra.mxu0 %v4804
      %v5020 = vpop.f32.mrf.mxu0
      %v5021 = vadd.f32 0.0, %v5020
      %v5022 = vpop.f32.mrf.mxu0
      %v5023 = vadd.f32 0.0, %v5022
      %5024 = vmatmul.bf16.gmra.mxu0 %v4812
      %v5025 = vpop.f32.mrf.mxu0
      %v5026 = vadd.f32 0.0, %v5025
      %v5027 = vpop.f32.mrf.mxu0
      %v5028 = vadd.f32 0.0, %v5027
      %5029 = vmatmul.bf16.gmra.mxu0 %v4820
      %v5030 = vpop.f32.mrf.mxu0
      %v5031 = vadd.f32 0.0, %v5030
      %v5032 = vpop.f32.mrf.mxu0
      %v5033 = vadd.f32 0.0, %v5032
      %5034 = vmatmul.bf16.gmra.mxu0 %v4828
      %v5035 = vpop.f32.mrf.mxu0
      %v5036 = vadd.f32 0.0, %v5035
      %v5037 = vpop.f32.mrf.mxu0
      %v5038 = vadd.f32 0.0, %v5037
      %5039 = vmatmul.bf16.gmra.mxu0 %v4836
      %v5040 = vpop.f32.mrf.mxu0
      %v5041 = vadd.f32 0.0, %v5040
      %v5042 = vpop.f32.mrf.mxu0
      %v5043 = vadd.f32 0.0, %v5042
      %5044 = vmatmul.bf16.gmra.mxu0 %v4844
      %v5045 = vpop.f32.mrf.mxu0
      %v5046 = vadd.f32 0.0, %v5045
      %v5047 = vpop.f32.mrf.mxu0
      %v5048 = vadd.f32 0.0, %v5047
      %5049 = vmatmul.bf16.gmra.mxu0 %v4852
      %v5050 = vpop.f32.mrf.mxu0
      %v5051 = vadd.f32 0.0, %v5050
      %v5052 = vpop.f32.mrf.mxu0
      %v5053 = vadd.f32 0.0, %v5052
      %5054 = vmatmul.bf16.gmra.mxu0 %v4860
      %v5055 = vpop.f32.mrf.mxu0
      %v5056 = vadd.f32 0.0, %v5055
      %v5057 = vpop.f32.mrf.mxu0
      %v5058 = vadd.f32 0.0, %v5057
      %5059 = vmatmul.bf16.gmra.mxu0 %v4868
      %v5060 = vpop.f32.mrf.mxu0
      %v5061 = vadd.f32 0.0, %v5060
      %v5062 = vpop.f32.mrf.mxu0
      %v5063 = vadd.f32 0.0, %v5062
      %5064 = vmatmul.bf16.gmra.mxu0 %v4876
      %v5065 = vpop.f32.mrf.mxu0
      %v5066 = vadd.f32 0.0, %v5065
      %v5067 = vpop.f32.mrf.mxu0
      %v5068 = vadd.f32 0.0, %v5067
      %5069 = vmatmul.bf16.gmra.mxu0 %v4884
      %v5070 = vpop.f32.mrf.mxu0
      %v5071 = vadd.f32 0.0, %v5070
      %v5072 = vpop.f32.mrf.mxu0
      %v5073 = vadd.f32 0.0, %v5072
      %5074 = vmatmul.bf16.gmra.mxu0 %v4892
      %v5075 = vpop.f32.mrf.mxu0
      %v5076 = vadd.f32 0.0, %v5075
      %v5077 = vpop.f32.mrf.mxu0
      %v5078 = vadd.f32 0.0, %v5077
      %5079 = vmatmul.bf16.gmra.mxu0 %v4900
      %v5080 = vpop.f32.mrf.mxu0
      %v5081 = vadd.f32 0.0, %v5080
      %v5082 = vpop.f32.mrf.mxu0
      %v5083 = vadd.f32 0.0, %v5082
      %5084 = vmatmul.bf16.gmra.mxu0 %v4908
      %v5085 = vpop.f32.mrf.mxu0
      %v5086 = vadd.f32 0.0, %v5085
      %v5087 = vpop.f32.mrf.mxu0
      %v5088 = vadd.f32 0.0, %v5087
      %5089 = vmatmul.bf16.gmra.mxu0 %v4911
      %v5090 = vpop.f32.mrf.mxu0
      %v5091 = vadd.f32 0.0, %v5090
      %v5092 = vpop.f32.mrf.mxu0
      %5093 = vdwg.mxu0
      %v5094 = vadd.f32 %v4540, %v4991
      %v5095 = vadd.f32 %v4541, %v4993
      %v5096 = vadd.f32 %v4542, %v4996
      %v5097 = vadd.f32 %v4543, %v4998
      %v5098 = vadd.f32 %v4544, %v5001
      %v5099 = vadd.f32 %v4545, %v5003
      %v5100 = vadd.f32 %v4546, %v5006
      %v5101 = vadd.f32 %v4547, %v5008
      %v5102 = vadd.f32 %v4548, %v5011
      %v5103 = vadd.f32 %v4549, %v5013
      %v5104 = vadd.f32 %v4550, %v5016
      %v5105 = vadd.f32 %v4551, %v5018
      %v5106 = vadd.f32 %v4552, %v5021
      %v5107 = vadd.f32 %v4553, %v5023
      %v5108 = vadd.f32 %v4554, %v5026
      %v5109 = vadd.f32 %v4555, %v5028
      %v5110 = vadd.f32 %v4556, %v5031
      %v5111 = vadd.f32 %v4557, %v5033
      %v5112 = vadd.f32 %v4558, %v5036
      %v5113 = vadd.f32 %v4559, %v5038
      %v5114 = vadd.f32 %v4560, %v5041
      %v5115 = vadd.f32 %v4561, %v5043
      %v5116 = vadd.f32 %v4562, %v5046
      %v5117 = vadd.f32 %v4563, %v5048
      %v5118 = vadd.f32 %v4564, %v5051
      %v5119 = vadd.f32 %v4565, %v5053
      %v5120 = vadd.f32 %v4566, %v5056
      %v5121 = vadd.f32 %v4567, %v5058
      %v5122 = vadd.f32 %v4568, %v5061
      %v5123 = vadd.f32 %v4569, %v5063
      %v5124 = vadd.f32 %v4570, %v5066
      %v5125 = vadd.f32 %v4571, %v5068
      %v5126 = vadd.f32 %v4572, %v5071
      %v5127 = vadd.f32 %v4573, %v5073
      %v5128 = vadd.f32 %v4574, %v5076
      %v5129 = vadd.f32 %v4575, %v5078
      %v5130 = vadd.f32 %v4576, %v5081
      %v5131 = vadd.f32 %v4577, %v5083
      %v5132 = vadd.f32 %v4578, %v5086
      %v5133 = vadd.f32 %v4579, %v5088
      %v5134 = vadd.f32 %v4580, %v5091
      %5135 = vst [vmem:[#allocation3] sm:$0xff] %v5094
      %5136 = vst [vmem:[#allocation3 + $0x8] sm:$0xff] %v5095
      %5137 = vst [vmem:[#allocation3 + $0x10] sm:$0xff] %v5096
      %5138 = vst [vmem:[#allocation3 + $0x18] sm:$0xff] %v5097
      %5139 = vst [vmem:[#allocation3 + $0x20] sm:$0xff] %v5098
      %5140 = vst [vmem:[#allocation3 + $0x28] sm:$0xff] %v5099
      %5141 = vst [vmem:[#allocation3 + $0x30] sm:$0xff] %v5100
      %5142 = vst [vmem:[#allocation3 + $0x38] sm:$0xff] %v5101
      %5143 = vst [vmem:[#allocation3 + $0x40] sm:$0xff] %v5102
      %5144 = vst [vmem:[#allocation3 + $0x48] sm:$0xff] %v5103
      %5145 = vst [vmem:[#allocation3 + $0x50] sm:$0xff] %v5104
      %5146 = vst [vmem:[#allocation3 + $0x58] sm:$0xff] %v5105
      %5147 = vst [vmem:[#allocation3 + $0x60] sm:$0xff] %v5106
      %5148 = vst [vmem:[#allocation3 + $0x68] sm:$0xff] %v5107
      %5149 = vst [vmem:[#allocation3 + $0x70] sm:$0xff] %v5108
      %5150 = vst [vmem:[#allocation3 + $0x78] sm:$0xff] %v5109
      %5151 = vst [vmem:[#allocation3 + $0x80] sm:$0xff] %v5110
      %5152 = vst [vmem:[#allocation3 + $0x88] sm:$0xff] %v5111
      %5153 = vst [vmem:[#allocation3 + $0x90] sm:$0xff] %v5112
      %5154 = vst [vmem:[#allocation3 + $0x98] sm:$0xff] %v5113
      %5155 = vst [vmem:[#allocation3 + $0xa0] sm:$0xff] %v5114
      %5156 = vst [vmem:[#allocation3 + $0xa8] sm:$0xff] %v5115
      %5157 = vst [vmem:[#allocation3 + $0xb0] sm:$0xff] %v5116
      %5158 = vst [vmem:[#allocation3 + $0xb8] sm:$0xff] %v5117
      %5159 = vst [vmem:[#allocation3 + $0xc0] sm:$0xff] %v5118
      %5160 = vst [vmem:[#allocation3 + $0xc8] sm:$0xff] %v5119
      %5161 = vst [vmem:[#allocation3 + $0xd0] sm:$0xff] %v5120
      %5162 = vst [vmem:[#allocation3 + $0xd8] sm:$0xff] %v5121
      %5163 = vst [vmem:[#allocation3 + $0xe0] sm:$0xff] %v5122
      %5164 = vst [vmem:[#allocation3 + $0xe8] sm:$0xff] %v5123
      %5165 = vst [vmem:[#allocation3 + $0xf0] sm:$0xff] %v5124
      %5166 = vst [vmem:[#allocation3 + $0xf8] sm:$0xff] %v5125
      %5167 = vst [vmem:[#allocation3 + $0x100] sm:$0xff] %v5126
      %5168 = vst [vmem:[#allocation3 + $0x108] sm:$0xff] %v5127
      %5169 = vst [vmem:[#allocation3 + $0x110] sm:$0xff] %v5128
      %5170 = vst [vmem:[#allocation3 + $0x118] sm:$0xff] %v5129
      %5171 = vst [vmem:[#allocation3 + $0x120] sm:$0xff] %v5130
      %5172 = vst [vmem:[#allocation3 + $0x128] sm:$0xff] %v5131
      %5173 = vst [vmem:[#allocation3 + $0x130] sm:$0xff] %v5132
      %5174 = vst [vmem:[#allocation3 + $0x138] sm:$0xff] %v5133
      %5175 = vst [vmem:[#allocation3 + $0x140] sm:$0xff] %v5134
      %v5176 = vld [vmem:[#allocation3] sm:$0xff]
      %v5177 = vld [vmem:[#allocation3 + $0x8] sm:$0xff]
      %v5178 = vld [vmem:[#allocation3 + $0x10] sm:$0xff]
      %v5179 = vld [vmem:[#allocation3 + $0x18] sm:$0xff]
      %v5180 = vld [vmem:[#allocation3 + $0x20] sm:$0xff]
      %v5181 = vld [vmem:[#allocation3 + $0x28] sm:$0xff]
      %v5182 = vld [vmem:[#allocation3 + $0x30] sm:$0xff]
      %v5183 = vld [vmem:[#allocation3 + $0x38] sm:$0xff]
      %v5184 = vld [vmem:[#allocation3 + $0x40] sm:$0xff]
      %v5185 = vld [vmem:[#allocation3 + $0x48] sm:$0xff]
      %v5186 = vld [vmem:[#allocation3 + $0x50] sm:$0xff]
      %v5187 = vld [vmem:[#allocation3 + $0x58] sm:$0xff]
      %v5188 = vld [vmem:[#allocation3 + $0x60] sm:$0xff]
      %v5189 = vld [vmem:[#allocation3 + $0x68] sm:$0xff]
      %v5190 = vld [vmem:[#allocation3 + $0x70] sm:$0xff]
      %v5191 = vld [vmem:[#allocation3 + $0x78] sm:$0xff]
      %v5192 = vld [vmem:[#allocation3 + $0x80] sm:$0xff]
      %v5193 = vld [vmem:[#allocation3 + $0x88] sm:$0xff]
      %v5194 = vld [vmem:[#allocation3 + $0x90] sm:$0xff]
      %v5195 = vld [vmem:[#allocation3 + $0x98] sm:$0xff]
      %v5196 = vld [vmem:[#allocation3 + $0xa0] sm:$0xff]
      %v5197 = vld [vmem:[#allocation3 + $0xa8] sm:$0xff]
      %v5198 = vld [vmem:[#allocation3 + $0xb0] sm:$0xff]
      %v5199 = vld [vmem:[#allocation3 + $0xb8] sm:$0xff]
      %v5200 = vld [vmem:[#allocation3 + $0xc0] sm:$0xff]
      %v5201 = vld [vmem:[#allocation3 + $0xc8] sm:$0xff]
      %v5202 = vld [vmem:[#allocation3 + $0xd0] sm:$0xff]
      %v5203 = vld [vmem:[#allocation3 + $0xd8] sm:$0xff]
      %v5204 = vld [vmem:[#allocation3 + $0xe0] sm:$0xff]
      %v5205 = vld [vmem:[#allocation3 + $0xe8] sm:$0xff]
      %v5206 = vld [vmem:[#allocation3 + $0xf0] sm:$0xff]
      %v5207 = vld [vmem:[#allocation3 + $0xf8] sm:$0xff]
      %v5208 = vld [vmem:[#allocation3 + $0x100] sm:$0xff]
      %v5209 = vld [vmem:[#allocation3 + $0x108] sm:$0xff]
      %v5210 = vld [vmem:[#allocation3 + $0x110] sm:$0xff]
      %v5211 = vld [vmem:[#allocation3 + $0x118] sm:$0xff]
      %v5212 = vld [vmem:[#allocation3 + $0x120] sm:$0xff]
      %v5213 = vld [vmem:[#allocation3 + $0x128] sm:$0xff]
      %v5214 = vld [vmem:[#allocation3 + $0x130] sm:$0xff]
      %v5215 = vld [vmem:[#allocation3 + $0x138] sm:$0xff]
      %v5216 = vld [vmem:[#allocation3 + $0x140] sm:$0xff]
      %v5217 = vld [vmem:[#allocation2 + $0x14] sm:$0xe]
      %v5218 = vld [vmem:[#allocation2 + $0x18] sm:$0xf]
      %v5219 = vld [vmem:[#allocation2 + $0x1c] sm:$0xf]
      %v5220 = vld [vmem:[#allocation2 + $0x20] sm:$0xf]
      %v5221 = vld [vmem:[#allocation2 + $0x24] sm:$0xf]
      %v5222 = vld [vmem:[#allocation2 + $0x28] sm:$0xf]
      %v5223 = vld [vmem:[#allocation2 + $0x2c] sm:$0xf]
      %v5224 = vld [vmem:[#allocation2 + $0x30] sm:$0xf]
      %v5225 = vld [vmem:[#allocation2 + $0x34] sm:$0xf]
      %v5226 = vld [vmem:[#allocation2 + $0x38] sm:$0xf]
      %v5227 = vld [vmem:[#allocation2 + $0x3c] sm:$0xf]
      %v5228 = vld [vmem:[#allocation2 + $0x40] sm:$0xf]
      %v5229 = vld [vmem:[#allocation2 + $0x44] sm:$0xf]
      %v5230 = vld [vmem:[#allocation2 + $0x48] sm:$0xf]
      %v5231 = vld [vmem:[#allocation2 + $0x4c] sm:$0xf]
      %v5232 = vld [vmem:[#allocation2 + $0x50] sm:$0xf]
      %v5233 = vld [vmem:[#allocation2 + $0x54] sm:$0xf]
      %v5234 = vld [vmem:[#allocation2 + $0x58] sm:$0xf]
      %v5235 = vld [vmem:[#allocation2 + $0x5c] sm:$0xf]
      %v5236 = vld [vmem:[#allocation2 + $0x60] sm:$0xf]
      %v5237 = vld [vmem:[#allocation2 + $0x64] sm:$0xf]
      %v5238 = vld [vmem:[#allocation2 + $0x68] sm:$0xf]
      %v5239 = vld [vmem:[#allocation2 + $0x6c] sm:$0xf]
      %v5240 = vld [vmem:[#allocation2 + $0x70] sm:$0xf]
      %v5241 = vld [vmem:[#allocation2 + $0x74] sm:$0xf]
      %v5242 = vld [vmem:[#allocation2 + $0x78] sm:$0xf]
      %v5243 = vld [vmem:[#allocation2 + $0x7c] sm:$0xf]
      %v5244 = vld [vmem:[#allocation2 + $0x80] sm:$0xf]
      %v5245 = vld [vmem:[#allocation2 + $0x84] sm:$0xf]
      %v5246 = vld [vmem:[#allocation2 + $0x88] sm:$0xf]
      %v5247 = vld [vmem:[#allocation2 + $0x8c] sm:$0xf]
      %v5248 = vld [vmem:[#allocation2 + $0x90] sm:$0xf]
      %v5249 = vld [vmem:[#allocation2 + $0x94] sm:$0xf]
      %v5250 = vld [vmem:[#allocation2 + $0x98] sm:$0xf]
      %v5251 = vld [vmem:[#allocation2 + $0x9c] sm:$0xf]
      %v5252 = vld [vmem:[#allocation2 + $0xa0] sm:$0xf]
      %v5253 = vld [vmem:[#allocation2 + $0xa4] sm:$0xf]
      %v5254 = vld [vmem:[#allocation2 + $0xa8] sm:$0xf]
      %v5255 = vld [vmem:[#allocation2 + $0xac] sm:$0xf]
      %v5256 = vld [vmem:[#allocation2 + $0xb0] sm:$0xf]
      %v5257 = vld [vmem:[#allocation2 + $0xb4] sm:$0xf]
      %v5258 = vld [vmem:[#allocation2 + $0xb8] sm:$0x1]
      %s5259 = scalar_lea.vmem %s3, 448
      %v5260 = vld [vmem:[%s5259] sm:$0xf]
      %v5261 = vld [vmem:[%s5259 + $0x4] sm:$0xf]
      %v5262 = vld [vmem:[%s5259 + $0x8] sm:$0xf]
      %v5263 = vld [vmem:[%s5259 + $0xc] sm:$0xf]
      %v5264 = vld [vmem:[%s5259 + $0x10] sm:$0xf]
      %v5265 = vld [vmem:[%s5259 + $0x14] sm:$0xf]
      %v5266 = vld [vmem:[%s5259 + $0x18] sm:$0xf]
      %v5267 = vld [vmem:[%s5259 + $0x1c] sm:$0xf]
      %v5268 = vld [vmem:[%s5259 + $0x20] sm:$0xf]
      %v5269 = vld [vmem:[%s5259 + $0x24] sm:$0xf]
      %v5270 = vld [vmem:[%s5259 + $0x28] sm:$0xf]
      %v5271 = vld [vmem:[%s5259 + $0x2c] sm:$0xf]
      %v5272 = vld [vmem:[%s5259 + $0x30] sm:$0xf]
      %v5273 = vld [vmem:[%s5259 + $0x34] sm:$0xf]
      %v5274 = vld [vmem:[%s5259 + $0x38] sm:$0xf]
      %v5275 = vld [vmem:[%s5259 + $0x3c] sm:$0xf]
      %v5318 = vunpack.c.l.b16 %v5217
      %v5319 = vunpack.c.l.b16 %v5218
      %v5320 = vunpack.c.l.b16 %v5219
      %v5321 = vunpack.c.l.b16 %v5220
      %v5322 = vunpack.c.l.b16 %v5221
      %v5323 = vunpack.c.l.b16 %v5222
      %v5324 = vunpack.c.l.b16 %v5223
      %v5325 = vunpack.c.l.b16 %v5224
      %v5326 = vunpack.c.l.b16 %v5225
      %v5327 = vunpack.c.l.b16 %v5226
      %v5328 = vunpack.c.l.b16 %v5227
      %v5329 = vunpack.c.l.b16 %v5228
      %v5330 = vunpack.c.l.b16 %v5229
      %v5331 = vunpack.c.l.b16 %v5230
      %v5332 = vunpack.c.l.b16 %v5231
      %v5333 = vunpack.c.l.b16 %v5232
      %v5334 = vunpack.c.l.b16 %v5233
      %v5335 = vunpack.c.l.b16 %v5234
      %v5336 = vunpack.c.l.b16 %v5235
      %v5337 = vunpack.c.l.b16 %v5236
      %v5338 = vunpack.c.l.b16 %v5237
      %v5339 = vunpack.c.l.b16 %v5238
      %v5340 = vunpack.c.l.b16 %v5239
      %v5341 = vunpack.c.l.b16 %v5240
      %v5342 = vunpack.c.l.b16 %v5241
      %v5343 = vunpack.c.l.b16 %v5242
      %v5344 = vunpack.c.l.b16 %v5243
      %v5345 = vunpack.c.l.b16 %v5244
      %v5346 = vunpack.c.l.b16 %v5245
      %v5347 = vunpack.c.l.b16 %v5246
      %v5348 = vunpack.c.l.b16 %v5247
      %v5349 = vunpack.c.l.b16 %v5248
      %v5350 = vunpack.c.l.b16 %v5249
      %v5351 = vunpack.c.l.b16 %v5250
      %v5352 = vunpack.c.l.b16 %v5251
      %v5353 = vunpack.c.l.b16 %v5252
      %v5354 = vunpack.c.l.b16 %v5253
      %v5355 = vunpack.c.l.b16 %v5254
      %v5356 = vunpack.c.l.b16 %v5255
      %v5357 = vunpack.c.l.b16 %v5256
      %v5358 = vunpack.c.l.b16 %v5257
      %v5359 = vunpack.c.l.b16 %v5258
      %v5360 = vpack.c.b16 %v5319, %v5318
      %v5361 = vpack.c.b16 %v5321, %v5320
      %v5362 = vpack.c.b16 %v5323, %v5322
      %v5363 = vpack.c.b16 %v5325, %v5324
      %v5364 = vpack.c.b16 %v5327, %v5326
      %v5365 = vpack.c.b16 %v5329, %v5328
      %v5366 = vpack.c.b16 %v5331, %v5330
      %v5367 = vpack.c.b16 %v5333, %v5332
      %v5368 = vpack.c.b16 %v5335, %v5334
      %v5369 = vpack.c.b16 %v5337, %v5336
      %v5370 = vpack.c.b16 %v5339, %v5338
      %v5371 = vpack.c.b16 %v5341, %v5340
      %v5372 = vpack.c.b16 %v5343, %v5342
      %v5373 = vpack.c.b16 %v5345, %v5344
      %v5374 = vpack.c.b16 %v5347, %v5346
      %v5375 = vpack.c.b16 %v5349, %v5348
      %v5376 = vpack.c.b16 %v5351, %v5350
      %v5377 = vpack.c.b16 %v5353, %v5352
      %v5378 = vpack.c.b16 %v5355, %v5354
      %v5379 = vpack.c.b16 %v5357, %v5356
      %v5380 = vpack.c.b16 %v5359, %v5358
      %vm5381 = vcmask 1046528
      %v5382 = vrot.slane %v5360, 1
      %v5383 = vrot.slane %v5361, 1
      %v5384 = vsel %vm5381, %v5382, %v5383
      %v5385 = vrot.slane %v5362, 1
      %v5386 = vsel %vm5381, %v5383, %v5385
      %v5387 = vrot.slane %v5363, 1
      %v5388 = vsel %vm5381, %v5385, %v5387
      %v5389 = vrot.slane %v5364, 1
      %v5390 = vsel %vm5381, %v5387, %v5389
      %v5391 = vrot.slane %v5365, 1
      %v5392 = vsel %vm5381, %v5389, %v5391
      %v5393 = vrot.slane %v5366, 1
      %v5394 = vsel %vm5381, %v5391, %v5393
      %v5395 = vrot.slane %v5367, 1
      %v5396 = vsel %vm5381, %v5393, %v5395
      %v5397 = vrot.slane %v5368, 1
      %v5398 = vsel %vm5381, %v5395, %v5397
      %v5399 = vrot.slane %v5369, 1
      %v5400 = vsel %vm5381, %v5397, %v5399
      %v5401 = vrot.slane %v5370, 1
      %v5402 = vsel %vm5381, %v5399, %v5401
      %v5403 = vrot.slane %v5371, 1
      %v5404 = vsel %vm5381, %v5401, %v5403
      %v5405 = vrot.slane %v5372, 1
      %v5406 = vsel %vm5381, %v5403, %v5405
      %v5407 = vrot.slane %v5373, 1
      %v5408 = vsel %vm5381, %v5405, %v5407
      %v5409 = vrot.slane %v5374, 1
      %v5410 = vsel %vm5381, %v5407, %v5409
      %v5411 = vrot.slane %v5375, 1
      %v5412 = vsel %vm5381, %v5409, %v5411
      %v5413 = vrot.slane %v5376, 1
      %v5414 = vsel %vm5381, %v5411, %v5413
      %v5415 = vrot.slane %v5377, 1
      %v5416 = vsel %vm5381, %v5413, %v5415
      %v5417 = vrot.slane %v5378, 1
      %v5418 = vsel %vm5381, %v5415, %v5417
      %v5419 = vrot.slane %v5379, 1
      %v5420 = vsel %vm5381, %v5417, %v5419
      %v5421 = vrot.slane %v5380, 1
      %v5422 = vsel %vm5381, %v5419, %v5421
      %v5460 = vunpack.c.l.b16 %v5260
      %v5461 = vunpack.c.l.b16 %v5261
      %v5462 = vunpack.c.l.b16 %v5262
      %v5463 = vunpack.c.l.b16 %v5263
      %v5464 = vunpack.c.l.b16 %v5264
      %v5465 = vunpack.c.l.b16 %v5265
      %v5466 = vunpack.c.l.b16 %v5266
      %v5467 = vunpack.c.l.b16 %v5267
      %v5468 = vunpack.c.l.b16 %v5268
      %v5469 = vunpack.c.l.b16 %v5269
      %v5470 = vunpack.c.l.b16 %v5270
      %v5471 = vunpack.c.l.b16 %v5271
      %v5472 = vunpack.c.l.b16 %v5272
      %v5473 = vunpack.c.l.b16 %v5273
      %v5474 = vunpack.c.l.b16 %v5274
      %v5475 = vunpack.c.l.b16 %v5275
      %v5476 = vpack.c.b16 %v5461, %v5460
      %v5477 = vpack.c.b16 %v5463, %v5462
      %v5478 = vpack.c.b16 %v5465, %v5464
      %v5479 = vpack.c.b16 %v5467, %v5466
      %v5480 = vpack.c.b16 %v5469, %v5468
      %v5481 = vpack.c.b16 %v5471, %v5470
      %v5482 = vpack.c.b16 %v5473, %v5472
      %v5483 = vpack.c.b16 %v5475, %v5474
      %5492 = vmatpush.bf16.msra.mxu0 %v5483
      %5493 = vmatpush.bf16.msra.mxu0 %v5482
      %5494 = vmatpush.bf16.msra.mxu0 %v5481
      %5495 = vmatpush.bf16.msra.mxu0 %v5480
      %5496 = vmatpush.bf16.msra.mxu0 %v5479
      %5497 = vmatpush.bf16.msra.mxu0 %v5478
      %5498 = vmatpush.bf16.msra.mxu0 %v5477
      %5499 = vmatpush.bf16.msra.mxu0 %v5476
      %5500 = vmatmul.bf16.gmra.mxu0 %v5384
      %v5501 = vpop.f32.mrf.mxu0
      %v5502 = vadd.f32 0.0, %v5501
      %v5503 = vpop.f32.mrf.mxu0
      %v5504 = vadd.f32 0.0, %v5503
      %5505 = vmatmul.bf16.gmra.mxu0 %v5386
      %v5506 = vpop.f32.mrf.mxu0
      %v5507 = vadd.f32 0.0, %v5506
      %v5508 = vpop.f32.mrf.mxu0
      %v5509 = vadd.f32 0.0, %v5508
      %5510 = vmatmul.bf16.gmra.mxu0 %v5388
      %v5511 = vpop.f32.mrf.mxu0
      %v5512 = vadd.f32 0.0, %v5511
      %v5513 = vpop.f32.mrf.mxu0
      %v5514 = vadd.f32 0.0, %v5513
      %5515 = vmatmul.bf16.gmra.mxu0 %v5390
      %v5516 = vpop.f32.mrf.mxu0
      %v5517 = vadd.f32 0.0, %v5516
      %v5518 = vpop.f32.mrf.mxu0
      %v5519 = vadd.f32 0.0, %v5518
      %5520 = vmatmul.bf16.gmra.mxu0 %v5392
      %v5521 = vpop.f32.mrf.mxu0
      %v5522 = vadd.f32 0.0, %v5521
      %v5523 = vpop.f32.mrf.mxu0
      %v5524 = vadd.f32 0.0, %v5523
      %5525 = vmatmul.bf16.gmra.mxu0 %v5394
      %v5526 = vpop.f32.mrf.mxu0
      %v5527 = vadd.f32 0.0, %v5526
      %v5528 = vpop.f32.mrf.mxu0
      %v5529 = vadd.f32 0.0, %v5528
      %5530 = vmatmul.bf16.gmra.mxu0 %v5396
      %v5531 = vpop.f32.mrf.mxu0
      %v5532 = vadd.f32 0.0, %v5531
      %v5533 = vpop.f32.mrf.mxu0
      %v5534 = vadd.f32 0.0, %v5533
      %5535 = vmatmul.bf16.gmra.mxu0 %v5398
      %v5536 = vpop.f32.mrf.mxu0
      %v5537 = vadd.f32 0.0, %v5536
      %v5538 = vpop.f32.mrf.mxu0
      %v5539 = vadd.f32 0.0, %v5538
      %5540 = vmatmul.bf16.gmra.mxu0 %v5400
      %v5541 = vpop.f32.mrf.mxu0
      %v5542 = vadd.f32 0.0, %v5541
      %v5543 = vpop.f32.mrf.mxu0
      %v5544 = vadd.f32 0.0, %v5543
      %5545 = vmatmul.bf16.gmra.mxu0 %v5402
      %v5546 = vpop.f32.mrf.mxu0
      %v5547 = vadd.f32 0.0, %v5546
      %v5548 = vpop.f32.mrf.mxu0
      %v5549 = vadd.f32 0.0, %v5548
      %5550 = vmatmul.bf16.gmra.mxu0 %v5404
      %v5551 = vpop.f32.mrf.mxu0
      %v5552 = vadd.f32 0.0, %v5551
      %v5553 = vpop.f32.mrf.mxu0
      %v5554 = vadd.f32 0.0, %v5553
      %5555 = vmatmul.bf16.gmra.mxu0 %v5406
      %v5556 = vpop.f32.mrf.mxu0
      %v5557 = vadd.f32 0.0, %v5556
      %v5558 = vpop.f32.mrf.mxu0
      %v5559 = vadd.f32 0.0, %v5558
      %5560 = vmatmul.bf16.gmra.mxu0 %v5408
      %v5561 = vpop.f32.mrf.mxu0
      %v5562 = vadd.f32 0.0, %v5561
      %v5563 = vpop.f32.mrf.mxu0
      %v5564 = vadd.f32 0.0, %v5563
      %5565 = vmatmul.bf16.gmra.mxu0 %v5410
      %v5566 = vpop.f32.mrf.mxu0
      %v5567 = vadd.f32 0.0, %v5566
      %v5568 = vpop.f32.mrf.mxu0
      %v5569 = vadd.f32 0.0, %v5568
      %5570 = vmatmul.bf16.gmra.mxu0 %v5412
      %v5571 = vpop.f32.mrf.mxu0
      %v5572 = vadd.f32 0.0, %v5571
      %v5573 = vpop.f32.mrf.mxu0
      %v5574 = vadd.f32 0.0, %v5573
      %5575 = vmatmul.bf16.gmra.mxu0 %v5414
      %v5576 = vpop.f32.mrf.mxu0
      %v5577 = vadd.f32 0.0, %v5576
      %v5578 = vpop.f32.mrf.mxu0
      %v5579 = vadd.f32 0.0, %v5578
      %5580 = vmatmul.bf16.gmra.mxu0 %v5416
      %v5581 = vpop.f32.mrf.mxu0
      %v5582 = vadd.f32 0.0, %v5581
      %v5583 = vpop.f32.mrf.mxu0
      %v5584 = vadd.f32 0.0, %v5583
      %5585 = vmatmul.bf16.gmra.mxu0 %v5418
      %v5586 = vpop.f32.mrf.mxu0
      %v5587 = vadd.f32 0.0, %v5586
      %v5588 = vpop.f32.mrf.mxu0
      %v5589 = vadd.f32 0.0, %v5588
      %5590 = vmatmul.bf16.gmra.mxu0 %v5420
      %v5591 = vpop.f32.mrf.mxu0
      %v5592 = vadd.f32 0.0, %v5591
      %v5593 = vpop.f32.mrf.mxu0
      %v5594 = vadd.f32 0.0, %v5593
      %5595 = vmatmul.bf16.gmra.mxu0 %v5422
      %v5596 = vpop.f32.mrf.mxu0
      %v5597 = vadd.f32 0.0, %v5596
      %v5598 = vpop.f32.mrf.mxu0
      %v5599 = vadd.f32 0.0, %v5598
      %5600 = vmatmul.bf16.gmra.mxu0 %v5421
      %v5601 = vpop.f32.mrf.mxu0
      %v5602 = vadd.f32 0.0, %v5601
      %v5603 = vpop.f32.mrf.mxu0
      %5604 = vdwg.mxu0
      %v5605 = vadd.f32 %v5176, %v5502
      %v5606 = vadd.f32 %v5177, %v5504
      %v5607 = vadd.f32 %v5178, %v5507
      %v5608 = vadd.f32 %v5179, %v5509
      %v5609 = vadd.f32 %v5180, %v5512
      %v5610 = vadd.f32 %v5181, %v5514
      %v5611 = vadd.f32 %v5182, %v5517
      %v5612 = vadd.f32 %v5183, %v5519
      %v5613 = vadd.f32 %v5184, %v5522
      %v5614 = vadd.f32 %v5185, %v5524
      %v5615 = vadd.f32 %v5186, %v5527
      %v5616 = vadd.f32 %v5187, %v5529
      %v5617 = vadd.f32 %v5188, %v5532
      %v5618 = vadd.f32 %v5189, %v5534
      %v5619 = vadd.f32 %v5190, %v5537
      %v5620 = vadd.f32 %v5191, %v5539
      %v5621 = vadd.f32 %v5192, %v5542
      %v5622 = vadd.f32 %v5193, %v5544
      %v5623 = vadd.f32 %v5194, %v5547
      %v5624 = vadd.f32 %v5195, %v5549
      %v5625 = vadd.f32 %v5196, %v5552
      %v5626 = vadd.f32 %v5197, %v5554
      %v5627 = vadd.f32 %v5198, %v5557
      %v5628 = vadd.f32 %v5199, %v5559
      %v5629 = vadd.f32 %v5200, %v5562
      %v5630 = vadd.f32 %v5201, %v5564
      %v5631 = vadd.f32 %v5202, %v5567
      %v5632 = vadd.f32 %v5203, %v5569
      %v5633 = vadd.f32 %v5204, %v5572
      %v5634 = vadd.f32 %v5205, %v5574
      %v5635 = vadd.f32 %v5206, %v5577
      %v5636 = vadd.f32 %v5207, %v5579
      %v5637 = vadd.f32 %v5208, %v5582
      %v5638 = vadd.f32 %v5209, %v5584
      %v5639 = vadd.f32 %v5210, %v5587
      %v5640 = vadd.f32 %v5211, %v5589
      %v5641 = vadd.f32 %v5212, %v5592
      %v5642 = vadd.f32 %v5213, %v5594
      %v5643 = vadd.f32 %v5214, %v5597
      %v5644 = vadd.f32 %v5215, %v5599
      %v5645 = vadd.f32 %v5216, %v5602
      %5646 = vst [vmem:[#allocation3] sm:$0xff] %v5605
      %5647 = vst [vmem:[#allocation3 + $0x8] sm:$0xff] %v5606
      %5648 = vst [vmem:[#allocation3 + $0x10] sm:$0xff] %v5607
      %5649 = vst [vmem:[#allocation3 + $0x18] sm:$0xff] %v5608
      %5650 = vst [vmem:[#allocation3 + $0x20] sm:$0xff] %v5609
      %5651 = vst [vmem:[#allocation3 + $0x28] sm:$0xff] %v5610
      %5652 = vst [vmem:[#allocation3 + $0x30] sm:$0xff] %v5611
      %5653 = vst [vmem:[#allocation3 + $0x38] sm:$0xff] %v5612
      %5654 = vst [vmem:[#allocation3 + $0x40] sm:$0xff] %v5613
      %5655 = vst [vmem:[#allocation3 + $0x48] sm:$0xff] %v5614
      %5656 = vst [vmem:[#allocation3 + $0x50] sm:$0xff] %v5615
      %5657 = vst [vmem:[#allocation3 + $0x58] sm:$0xff] %v5616
      %5658 = vst [vmem:[#allocation3 + $0x60] sm:$0xff] %v5617
      %5659 = vst [vmem:[#allocation3 + $0x68] sm:$0xff] %v5618
      %5660 = vst [vmem:[#allocation3 + $0x70] sm:$0xff] %v5619
      %5661 = vst [vmem:[#allocation3 + $0x78] sm:$0xff] %v5620
      %5662 = vst [vmem:[#allocation3 + $0x80] sm:$0xff] %v5621
      %5663 = vst [vmem:[#allocation3 + $0x88] sm:$0xff] %v5622
      %5664 = vst [vmem:[#allocation3 + $0x90] sm:$0xff] %v5623
      %5665 = vst [vmem:[#allocation3 + $0x98] sm:$0xff] %v5624
      %5666 = vst [vmem:[#allocation3 + $0xa0] sm:$0xff] %v5625
      %5667 = vst [vmem:[#allocation3 + $0xa8] sm:$0xff] %v5626
      %5668 = vst [vmem:[#allocation3 + $0xb0] sm:$0xff] %v5627
      %5669 = vst [vmem:[#allocation3 + $0xb8] sm:$0xff] %v5628
      %5670 = vst [vmem:[#allocation3 + $0xc0] sm:$0xff] %v5629
      %5671 = vst [vmem:[#allocation3 + $0xc8] sm:$0xff] %v5630
      %5672 = vst [vmem:[#allocation3 + $0xd0] sm:$0xff] %v5631
      %5673 = vst [vmem:[#allocation3 + $0xd8] sm:$0xff] %v5632
      %5674 = vst [vmem:[#allocation3 + $0xe0] sm:$0xff] %v5633
      %5675 = vst [vmem:[#allocation3 + $0xe8] sm:$0xff] %v5634
      %5676 = vst [vmem:[#allocation3 + $0xf0] sm:$0xff] %v5635
      %5677 = vst [vmem:[#allocation3 + $0xf8] sm:$0xff] %v5636
      %5678 = vst [vmem:[#allocation3 + $0x100] sm:$0xff] %v5637
      %5679 = vst [vmem:[#allocation3 + $0x108] sm:$0xff] %v5638
      %5680 = vst [vmem:[#allocation3 + $0x110] sm:$0xff] %v5639
      %5681 = vst [vmem:[#allocation3 + $0x118] sm:$0xff] %v5640
      %5682 = vst [vmem:[#allocation3 + $0x120] sm:$0xff] %v5641
      %5683 = vst [vmem:[#allocation3 + $0x128] sm:$0xff] %v5642
      %5684 = vst [vmem:[#allocation3 + $0x130] sm:$0xff] %v5643
      %5685 = vst [vmem:[#allocation3 + $0x138] sm:$0xff] %v5644
      %5686 = vst [vmem:[#allocation3 + $0x140] sm:$0xff] %v5645
      %v5687 = vld [vmem:[#allocation3] sm:$0xff]
      %v5688 = vld [vmem:[#allocation3 + $0x8] sm:$0xff]
      %v5689 = vld [vmem:[#allocation3 + $0x10] sm:$0xff]
      %v5690 = vld [vmem:[#allocation3 + $0x18] sm:$0xff]
      %v5691 = vld [vmem:[#allocation3 + $0x20] sm:$0xff]
      %v5692 = vld [vmem:[#allocation3 + $0x28] sm:$0xff]
      %v5693 = vld [vmem:[#allocation3 + $0x30] sm:$0xff]
      %v5694 = vld [vmem:[#allocation3 + $0x38] sm:$0xff]
      %v5695 = vld [vmem:[#allocation3 + $0x40] sm:$0xff]
      %v5696 = vld [vmem:[#allocation3 + $0x48] sm:$0xff]
      %v5697 = vld [vmem:[#allocation3 + $0x50] sm:$0xff]
      %v5698 = vld [vmem:[#allocation3 + $0x58] sm:$0xff]
      %v5699 = vld [vmem:[#allocation3 + $0x60] sm:$0xff]
      %v5700 = vld [vmem:[#allocation3 + $0x68] sm:$0xff]
      %v5701 = vld [vmem:[#allocation3 + $0x70] sm:$0xff]
      %v5702 = vld [vmem:[#allocation3 + $0x78] sm:$0xff]
      %v5703 = vld [vmem:[#allocation3 + $0x80] sm:$0xff]
      %v5704 = vld [vmem:[#allocation3 + $0x88] sm:$0xff]
      %v5705 = vld [vmem:[#allocation3 + $0x90] sm:$0xff]
      %v5706 = vld [vmem:[#allocation3 + $0x98] sm:$0xff]
      %v5707 = vld [vmem:[#allocation3 + $0xa0] sm:$0xff]
      %v5708 = vld [vmem:[#allocation3 + $0xa8] sm:$0xff]
      %v5709 = vld [vmem:[#allocation3 + $0xb0] sm:$0xff]
      %v5710 = vld [vmem:[#allocation3 + $0xb8] sm:$0xff]
      %v5711 = vld [vmem:[#allocation3 + $0xc0] sm:$0xff]
      %v5712 = vld [vmem:[#allocation3 + $0xc8] sm:$0xff]
      %v5713 = vld [vmem:[#allocation3 + $0xd0] sm:$0xff]
      %v5714 = vld [vmem:[#allocation3 + $0xd8] sm:$0xff]
      %v5715 = vld [vmem:[#allocation3 + $0xe0] sm:$0xff]
      %v5716 = vld [vmem:[#allocation3 + $0xe8] sm:$0xff]
      %v5717 = vld [vmem:[#allocation3 + $0xf0] sm:$0xff]
      %v5718 = vld [vmem:[#allocation3 + $0xf8] sm:$0xff]
      %v5719 = vld [vmem:[#allocation3 + $0x100] sm:$0xff]
      %v5720 = vld [vmem:[#allocation3 + $0x108] sm:$0xff]
      %v5721 = vld [vmem:[#allocation3 + $0x110] sm:$0xff]
      %v5722 = vld [vmem:[#allocation3 + $0x118] sm:$0xff]
      %v5723 = vld [vmem:[#allocation3 + $0x120] sm:$0xff]
      %v5724 = vld [vmem:[#allocation3 + $0x128] sm:$0xff]
      %v5725 = vld [vmem:[#allocation3 + $0x130] sm:$0xff]
      %v5726 = vld [vmem:[#allocation3 + $0x138] sm:$0xff]
      %v5727 = vld [vmem:[#allocation3 + $0x140] sm:$0xff]
      %v5728 = vld [vmem:[#allocation2 + $0x14] sm:$0xe]
      %v5729 = vld [vmem:[#allocation2 + $0x18] sm:$0xf]
      %v5730 = vld [vmem:[#allocation2 + $0x1c] sm:$0xf]
      %v5731 = vld [vmem:[#allocation2 + $0x20] sm:$0xf]
      %v5732 = vld [vmem:[#allocation2 + $0x24] sm:$0xf]
      %v5733 = vld [vmem:[#allocation2 + $0x28] sm:$0xf]
      %v5734 = vld [vmem:[#allocation2 + $0x2c] sm:$0xf]
      %v5735 = vld [vmem:[#allocation2 + $0x30] sm:$0xf]
      %v5736 = vld [vmem:[#allocation2 + $0x34] sm:$0xf]
      %v5737 = vld [vmem:[#allocation2 + $0x38] sm:$0xf]
      %v5738 = vld [vmem:[#allocation2 + $0x3c] sm:$0xf]
      %v5739 = vld [vmem:[#allocation2 + $0x40] sm:$0xf]
      %v5740 = vld [vmem:[#allocation2 + $0x44] sm:$0xf]
      %v5741 = vld [vmem:[#allocation2 + $0x48] sm:$0xf]
      %v5742 = vld [vmem:[#allocation2 + $0x4c] sm:$0xf]
      %v5743 = vld [vmem:[#allocation2 + $0x50] sm:$0xf]
      %v5744 = vld [vmem:[#allocation2 + $0x54] sm:$0xf]
      %v5745 = vld [vmem:[#allocation2 + $0x58] sm:$0xf]
      %v5746 = vld [vmem:[#allocation2 + $0x5c] sm:$0xf]
      %v5747 = vld [vmem:[#allocation2 + $0x60] sm:$0xf]
      %v5748 = vld [vmem:[#allocation2 + $0x64] sm:$0xf]
      %v5749 = vld [vmem:[#allocation2 + $0x68] sm:$0xf]
      %v5750 = vld [vmem:[#allocation2 + $0x6c] sm:$0xf]
      %v5751 = vld [vmem:[#allocation2 + $0x70] sm:$0xf]
      %v5752 = vld [vmem:[#allocation2 + $0x74] sm:$0xf]
      %v5753 = vld [vmem:[#allocation2 + $0x78] sm:$0xf]
      %v5754 = vld [vmem:[#allocation2 + $0x7c] sm:$0xf]
      %v5755 = vld [vmem:[#allocation2 + $0x80] sm:$0xf]
      %v5756 = vld [vmem:[#allocation2 + $0x84] sm:$0xf]
      %v5757 = vld [vmem:[#allocation2 + $0x88] sm:$0xf]
      %v5758 = vld [vmem:[#allocation2 + $0x8c] sm:$0xf]
      %v5759 = vld [vmem:[#allocation2 + $0x90] sm:$0xf]
      %v5760 = vld [vmem:[#allocation2 + $0x94] sm:$0xf]
      %v5761 = vld [vmem:[#allocation2 + $0x98] sm:$0xf]
      %v5762 = vld [vmem:[#allocation2 + $0x9c] sm:$0xf]
      %v5763 = vld [vmem:[#allocation2 + $0xa0] sm:$0xf]
      %v5764 = vld [vmem:[#allocation2 + $0xa4] sm:$0xf]
      %v5765 = vld [vmem:[#allocation2 + $0xa8] sm:$0xf]
      %v5766 = vld [vmem:[#allocation2 + $0xac] sm:$0xf]
      %v5767 = vld [vmem:[#allocation2 + $0xb0] sm:$0xf]
      %v5768 = vld [vmem:[#allocation2 + $0xb4] sm:$0xf]
      %v5769 = vld [vmem:[#allocation2 + $0xb8] sm:$0x3]
      %s5770 = scalar_lea.vmem %s3, 512
      %v5771 = vld [vmem:[%s5770] sm:$0xf]
      %v5772 = vld [vmem:[%s5770 + $0x4] sm:$0xf]
      %v5773 = vld [vmem:[%s5770 + $0x8] sm:$0xf]
      %v5774 = vld [vmem:[%s5770 + $0xc] sm:$0xf]
      %v5775 = vld [vmem:[%s5770 + $0x10] sm:$0xf]
      %v5776 = vld [vmem:[%s5770 + $0x14] sm:$0xf]
      %v5777 = vld [vmem:[%s5770 + $0x18] sm:$0xf]
      %v5778 = vld [vmem:[%s5770 + $0x1c] sm:$0xf]
      %v5779 = vld [vmem:[%s5770 + $0x20] sm:$0xf]
      %v5780 = vld [vmem:[%s5770 + $0x24] sm:$0xf]
      %v5781 = vld [vmem:[%s5770 + $0x28] sm:$0xf]
      %v5782 = vld [vmem:[%s5770 + $0x2c] sm:$0xf]
      %v5783 = vld [vmem:[%s5770 + $0x30] sm:$0xf]
      %v5784 = vld [vmem:[%s5770 + $0x34] sm:$0xf]
      %v5785 = vld [vmem:[%s5770 + $0x38] sm:$0xf]
      %v5786 = vld [vmem:[%s5770 + $0x3c] sm:$0xf]
      %v5829 = vunpack.c.l.b16 %v5728
      %v5830 = vunpack.c.l.b16 %v5729
      %v5831 = vunpack.c.l.b16 %v5730
      %v5832 = vunpack.c.l.b16 %v5731
      %v5833 = vunpack.c.l.b16 %v5732
      %v5834 = vunpack.c.l.b16 %v5733
      %v5835 = vunpack.c.l.b16 %v5734
      %v5836 = vunpack.c.l.b16 %v5735
      %v5837 = vunpack.c.l.b16 %v5736
      %v5838 = vunpack.c.l.b16 %v5737
      %v5839 = vunpack.c.l.b16 %v5738
      %v5840 = vunpack.c.l.b16 %v5739
      %v5841 = vunpack.c.l.b16 %v5740
      %v5842 = vunpack.c.l.b16 %v5741
      %v5843 = vunpack.c.l.b16 %v5742
      %v5844 = vunpack.c.l.b16 %v5743
      %v5845 = vunpack.c.l.b16 %v5744
      %v5846 = vunpack.c.l.b16 %v5745
      %v5847 = vunpack.c.l.b16 %v5746
      %v5848 = vunpack.c.l.b16 %v5747
      %v5849 = vunpack.c.l.b16 %v5748
      %v5850 = vunpack.c.l.b16 %v5749
      %v5851 = vunpack.c.l.b16 %v5750
      %v5852 = vunpack.c.l.b16 %v5751
      %v5853 = vunpack.c.l.b16 %v5752
      %v5854 = vunpack.c.l.b16 %v5753
      %v5855 = vunpack.c.l.b16 %v5754
      %v5856 = vunpack.c.l.b16 %v5755
      %v5857 = vunpack.c.l.b16 %v5756
      %v5858 = vunpack.c.l.b16 %v5757
      %v5859 = vunpack.c.l.b16 %v5758
      %v5860 = vunpack.c.l.b16 %v5759
      %v5861 = vunpack.c.l.b16 %v5760
      %v5862 = vunpack.c.l.b16 %v5761
      %v5863 = vunpack.c.l.b16 %v5762
      %v5864 = vunpack.c.l.b16 %v5763
      %v5865 = vunpack.c.l.b16 %v5764
      %v5866 = vunpack.c.l.b16 %v5765
      %v5867 = vunpack.c.l.b16 %v5766
      %v5868 = vunpack.c.l.b16 %v5767
      %v5869 = vunpack.c.l.b16 %v5768
      %v5870 = vunpack.c.l.b16 %v5769
      %v5871 = vpack.c.b16 %v5830, %v5829
      %v5872 = vpack.c.b16 %v5832, %v5831
      %v5873 = vpack.c.b16 %v5834, %v5833
      %v5874 = vpack.c.b16 %v5836, %v5835
      %v5875 = vpack.c.b16 %v5838, %v5837
      %v5876 = vpack.c.b16 %v5840, %v5839
      %v5877 = vpack.c.b16 %v5842, %v5841
      %v5878 = vpack.c.b16 %v5844, %v5843
      %v5879 = vpack.c.b16 %v5846, %v5845
      %v5880 = vpack.c.b16 %v5848, %v5847
      %v5881 = vpack.c.b16 %v5850, %v5849
      %v5882 = vpack.c.b16 %v5852, %v5851
      %v5883 = vpack.c.b16 %v5854, %v5853
      %v5884 = vpack.c.b16 %v5856, %v5855
      %v5885 = vpack.c.b16 %v5858, %v5857
      %v5886 = vpack.c.b16 %v5860, %v5859
      %v5887 = vpack.c.b16 %v5862, %v5861
      %v5888 = vpack.c.b16 %v5864, %v5863
      %v5889 = vpack.c.b16 %v5866, %v5865
      %v5890 = vpack.c.b16 %v5868, %v5867
      %v5891 = vpack.c.b16 %v5870, %v5869
      %vm5892 = vsmask.f32 6400
      %v5894 = vshrl.u32 %v5871, 16
      %v5896 = vrot.slane %v5894, 1
      %v5897 = vshll.u32 %v5871, 16
      %v5899 = vrot.slane %v5897, 2
      %v5900 = vor.u32 %v5896, %v5899
      %v5902 = vshrl.u32 %v5872, 16
      %v5904 = vrot.slane %v5902, 1
      %v5905 = vshll.u32 %v5872, 16
      %v5907 = vrot.slane %v5905, 2
      %v5908 = vor.u32 %v5904, %v5907
      %v5909 = vsel %vm5892, %v5900, %v5908
      %v5911 = vshrl.u32 %v5873, 16
      %v5913 = vrot.slane %v5911, 1
      %v5914 = vshll.u32 %v5873, 16
      %v5916 = vrot.slane %v5914, 2
      %v5917 = vor.u32 %v5913, %v5916
      %v5918 = vsel %vm5892, %v5908, %v5917
      %v5920 = vshrl.u32 %v5874, 16
      %v5922 = vrot.slane %v5920, 1
      %v5923 = vshll.u32 %v5874, 16
      %v5925 = vrot.slane %v5923, 2
      %v5926 = vor.u32 %v5922, %v5925
      %v5927 = vsel %vm5892, %v5917, %v5926
      %v5929 = vshrl.u32 %v5875, 16
      %v5931 = vrot.slane %v5929, 1
      %v5932 = vshll.u32 %v5875, 16
      %v5934 = vrot.slane %v5932, 2
      %v5935 = vor.u32 %v5931, %v5934
      %v5936 = vsel %vm5892, %v5926, %v5935
      %v5938 = vshrl.u32 %v5876, 16
      %v5940 = vrot.slane %v5938, 1
      %v5941 = vshll.u32 %v5876, 16
      %v5943 = vrot.slane %v5941, 2
      %v5944 = vor.u32 %v5940, %v5943
      %v5945 = vsel %vm5892, %v5935, %v5944
      %v5947 = vshrl.u32 %v5877, 16
      %v5949 = vrot.slane %v5947, 1
      %v5950 = vshll.u32 %v5877, 16
      %v5952 = vrot.slane %v5950, 2
      %v5953 = vor.u32 %v5949, %v5952
      %v5954 = vsel %vm5892, %v5944, %v5953
      %v5956 = vshrl.u32 %v5878, 16
      %v5958 = vrot.slane %v5956, 1
      %v5959 = vshll.u32 %v5878, 16
      %v5961 = vrot.slane %v5959, 2
      %v5962 = vor.u32 %v5958, %v5961
      %v5963 = vsel %vm5892, %v5953, %v5962
      %v5965 = vshrl.u32 %v5879, 16
      %v5967 = vrot.slane %v5965, 1
      %v5968 = vshll.u32 %v5879, 16
      %v5970 = vrot.slane %v5968, 2
      %v5971 = vor.u32 %v5967, %v5970
      %v5972 = vsel %vm5892, %v5962, %v5971
      %v5974 = vshrl.u32 %v5880, 16
      %v5976 = vrot.slane %v5974, 1
      %v5977 = vshll.u32 %v5880, 16
      %v5979 = vrot.slane %v5977, 2
      %v5980 = vor.u32 %v5976, %v5979
      %v5981 = vsel %vm5892, %v5971, %v5980
      %v5983 = vshrl.u32 %v5881, 16
      %v5985 = vrot.slane %v5983, 1
      %v5986 = vshll.u32 %v5881, 16
      %v5988 = vrot.slane %v5986, 2
      %v5989 = vor.u32 %v5985, %v5988
      %v5990 = vsel %vm5892, %v5980, %v5989
      %v5992 = vshrl.u32 %v5882, 16
      %v5994 = vrot.slane %v5992, 1
      %v5995 = vshll.u32 %v5882, 16
      %v5997 = vrot.slane %v5995, 2
      %v5998 = vor.u32 %v5994, %v5997
      %v5999 = vsel %vm5892, %v5989, %v5998
      %v6001 = vshrl.u32 %v5883, 16
      %v6003 = vrot.slane %v6001, 1
      %v6004 = vshll.u32 %v5883, 16
      %v6006 = vrot.slane %v6004, 2
      %v6007 = vor.u32 %v6003, %v6006
      %v6008 = vsel %vm5892, %v5998, %v6007
      %v6010 = vshrl.u32 %v5884, 16
      %v6012 = vrot.slane %v6010, 1
      %v6013 = vshll.u32 %v5884, 16
      %v6015 = vrot.slane %v6013, 2
      %v6016 = vor.u32 %v6012, %v6015
      %v6017 = vsel %vm5892, %v6007, %v6016
      %v6019 = vshrl.u32 %v5885, 16
      %v6021 = vrot.slane %v6019, 1
      %v6022 = vshll.u32 %v5885, 16
      %v6024 = vrot.slane %v6022, 2
      %v6025 = vor.u32 %v6021, %v6024
      %v6026 = vsel %vm5892, %v6016, %v6025
      %v6028 = vshrl.u32 %v5886, 16
      %v6030 = vrot.slane %v6028, 1
      %v6031 = vshll.u32 %v5886, 16
      %v6033 = vrot.slane %v6031, 2
      %v6034 = vor.u32 %v6030, %v6033
      %v6035 = vsel %vm5892, %v6025, %v6034
      %v6037 = vshrl.u32 %v5887, 16
      %v6039 = vrot.slane %v6037, 1
      %v6040 = vshll.u32 %v5887, 16
      %v6042 = vrot.slane %v6040, 2
      %v6043 = vor.u32 %v6039, %v6042
      %v6044 = vsel %vm5892, %v6034, %v6043
      %v6046 = vshrl.u32 %v5888, 16
      %v6048 = vrot.slane %v6046, 1
      %v6049 = vshll.u32 %v5888, 16
      %v6051 = vrot.slane %v6049, 2
      %v6052 = vor.u32 %v6048, %v6051
      %v6053 = vsel %vm5892, %v6043, %v6052
      %v6055 = vshrl.u32 %v5889, 16
      %v6057 = vrot.slane %v6055, 1
      %v6058 = vshll.u32 %v5889, 16
      %v6060 = vrot.slane %v6058, 2
      %v6061 = vor.u32 %v6057, %v6060
      %v6062 = vsel %vm5892, %v6052, %v6061
      %v6064 = vshrl.u32 %v5890, 16
      %v6066 = vrot.slane %v6064, 1
      %v6067 = vshll.u32 %v5890, 16
      %v6069 = vrot.slane %v6067, 2
      %v6070 = vor.u32 %v6066, %v6069
      %v6071 = vsel %vm5892, %v6061, %v6070
      %v6073 = vshrl.u32 %v5891, 16
      %v6075 = vrot.slane %v6073, 1
      %v6076 = vshll.u32 %v5891, 16
      %v6078 = vrot.slane %v6076, 2
      %v6079 = vor.u32 %v6075, %v6078
      %v6080 = vsel %vm5892, %v6070, %v6079
      %v6118 = vunpack.c.l.b16 %v5771
      %v6119 = vunpack.c.l.b16 %v5772
      %v6120 = vunpack.c.l.b16 %v5773
      %v6121 = vunpack.c.l.b16 %v5774
      %v6122 = vunpack.c.l.b16 %v5775
      %v6123 = vunpack.c.l.b16 %v5776
      %v6124 = vunpack.c.l.b16 %v5777
      %v6125 = vunpack.c.l.b16 %v5778
      %v6126 = vunpack.c.l.b16 %v5779
      %v6127 = vunpack.c.l.b16 %v5780
      %v6128 = vunpack.c.l.b16 %v5781
      %v6129 = vunpack.c.l.b16 %v5782
      %v6130 = vunpack.c.l.b16 %v5783
      %v6131 = vunpack.c.l.b16 %v5784
      %v6132 = vunpack.c.l.b16 %v5785
      %v6133 = vunpack.c.l.b16 %v5786
      %v6134 = vpack.c.b16 %v6119, %v6118
      %v6135 = vpack.c.b16 %v6121, %v6120
      %v6136 = vpack.c.b16 %v6123, %v6122
      %v6137 = vpack.c.b16 %v6125, %v6124
      %v6138 = vpack.c.b16 %v6127, %v6126
      %v6139 = vpack.c.b16 %v6129, %v6128
      %v6140 = vpack.c.b16 %v6131, %v6130
      %v6141 = vpack.c.b16 %v6133, %v6132
      %6150 = vmatpush.bf16.msra.mxu0 %v6141
      %6151 = vmatpush.bf16.msra.mxu0 %v6140
      %6152 = vmatpush.bf16.msra.mxu0 %v6139
      %6153 = vmatpush.bf16.msra.mxu0 %v6138
      %6154 = vmatpush.bf16.msra.mxu0 %v6137
      %6155 = vmatpush.bf16.msra.mxu0 %v6136
      %6156 = vmatpush.bf16.msra.mxu0 %v6135
      %6157 = vmatpush.bf16.msra.mxu0 %v6134
      %6158 = vmatmul.bf16.gmra.mxu0 %v5909
      %v6159 = vpop.f32.mrf.mxu0
      %v6160 = vadd.f32 0.0, %v6159
      %v6161 = vpop.f32.mrf.mxu0
      %v6162 = vadd.f32 0.0, %v6161
      %6163 = vmatmul.bf16.gmra.mxu0 %v5918
      %v6164 = vpop.f32.mrf.mxu0
      %v6165 = vadd.f32 0.0, %v6164
      %v6166 = vpop.f32.mrf.mxu0
      %v6167 = vadd.f32 0.0, %v6166
      %6168 = vmatmul.bf16.gmra.mxu0 %v5927
      %v6169 = vpop.f32.mrf.mxu0
      %v6170 = vadd.f32 0.0, %v6169
      %v6171 = vpop.f32.mrf.mxu0
      %v6172 = vadd.f32 0.0, %v6171
      %6173 = vmatmul.bf16.gmra.mxu0 %v5936
      %v6174 = vpop.f32.mrf.mxu0
      %v6175 = vadd.f32 0.0, %v6174
      %v6176 = vpop.f32.mrf.mxu0
      %v6177 = vadd.f32 0.0, %v6176
      %6178 = vmatmul.bf16.gmra.mxu0 %v5945
      %v6179 = vpop.f32.mrf.mxu0
      %v6180 = vadd.f32 0.0, %v6179
      %v6181 = vpop.f32.mrf.mxu0
      %v6182 = vadd.f32 0.0, %v6181
      %6183 = vmatmul.bf16.gmra.mxu0 %v5954
      %v6184 = vpop.f32.mrf.mxu0
      %v6185 = vadd.f32 0.0, %v6184
      %v6186 = vpop.f32.mrf.mxu0
      %v6187 = vadd.f32 0.0, %v6186
      %6188 = vmatmul.bf16.gmra.mxu0 %v5963
      %v6189 = vpop.f32.mrf.mxu0
      %v6190 = vadd.f32 0.0, %v6189
      %v6191 = vpop.f32.mrf.mxu0
      %v6192 = vadd.f32 0.0, %v6191
      %6193 = vmatmul.bf16.gmra.mxu0 %v5972
      %v6194 = vpop.f32.mrf.mxu0
      %v6195 = vadd.f32 0.0, %v6194
      %v6196 = vpop.f32.mrf.mxu0
      %v6197 = vadd.f32 0.0, %v6196
      %6198 = vmatmul.bf16.gmra.mxu0 %v5981
      %v6199 = vpop.f32.mrf.mxu0
      %v6200 = vadd.f32 0.0, %v6199
      %v6201 = vpop.f32.mrf.mxu0
      %v6202 = vadd.f32 0.0, %v6201
      %6203 = vmatmul.bf16.gmra.mxu0 %v5990
      %v6204 = vpop.f32.mrf.mxu0
      %v6205 = vadd.f32 0.0, %v6204
      %v6206 = vpop.f32.mrf.mxu0
      %v6207 = vadd.f32 0.0, %v6206
      %6208 = vmatmul.bf16.gmra.mxu0 %v5999
      %v6209 = vpop.f32.mrf.mxu0
      %v6210 = vadd.f32 0.0, %v6209
      %v6211 = vpop.f32.mrf.mxu0
      %v6212 = vadd.f32 0.0, %v6211
      %6213 = vmatmul.bf16.gmra.mxu0 %v6008
      %v6214 = vpop.f32.mrf.mxu0
      %v6215 = vadd.f32 0.0, %v6214
      %v6216 = vpop.f32.mrf.mxu0
      %v6217 = vadd.f32 0.0, %v6216
      %6218 = vmatmul.bf16.gmra.mxu0 %v6017
      %v6219 = vpop.f32.mrf.mxu0
      %v6220 = vadd.f32 0.0, %v6219
      %v6221 = vpop.f32.mrf.mxu0
      %v6222 = vadd.f32 0.0, %v6221
      %6223 = vmatmul.bf16.gmra.mxu0 %v6026
      %v6224 = vpop.f32.mrf.mxu0
      %v6225 = vadd.f32 0.0, %v6224
      %v6226 = vpop.f32.mrf.mxu0
      %v6227 = vadd.f32 0.0, %v6226
      %6228 = vmatmul.bf16.gmra.mxu0 %v6035
      %v6229 = vpop.f32.mrf.mxu0
      %v6230 = vadd.f32 0.0, %v6229
      %v6231 = vpop.f32.mrf.mxu0
      %v6232 = vadd.f32 0.0, %v6231
      %6233 = vmatmul.bf16.gmra.mxu0 %v6044
      %v6234 = vpop.f32.mrf.mxu0
      %v6235 = vadd.f32 0.0, %v6234
      %v6236 = vpop.f32.mrf.mxu0
      %v6237 = vadd.f32 0.0, %v6236
      %6238 = vmatmul.bf16.gmra.mxu0 %v6053
      %v6239 = vpop.f32.mrf.mxu0
      %v6240 = vadd.f32 0.0, %v6239
      %v6241 = vpop.f32.mrf.mxu0
      %v6242 = vadd.f32 0.0, %v6241
      %6243 = vmatmul.bf16.gmra.mxu0 %v6062
      %v6244 = vpop.f32.mrf.mxu0
      %v6245 = vadd.f32 0.0, %v6244
      %v6246 = vpop.f32.mrf.mxu0
      %v6247 = vadd.f32 0.0, %v6246
      %6248 = vmatmul.bf16.gmra.mxu0 %v6071
      %v6249 = vpop.f32.mrf.mxu0
      %v6250 = vadd.f32 0.0, %v6249
      %v6251 = vpop.f32.mrf.mxu0
      %v6252 = vadd.f32 0.0, %v6251
      %6253 = vmatmul.bf16.gmra.mxu0 %v6080
      %v6254 = vpop.f32.mrf.mxu0
      %v6255 = vadd.f32 0.0, %v6254
      %v6256 = vpop.f32.mrf.mxu0
      %v6257 = vadd.f32 0.0, %v6256
      %6258 = vmatmul.bf16.gmra.mxu0 %v6079
      %v6259 = vpop.f32.mrf.mxu0
      %v6260 = vadd.f32 0.0, %v6259
      %v6261 = vpop.f32.mrf.mxu0
      %6262 = vdwg.mxu0
      %v6263 = vadd.f32 %v5687, %v6160
      %v6264 = vadd.f32 %v5688, %v6162
      %v6265 = vadd.f32 %v5689, %v6165
      %v6266 = vadd.f32 %v5690, %v6167
      %v6267 = vadd.f32 %v5691, %v6170
      %v6268 = vadd.f32 %v5692, %v6172
      %v6269 = vadd.f32 %v5693, %v6175
      %v6270 = vadd.f32 %v5694, %v6177
      %v6271 = vadd.f32 %v5695, %v6180
      %v6272 = vadd.f32 %v5696, %v6182
      %v6273 = vadd.f32 %v5697, %v6185
      %v6274 = vadd.f32 %v5698, %v6187
      %v6275 = vadd.f32 %v5699, %v6190
      %v6276 = vadd.f32 %v5700, %v6192
      %v6277 = vadd.f32 %v5701, %v6195
      %v6278 = vadd.f32 %v5702, %v6197
      %v6279 = vadd.f32 %v5703, %v6200
      %v6280 = vadd.f32 %v5704, %v6202
      %v6281 = vadd.f32 %v5705, %v6205
      %v6282 = vadd.f32 %v5706, %v6207
      %v6283 = vadd.f32 %v5707, %v6210
      %v6284 = vadd.f32 %v5708, %v6212
      %v6285 = vadd.f32 %v5709, %v6215
      %v6286 = vadd.f32 %v5710, %v6217
      %v6287 = vadd.f32 %v5711, %v6220
      %v6288 = vadd.f32 %v5712, %v6222
      %v6289 = vadd.f32 %v5713, %v6225
      %v6290 = vadd.f32 %v5714, %v6227
      %v6291 = vadd.f32 %v5715, %v6230
      %v6292 = vadd.f32 %v5716, %v6232
      %v6293 = vadd.f32 %v5717, %v6235
      %v6294 = vadd.f32 %v5718, %v6237
      %v6295 = vadd.f32 %v5719, %v6240
      %v6296 = vadd.f32 %v5720, %v6242
      %v6297 = vadd.f32 %v5721, %v6245
      %v6298 = vadd.f32 %v5722, %v6247
      %v6299 = vadd.f32 %v5723, %v6250
      %v6300 = vadd.f32 %v5724, %v6252
      %v6301 = vadd.f32 %v5725, %v6255
      %v6302 = vadd.f32 %v5726, %v6257
      %v6303 = vadd.f32 %v5727, %v6260
      %6304 = vst [vmem:[#allocation3] sm:$0xff] %v6263
      %6305 = vst [vmem:[#allocation3 + $0x8] sm:$0xff] %v6264
      %6306 = vst [vmem:[#allocation3 + $0x10] sm:$0xff] %v6265
      %6307 = vst [vmem:[#allocation3 + $0x18] sm:$0xff] %v6266
      %6308 = vst [vmem:[#allocation3 + $0x20] sm:$0xff] %v6267
      %6309 = vst [vmem:[#allocation3 + $0x28] sm:$0xff] %v6268
      %6310 = vst [vmem:[#allocation3 + $0x30] sm:$0xff] %v6269
      %6311 = vst [vmem:[#allocation3 + $0x38] sm:$0xff] %v6270
      %6312 = vst [vmem:[#allocation3 + $0x40] sm:$0xff] %v6271
      %6313 = vst [vmem:[#allocation3 + $0x48] sm:$0xff] %v6272
      %6314 = vst [vmem:[#allocation3 + $0x50] sm:$0xff] %v6273
      %6315 = vst [vmem:[#allocation3 + $0x58] sm:$0xff] %v6274
      %6316 = vst [vmem:[#allocation3 + $0x60] sm:$0xff] %v6275
      %6317 = vst [vmem:[#allocation3 + $0x68] sm:$0xff] %v6276
      %6318 = vst [vmem:[#allocation3 + $0x70] sm:$0xff] %v6277
      %6319 = vst [vmem:[#allocation3 + $0x78] sm:$0xff] %v6278
      %6320 = vst [vmem:[#allocation3 + $0x80] sm:$0xff] %v6279
      %6321 = vst [vmem:[#allocation3 + $0x88] sm:$0xff] %v6280
      %6322 = vst [vmem:[#allocation3 + $0x90] sm:$0xff] %v6281
      %6323 = vst [vmem:[#allocation3 + $0x98] sm:$0xff] %v6282
      %6324 = vst [vmem:[#allocation3 + $0xa0] sm:$0xff] %v6283
      %6325 = vst [vmem:[#allocation3 + $0xa8] sm:$0xff] %v6284
      %6326 = vst [vmem:[#allocation3 + $0xb0] sm:$0xff] %v6285
      %6327 = vst [vmem:[#allocation3 + $0xb8] sm:$0xff] %v6286
      %6328 = vst [vmem:[#allocation3 + $0xc0] sm:$0xff] %v6287
      %6329 = vst [vmem:[#allocation3 + $0xc8] sm:$0xff] %v6288
      %6330 = vst [vmem:[#allocation3 + $0xd0] sm:$0xff] %v6289
      %6331 = vst [vmem:[#allocation3 + $0xd8] sm:$0xff] %v6290
      %6332 = vst [vmem:[#allocation3 + $0xe0] sm:$0xff] %v6291
      %6333 = vst [vmem:[#allocation3 + $0xe8] sm:$0xff] %v6292
      %6334 = vst [vmem:[#allocation3 + $0xf0] sm:$0xff] %v6293
      %6335 = vst [vmem:[#allocation3 + $0xf8] sm:$0xff] %v6294
      %6336 = vst [vmem:[#allocation3 + $0x100] sm:$0xff] %v6295
      %6337 = vst [vmem:[#allocation3 + $0x108] sm:$0xff] %v6296
      %6338 = vst [vmem:[#allocation3 + $0x110] sm:$0xff] %v6297
      %6339 = vst [vmem:[#allocation3 + $0x118] sm:$0xff] %v6298
      %6340 = vst [vmem:[#allocation3 + $0x120] sm:$0xff] %v6299
      %6341 = vst [vmem:[#allocation3 + $0x128] sm:$0xff] %v6300
      %6342 = vst [vmem:[#allocation3 + $0x130] sm:$0xff] %v6301
      %6343 = vst [vmem:[#allocation3 + $0x138] sm:$0xff] %v6302
      %6344 = vst [vmem:[#allocation3 + $0x140] sm:$0xff] %v6303
      %v6345 = vld [vmem:[#allocation3] sm:$0xff]
      %v6346 = vld [vmem:[#allocation3 + $0x8] sm:$0xff]
      %v6347 = vld [vmem:[#allocation3 + $0x10] sm:$0xff]
      %v6348 = vld [vmem:[#allocation3 + $0x18] sm:$0xff]
      %v6349 = vld [vmem:[#allocation3 + $0x20] sm:$0xff]
      %v6350 = vld [vmem:[#allocation3 + $0x28] sm:$0xff]
      %v6351 = vld [vmem:[#allocation3 + $0x30] sm:$0xff]
      %v6352 = vld [vmem:[#allocation3 + $0x38] sm:$0xff]
      %v6353 = vld [vmem:[#allocation3 + $0x40] sm:$0xff]
      %v6354 = vld [vmem:[#allocation3 + $0x48] sm:$0xff]
      %v6355 = vld [vmem:[#allocation3 + $0x50] sm:$0xff]
      %v6356 = vld [vmem:[#allocation3 + $0x58] sm:$0xff]
      %v6357 = vld [vmem:[#allocation3 + $0x60] sm:$0xff]
      %v6358 = vld [vmem:[#allocation3 + $0x68] sm:$0xff]
      %v6359 = vld [vmem:[#allocation3 + $0x70] sm:$0xff]
      %v6360 = vld [vmem:[#allocation3 + $0x78] sm:$0xff]
      %v6361 = vld [vmem:[#allocation3 + $0x80] sm:$0xff]
      %v6362 = vld [vmem:[#allocation3 + $0x88] sm:$0xff]
      %v6363 = vld [vmem:[#allocation3 + $0x90] sm:$0xff]
      %v6364 = vld [vmem:[#allocation3 + $0x98] sm:$0xff]
      %v6365 = vld [vmem:[#allocation3 + $0xa0] sm:$0xff]
      %v6366 = vld [vmem:[#allocation3 + $0xa8] sm:$0xff]
      %v6367 = vld [vmem:[#allocation3 + $0xb0] sm:$0xff]
      %v6368 = vld [vmem:[#allocation3 + $0xb8] sm:$0xff]
      %v6369 = vld [vmem:[#allocation3 + $0xc0] sm:$0xff]
      %v6370 = vld [vmem:[#allocation3 + $0xc8] sm:$0xff]
      %v6371 = vld [vmem:[#allocation3 + $0xd0] sm:$0xff]
      %v6372 = vld [vmem:[#allocation3 + $0xd8] sm:$0xff]
      %v6373 = vld [vmem:[#allocation3 + $0xe0] sm:$0xff]
      %v6374 = vld [vmem:[#allocation3 + $0xe8] sm:$0xff]
      %v6375 = vld [vmem:[#allocation3 + $0xf0] sm:$0xff]
      %v6376 = vld [vmem:[#allocation3 + $0xf8] sm:$0xff]
      %v6377 = vld [vmem:[#allocation3 + $0x100] sm:$0xff]
      %v6378 = vld [vmem:[#allocation3 + $0x108] sm:$0xff]
      %v6379 = vld [vmem:[#allocation3 + $0x110] sm:$0xff]
      %v6380 = vld [vmem:[#allocation3 + $0x118] sm:$0xff]
      %v6381 = vld [vmem:[#allocation3 + $0x120] sm:$0xff]
      %v6382 = vld [vmem:[#allocation3 + $0x128] sm:$0xff]
      %v6383 = vld [vmem:[#allocation3 + $0x130] sm:$0xff]
      %v6384 = vld [vmem:[#allocation3 + $0x138] sm:$0xff]
      %v6385 = vld [vmem:[#allocation3 + $0x140] sm:$0xff]
      %v6386 = vpack.c.bf16 %v6345, %v6345
      %v6387 = vpack.c.bf16 %v6346, %v6346
      %v6388 = vpack.c.bf16 %v6347, %v6347
      %v6389 = vpack.c.bf16 %v6348, %v6348
      %v6390 = vpack.c.bf16 %v6349, %v6349
      %v6391 = vpack.c.bf16 %v6350, %v6350
      %v6392 = vpack.c.bf16 %v6351, %v6351
      %v6393 = vpack.c.bf16 %v6352, %v6352
      %v6394 = vpack.c.bf16 %v6353, %v6353
      %v6395 = vpack.c.bf16 %v6354, %v6354
      %v6396 = vpack.c.bf16 %v6355, %v6355
      %v6397 = vpack.c.bf16 %v6356, %v6356
      %v6398 = vpack.c.bf16 %v6357, %v6357
      %v6399 = vpack.c.bf16 %v6358, %v6358
      %v6400 = vpack.c.bf16 %v6359, %v6359
      %v6401 = vpack.c.bf16 %v6360, %v6360
      %v6402 = vpack.c.bf16 %v6361, %v6361
      %v6403 = vpack.c.bf16 %v6362, %v6362
      %v6404 = vpack.c.bf16 %v6363, %v6363
      %v6405 = vpack.c.bf16 %v6364, %v6364
      %v6406 = vpack.c.bf16 %v6365, %v6365
      %v6407 = vpack.c.bf16 %v6366, %v6366
      %v6408 = vpack.c.bf16 %v6367, %v6367
      %v6409 = vpack.c.bf16 %v6368, %v6368
      %v6410 = vpack.c.bf16 %v6369, %v6369
      %v6411 = vpack.c.bf16 %v6370, %v6370
      %v6412 = vpack.c.bf16 %v6371, %v6371
      %v6413 = vpack.c.bf16 %v6372, %v6372
      %v6414 = vpack.c.bf16 %v6373, %v6373
      %v6415 = vpack.c.bf16 %v6374, %v6374
      %v6416 = vpack.c.bf16 %v6375, %v6375
      %v6417 = vpack.c.bf16 %v6376, %v6376
      %v6418 = vpack.c.bf16 %v6377, %v6377
      %v6419 = vpack.c.bf16 %v6378, %v6378
      %v6420 = vpack.c.bf16 %v6379, %v6379
      %v6421 = vpack.c.bf16 %v6380, %v6380
      %v6422 = vpack.c.bf16 %v6381, %v6381
      %v6423 = vpack.c.bf16 %v6382, %v6382
      %v6424 = vpack.c.bf16 %v6383, %v6383
      %v6425 = vpack.c.bf16 %v6384, %v6384
      %v6426 = vpack.c.bf16 %v6385, %v6385
      %6427 = vst [vmem:[%s317] sm:$0xf] %v6386
      %6428 = vst [vmem:[%s317 + $0x4] sm:$0xf] %v6387
      %6429 = vst [vmem:[%s317 + $0x8] sm:$0xf] %v6388
      %6430 = vst [vmem:[%s317 + $0xc] sm:$0xf] %v6389
      %6431 = vst [vmem:[%s317 + $0x10] sm:$0xf] %v6390
      %6432 = vst [vmem:[%s317 + $0x14] sm:$0xf] %v6391
      %6433 = vst [vmem:[%s317 + $0x18] sm:$0xf] %v6392
      %6434 = vst [vmem:[%s317 + $0x1c] sm:$0xf] %v6393
      %6435 = vst [vmem:[%s317 + $0x20] sm:$0xf] %v6394
      %6436 = vst [vmem:[%s317 + $0x24] sm:$0xf] %v6395
      %6437 = vst [vmem:[%s317 + $0x28] sm:$0xf] %v6396
      %6438 = vst [vmem:[%s317 + $0x2c] sm:$0xf] %v6397
      %6439 = vst [vmem:[%s317 + $0x30] sm:$0xf] %v6398
      %6440 = vst [vmem:[%s317 + $0x34] sm:$0xf] %v6399
      %6441 = vst [vmem:[%s317 + $0x38] sm:$0xf] %v6400
      %6442 = vst [vmem:[%s317 + $0x3c] sm:$0xf] %v6401
      %6443 = vst [vmem:[%s317 + $0x40] sm:$0xf] %v6402
      %6444 = vst [vmem:[%s317 + $0x44] sm:$0xf] %v6403
      %6445 = vst [vmem:[%s317 + $0x48] sm:$0xf] %v6404
      %6446 = vst [vmem:[%s317 + $0x4c] sm:$0xf] %v6405
      %6447 = vst [vmem:[%s317 + $0x50] sm:$0xf] %v6406
      %6448 = vst [vmem:[%s317 + $0x54] sm:$0xf] %v6407
      %6449 = vst [vmem:[%s317 + $0x58] sm:$0xf] %v6408
      %6450 = vst [vmem:[%s317 + $0x5c] sm:$0xf] %v6409
      %6451 = vst [vmem:[%s317 + $0x60] sm:$0xf] %v6410
      %6452 = vst [vmem:[%s317 + $0x64] sm:$0xf] %v6411
      %6453 = vst [vmem:[%s317 + $0x68] sm:$0xf] %v6412
      %6454 = vst [vmem:[%s317 + $0x6c] sm:$0xf] %v6413
      %6455 = vst [vmem:[%s317 + $0x70] sm:$0xf] %v6414
      %6456 = vst [vmem:[%s317 + $0x74] sm:$0xf] %v6415
      %6457 = vst [vmem:[%s317 + $0x78] sm:$0xf] %v6416
      %6458 = vst [vmem:[%s317 + $0x7c] sm:$0xf] %v6417
      %6459 = vst [vmem:[%s317 + $0x80] sm:$0xf] %v6418
      %6460 = vst [vmem:[%s317 + $0x84] sm:$0xf] %v6419
      %6461 = vst [vmem:[%s317 + $0x88] sm:$0xf] %v6420
      %6462 = vst [vmem:[%s317 + $0x8c] sm:$0xf] %v6421
      %6463 = vst [vmem:[%s317 + $0x90] sm:$0xf] %v6422
      %6464 = vst [vmem:[%s317 + $0x94] sm:$0xf] %v6423
      %6465 = vst [vmem:[%s317 + $0x98] sm:$0xf] %v6424
      %6466 = vst [vmem:[%s317 + $0x9c] sm:$0xf] %v6425
      %6467 = vst [vmem:[%s317 + $0xa0] sm:$0xf] %v6426
      %v6468 = vmul.f32 %v6345, %v582
      %v6469 = vmul.f32 %v6346, %v587
      %v6470 = vmul.f32 %v6347, %v592
      %v6471 = vmul.f32 %v6348, %v597
      %v6472 = vmul.f32 %v6349, %v602
      %v6473 = vmul.f32 %v6350, %v607
      %v6474 = vmul.f32 %v6351, %v612
      %v6475 = vmul.f32 %v6352, %v617
      %v6476 = vmul.f32 %v6353, %v622
      %v6477 = vmul.f32 %v6354, %v627
      %v6478 = vmul.f32 %v6355, %v632
      %v6479 = vmul.f32 %v6356, %v637
      %v6480 = vmul.f32 %v6357, %v642
      %v6481 = vmul.f32 %v6358, %v647
      %v6482 = vmul.f32 %v6359, %v652
      %v6483 = vmul.f32 %v6360, %v657
      %v6484 = vmul.f32 %v6361, %v662
      %v6485 = vmul.f32 %v6362, %v667
      %v6486 = vmul.f32 %v6363, %v672
      %v6487 = vmul.f32 %v6364, %v677
      %v6488 = vmul.f32 %v6365, %v682
      %v6489 = vmul.f32 %v6366, %v687
      %v6490 = vmul.f32 %v6367, %v692
      %v6491 = vmul.f32 %v6368, %v697
      %v6492 = vmul.f32 %v6369, %v702
      %v6493 = vmul.f32 %v6370, %v707
      %v6494 = vmul.f32 %v6371, %v712
      %v6495 = vmul.f32 %v6372, %v717
      %v6496 = vmul.f32 %v6373, %v722
      %v6497 = vmul.f32 %v6374, %v727
      %v6498 = vmul.f32 %v6375, %v732
      %v6499 = vmul.f32 %v6376, %v737
      %v6500 = vmul.f32 %v6377, %v742
      %v6501 = vmul.f32 %v6378, %v747
      %v6502 = vmul.f32 %v6379, %v752
      %v6503 = vmul.f32 %v6380, %v757
      %v6504 = vmul.f32 %v6381, %v762
      %v6505 = vmul.f32 %v6382, %v767
      %v6506 = vmul.f32 %v6383, %v772
      %v6507 = vmul.f32 %v6384, %v777
      %v6508 = vmul.f32 %v6385, %v782
      %v6509 = vadd.f32 %v6468, %v6469
      %v6510 = vadd.f32 %v6509, %v6470
      %v6511 = vadd.f32 %v6510, %v6471
      %v6512 = vadd.f32 %v6511, %v6472
      %v6513 = vadd.f32 %v6512, %v6473
      %v6514 = vadd.f32 %v6513, %v6474
      %v6515 = vadd.f32 %v6514, %v6475
      %v6516 = vadd.f32 %v6515, %v6476
      %v6517 = vadd.f32 %v6516, %v6477
      %v6518 = vadd.f32 %v6517, %v6478
      %v6519 = vadd.f32 %v6518, %v6479
      %v6520 = vadd.f32 %v6519, %v6480
      %v6521 = vadd.f32 %v6520, %v6481
      %v6522 = vadd.f32 %v6521, %v6482
      %v6523 = vadd.f32 %v6522, %v6483
      %v6524 = vadd.f32 %v6523, %v6484
      %v6525 = vadd.f32 %v6524, %v6485
      %v6526 = vadd.f32 %v6525, %v6486
      %v6527 = vadd.f32 %v6526, %v6487
      %v6528 = vadd.f32 %v6527, %v6488
      %v6529 = vadd.f32 %v6528, %v6489
      %v6530 = vadd.f32 %v6529, %v6490
      %v6531 = vadd.f32 %v6530, %v6491
      %v6532 = vadd.f32 %v6531, %v6492
      %v6533 = vadd.f32 %v6532, %v6493
      %v6534 = vadd.f32 %v6533, %v6494
      %v6535 = vadd.f32 %v6534, %v6495
      %v6536 = vadd.f32 %v6535, %v6496
      %v6537 = vadd.f32 %v6536, %v6497
      %v6538 = vadd.f32 %v6537, %v6498
      %v6539 = vadd.f32 %v6538, %v6499
      %v6540 = vadd.f32 %v6539, %v6500
      %v6541 = vadd.f32 %v6540, %v6501
      %v6542 = vadd.f32 %v6541, %v6502
      %v6543 = vadd.f32 %v6542, %v6503
      %v6544 = vadd.f32 %v6543, %v6504
      %v6545 = vadd.f32 %v6544, %v6505
      %v6546 = vadd.f32 %v6545, %v6506
      %v6547 = vadd.f32 %v6546, %v6507
      %v6548 = vadd.f32 %v6547, %v6508
      %v6549 = vrot.slane %v6548, 4
      %v6550 = vadd.f32 %v6548, %v6549
      %v6551 = vrot.slane %v6550, 2
      %v6552 = vadd.f32 %v6550, %v6551
      %v6553 = vrot.slane %v6552, 1
      %v6554 = vadd.f32 %v6552, %v6553
      %6555 = vst [vmem:[%s320] sm:$0x1] %v6554
      %v6556 = vmul.f32 %v6345, %v6468
      %v6557 = vmul.f32 %v6346, %v6469
      %v6558 = vmul.f32 %v6347, %v6470
      %v6559 = vmul.f32 %v6348, %v6471
      %v6560 = vmul.f32 %v6349, %v6472
      %v6561 = vmul.f32 %v6350, %v6473
      %v6562 = vmul.f32 %v6351, %v6474
      %v6563 = vmul.f32 %v6352, %v6475
      %v6564 = vmul.f32 %v6353, %v6476
      %v6565 = vmul.f32 %v6354, %v6477
      %v6566 = vmul.f32 %v6355, %v6478
      %v6567 = vmul.f32 %v6356, %v6479
      %v6568 = vmul.f32 %v6357, %v6480
      %v6569 = vmul.f32 %v6358, %v6481
      %v6570 = vmul.f32 %v6359, %v6482
      %v6571 = vmul.f32 %v6360, %v6483
      %v6572 = vmul.f32 %v6361, %v6484
      %v6573 = vmul.f32 %v6362, %v6485
      %v6574 = vmul.f32 %v6363, %v6486
      %v6575 = vmul.f32 %v6364, %v6487
      %v6576 = vmul.f32 %v6365, %v6488
      %v6577 = vmul.f32 %v6366, %v6489
      %v6578 = vmul.f32 %v6367, %v6490
      %v6579 = vmul.f32 %v6368, %v6491
      %v6580 = vmul.f32 %v6369, %v6492
      %v6581 = vmul.f32 %v6370, %v6493
      %v6582 = vmul.f32 %v6371, %v6494
      %v6583 = vmul.f32 %v6372, %v6495
      %v6584 = vmul.f32 %v6373, %v6496
      %v6585 = vmul.f32 %v6374, %v6497
      %v6586 = vmul.f32 %v6375, %v6498
      %v6587 = vmul.f32 %v6376, %v6499
      %v6588 = vmul.f32 %v6377, %v6500
      %v6589 = vmul.f32 %v6378, %v6501
      %v6590 = vmul.f32 %v6379, %v6502
      %v6591 = vmul.f32 %v6380, %v6503
      %v6592 = vmul.f32 %v6381, %v6504
      %v6593 = vmul.f32 %v6382, %v6505
      %v6594 = vmul.f32 %v6383, %v6506
      %v6595 = vmul.f32 %v6384, %v6507
      %v6596 = vmul.f32 %v6385, %v6508
      %v6597 = vadd.f32 %v6556, %v6557
      %v6598 = vadd.f32 %v6597, %v6558
      %v6599 = vadd.f32 %v6598, %v6559
      %v6600 = vadd.f32 %v6599, %v6560
      %v6601 = vadd.f32 %v6600, %v6561
      %v6602 = vadd.f32 %v6601, %v6562
      %v6603 = vadd.f32 %v6602, %v6563
      %v6604 = vadd.f32 %v6603, %v6564
      %v6605 = vadd.f32 %v6604, %v6565
      %v6606 = vadd.f32 %v6605, %v6566
      %v6607 = vadd.f32 %v6606, %v6567
      %v6608 = vadd.f32 %v6607, %v6568
      %v6609 = vadd.f32 %v6608, %v6569
      %v6610 = vadd.f32 %v6609, %v6570
      %v6611 = vadd.f32 %v6610, %v6571
      %v6612 = vadd.f32 %v6611, %v6572
      %v6613 = vadd.f32 %v6612, %v6573
      %v6614 = vadd.f32 %v6613, %v6574
      %v6615 = vadd.f32 %v6614, %v6575
      %v6616 = vadd.f32 %v6615, %v6576
      %v6617 = vadd.f32 %v6616, %v6577
      %v6618 = vadd.f32 %v6617, %v6578
      %v6619 = vadd.f32 %v6618, %v6579
      %v6620 = vadd.f32 %v6619, %v6580
      %v6621 = vadd.f32 %v6620, %v6581
      %v6622 = vadd.f32 %v6621, %v6582
      %v6623 = vadd.f32 %v6622, %v6583
      %v6624 = vadd.f32 %v6623, %v6584
      %v6625 = vadd.f32 %v6624, %v6585
      %v6626 = vadd.f32 %v6625, %v6586
      %v6627 = vadd.f32 %v6626, %v6587
      %v6628 = vadd.f32 %v6627, %v6588
      %v6629 = vadd.f32 %v6628, %v6589
      %v6630 = vadd.f32 %v6629, %v6590
      %v6631 = vadd.f32 %v6630, %v6591
      %v6632 = vadd.f32 %v6631, %v6592
      %v6633 = vadd.f32 %v6632, %v6593
      %v6634 = vadd.f32 %v6633, %v6594
      %v6635 = vadd.f32 %v6634, %v6595
      %v6636 = vadd.f32 %v6635, %v6596
      %v6637 = vrot.slane %v6636, 4
      %v6638 = vadd.f32 %v6636, %v6637
      %v6639 = vrot.slane %v6638, 2
      %v6640 = vadd.f32 %v6638, %v6639
      %v6641 = vrot.slane %v6640, 1
      %v6642 = vadd.f32 %v6640, %v6641
      %6643 = vst [vmem:[%s323] sm:$0x1] %v6642
      %p6644 = scmp.lt.s32.totalorder %s19, 1
      %s6645 = scalar_select %p6644, %s19, 1
      %s6646 = smul.addr %s6645, 41
      %s6647 = smul.addr %s6646, 4
      %s6648 = scalar_lea.vmem %s5, %s6647
      %p6649 = scmp.lt.s32.totalorder %s19, 1
      %s6650 = scalar_select %p6649, %s19, 1
      %s6651 = scalar_lea.vmem %s6, %s6650
      %p6652 = scmp.lt.s32.totalorder %s19, 1
      %s6653 = scalar_select %p6652, %s19, 1
      %s6654 = scalar_lea.vmem %s7, %s6653
      // Predicated region
      $region41: #{_forward_impl.5} parent=39 // pred_check
        %p6655 = pneg %p157
      $region42: #{_forward_impl.5} parent=39 // pred_check_branch
        %6657 = sbr.rel (%p6655) target = $region44
      $region43: #{_forward_impl.5} parent=39 // pred_region
        _
      $region44: #{_forward_impl.5} parent=39 // pred_fallthru
        _
      // Predicated region
      $region45: #{_forward_impl.5} parent=39 // pred_check
        %p6658 = pneg %p183
      $region46: #{_forward_impl.5} parent=39 // pred_check_branch
        %6660 = sbr.rel (%p6658) target = $region48
      $region47: #{_forward_impl.5} parent=39 // pred_region
        _
      $region48: #{_forward_impl.5} parent=39 // pred_fallthru
        _
      // Predicated region
      $region49: #{_forward_impl.5} parent=39 // pred_check
        %p6661 = pneg %p209
      $region50: #{_forward_impl.5} parent=39 // pred_check_branch
        %6663 = sbr.rel (%p6661) target = $region52
      $region51: #{_forward_impl.5} parent=39 // pred_region
        _
      $region52: #{_forward_impl.5} parent=39 // pred_fallthru
        _
    $region40: #{_forward_impl.5} parent=5 // pred_fallthru
      _
    %p6664 = scmp.le.s32.totalorder 2, %s14
    // Predicated region
    $region53: #{_forward_impl.5} parent=5 // pred_check
      %p6665 = pneg %p6664
    $region54: #{_forward_impl.5} parent=5 // pred_check_branch
      %6667 = sbr.rel (%p6665) target = $region56
    $region55: #{_forward_impl.5} parent=5 // pred_region
      %s6668 = ssub.s32 %s14, 2
      // Predicated region
      $region57: #{_forward_impl.5} parent=55 // pred_check
        %p6669 = pneg %p163
      $region58: #{_forward_impl.5} parent=55 // pred_check_branch
        %6671 = sbr.rel (%p6669) target = $region60
      $region59: #{_forward_impl.5} parent=55 // pred_region
        %p6672 = scmp.lt.s32.totalorder %s20, 1
        %s6673 = scalar_select %p6672, %s20, 1
        %s6674 = smul.addr %s6673, 41
        %s6675 = smul.addr %s6674, 4
        %s6676 = scalar_lea.vmem %s5, %s6675
      $region60: #{_forward_impl.5} parent=55 // pred_fallthru
        _
      // Predicated region
      $region61: #{_forward_impl.5} parent=55 // pred_check
        %p6677 = pneg %p189
      $region62: #{_forward_impl.5} parent=55 // pred_check_branch
        %6679 = sbr.rel (%p6677) target = $region64
      $region63: #{_forward_impl.5} parent=55 // pred_region
        %p6680 = scmp.lt.s32.totalorder %s20, 1
        %s6681 = scalar_select %p6680, %s20, 1
        %s6682 = scalar_lea.vmem %s6, %s6681
      $region64: #{_forward_impl.5} parent=55 // pred_fallthru
        _
      // Predicated region
      $region65: #{_forward_impl.5} parent=55 // pred_check
        %p6683 = pneg %p215
      $region66: #{_forward_impl.5} parent=55 // pred_check_branch
        %6685 = sbr.rel (%p6683) target = $region68
      $region67: #{_forward_impl.5} parent=55 // pred_region
        %p6686 = scmp.lt.s32.totalorder %s20, 1
        %s6687 = scalar_select %p6686, %s20, 1
        %s6688 = scalar_lea.vmem %s7, %s6687
      $region68: #{_forward_impl.5} parent=55 // pred_fallthru
        _
    $region56: #{_forward_impl.5} parent=5 // pred_fallthru
      _
  $region6: #{_forward_impl.5} parent=0 // loop_footer
    %s18 = sadd.s32 1, %s14
  $region7: #{_forward_impl.5} parent=0 // loop_footer_branch
    %13 = sbr.rel target = $region3
  $region8: #{_forward_impl.5} parent=0 // loop_exit
    _

</llo_original>
